<compile_context>
chip_gen: v5e
topology: v5e:2x2
jax: 0.10.0
libtpu: 0.0.40
codegen_flags: <defaults>
</compile_context>

<pallas_src>
import numpy as np

import jax
import jax.numpy as jnp
from jax.experimental import pallas as pl
from jax.experimental.pallas import tpu as pltpu

# ----------------------------- configuration ------------------------------
B = 2                     # batch
GAZE_SEQ_SIZE = 16        # gazeSeqLength = 8  (2 features / step)
HEAD_SEQ_SIZE = 16        # headSeqLength = 8
OBJECT_SEQ_SIZE = 96      # objectSeqLength = 8 (12 features / step)
SALIENCY_NUM = 2
SALIENCY_WIDTH = 24       # hard-coded in the module
SALIENCY_SIZE = SALIENCY_NUM * SALIENCY_WIDTH * SALIENCY_WIDTH  # 1152
CLUSTER_SIZE = 16
D_IN = GAZE_SEQ_SIZE + HEAD_SEQ_SIZE + OBJECT_SEQ_SIZE + SALIENCY_SIZE  # 1280

GAZE_L = GAZE_SEQ_SIZE // 2          # 8
HEAD_L = HEAD_SEQ_SIZE // 2          # 8
OBJ_L = OBJECT_SEQ_SIZE // 12        # 8
SAL_HALF = SALIENCY_WIDTH // 2       # 12
SAL_POS = SAL_HALF * SAL_HALF        # 144

GAZE_OUT = (GAZE_L // 2) * 32        # 128
HEAD_OUT = (HEAD_L // 2) * 64        # 256
OBJ_OUT = (OBJ_L // 4) * 32          # 64
SAL_OUT = SAL_POS * 8                # 1152
PRD_IN = GAZE_OUT + HEAD_OUT + OBJ_OUT + SAL_OUT  # 1600
PRD_H = 128
EPS = 1e-5

GAZE_OFF = 0
HEAD_OFF = GAZE_OUT                  # 128
OBJ_OFF = HEAD_OFF + HEAD_OUT        # 384
SAL_OFF = OBJ_OFF + OBJ_OUT          # 448


# ------------------------------ fused kernel ------------------------------
def _sigmoid(v):
    return 1.0 / (1.0 + jnp.exp(-v))


def fixation_net_kernel(
    gi_ref, hi_ref, oi_ref, si_ref,
    gw_ref, gs_ref, gt_ref,
    hw_ref, hs_ref, ht_ref,
    ow1_ref, os1_ref, ot1_ref,
    ow2_ref, os2_ref, ot2_ref,
    sw_ref, ss_ref, st_ref,
    w1_ref, f1s_ref, f1t_ref,
    w2_ref, b2_ref, cl_ref,
    out_ref,
):
    b = out_ref.shape[0]

    # fc1 partial matmul against a statically sliced row block of the
    # pre-permuted bf16 fc1 weight.  These partials replace the PyTorch
    # concat + channel-major reshape; the permutation was folded into the
    # weight rows offline.
    def fc1_partial(act, row_off, rows):
        return jnp.dot(act.astype(jnp.bfloat16),
                       w1_ref[row_off:row_off + rows, :],
                       preferred_element_type=jnp.float32)

    # Pointwise (k=1) conv as VPU broadcast-FMA (K = 2..12 would leave the
    # MXU almost empty).
    def conv_k1(x, w_ref, cin):
        acc = x[:, 0:1] * w_ref[0:1, :]
        for c in range(1, cin):
            acc = acc + x[:, c:c + 1] * w_ref[c:c + 1, :]
        return acc

    # conv + folded BN + Sigmoid for one pooled output position; the two
    # pool-window elements live on the leading axis of the input.
    def seq_piece(x_ref, pos, w_ref, s_ref, t_ref, cin):
        a0 = _sigmoid(conv_k1(x_ref[0, pos], w_ref, cin) * s_ref[...] + t_ref[...])
        a1 = _sigmoid(conv_k1(x_ref[1, pos], w_ref, cin) * s_ref[...] + t_ref[...])
        return jnp.maximum(a0, a1)

    acc = jnp.zeros((b, PRD_H), jnp.float32)

    # ---- gaze branch: Conv1d(2->32,k=1) + BN + Sigmoid + MaxPool1d(2) ----
    for pos in range(GAZE_L // 2):
        piece = seq_piece(gi_ref, pos, gw_ref, gs_ref, gt_ref, 2)        # (b, 32)
        acc = acc + fc1_partial(piece, GAZE_OFF + pos * 32, 32)

    # ---- head branch: Conv1d(2->64,k=1) + BN + Sigmoid + MaxPool1d(2) ----
    for pos in range(HEAD_L // 2):
        piece = seq_piece(hi_ref, pos, hw_ref, hs_ref, ht_ref, 2)        # (b, 64)
        acc = acc + fc1_partial(piece, HEAD_OFF + pos * 64, 64)

    # ---- object branch: two (conv k=1 + BN + Sigmoid + MaxPool(2)) stages ----
    stage2 = []
    for pos in range(OBJ_L // 2):
        piece1 = seq_piece(oi_ref, pos, ow1_ref, os1_ref, ot1_ref, 12)   # (b, 64)
        z = jnp.dot(piece1, ow2_ref[...], preferred_element_type=jnp.float32)
        stage2.append(_sigmoid(z * os2_ref[...] + ot2_ref[...]))         # (b, 32)
    for m in range(OBJ_L // 4):
        pooled = jnp.maximum(stage2[2 * m], stage2[2 * m + 1])
        acc = acc + fc1_partial(pooled, OBJ_OFF + m * 32, 32)

    # ---- saliency branch: Conv2d(2->8,k=1) + BN + ReLU + MaxPool2d(2) ----
    # Per output channel on the VPU; conv / BN parameters read as SMEM scalars.
    for co in range(8):
        w0 = sw_ref[0, co]
        w1c = sw_ref[1, co]
        sc = ss_ref[0, co]
        sh = st_ref[0, co]
        pooled = None
        for q in range(4):                                              # 2x2 window
            lin = si_ref[q, 0] * w0 + si_ref[q, 1] * w1c                # (b, 144)
            a = jnp.maximum(lin * sc + sh, 0.0)
            pooled = a if pooled is None else jnp.maximum(pooled, a)
        acc = acc + fc1_partial(pooled, SAL_OFF + co * SAL_POS, SAL_POS)

    # ---- prediction head: BN + Sigmoid, Linear, Softmax, cluster matmul ----
    # (both Dropout layers are identity at inference)
    hdn = _sigmoid(acc * f1s_ref[...] + f1t_ref[...])                    # (b, 128)
    logits = jnp.dot(hdn, w2_ref[...], preferred_element_type=jnp.float32) + b2_ref[...]
    mx = jnp.max(logits, axis=1, keepdims=True)
    e = jnp.exp(logits - mx)
    prob = e / jnp.sum(e, axis=1, keepdims=True)
    out_ref[...] = jnp.dot(prob, cl_ref[...],
                           preferred_element_type=jnp.float32).astype(out_ref.dtype)


# ------------------------------ parameters --------------------------------
def make_params(key):
    keys = iter(jax.random.split(key, 64))
    nk = lambda: next(keys)

    def conv_bn(cin, cout):
        w = 0.1 * jax.random.normal(nk(), (cin, cout), jnp.float32)
        bias = 0.1 * jax.random.normal(nk(), (cout,), jnp.float32)
        gamma = 1.0 + 0.1 * jax.random.normal(nk(), (cout,), jnp.float32)
        beta = 0.1 * jax.random.normal(nk(), (cout,), jnp.float32)
        mean = 0.1 * jax.random.normal(nk(), (cout,), jnp.float32)
        var = 0.5 + jax.random.uniform(nk(), (cout,), jnp.float32)
        scale = gamma / jnp.sqrt(var + EPS)         # folded eval-mode BN
        shift = (bias - mean) * scale + beta
        return w, scale, shift

    p = {}
    p["gaze_w"], p["gaze_s"], p["gaze_t"] = conv_bn(2, 32)
    p["head_w"], p["head_s"], p["head_t"] = conv_bn(2, 64)
    p["obj_w1"], p["obj_s1"], p["obj_t1"] = conv_bn(12, 64)
    p["obj_w2"], p["obj_s2"], p["obj_t2"] = conv_bn(64, 32)
    p["sal_w"], p["sal_s"], p["sal_t"] = conv_bn(SALIENCY_NUM, 8)
    fc1_w, p["fc1_s"], p["fc1_t"] = conv_bn(PRD_IN, PRD_H)   # Linear + BN1d folded
    # The deployed fc1 weight is stored in bf16 (it dominates HBM traffic);
    # keep the f32 master copy rounded so reference and kernel use identical values.
    p["fc1_w"] = fc1_w.astype(jnp.bfloat16).astype(jnp.float32)
    p["fc2_w"] = 0.1 * jax.random.normal(nk(), (PRD_H, CLUSTER_SIZE), jnp.float32)
    p["fc2_b"] = 0.1 * jax.random.normal(nk(), (CLUSTER_SIZE,), jnp.float32)
    p["cluster"] = jax.random.normal(nk(), (CLUSTER_SIZE, 2), jnp.float32)
    return p


def _fc1_row_permutation():
    """kernel row j -> PyTorch prd_in row (layout permutation folded into fc1_w)."""
    perm = np.zeros(PRD_IN, dtype=np.int64)
    j = np.arange(GAZE_OUT)                       # kernel: pos*32 + ch,  torch: ch*4 + pos
    perm[j] = (j % 32) * 4 + (j // 32)
    j = np.arange(HEAD_OUT)                       # kernel: pos*64 + ch,  torch: ch*4 + pos
    perm[HEAD_OFF + j] = HEAD_OFF + (j % 64) * 4 + (j // 64)
    j = np.arange(OBJ_OUT)                        # kernel: pos*32 + ch,  torch: ch*2 + pos
    perm[OBJ_OFF + j] = OBJ_OFF + (j % 32) * 2 + (j // 32)
    perm[SAL_OFF:] = np.arange(SAL_OFF, PRD_IN)   # saliency: both channel-major
    return perm


def prepare_kernel_params(p):
    """One-time offline transform: permute + bf16-cast fc1_w, reshape row params."""
    kp = dict(p)
    kp["fc1_w"] = p["fc1_w"][_fc1_row_permutation(), :].astype(jnp.bfloat16)
    for name in ["gaze_s", "gaze_t", "head_s", "head_t",
                 "obj_s1", "obj_t1", "obj_s2", "obj_t2",
                 "sal_s", "sal_t", "fc1_s", "fc1_t", "fc2_b"]:
        kp[name] = p[name].reshape(1, -1)
    # kp["sal_w"] stays (2, 8) for SMEM scalar reads.
    return kp


# ------------------------------ forward (wrapper + kernel) ----------------
def fixation_net_forward(x, kp):
    b = x.shape[0]
    i0 = GAZE_SEQ_SIZE
    i1 = i0 + HEAD_SEQ_SIZE
    i2 = i1 + OBJECT_SEQ_SIZE
    gaze = x[:, :i0]
    head = x[:, i0:i1]
    obj = x[:, i1:i2]
    sal = x[:, i2:]

    # Cheap input-layout prep (a few KB): pool window on the leading axis and
    # pooled positions separated, so the kernel never slices register sublanes.
    g_in = gaze.reshape(b, GAZE_L // 2, 2, 2).transpose(2, 1, 0, 3)        # (2,4,b,2)
    h_in = head.reshape(b, HEAD_L // 2, 2, 2).transpose(2, 1, 0, 3)        # (2,4,b,2)
    o_in = obj.reshape(b, OBJ_L // 2, 2, 12).transpose(2, 1, 0, 3)         # (2,4,b,12)
    s_in = sal.reshape(b, SALIENCY_NUM, SAL_HALF, 2, SAL_HALF, 2)
    s_in = s_in.transpose(3, 5, 1, 0, 2, 4).reshape(4, SALIENCY_NUM, b, SAL_POS)

    args = (
        g_in, h_in, o_in, s_in,
        kp["gaze_w"], kp["gaze_s"], kp["gaze_t"],
        kp["head_w"], kp["head_s"], kp["head_t"],
        kp["obj_w1"], kp["obj_s1"], kp["obj_t1"],
        kp["obj_w2"], kp["obj_s2"], kp["obj_t2"],
        kp["sal_w"], kp["sal_s"], kp["sal_t"],
        kp["fc1_w"], kp["fc1_s"], kp["fc1_t"],
        kp["fc2_w"], kp["fc2_b"], kp["cluster"],
    )
    smem_idx = (16, 17, 18)   # sal_w, sal_s, sal_t: scalar tables -> SMEM

    def vspec(shape):
        return pl.BlockSpec(shape, lambda i: (0,) * len(shape))

    in_specs = [
        pl.BlockSpec(memory_space=pltpu.MemorySpace.SMEM) if idx in smem_idx
        else vspec(a.shape)
        for idx, a in enumerate(args)
    ]

    return pl.pallas_call(
        fixation_net_kernel,
        out_shape=jax.ShapeDtypeStruct((b, 2), jnp.float32),
        grid=(1,),
        in_specs=in_specs,
        out_specs=pl.BlockSpec((b, 2), lambda i: (0, 0)),
        compiler_params=pltpu.CompilerParams(dimension_semantics=("arbitrary",)),
    )(*args)


# ------------------------------ pure-JAX reference ------------------------
def reference_forward(x, p):
    b = x.shape[0]

    def conv_bn_sig(x_ncl, w, scale, shift):
        y = jnp.einsum("bcl,cd->bdl", x_ncl, w)
        y = y * scale.reshape(1, -1, 1) + shift.reshape(1, -1, 1)
        return jax.nn.sigmoid(y)

    def pool1d(y):
        bb, c, l = y.shape
        return y.reshape(bb, c, l // 2, 2).max(axis=-1)

    i0 = GAZE_SEQ_SIZE
    i1 = i0 + HEAD_SEQ_SIZE
    i2 = i1 + OBJECT_SEQ_SIZE
    gaze = x[:, :i0]
    head = x[:, i0:i1]
    obj = x[:, i1:i2]
    sal = x[:, i2:]

    g = gaze.reshape(-1, GAZE_L, 2).transpose(0, 2, 1)
    g = pool1d(conv_bn_sig(g, p["gaze_w"], p["gaze_s"], p["gaze_t"])).reshape(b, -1)

    h = head.reshape(-1, HEAD_L, 2).transpose(0, 2, 1)
    h = pool1d(conv_bn_sig(h, p["head_w"], p["head_s"], p["head_t"])).reshape(b, -1)

    o = obj.reshape(-1, OBJ_L, 12).transpose(0, 2, 1)
    o = pool1d(conv_bn_sig(o, p["obj_w1"], p["obj_s1"], p["obj_t1"]))
    o = pool1d(conv_bn_sig(o, p["obj_w2"], p["obj_s2"], p["obj_t2"])).reshape(b, -1)

    s = sal.reshape(-1, SALIENCY_NUM, SALIENCY_WIDTH, SALIENCY_WIDTH)
    sy = jnp.einsum("bchw,cd->bdhw", s, p["sal_w"])
    sy = jnp.maximum(sy * p["sal_s"].reshape(1, -1, 1, 1)
                     + p["sal_t"].reshape(1, -1, 1, 1), 0.0)
    sy = sy.reshape(-1, 8, SAL_HALF, 2, SAL_HALF, 2).max(axis=(3, 5)).reshape(b, -1)

    z = jnp.concatenate([g, h, o, sy], axis=1)                # (B, 1600), torch order
    z = jax.nn.sigmoid(z @ p["fc1_w"] * p["fc1_s"] + p["fc1_t"])
    logits = z @ p["fc2_w"] + p["fc2_b"]
    prob = jax.nn.softmax(logits, axis=1)
    return prob @ p["cluster"]


# ------------------------------ main ---------------------------------------
if __name__ == "__main__":
    key = jax.random.PRNGKey(0)
    pkey, xkey = jax.random.split(key)
    params = make_params(pkey)
    kparams = prepare_kernel_params(params)
    x = jax.random.normal(xkey, (B, D_IN), jnp.float32)

    fwd = jax.jit(fixation_net_forward)
    out = jax.block_until_ready(fwd(x, kparams))

    ref = reference_forward(x, params)
    assert out.shape == (B, 2), out.shape
    max_diff = float(jnp.max(jnp.abs(out - ref)))
    # fc1 runs in bf16 on the MXU (f32 accumulation); tolerance reflects only
    # that rounding -- weights are identical bf16-rounded values on both sides.
    assert jnp.allclose(out, ref, rtol=1e-2, atol=2e-2), f"mismatch: max abs diff {max_diff}"

    print("KERNEL_OK")
</pallas_src>

<mosaic_0001>
module attributes {stable_mosaic.version = 11 : i64} {
  func.func @fixation_net_kernel(%arg0: i32, %arg1: memref<2x4x2x2xf32, #tpu.memory_space<vmem>>, %arg2: memref<2x4x2x2xf32, #tpu.memory_space<vmem>>, %arg3: memref<2x4x2x12xf32, #tpu.memory_space<vmem>>, %arg4: memref<4x2x2x144xf32, #tpu.memory_space<vmem>>, %arg5: memref<2x32xf32, #tpu.memory_space<vmem>>, %arg6: memref<1x32xf32, #tpu.memory_space<vmem>>, %arg7: memref<1x32xf32, #tpu.memory_space<vmem>>, %arg8: memref<2x64xf32, #tpu.memory_space<vmem>>, %arg9: memref<1x64xf32, #tpu.memory_space<vmem>>, %arg10: memref<1x64xf32, #tpu.memory_space<vmem>>, %arg11: memref<12x64xf32, #tpu.memory_space<vmem>>, %arg12: memref<1x64xf32, #tpu.memory_space<vmem>>, %arg13: memref<1x64xf32, #tpu.memory_space<vmem>>, %arg14: memref<64x32xf32, #tpu.memory_space<vmem>>, %arg15: memref<1x32xf32, #tpu.memory_space<vmem>>, %arg16: memref<1x32xf32, #tpu.memory_space<vmem>>, %arg17: memref<2x8xf32, #tpu.memory_space<smem>>, %arg18: memref<1x8xf32, #tpu.memory_space<smem>>, %arg19: memref<1x8xf32, #tpu.memory_space<smem>>, %arg20: memref<1600x128xbf16, #tpu.memory_space<vmem>>, %arg21: memref<1x128xf32, #tpu.memory_space<vmem>>, %arg22: memref<1x128xf32, #tpu.memory_space<vmem>>, %arg23: memref<128x16xf32, #tpu.memory_space<vmem>>, %arg24: memref<1x16xf32, #tpu.memory_space<vmem>>, %arg25: memref<16x2xf32, #tpu.memory_space<vmem>>, %arg26: memref<2x2xf32, #tpu.memory_space<vmem>>) attributes {dimension_semantics = [#tpu.dimension_semantics<arbitrary>], iteration_bounds = array<i64: 1>, scalar_prefetch = 0 : i64, scratch_operands = 0 : i64, tpu.core_type = #tpu.core_type<tc>, window_params = [{pipeline_mode = #tpu.pipeline_mode<synchronous>, transform_indices = @transform_0, window_bounds = array<i64: 2, 4, 2, 2>}, {pipeline_mode = #tpu.pipeline_mode<synchronous>, transform_indices = @transform_1, window_bounds = array<i64: 2, 4, 2, 2>}, {pipeline_mode = #tpu.pipeline_mode<synchronous>, transform_indices = @transform_2, window_bounds = array<i64: 2, 4, 2, 12>}, {pipeline_mode = #tpu.pipeline_mode<synchronous>, transform_indices = @transform_3, window_bounds = array<i64: 4, 2, 2, 144>}, {pipeline_mode = #tpu.pipeline_mode<synchronous>, transform_indices = @transform_4, window_bounds = array<i64: 2, 32>}, {pipeline_mode = #tpu.pipeline_mode<synchronous>, transform_indices = @transform_5, window_bounds = array<i64: 1, 32>}, {pipeline_mode = #tpu.pipeline_mode<synchronous>, transform_indices = @transform_6, window_bounds = array<i64: 1, 32>}, {pipeline_mode = #tpu.pipeline_mode<synchronous>, transform_indices = @transform_7, window_bounds = array<i64: 2, 64>}, {pipeline_mode = #tpu.pipeline_mode<synchronous>, transform_indices = @transform_8, window_bounds = array<i64: 1, 64>}, {pipeline_mode = #tpu.pipeline_mode<synchronous>, transform_indices = @transform_9, window_bounds = array<i64: 1, 64>}, {pipeline_mode = #tpu.pipeline_mode<synchronous>, transform_indices = @transform_10, window_bounds = array<i64: 12, 64>}, {pipeline_mode = #tpu.pipeline_mode<synchronous>, transform_indices = @transform_11, window_bounds = array<i64: 1, 64>}, {pipeline_mode = #tpu.pipeline_mode<synchronous>, transform_indices = @transform_12, window_bounds = array<i64: 1, 64>}, {pipeline_mode = #tpu.pipeline_mode<synchronous>, transform_indices = @transform_13, window_bounds = array<i64: 64, 32>}, {pipeline_mode = #tpu.pipeline_mode<synchronous>, transform_indices = @transform_14, window_bounds = array<i64: 1, 32>}, {pipeline_mode = #tpu.pipeline_mode<synchronous>, transform_indices = @transform_15, window_bounds = array<i64: 1, 32>}, {transform_indices = @transform_16, window_bounds = array<i64: 2, 8>}, {transform_indices = @transform_17, window_bounds = array<i64: 1, 8>}, {transform_indices = @transform_18, window_bounds = array<i64: 1, 8>}, {pipeline_mode = #tpu.pipeline_mode<synchronous>, transform_indices = @transform_19, window_bounds = array<i64: 1600, 128>}, {pipeline_mode = #tpu.pipeline_mode<synchronous>, transform_indices = @transform_20, window_bounds = array<i64: 1, 128>}, {pipeline_mode = #tpu.pipeline_mode<synchronous>, transform_indices = @transform_21, window_bounds = array<i64: 1, 128>}, {pipeline_mode = #tpu.pipeline_mode<synchronous>, transform_indices = @transform_22, window_bounds = array<i64: 128, 16>}, {pipeline_mode = #tpu.pipeline_mode<synchronous>, transform_indices = @transform_23, window_bounds = array<i64: 1, 16>}, {pipeline_mode = #tpu.pipeline_mode<synchronous>, transform_indices = @transform_24, window_bounds = array<i64: 16, 2>}, {pipeline_mode = #tpu.pipeline_mode<synchronous>, transform_indices = @transform_25, window_bounds = array<i64: 2, 2>}]} {
    %cst = arith.constant 0.000000e+00 : f32
    %0 = vector.broadcast %cst : f32 to vector<2x128xf32>
    %c0 = arith.constant 0 : index
    %c0_0 = arith.constant 0 : index
    %c0_1 = arith.constant 0 : index
    %c0_2 = arith.constant 0 : index
    %1 = vector.load %arg1[%c0, %c0_0, %c0_1, %c0_2] : memref<2x4x2x2xf32, #tpu.memory_space<vmem>>, vector<1x1x2x2xf32>
    %2 = vector.shape_cast %1 : vector<1x1x2x2xf32> to vector<2x2xf32>
    %3 = vector.extract_strided_slice %2 {offsets = [0, 0], sizes = [2, 1], strides = [1, 1]} : vector<2x2xf32> to vector<2x1xf32>
    %c0_3 = arith.constant 0 : index
    %c0_4 = arith.constant 0 : index
    %4 = vector.load %arg5[%c0_3, %c0_4] : memref<2x32xf32, #tpu.memory_space<vmem>>, vector<1x32xf32>
    %5 = vector.broadcast %3 : vector<2x1xf32> to vector<2x32xf32>
    %6 = vector.broadcast %4 : vector<1x32xf32> to vector<2x32xf32>
    %7 = arith.mulf %5, %6 : vector<2x32xf32>
    %8 = vector.extract_strided_slice %2 {offsets = [0, 1], sizes = [2, 1], strides = [1, 1]} : vector<2x2xf32> to vector<2x1xf32>
    %c1 = arith.constant 1 : index
    %c0_5 = arith.constant 0 : index
    %9 = vector.load %arg5[%c1, %c0_5] : memref<2x32xf32, #tpu.memory_space<vmem>>, vector<1x32xf32>
    %10 = vector.broadcast %8 : vector<2x1xf32> to vector<2x32xf32>
    %11 = vector.broadcast %9 : vector<1x32xf32> to vector<2x32xf32>
    %12 = arith.mulf %10, %11 : vector<2x32xf32>
    %13 = arith.addf %7, %12 : vector<2x32xf32>
    %c0_6 = arith.constant 0 : index
    %c0_7 = arith.constant 0 : index
    %14 = vector.load %arg6[%c0_6, %c0_7] : memref<1x32xf32, #tpu.memory_space<vmem>>, vector<1x32xf32>
    %15 = vector.broadcast %14 : vector<1x32xf32> to vector<2x32xf32>
    %16 = arith.mulf %13, %15 : vector<2x32xf32>
    %c0_8 = arith.constant 0 : index
    %c0_9 = arith.constant 0 : index
    %17 = vector.load %arg7[%c0_8, %c0_9] : memref<1x32xf32, #tpu.memory_space<vmem>>, vector<1x32xf32>
    %18 = vector.broadcast %17 : vector<1x32xf32> to vector<2x32xf32>
    %19 = arith.addf %16, %18 : vector<2x32xf32>
    %cst_10 = arith.constant 0.000000e+00 : f32
    %20 = vector.broadcast %cst_10 : f32 to vector<2x32xf32>
    %21 = arith.subf %20, %19 : vector<2x32xf32>
    %22 = math.exp %21 : vector<2x32xf32>
    %cst_11 = arith.constant 1.000000e+00 : f32
    %23 = vector.broadcast %cst_11 : f32 to vector<2x32xf32>
    %24 = arith.addf %23, %22 : vector<2x32xf32>
    %cst_12 = arith.constant 1.000000e+00 : f32
    %25 = vector.broadcast %cst_12 : f32 to vector<2x32xf32>
    %26 = arith.divf %25, %24 : vector<2x32xf32>
    %c1_13 = arith.constant 1 : index
    %c0_14 = arith.constant 0 : index
    %c0_15 = arith.constant 0 : index
    %c0_16 = arith.constant 0 : index
    %27 = vector.load %arg1[%c1_13, %c0_14, %c0_15, %c0_16] : memref<2x4x2x2xf32, #tpu.memory_space<vmem>>, vector<1x1x2x2xf32>
    %28 = vector.shape_cast %27 : vector<1x1x2x2xf32> to vector<2x2xf32>
    %29 = vector.extract_strided_slice %28 {offsets = [0, 0], sizes = [2, 1], strides = [1, 1]} : vector<2x2xf32> to vector<2x1xf32>
    %c0_17 = arith.constant 0 : index
    %c0_18 = arith.constant 0 : index
    %30 = vector.load %arg5[%c0_17, %c0_18] : memref<2x32xf32, #tpu.memory_space<vmem>>, vector<1x32xf32>
    %31 = vector.broadcast %29 : vector<2x1xf32> to vector<2x32xf32>
    %32 = vector.broadcast %30 : vector<1x32xf32> to vector<2x32xf32>
    %33 = arith.mulf %31, %32 : vector<2x32xf32>
    %34 = vector.extract_strided_slice %28 {offsets = [0, 1], sizes = [2, 1], strides = [1, 1]} : vector<2x2xf32> to vector<2x1xf32>
    %c1_19 = arith.constant 1 : index
    %c0_20 = arith.constant 0 : index
    %35 = vector.load %arg5[%c1_19, %c0_20] : memref<2x32xf32, #tpu.memory_space<vmem>>, vector<1x32xf32>
    %36 = vector.broadcast %34 : vector<2x1xf32> to vector<2x32xf32>
    %37 = vector.broadcast %35 : vector<1x32xf32> to vector<2x32xf32>
    %38 = arith.mulf %36, %37 : vector<2x32xf32>
    %39 = arith.addf %33, %38 : vector<2x32xf32>
    %c0_21 = arith.constant 0 : index
    %c0_22 = arith.constant 0 : index
    %40 = vector.load %arg6[%c0_21, %c0_22] : memref<1x32xf32, #tpu.memory_space<vmem>>, vector<1x32xf32>
    %41 = vector.broadcast %40 : vector<1x32xf32> to vector<2x32xf32>
    %42 = arith.mulf %39, %41 : vector<2x32xf32>
    %c0_23 = arith.constant 0 : index
    %c0_24 = arith.constant 0 : index
    %43 = vector.load %arg7[%c0_23, %c0_24] : memref<1x32xf32, #tpu.memory_space<vmem>>, vector<1x32xf32>
    %44 = vector.broadcast %43 : vector<1x32xf32> to vector<2x32xf32>
    %45 = arith.addf %42, %44 : vector<2x32xf32>
    %cst_25 = arith.constant 0.000000e+00 : f32
    %46 = vector.broadcast %cst_25 : f32 to vector<2x32xf32>
    %47 = arith.subf %46, %45 : vector<2x32xf32>
    %48 = math.exp %47 : vector<2x32xf32>
    %cst_26 = arith.constant 1.000000e+00 : f32
    %49 = vector.broadcast %cst_26 : f32 to vector<2x32xf32>
    %50 = arith.addf %49, %48 : vector<2x32xf32>
    %cst_27 = arith.constant 1.000000e+00 : f32
    %51 = vector.broadcast %cst_27 : f32 to vector<2x32xf32>
    %52 = arith.divf %51, %50 : vector<2x32xf32>
    %53 = arith.maximumf %26, %52 : vector<2x32xf32>
    %54 = arith.truncf %53 : vector<2x32xf32> to vector<2x32xbf16>
    %c0_28 = arith.constant 0 : index
    %c0_29 = arith.constant 0 : index
    %55 = vector.load %arg20[%c0_28, %c0_29] : memref<1600x128xbf16, #tpu.memory_space<vmem>>, vector<32x128xbf16>
    %cst_30 = arith.constant dense<0.000000e+00> : vector<2x128xf32>
    %56 = tpu.matmul %54, %55, %cst_30 {dimension_numbers = #tpu.dot_dimension_numbers<[1], [0], [0], [1], [0, 0, 1, 1], [], []>} : vector<2x32xbf16>, vector<32x128xbf16>, vector<2x128xf32> -> vector<2x128xf32>
    %57 = arith.addf %0, %56 : vector<2x128xf32>
    %c0_31 = arith.constant 0 : index
    %c1_32 = arith.constant 1 : index
    %c0_33 = arith.constant 0 : index
    %c0_34 = arith.constant 0 : index
    %58 = vector.load %arg1[%c0_31, %c1_32, %c0_33, %c0_34] : memref<2x4x2x2xf32, #tpu.memory_space<vmem>>, vector<1x1x2x2xf32>
    %59 = vector.shape_cast %58 : vector<1x1x2x2xf32> to vector<2x2xf32>
    %60 = vector.extract_strided_slice %59 {offsets = [0, 0], sizes = [2, 1], strides = [1, 1]} : vector<2x2xf32> to vector<2x1xf32>
    %c0_35 = arith.constant 0 : index
    %c0_36 = arith.constant 0 : index
    %61 = vector.load %arg5[%c0_35, %c0_36] : memref<2x32xf32, #tpu.memory_space<vmem>>, vector<1x32xf32>
    %62 = vector.broadcast %60 : vector<2x1xf32> to vector<2x32xf32>
    %63 = vector.broadcast %61 : vector<1x32xf32> to vector<2x32xf32>
    %64 = arith.mulf %62, %63 : vector<2x32xf32>
    %65 = vector.extract_strided_slice %59 {offsets = [0, 1], sizes = [2, 1], strides = [1, 1]} : vector<2x2xf32> to vector<2x1xf32>
    %c1_37 = arith.constant 1 : index
    %c0_38 = arith.constant 0 : index
    %66 = vector.load %arg5[%c1_37, %c0_38] : memref<2x32xf32, #tpu.memory_space<vmem>>, vector<1x32xf32>
    %67 = vector.broadcast %65 : vector<2x1xf32> to vector<2x32xf32>
    %68 = vector.broadcast %66 : vector<1x32xf32> to vector<2x32xf32>
    %69 = arith.mulf %67, %68 : vector<2x32xf32>
    %70 = arith.addf %64, %69 : vector<2x32xf32>
    %c0_39 = arith.constant 0 : index
    %c0_40 = arith.constant 0 : index
    %71 = vector.load %arg6[%c0_39, %c0_40] : memref<1x32xf32, #tpu.memory_space<vmem>>, vector<1x32xf32>
    %72 = vector.broadcast %71 : vector<1x32xf32> to vector<2x32xf32>
    %73 = arith.mulf %70, %72 : vector<2x32xf32>
    %c0_41 = arith.constant 0 : index
    %c0_42 = arith.constant 0 : index
    %74 = vector.load %arg7[%c0_41, %c0_42] : memref<1x32xf32, #tpu.memory_space<vmem>>, vector<1x32xf32>
    %75 = vector.broadcast %74 : vector<1x32xf32> to vector<2x32xf32>
    %76 = arith.addf %73, %75 : vector<2x32xf32>
    %cst_43 = arith.constant 0.000000e+00 : f32
    %77 = vector.broadcast %cst_43 : f32 to vector<2x32xf32>
    %78 = arith.subf %77, %76 : vector<2x32xf32>
    %79 = math.exp %78 : vector<2x32xf32>
    %cst_44 = arith.constant 1.000000e+00 : f32
    %80 = vector.broadcast %cst_44 : f32 to vector<2x32xf32>
    %81 = arith.addf %80, %79 : vector<2x32xf32>
    %cst_45 = arith.constant 1.000000e+00 : f32
    %82 = vector.broadcast %cst_45 : f32 to vector<2x32xf32>
    %83 = arith.divf %82, %81 : vector<2x32xf32>
    %c1_46 = arith.constant 1 : index
    %c1_47 = arith.constant 1 : index
    %c0_48 = arith.constant 0 : index
    %c0_49 = arith.constant 0 : index
    %84 = vector.load %arg1[%c1_46, %c1_47, %c0_48, %c0_49] : memref<2x4x2x2xf32, #tpu.memory_space<vmem>>, vector<1x1x2x2xf32>
    %85 = vector.shape_cast %84 : vector<1x1x2x2xf32> to vector<2x2xf32>
    %86 = vector.extract_strided_slice %85 {offsets = [0, 0], sizes = [2, 1], strides = [1, 1]} : vector<2x2xf32> to vector<2x1xf32>
    %c0_50 = arith.constant 0 : index
    %c0_51 = arith.constant 0 : index
    %87 = vector.load %arg5[%c0_50, %c0_51] : memref<2x32xf32, #tpu.memory_space<vmem>>, vector<1x32xf32>
    %88 = vector.broadcast %86 : vector<2x1xf32> to vector<2x32xf32>
    %89 = vector.broadcast %87 : vector<1x32xf32> to vector<2x32xf32>
    %90 = arith.mulf %88, %89 : vector<2x32xf32>
    %91 = vector.extract_strided_slice %85 {offsets = [0, 1], sizes = [2, 1], strides = [1, 1]} : vector<2x2xf32> to vector<2x1xf32>
    %c1_52 = arith.constant 1 : index
    %c0_53 = arith.constant 0 : index
    %92 = vector.load %arg5[%c1_52, %c0_53] : memref<2x32xf32, #tpu.memory_space<vmem>>, vector<1x32xf32>
    %93 = vector.broadcast %91 : vector<2x1xf32> to vector<2x32xf32>
    %94 = vector.broadcast %92 : vector<1x32xf32> to vector<2x32xf32>
    %95 = arith.mulf %93, %94 : vector<2x32xf32>
    %96 = arith.addf %90, %95 : vector<2x32xf32>
    %c0_54 = arith.constant 0 : index
    %c0_55 = arith.constant 0 : index
    %97 = vector.load %arg6[%c0_54, %c0_55] : memref<1x32xf32, #tpu.memory_space<vmem>>, vector<1x32xf32>
    %98 = vector.broadcast %97 : vector<1x32xf32> to vector<2x32xf32>
    %99 = arith.mulf %96, %98 : vector<2x32xf32>
    %c0_56 = arith.constant 0 : index
    %c0_57 = arith.constant 0 : index
    %100 = vector.load %arg7[%c0_56, %c0_57] : memref<1x32xf32, #tpu.memory_space<vmem>>, vector<1x32xf32>
    %101 = vector.broadcast %100 : vector<1x32xf32> to vector<2x32xf32>
    %102 = arith.addf %99, %101 : vector<2x32xf32>
    %cst_58 = arith.constant 0.000000e+00 : f32
    %103 = vector.broadcast %cst_58 : f32 to vector<2x32xf32>
    %104 = arith.subf %103, %102 : vector<2x32xf32>
    %105 = math.exp %104 : vector<2x32xf32>
    %cst_59 = arith.constant 1.000000e+00 : f32
    %106 = vector.broadcast %cst_59 : f32 to vector<2x32xf32>
    %107 = arith.addf %106, %105 : vector<2x32xf32>
    %cst_60 = arith.constant 1.000000e+00 : f32
    %108 = vector.broadcast %cst_60 : f32 to vector<2x32xf32>
    %109 = arith.divf %108, %107 : vector<2x32xf32>
    %110 = arith.maximumf %83, %109 : vector<2x32xf32>
    %111 = arith.truncf %110 : vector<2x32xf32> to vector<2x32xbf16>
    %c32 = arith.constant 32 : index
    %c0_61 = arith.constant 0 : index
    %112 = vector.load %arg20[%c32, %c0_61] : memref<1600x128xbf16, #tpu.memory_space<vmem>>, vector<32x128xbf16>
    %cst_62 = arith.constant dense<0.000000e+00> : vector<2x128xf32>
    %113 = tpu.matmul %111, %112, %cst_62 {dimension_numbers = #tpu.dot_dimension_numbers<[1], [0], [0], [1], [0, 0, 1, 1], [], []>} : vector<2x32xbf16>, vector<32x128xbf16>, vector<2x128xf32> -> vector<2x128xf32>
    %114 = arith.addf %57, %113 : vector<2x128xf32>
    %c0_63 = arith.constant 0 : index
    %c2 = arith.constant 2 : index
    %c0_64 = arith.constant 0 : index
    %c0_65 = arith.constant 0 : index
    %115 = vector.load %arg1[%c0_63, %c2, %c0_64, %c0_65] : memref<2x4x2x2xf32, #tpu.memory_space<vmem>>, vector<1x1x2x2xf32>
    %116 = vector.shape_cast %115 : vector<1x1x2x2xf32> to vector<2x2xf32>
    %117 = vector.extract_strided_slice %116 {offsets = [0, 0], sizes = [2, 1], strides = [1, 1]} : vector<2x2xf32> to vector<2x1xf32>
    %c0_66 = arith.constant 0 : index
    %c0_67 = arith.constant 0 : index
    %118 = vector.load %arg5[%c0_66, %c0_67] : memref<2x32xf32, #tpu.memory_space<vmem>>, vector<1x32xf32>
    %119 = vector.broadcast %117 : vector<2x1xf32> to vector<2x32xf32>
    %120 = vector.broadcast %118 : vector<1x32xf32> to vector<2x32xf32>
    %121 = arith.mulf %119, %120 : vector<2x32xf32>
    %122 = vector.extract_strided_slice %116 {offsets = [0, 1], sizes = [2, 1], strides = [1, 1]} : vector<2x2xf32> to vector<2x1xf32>
    %c1_68 = arith.constant 1 : index
    %c0_69 = arith.constant 0 : index
    %123 = vector.load %arg5[%c1_68, %c0_69] : memref<2x32xf32, #tpu.memory_space<vmem>>, vector<1x32xf32>
    %124 = vector.broadcast %122 : vector<2x1xf32> to vector<2x32xf32>
    %125 = vector.broadcast %123 : vector<1x32xf32> to vector<2x32xf32>
    %126 = arith.mulf %124, %125 : vector<2x32xf32>
    %127 = arith.addf %121, %126 : vector<2x32xf32>
    %c0_70 = arith.constant 0 : index
    %c0_71 = arith.constant 0 : index
    %128 = vector.load %arg6[%c0_70, %c0_71] : memref<1x32xf32, #tpu.memory_space<vmem>>, vector<1x32xf32>
    %129 = vector.broadcast %128 : vector<1x32xf32> to vector<2x32xf32>
    %130 = arith.mulf %127, %129 : vector<2x32xf32>
    %c0_72 = arith.constant 0 : index
    %c0_73 = arith.constant 0 : index
    %131 = vector.load %arg7[%c0_72, %c0_73] : memref<1x32xf32, #tpu.memory_space<vmem>>, vector<1x32xf32>
    %132 = vector.broadcast %131 : vector<1x32xf32> to vector<2x32xf32>
    %133 = arith.addf %130, %132 : vector<2x32xf32>
    %cst_74 = arith.constant 0.000000e+00 : f32
    %134 = vector.broadcast %cst_74 : f32 to vector<2x32xf32>
    %135 = arith.subf %134, %133 : vector<2x32xf32>
    %136 = math.exp %135 : vector<2x32xf32>
    %cst_75 = arith.constant 1.000000e+00 : f32
    %137 = vector.broadcast %cst_75 : f32 to vector<2x32xf32>
    %138 = arith.addf %137, %136 : vector<2x32xf32>
    %cst_76 = arith.constant 1.000000e+00 : f32
    %139 = vector.broadcast %cst_76 : f32 to vector<2x32xf32>
    %140 = arith.divf %139, %138 : vector<2x32xf32>
    %c1_77 = arith.constant 1 : index
    %c2_78 = arith.constant 2 : index
    %c0_79 = arith.constant 0 : index
    %c0_80 = arith.constant 0 : index
    %141 = vector.load %arg1[%c1_77, %c2_78, %c0_79, %c0_80] : memref<2x4x2x2xf32, #tpu.memory_space<vmem>>, vector<1x1x2x2xf32>
    %142 = vector.shape_cast %141 : vector<1x1x2x2xf32> to vector<2x2xf32>
    %143 = vector.extract_strided_slice %142 {offsets = [0, 0], sizes = [2, 1], strides = [1, 1]} : vector<2x2xf32> to vector<2x1xf32>
    %c0_81 = arith.constant 0 : index
    %c0_82 = arith.constant 0 : index
    %144 = vector.load %arg5[%c0_81, %c0_82] : memref<2x32xf32, #tpu.memory_space<vmem>>, vector<1x32xf32>
    %145 = vector.broadcast %143 : vector<2x1xf32> to vector<2x32xf32>
    %146 = vector.broadcast %144 : vector<1x32xf32> to vector<2x32xf32>
    %147 = arith.mulf %145, %146 : vector<2x32xf32>
    %148 = vector.extract_strided_slice %142 {offsets = [0, 1], sizes = [2, 1], strides = [1, 1]} : vector<2x2xf32> to vector<2x1xf32>
    %c1_83 = arith.constant 1 : index
    %c0_84 = arith.constant 0 : index
    %149 = vector.load %arg5[%c1_83, %c0_84] : memref<2x32xf32, #tpu.memory_space<vmem>>, vector<1x32xf32>
    %150 = vector.broadcast %148 : vector<2x1xf32> to vector<2x32xf32>
    %151 = vector.broadcast %149 : vector<1x32xf32> to vector<2x32xf32>
    %152 = arith.mulf %150, %151 : vector<2x32xf32>
    %153 = arith.addf %147, %152 : vector<2x32xf32>
    %c0_85 = arith.constant 0 : index
    %c0_86 = arith.constant 0 : index
    %154 = vector.load %arg6[%c0_85, %c0_86] : memref<1x32xf32, #tpu.memory_space<vmem>>, vector<1x32xf32>
    %155 = vector.broadcast %154 : vector<1x32xf32> to vector<2x32xf32>
    %156 = arith.mulf %153, %155 : vector<2x32xf32>
    %c0_87 = arith.constant 0 : index
    %c0_88 = arith.constant 0 : index
    %157 = vector.load %arg7[%c0_87, %c0_88] : memref<1x32xf32, #tpu.memory_space<vmem>>, vector<1x32xf32>
    %158 = vector.broadcast %157 : vector<1x32xf32> to vector<2x32xf32>
    %159 = arith.addf %156, %158 : vector<2x32xf32>
    %cst_89 = arith.constant 0.000000e+00 : f32
    %160 = vector.broadcast %cst_89 : f32 to vector<2x32xf32>
    %161 = arith.subf %160, %159 : vector<2x32xf32>
    %162 = math.exp %161 : vector<2x32xf32>
    %cst_90 = arith.constant 1.000000e+00 : f32
    %163 = vector.broadcast %cst_90 : f32 to vector<2x32xf32>
    %164 = arith.addf %163, %162 : vector<2x32xf32>
    %cst_91 = arith.constant 1.000000e+00 : f32
    %165 = vector.broadcast %cst_91 : f32 to vector<2x32xf32>
    %166 = arith.divf %165, %164 : vector<2x32xf32>
    %167 = arith.maximumf %140, %166 : vector<2x32xf32>
    %168 = arith.truncf %167 : vector<2x32xf32> to vector<2x32xbf16>
    %c64 = arith.constant 64 : index
    %c0_92 = arith.constant 0 : index
    %169 = vector.load %arg20[%c64, %c0_92] : memref<1600x128xbf16, #tpu.memory_space<vmem>>, vector<32x128xbf16>
    %cst_93 = arith.constant dense<0.000000e+00> : vector<2x128xf32>
    %170 = tpu.matmul %168, %169, %cst_93 {dimension_numbers = #tpu.dot_dimension_numbers<[1], [0], [0], [1], [0, 0, 1, 1], [], []>} : vector<2x32xbf16>, vector<32x128xbf16>, vector<2x128xf32> -> vector<2x128xf32>
    %171 = arith.addf %114, %170 : vector<2x128xf32>
    %c0_94 = arith.constant 0 : index
    %c3 = arith.constant 3 : index
    %c0_95 = arith.constant 0 : index
    %c0_96 = arith.constant 0 : index
    %172 = vector.load %arg1[%c0_94, %c3, %c0_95, %c0_96] : memref<2x4x2x2xf32, #tpu.memory_space<vmem>>, vector<1x1x2x2xf32>
    %173 = vector.shape_cast %172 : vector<1x1x2x2xf32> to vector<2x2xf32>
    %174 = vector.extract_strided_slice %173 {offsets = [0, 0], sizes = [2, 1], strides = [1, 1]} : vector<2x2xf32> to vector<2x1xf32>
    %c0_97 = arith.constant 0 : index
    %c0_98 = arith.constant 0 : index
    %175 = vector.load %arg5[%c0_97, %c0_98] : memref<2x32xf32, #tpu.memory_space<vmem>>, vector<1x32xf32>
    %176 = vector.broadcast %174 : vector<2x1xf32> to vector<2x32xf32>
    %177 = vector.broadcast %175 : vector<1x32xf32> to vector<2x32xf32>
    %178 = arith.mulf %176, %177 : vector<2x32xf32>
    %179 = vector.extract_strided_slice %173 {offsets = [0, 1], sizes = [2, 1], strides = [1, 1]} : vector<2x2xf32> to vector<2x1xf32>
    %c1_99 = arith.constant 1 : index
    %c0_100 = arith.constant 0 : index
    %180 = vector.load %arg5[%c1_99, %c0_100] : memref<2x32xf32, #tpu.memory_space<vmem>>, vector<1x32xf32>
    %181 = vector.broadcast %179 : vector<2x1xf32> to vector<2x32xf32>
    %182 = vector.broadcast %180 : vector<1x32xf32> to vector<2x32xf32>
    %183 = arith.mulf %181, %182 : vector<2x32xf32>
    %184 = arith.addf %178, %183 : vector<2x32xf32>
    %c0_101 = arith.constant 0 : index
    %c0_102 = arith.constant 0 : index
    %185 = vector.load %arg6[%c0_101, %c0_102] : memref<1x32xf32, #tpu.memory_space<vmem>>, vector<1x32xf32>
    %186 = vector.broadcast %185 : vector<1x32xf32> to vector<2x32xf32>
    %187 = arith.mulf %184, %186 : vector<2x32xf32>
    %c0_103 = arith.constant 0 : index
    %c0_104 = arith.constant 0 : index
    %188 = vector.load %arg7[%c0_103, %c0_104] : memref<1x32xf32, #tpu.memory_space<vmem>>, vector<1x32xf32>
    %189 = vector.broadcast %188 : vector<1x32xf32> to vector<2x32xf32>
    %190 = arith.addf %187, %189 : vector<2x32xf32>
    %cst_105 = arith.constant 0.000000e+00 : f32
    %191 = vector.broadcast %cst_105 : f32 to vector<2x32xf32>
    %192 = arith.subf %191, %190 : vector<2x32xf32>
    %193 = math.exp %192 : vector<2x32xf32>
    %cst_106 = arith.constant 1.000000e+00 : f32
    %194 = vector.broadcast %cst_106 : f32 to vector<2x32xf32>
    %195 = arith.addf %194, %193 : vector<2x32xf32>
    %cst_107 = arith.constant 1.000000e+00 : f32
    %196 = vector.broadcast %cst_107 : f32 to vector<2x32xf32>
    %197 = arith.divf %196, %195 : vector<2x32xf32>
    %c1_108 = arith.constant 1 : index
    %c3_109 = arith.constant 3 : index
    %c0_110 = arith.constant 0 : index
    %c0_111 = arith.constant 0 : index
    %198 = vector.load %arg1[%c1_108, %c3_109, %c0_110, %c0_111] : memref<2x4x2x2xf32, #tpu.memory_space<vmem>>, vector<1x1x2x2xf32>
    %199 = vector.shape_cast %198 : vector<1x1x2x2xf32> to vector<2x2xf32>
    %200 = vector.extract_strided_slice %199 {offsets = [0, 0], sizes = [2, 1], strides = [1, 1]} : vector<2x2xf32> to vector<2x1xf32>
    %c0_112 = arith.constant 0 : index
    %c0_113 = arith.constant 0 : index
    %201 = vector.load %arg5[%c0_112, %c0_113] : memref<2x32xf32, #tpu.memory_space<vmem>>, vector<1x32xf32>
    %202 = vector.broadcast %200 : vector<2x1xf32> to vector<2x32xf32>
    %203 = vector.broadcast %201 : vector<1x32xf32> to vector<2x32xf32>
    %204 = arith.mulf %202, %203 : vector<2x32xf32>
    %205 = vector.extract_strided_slice %199 {offsets = [0, 1], sizes = [2, 1], strides = [1, 1]} : vector<2x2xf32> to vector<2x1xf32>
    %c1_114 = arith.constant 1 : index
    %c0_115 = arith.constant 0 : index
    %206 = vector.load %arg5[%c1_114, %c0_115] : memref<2x32xf32, #tpu.memory_space<vmem>>, vector<1x32xf32>
    %207 = vector.broadcast %205 : vector<2x1xf32> to vector<2x32xf32>
    %208 = vector.broadcast %206 : vector<1x32xf32> to vector<2x32xf32>
    %209 = arith.mulf %207, %208 : vector<2x32xf32>
    %210 = arith.addf %204, %209 : vector<2x32xf32>
    %c0_116 = arith.constant 0 : index
    %c0_117 = arith.constant 0 : index
    %211 = vector.load %arg6[%c0_116, %c0_117] : memref<1x32xf32, #tpu.memory_space<vmem>>, vector<1x32xf32>
    %212 = vector.broadcast %211 : vector<1x32xf32> to vector<2x32xf32>
    %213 = arith.mulf %210, %212 : vector<2x32xf32>
    %c0_118 = arith.constant 0 : index
    %c0_119 = arith.constant 0 : index
    %214 = vector.load %arg7[%c0_118, %c0_119] : memref<1x32xf32, #tpu.memory_space<vmem>>, vector<1x32xf32>
    %215 = vector.broadcast %214 : vector<1x32xf32> to vector<2x32xf32>
    %216 = arith.addf %213, %215 : vector<2x32xf32>
    %cst_120 = arith.constant 0.000000e+00 : f32
    %217 = vector.broadcast %cst_120 : f32 to vector<2x32xf32>
    %218 = arith.subf %217, %216 : vector<2x32xf32>
    %219 = math.exp %218 : vector<2x32xf32>
    %cst_121 = arith.constant 1.000000e+00 : f32
    %220 = vector.broadcast %cst_121 : f32 to vector<2x32xf32>
    %221 = arith.addf %220, %219 : vector<2x32xf32>
    %cst_122 = arith.constant 1.000000e+00 : f32
    %222 = vector.broadcast %cst_122 : f32 to vector<2x32xf32>
    %223 = arith.divf %222, %221 : vector<2x32xf32>
    %224 = arith.maximumf %197, %223 : vector<2x32xf32>
    %225 = arith.truncf %224 : vector<2x32xf32> to vector<2x32xbf16>
    %c96 = arith.constant 96 : index
    %c0_123 = arith.constant 0 : index
    %226 = vector.load %arg20[%c96, %c0_123] : memref<1600x128xbf16, #tpu.memory_space<vmem>>, vector<32x128xbf16>
    %cst_124 = arith.constant dense<0.000000e+00> : vector<2x128xf32>
    %227 = tpu.matmul %225, %226, %cst_124 {dimension_numbers = #tpu.dot_dimension_numbers<[1], [0], [0], [1], [0, 0, 1, 1], [], []>} : vector<2x32xbf16>, vector<32x128xbf16>, vector<2x128xf32> -> vector<2x128xf32>
    %228 = arith.addf %171, %227 : vector<2x128xf32>
    %c0_125 = arith.constant 0 : index
    %c0_126 = arith.constant 0 : index
    %c0_127 = arith.constant 0 : index
    %c0_128 = arith.constant 0 : index
    %229 = vector.load %arg2[%c0_125, %c0_126, %c0_127, %c0_128] : memref<2x4x2x2xf32, #tpu.memory_space<vmem>>, vector<1x1x2x2xf32>
    %230 = vector.shape_cast %229 : vector<1x1x2x2xf32> to vector<2x2xf32>
    %231 = vector.extract_strided_slice %230 {offsets = [0, 0], sizes = [2, 1], strides = [1, 1]} : vector<2x2xf32> to vector<2x1xf32>
    %c0_129 = arith.constant 0 : index
    %c0_130 = arith.constant 0 : index
    %232 = vector.load %arg8[%c0_129, %c0_130] : memref<2x64xf32, #tpu.memory_space<vmem>>, vector<1x64xf32>
    %233 = vector.broadcast %231 : vector<2x1xf32> to vector<2x64xf32>
    %234 = vector.broadcast %232 : vector<1x64xf32> to vector<2x64xf32>
    %235 = arith.mulf %233, %234 : vector<2x64xf32>
    %236 = vector.extract_strided_slice %230 {offsets = [0, 1], sizes = [2, 1], strides = [1, 1]} : vector<2x2xf32> to vector<2x1xf32>
    %c1_131 = arith.constant 1 : index
    %c0_132 = arith.constant 0 : index
    %237 = vector.load %arg8[%c1_131, %c0_132] : memref<2x64xf32, #tpu.memory_space<vmem>>, vector<1x64xf32>
    %238 = vector.broadcast %236 : vector<2x1xf32> to vector<2x64xf32>
    %239 = vector.broadcast %237 : vector<1x64xf32> to vector<2x64xf32>
    %240 = arith.mulf %238, %239 : vector<2x64xf32>
    %241 = arith.addf %235, %240 : vector<2x64xf32>
    %c0_133 = arith.constant 0 : index
    %c0_134 = arith.constant 0 : index
    %242 = vector.load %arg9[%c0_133, %c0_134] : memref<1x64xf32, #tpu.memory_space<vmem>>, vector<1x64xf32>
    %243 = vector.broadcast %242 : vector<1x64xf32> to vector<2x64xf32>
    %244 = arith.mulf %241, %243 : vector<2x64xf32>
    %c0_135 = arith.constant 0 : index
    %c0_136 = arith.constant 0 : index
    %245 = vector.load %arg10[%c0_135, %c0_136] : memref<1x64xf32, #tpu.memory_space<vmem>>, vector<1x64xf32>
    %246 = vector.broadcast %245 : vector<1x64xf32> to vector<2x64xf32>
    %247 = arith.addf %244, %246 : vector<2x64xf32>
    %cst_137 = arith.constant 0.000000e+00 : f32
    %248 = vector.broadcast %cst_137 : f32 to vector<2x64xf32>
    %249 = arith.subf %248, %247 : vector<2x64xf32>
    %250 = math.exp %249 : vector<2x64xf32>
    %cst_138 = arith.constant 1.000000e+00 : f32
    %251 = vector.broadcast %cst_138 : f32 to vector<2x64xf32>
    %252 = arith.addf %251, %250 : vector<2x64xf32>
    %cst_139 = arith.constant 1.000000e+00 : f32
    %253 = vector.broadcast %cst_139 : f32 to vector<2x64xf32>
    %254 = arith.divf %253, %252 : vector<2x64xf32>
    %c1_140 = arith.constant 1 : index
    %c0_141 = arith.constant 0 : index
    %c0_142 = arith.constant 0 : index
    %c0_143 = arith.constant 0 : index
    %255 = vector.load %arg2[%c1_140, %c0_141, %c0_142, %c0_143] : memref<2x4x2x2xf32, #tpu.memory_space<vmem>>, vector<1x1x2x2xf32>
    %256 = vector.shape_cast %255 : vector<1x1x2x2xf32> to vector<2x2xf32>
    %257 = vector.extract_strided_slice %256 {offsets = [0, 0], sizes = [2, 1], strides = [1, 1]} : vector<2x2xf32> to vector<2x1xf32>
    %c0_144 = arith.constant 0 : index
    %c0_145 = arith.constant 0 : index
    %258 = vector.load %arg8[%c0_144, %c0_145] : memref<2x64xf32, #tpu.memory_space<vmem>>, vector<1x64xf32>
    %259 = vector.broadcast %257 : vector<2x1xf32> to vector<2x64xf32>
    %260 = vector.broadcast %258 : vector<1x64xf32> to vector<2x64xf32>
    %261 = arith.mulf %259, %260 : vector<2x64xf32>
    %262 = vector.extract_strided_slice %256 {offsets = [0, 1], sizes = [2, 1], strides = [1, 1]} : vector<2x2xf32> to vector<2x1xf32>
    %c1_146 = arith.constant 1 : index
    %c0_147 = arith.constant 0 : index
    %263 = vector.load %arg8[%c1_146, %c0_147] : memref<2x64xf32, #tpu.memory_space<vmem>>, vector<1x64xf32>
    %264 = vector.broadcast %262 : vector<2x1xf32> to vector<2x64xf32>
    %265 = vector.broadcast %263 : vector<1x64xf32> to vector<2x64xf32>
    %266 = arith.mulf %264, %265 : vector<2x64xf32>
    %267 = arith.addf %261, %266 : vector<2x64xf32>
    %c0_148 = arith.constant 0 : index
    %c0_149 = arith.constant 0 : index
    %268 = vector.load %arg9[%c0_148, %c0_149] : memref<1x64xf32, #tpu.memory_space<vmem>>, vector<1x64xf32>
    %269 = vector.broadcast %268 : vector<1x64xf32> to vector<2x64xf32>
    %270 = arith.mulf %267, %269 : vector<2x64xf32>
    %c0_150 = arith.constant 0 : index
    %c0_151 = arith.constant 0 : index
    %271 = vector.load %arg10[%c0_150, %c0_151] : memref<1x64xf32, #tpu.memory_space<vmem>>, vector<1x64xf32>
    %272 = vector.broadcast %271 : vector<1x64xf32> to vector<2x64xf32>
    %273 = arith.addf %270, %272 : vector<2x64xf32>
    %cst_152 = arith.constant 0.000000e+00 : f32
    %274 = vector.broadcast %cst_152 : f32 to vector<2x64xf32>
    %275 = arith.subf %274, %273 : vector<2x64xf32>
    %276 = math.exp %275 : vector<2x64xf32>
    %cst_153 = arith.constant 1.000000e+00 : f32
    %277 = vector.broadcast %cst_153 : f32 to vector<2x64xf32>
    %278 = arith.addf %277, %276 : vector<2x64xf32>
    %cst_154 = arith.constant 1.000000e+00 : f32
    %279 = vector.broadcast %cst_154 : f32 to vector<2x64xf32>
    %280 = arith.divf %279, %278 : vector<2x64xf32>
    %281 = arith.maximumf %254, %280 : vector<2x64xf32>
    %282 = arith.truncf %281 : vector<2x64xf32> to vector<2x64xbf16>
    %c128 = arith.constant 128 : index
    %c0_155 = arith.constant 0 : index
    %283 = vector.load %arg20[%c128, %c0_155] : memref<1600x128xbf16, #tpu.memory_space<vmem>>, vector<64x128xbf16>
    %cst_156 = arith.constant dense<0.000000e+00> : vector<2x128xf32>
    %284 = tpu.matmul %282, %283, %cst_156 {dimension_numbers = #tpu.dot_dimension_numbers<[1], [0], [0], [1], [0, 0, 1, 1], [], []>} : vector<2x64xbf16>, vector<64x128xbf16>, vector<2x128xf32> -> vector<2x128xf32>
    %285 = arith.addf %228, %284 : vector<2x128xf32>
    %c0_157 = arith.constant 0 : index
    %c1_158 = arith.constant 1 : index
    %c0_159 = arith.constant 0 : index
    %c0_160 = arith.constant 0 : index
    %286 = vector.load %arg2[%c0_157, %c1_158, %c0_159, %c0_160] : memref<2x4x2x2xf32, #tpu.memory_space<vmem>>, vector<1x1x2x2xf32>
    %287 = vector.shape_cast %286 : vector<1x1x2x2xf32> to vector<2x2xf32>
    %288 = vector.extract_strided_slice %287 {offsets = [0, 0], sizes = [2, 1], strides = [1, 1]} : vector<2x2xf32> to vector<2x1xf32>
    %c0_161 = arith.constant 0 : index
    %c0_162 = arith.constant 0 : index
    %289 = vector.load %arg8[%c0_161, %c0_162] : memref<2x64xf32, #tpu.memory_space<vmem>>, vector<1x64xf32>
    %290 = vector.broadcast %288 : vector<2x1xf32> to vector<2x64xf32>
    %291 = vector.broadcast %289 : vector<1x64xf32> to vector<2x64xf32>
    %292 = arith.mulf %290, %291 : vector<2x64xf32>
    %293 = vector.extract_strided_slice %287 {offsets = [0, 1], sizes = [2, 1], strides = [1, 1]} : vector<2x2xf32> to vector<2x1xf32>
    %c1_163 = arith.constant 1 : index
    %c0_164 = arith.constant 0 : index
    %294 = vector.load %arg8[%c1_163, %c0_164] : memref<2x64xf32, #tpu.memory_space<vmem>>, vector<1x64xf32>
    %295 = vector.broadcast %293 : vector<2x1xf32> to vector<2x64xf32>
    %296 = vector.broadcast %294 : vector<1x64xf32> to vector<2x64xf32>
    %297 = arith.mulf %295, %296 : vector<2x64xf32>
    %298 = arith.addf %292, %297 : vector<2x64xf32>
    %c0_165 = arith.constant 0 : index
    %c0_166 = arith.constant 0 : index
    %299 = vector.load %arg9[%c0_165, %c0_166] : memref<1x64xf32, #tpu.memory_space<vmem>>, vector<1x64xf32>
    %300 = vector.broadcast %299 : vector<1x64xf32> to vector<2x64xf32>
    %301 = arith.mulf %298, %300 : vector<2x64xf32>
    %c0_167 = arith.constant 0 : index
    %c0_168 = arith.constant 0 : index
    %302 = vector.load %arg10[%c0_167, %c0_168] : memref<1x64xf32, #tpu.memory_space<vmem>>, vector<1x64xf32>
    %303 = vector.broadcast %302 : vector<1x64xf32> to vector<2x64xf32>
    %304 = arith.addf %301, %303 : vector<2x64xf32>
    %cst_169 = arith.constant 0.000000e+00 : f32
    %305 = vector.broadcast %cst_169 : f32 to vector<2x64xf32>
    %306 = arith.subf %305, %304 : vector<2x64xf32>
    %307 = math.exp %306 : vector<2x64xf32>
    %cst_170 = arith.constant 1.000000e+00 : f32
    %308 = vector.broadcast %cst_170 : f32 to vector<2x64xf32>
    %309 = arith.addf %308, %307 : vector<2x64xf32>
    %cst_171 = arith.constant 1.000000e+00 : f32
    %310 = vector.broadcast %cst_171 : f32 to vector<2x64xf32>
    %311 = arith.divf %310, %309 : vector<2x64xf32>
    %c1_172 = arith.constant 1 : index
    %c1_173 = arith.constant 1 : index
    %c0_174 = arith.constant 0 : index
    %c0_175 = arith.constant 0 : index
    %312 = vector.load %arg2[%c1_172, %c1_173, %c0_174, %c0_175] : memref<2x4x2x2xf32, #tpu.memory_space<vmem>>, vector<1x1x2x2xf32>
    %313 = vector.shape_cast %312 : vector<1x1x2x2xf32> to vector<2x2xf32>
    %314 = vector.extract_strided_slice %313 {offsets = [0, 0], sizes = [2, 1], strides = [1, 1]} : vector<2x2xf32> to vector<2x1xf32>
    %c0_176 = arith.constant 0 : index
    %c0_177 = arith.constant 0 : index
    %315 = vector.load %arg8[%c0_176, %c0_177] : memref<2x64xf32, #tpu.memory_space<vmem>>, vector<1x64xf32>
    %316 = vector.broadcast %314 : vector<2x1xf32> to vector<2x64xf32>
    %317 = vector.broadcast %315 : vector<1x64xf32> to vector<2x64xf32>
    %318 = arith.mulf %316, %317 : vector<2x64xf32>
    %319 = vector.extract_strided_slice %313 {offsets = [0, 1], sizes = [2, 1], strides = [1, 1]} : vector<2x2xf32> to vector<2x1xf32>
    %c1_178 = arith.constant 1 : index
    %c0_179 = arith.constant 0 : index
    %320 = vector.load %arg8[%c1_178, %c0_179] : memref<2x64xf32, #tpu.memory_space<vmem>>, vector<1x64xf32>
    %321 = vector.broadcast %319 : vector<2x1xf32> to vector<2x64xf32>
    %322 = vector.broadcast %320 : vector<1x64xf32> to vector<2x64xf32>
    %323 = arith.mulf %321, %322 : vector<2x64xf32>
    %324 = arith.addf %318, %323 : vector<2x64xf32>
    %c0_180 = arith.constant 0 : index
    %c0_181 = arith.constant 0 : index
    %325 = vector.load %arg9[%c0_180, %c0_181] : memref<1x64xf32, #tpu.memory_space<vmem>>, vector<1x64xf32>
    %326 = vector.broadcast %325 : vector<1x64xf32> to vector<2x64xf32>
    %327 = arith.mulf %324, %326 : vector<2x64xf32>
    %c0_182 = arith.constant 0 : index
    %c0_183 = arith.constant 0 : index
    %328 = vector.load %arg10[%c0_182, %c0_183] : memref<1x64xf32, #tpu.memory_space<vmem>>, vector<1x64xf32>
    %329 = vector.broadcast %328 : vector<1x64xf32> to vector<2x64xf32>
    %330 = arith.addf %327, %329 : vector<2x64xf32>
    %cst_184 = arith.constant 0.000000e+00 : f32
    %331 = vector.broadcast %cst_184 : f32 to vector<2x64xf32>
    %332 = arith.subf %331, %330 : vector<2x64xf32>
    %333 = math.exp %332 : vector<2x64xf32>
    %cst_185 = arith.constant 1.000000e+00 : f32
    %334 = vector.broadcast %cst_185 : f32 to vector<2x64xf32>
    %335 = arith.addf %334, %333 : vector<2x64xf32>
    %cst_186 = arith.constant 1.000000e+00 : f32
    %336 = vector.broadcast %cst_186 : f32 to vector<2x64xf32>
    %337 = arith.divf %336, %335 : vector<2x64xf32>
    %338 = arith.maximumf %311, %337 : vector<2x64xf32>
    %339 = arith.truncf %338 : vector<2x64xf32> to vector<2x64xbf16>
    %c192 = arith.constant 192 : index
    %c0_187 = arith.constant 0 : index
    %340 = vector.load %arg20[%c192, %c0_187] : memref<1600x128xbf16, #tpu.memory_space<vmem>>, vector<64x128xbf16>
    %cst_188 = arith.constant dense<0.000000e+00> : vector<2x128xf32>
    %341 = tpu.matmul %339, %340, %cst_188 {dimension_numbers = #tpu.dot_dimension_numbers<[1], [0], [0], [1], [0, 0, 1, 1], [], []>} : vector<2x64xbf16>, vector<64x128xbf16>, vector<2x128xf32> -> vector<2x128xf32>
    %342 = arith.addf %285, %341 : vector<2x128xf32>
    %c0_189 = arith.constant 0 : index
    %c2_190 = arith.constant 2 : index
    %c0_191 = arith.constant 0 : index
    %c0_192 = arith.constant 0 : index
    %343 = vector.load %arg2[%c0_189, %c2_190, %c0_191, %c0_192] : memref<2x4x2x2xf32, #tpu.memory_space<vmem>>, vector<1x1x2x2xf32>
    %344 = vector.shape_cast %343 : vector<1x1x2x2xf32> to vector<2x2xf32>
    %345 = vector.extract_strided_slice %344 {offsets = [0, 0], sizes = [2, 1], strides = [1, 1]} : vector<2x2xf32> to vector<2x1xf32>
    %c0_193 = arith.constant 0 : index
    %c0_194 = arith.constant 0 : index
    %346 = vector.load %arg8[%c0_193, %c0_194] : memref<2x64xf32, #tpu.memory_space<vmem>>, vector<1x64xf32>
    %347 = vector.broadcast %345 : vector<2x1xf32> to vector<2x64xf32>
    %348 = vector.broadcast %346 : vector<1x64xf32> to vector<2x64xf32>
    %349 = arith.mulf %347, %348 : vector<2x64xf32>
    %350 = vector.extract_strided_slice %344 {offsets = [0, 1], sizes = [2, 1], strides = [1, 1]} : vector<2x2xf32> to vector<2x1xf32>
    %c1_195 = arith.constant 1 : index
    %c0_196 = arith.constant 0 : index
    %351 = vector.load %arg8[%c1_195, %c0_196] : memref<2x64xf32, #tpu.memory_space<vmem>>, vector<1x64xf32>
    %352 = vector.broadcast %350 : vector<2x1xf32> to vector<2x64xf32>
    %353 = vector.broadcast %351 : vector<1x64xf32> to vector<2x64xf32>
    %354 = arith.mulf %352, %353 : vector<2x64xf32>
    %355 = arith.addf %349, %354 : vector<2x64xf32>
    %c0_197 = arith.constant 0 : index
    %c0_198 = arith.constant 0 : index
    %356 = vector.load %arg9[%c0_197, %c0_198] : memref<1x64xf32, #tpu.memory_space<vmem>>, vector<1x64xf32>
    %357 = vector.broadcast %356 : vector<1x64xf32> to vector<2x64xf32>
    %358 = arith.mulf %355, %357 : vector<2x64xf32>
    %c0_199 = arith.constant 0 : index
    %c0_200 = arith.constant 0 : index
    %359 = vector.load %arg10[%c0_199, %c0_200] : memref<1x64xf32, #tpu.memory_space<vmem>>, vector<1x64xf32>
    %360 = vector.broadcast %359 : vector<1x64xf32> to vector<2x64xf32>
    %361 = arith.addf %358, %360 : vector<2x64xf32>
    %cst_201 = arith.constant 0.000000e+00 : f32
    %362 = vector.broadcast %cst_201 : f32 to vector<2x64xf32>
    %363 = arith.subf %362, %361 : vector<2x64xf32>
    %364 = math.exp %363 : vector<2x64xf32>
    %cst_202 = arith.constant 1.000000e+00 : f32
    %365 = vector.broadcast %cst_202 : f32 to vector<2x64xf32>
    %366 = arith.addf %365, %364 : vector<2x64xf32>
    %cst_203 = arith.constant 1.000000e+00 : f32
    %367 = vector.broadcast %cst_203 : f32 to vector<2x64xf32>
    %368 = arith.divf %367, %366 : vector<2x64xf32>
    %c1_204 = arith.constant 1 : index
    %c2_205 = arith.constant 2 : index
    %c0_206 = arith.constant 0 : index
    %c0_207 = arith.constant 0 : index
    %369 = vector.load %arg2[%c1_204, %c2_205, %c0_206, %c0_207] : memref<2x4x2x2xf32, #tpu.memory_space<vmem>>, vector<1x1x2x2xf32>
    %370 = vector.shape_cast %369 : vector<1x1x2x2xf32> to vector<2x2xf32>
    %371 = vector.extract_strided_slice %370 {offsets = [0, 0], sizes = [2, 1], strides = [1, 1]} : vector<2x2xf32> to vector<2x1xf32>
    %c0_208 = arith.constant 0 : index
    %c0_209 = arith.constant 0 : index
    %372 = vector.load %arg8[%c0_208, %c0_209] : memref<2x64xf32, #tpu.memory_space<vmem>>, vector<1x64xf32>
    %373 = vector.broadcast %371 : vector<2x1xf32> to vector<2x64xf32>
    %374 = vector.broadcast %372 : vector<1x64xf32> to vector<2x64xf32>
    %375 = arith.mulf %373, %374 : vector<2x64xf32>
    %376 = vector.extract_strided_slice %370 {offsets = [0, 1], sizes = [2, 1], strides = [1, 1]} : vector<2x2xf32> to vector<2x1xf32>
    %c1_210 = arith.constant 1 : index
    %c0_211 = arith.constant 0 : index
    %377 = vector.load %arg8[%c1_210, %c0_211] : memref<2x64xf32, #tpu.memory_space<vmem>>, vector<1x64xf32>
    %378 = vector.broadcast %376 : vector<2x1xf32> to vector<2x64xf32>
    %379 = vector.broadcast %377 : vector<1x64xf32> to vector<2x64xf32>
    %380 = arith.mulf %378, %379 : vector<2x64xf32>
    %381 = arith.addf %375, %380 : vector<2x64xf32>
    %c0_212 = arith.constant 0 : index
    %c0_213 = arith.constant 0 : index
    %382 = vector.load %arg9[%c0_212, %c0_213] : memref<1x64xf32, #tpu.memory_space<vmem>>, vector<1x64xf32>
    %383 = vector.broadcast %382 : vector<1x64xf32> to vector<2x64xf32>
    %384 = arith.mulf %381, %383 : vector<2x64xf32>
    %c0_214 = arith.constant 0 : index
    %c0_215 = arith.constant 0 : index
    %385 = vector.load %arg10[%c0_214, %c0_215] : memref<1x64xf32, #tpu.memory_space<vmem>>, vector<1x64xf32>
    %386 = vector.broadcast %385 : vector<1x64xf32> to vector<2x64xf32>
    %387 = arith.addf %384, %386 : vector<2x64xf32>
    %cst_216 = arith.constant 0.000000e+00 : f32
    %388 = vector.broadcast %cst_216 : f32 to vector<2x64xf32>
    %389 = arith.subf %388, %387 : vector<2x64xf32>
    %390 = math.exp %389 : vector<2x64xf32>
    %cst_217 = arith.constant 1.000000e+00 : f32
    %391 = vector.broadcast %cst_217 : f32 to vector<2x64xf32>
    %392 = arith.addf %391, %390 : vector<2x64xf32>
    %cst_218 = arith.constant 1.000000e+00 : f32
    %393 = vector.broadcast %cst_218 : f32 to vector<2x64xf32>
    %394 = arith.divf %393, %392 : vector<2x64xf32>
    %395 = arith.maximumf %368, %394 : vector<2x64xf32>
    %396 = arith.truncf %395 : vector<2x64xf32> to vector<2x64xbf16>
    %c256 = arith.constant 256 : index
    %c0_219 = arith.constant 0 : index
    %397 = vector.load %arg20[%c256, %c0_219] : memref<1600x128xbf16, #tpu.memory_space<vmem>>, vector<64x128xbf16>
    %cst_220 = arith.constant dense<0.000000e+00> : vector<2x128xf32>
    %398 = tpu.matmul %396, %397, %cst_220 {dimension_numbers = #tpu.dot_dimension_numbers<[1], [0], [0], [1], [0, 0, 1, 1], [], []>} : vector<2x64xbf16>, vector<64x128xbf16>, vector<2x128xf32> -> vector<2x128xf32>
    %399 = arith.addf %342, %398 : vector<2x128xf32>
    %c0_221 = arith.constant 0 : index
    %c3_222 = arith.constant 3 : index
    %c0_223 = arith.constant 0 : index
    %c0_224 = arith.constant 0 : index
    %400 = vector.load %arg2[%c0_221, %c3_222, %c0_223, %c0_224] : memref<2x4x2x2xf32, #tpu.memory_space<vmem>>, vector<1x1x2x2xf32>
    %401 = vector.shape_cast %400 : vector<1x1x2x2xf32> to vector<2x2xf32>
    %402 = vector.extract_strided_slice %401 {offsets = [0, 0], sizes = [2, 1], strides = [1, 1]} : vector<2x2xf32> to vector<2x1xf32>
    %c0_225 = arith.constant 0 : index
    %c0_226 = arith.constant 0 : index
    %403 = vector.load %arg8[%c0_225, %c0_226] : memref<2x64xf32, #tpu.memory_space<vmem>>, vector<1x64xf32>
    %404 = vector.broadcast %402 : vector<2x1xf32> to vector<2x64xf32>
    %405 = vector.broadcast %403 : vector<1x64xf32> to vector<2x64xf32>
    %406 = arith.mulf %404, %405 : vector<2x64xf32>
    %407 = vector.extract_strided_slice %401 {offsets = [0, 1], sizes = [2, 1], strides = [1, 1]} : vector<2x2xf32> to vector<2x1xf32>
    %c1_227 = arith.constant 1 : index
    %c0_228 = arith.constant 0 : index
    %408 = vector.load %arg8[%c1_227, %c0_228] : memref<2x64xf32, #tpu.memory_space<vmem>>, vector<1x64xf32>
    %409 = vector.broadcast %407 : vector<2x1xf32> to vector<2x64xf32>
    %410 = vector.broadcast %408 : vector<1x64xf32> to vector<2x64xf32>
    %411 = arith.mulf %409, %410 : vector<2x64xf32>
    %412 = arith.addf %406, %411 : vector<2x64xf32>
    %c0_229 = arith.constant 0 : index
    %c0_230 = arith.constant 0 : index
    %413 = vector.load %arg9[%c0_229, %c0_230] : memref<1x64xf32, #tpu.memory_space<vmem>>, vector<1x64xf32>
    %414 = vector.broadcast %413 : vector<1x64xf32> to vector<2x64xf32>
    %415 = arith.mulf %412, %414 : vector<2x64xf32>
    %c0_231 = arith.constant 0 : index
    %c0_232 = arith.constant 0 : index
    %416 = vector.load %arg10[%c0_231, %c0_232] : memref<1x64xf32, #tpu.memory_space<vmem>>, vector<1x64xf32>
    %417 = vector.broadcast %416 : vector<1x64xf32> to vector<2x64xf32>
    %418 = arith.addf %415, %417 : vector<2x64xf32>
    %cst_233 = arith.constant 0.000000e+00 : f32
    %419 = vector.broadcast %cst_233 : f32 to vector<2x64xf32>
    %420 = arith.subf %419, %418 : vector<2x64xf32>
    %421 = math.exp %420 : vector<2x64xf32>
    %cst_234 = arith.constant 1.000000e+00 : f32
    %422 = vector.broadcast %cst_234 : f32 to vector<2x64xf32>
    %423 = arith.addf %422, %421 : vector<2x64xf32>
    %cst_235 = arith.constant 1.000000e+00 : f32
    %424 = vector.broadcast %cst_235 : f32 to vector<2x64xf32>
    %425 = arith.divf %424, %423 : vector<2x64xf32>
    %c1_236 = arith.constant 1 : index
    %c3_237 = arith.constant 3 : index
    %c0_238 = arith.constant 0 : index
    %c0_239 = arith.constant 0 : index
    %426 = vector.load %arg2[%c1_236, %c3_237, %c0_238, %c0_239] : memref<2x4x2x2xf32, #tpu.memory_space<vmem>>, vector<1x1x2x2xf32>
    %427 = vector.shape_cast %426 : vector<1x1x2x2xf32> to vector<2x2xf32>
    %428 = vector.extract_strided_slice %427 {offsets = [0, 0], sizes = [2, 1], strides = [1, 1]} : vector<2x2xf32> to vector<2x1xf32>
    %c0_240 = arith.constant 0 : index
    %c0_241 = arith.constant 0 : index
    %429 = vector.load %arg8[%c0_240, %c0_241] : memref<2x64xf32, #tpu.memory_space<vmem>>, vector<1x64xf32>
    %430 = vector.broadcast %428 : vector<2x1xf32> to vector<2x64xf32>
    %431 = vector.broadcast %429 : vector<1x64xf32> to vector<2x64xf32>
    %432 = arith.mulf %430, %431 : vector<2x64xf32>
    %433 = vector.extract_strided_slice %427 {offsets = [0, 1], sizes = [2, 1], strides = [1, 1]} : vector<2x2xf32> to vector<2x1xf32>
    %c1_242 = arith.constant 1 : index
    %c0_243 = arith.constant 0 : index
    %434 = vector.load %arg8[%c1_242, %c0_243] : memref<2x64xf32, #tpu.memory_space<vmem>>, vector<1x64xf32>
    %435 = vector.broadcast %433 : vector<2x1xf32> to vector<2x64xf32>
    %436 = vector.broadcast %434 : vector<1x64xf32> to vector<2x64xf32>
    %437 = arith.mulf %435, %436 : vector<2x64xf32>
    %438 = arith.addf %432, %437 : vector<2x64xf32>
    %c0_244 = arith.constant 0 : index
    %c0_245 = arith.constant 0 : index
    %439 = vector.load %arg9[%c0_244, %c0_245] : memref<1x64xf32, #tpu.memory_space<vmem>>, vector<1x64xf32>
    %440 = vector.broadcast %439 : vector<1x64xf32> to vector<2x64xf32>
    %441 = arith.mulf %438, %440 : vector<2x64xf32>
    %c0_246 = arith.constant 0 : index
    %c0_247 = arith.constant 0 : index
    %442 = vector.load %arg10[%c0_246, %c0_247] : memref<1x64xf32, #tpu.memory_space<vmem>>, vector<1x64xf32>
    %443 = vector.broadcast %442 : vector<1x64xf32> to vector<2x64xf32>
    %444 = arith.addf %441, %443 : vector<2x64xf32>
    %cst_248 = arith.constant 0.000000e+00 : f32
    %445 = vector.broadcast %cst_248 : f32 to vector<2x64xf32>
    %446 = arith.subf %445, %444 : vector<2x64xf32>
    %447 = math.exp %446 : vector<2x64xf32>
    %cst_249 = arith.constant 1.000000e+00 : f32
    %448 = vector.broadcast %cst_249 : f32 to vector<2x64xf32>
    %449 = arith.addf %448, %447 : vector<2x64xf32>
    %cst_250 = arith.constant 1.000000e+00 : f32
    %450 = vector.broadcast %cst_250 : f32 to vector<2x64xf32>
    %451 = arith.divf %450, %449 : vector<2x64xf32>
    %452 = arith.maximumf %425, %451 : vector<2x64xf32>
    %453 = arith.truncf %452 : vector<2x64xf32> to vector<2x64xbf16>
    %c320 = arith.constant 320 : index
    %c0_251 = arith.constant 0 : index
    %454 = vector.load %arg20[%c320, %c0_251] : memref<1600x128xbf16, #tpu.memory_space<vmem>>, vector<64x128xbf16>
    %cst_252 = arith.constant dense<0.000000e+00> : vector<2x128xf32>
    %455 = tpu.matmul %453, %454, %cst_252 {dimension_numbers = #tpu.dot_dimension_numbers<[1], [0], [0], [1], [0, 0, 1, 1], [], []>} : vector<2x64xbf16>, vector<64x128xbf16>, vector<2x128xf32> -> vector<2x128xf32>
    %456 = arith.addf %399, %455 : vector<2x128xf32>
    %c0_253 = arith.constant 0 : index
    %c0_254 = arith.constant 0 : index
    %c0_255 = arith.constant 0 : index
    %c0_256 = arith.constant 0 : index
    %457 = vector.load %arg3[%c0_253, %c0_254, %c0_255, %c0_256] : memref<2x4x2x12xf32, #tpu.memory_space<vmem>>, vector<1x1x2x12xf32>
    %458 = vector.shape_cast %457 : vector<1x1x2x12xf32> to vector<2x12xf32>
    %459 = vector.extract_strided_slice %458 {offsets = [0, 0], sizes = [2, 1], strides = [1, 1]} : vector<2x12xf32> to vector<2x1xf32>
    %c0_257 = arith.constant 0 : index
    %c0_258 = arith.constant 0 : index
    %460 = vector.load %arg11[%c0_257, %c0_258] : memref<12x64xf32, #tpu.memory_space<vmem>>, vector<1x64xf32>
    %461 = vector.broadcast %459 : vector<2x1xf32> to vector<2x64xf32>
    %462 = vector.broadcast %460 : vector<1x64xf32> to vector<2x64xf32>
    %463 = arith.mulf %461, %462 : vector<2x64xf32>
    %464 = vector.extract_strided_slice %458 {offsets = [0, 1], sizes = [2, 1], strides = [1, 1]} : vector<2x12xf32> to vector<2x1xf32>
    %c1_259 = arith.constant 1 : index
    %c0_260 = arith.constant 0 : index
    %465 = vector.load %arg11[%c1_259, %c0_260] : memref<12x64xf32, #tpu.memory_space<vmem>>, vector<1x64xf32>
    %466 = vector.broadcast %464 : vector<2x1xf32> to vector<2x64xf32>
    %467 = vector.broadcast %465 : vector<1x64xf32> to vector<2x64xf32>
    %468 = arith.mulf %466, %467 : vector<2x64xf32>
    %469 = arith.addf %463, %468 : vector<2x64xf32>
    %470 = vector.extract_strided_slice %458 {offsets = [0, 2], sizes = [2, 1], strides = [1, 1]} : vector<2x12xf32> to vector<2x1xf32>
    %c2_261 = arith.constant 2 : index
    %c0_262 = arith.constant 0 : index
    %471 = vector.load %arg11[%c2_261, %c0_262] : memref<12x64xf32, #tpu.memory_space<vmem>>, vector<1x64xf32>
    %472 = vector.broadcast %470 : vector<2x1xf32> to vector<2x64xf32>
    %473 = vector.broadcast %471 : vector<1x64xf32> to vector<2x64xf32>
    %474 = arith.mulf %472, %473 : vector<2x64xf32>
    %475 = arith.addf %469, %474 : vector<2x64xf32>
    %476 = vector.extract_strided_slice %458 {offsets = [0, 3], sizes = [2, 1], strides = [1, 1]} : vector<2x12xf32> to vector<2x1xf32>
    %c3_263 = arith.constant 3 : index
    %c0_264 = arith.constant 0 : index
    %477 = vector.load %arg11[%c3_263, %c0_264] : memref<12x64xf32, #tpu.memory_space<vmem>>, vector<1x64xf32>
    %478 = vector.broadcast %476 : vector<2x1xf32> to vector<2x64xf32>
    %479 = vector.broadcast %477 : vector<1x64xf32> to vector<2x64xf32>
    %480 = arith.mulf %478, %479 : vector<2x64xf32>
    %481 = arith.addf %475, %480 : vector<2x64xf32>
    %482 = vector.extract_strided_slice %458 {offsets = [0, 4], sizes = [2, 1], strides = [1, 1]} : vector<2x12xf32> to vector<2x1xf32>
    %c4 = arith.constant 4 : index
    %c0_265 = arith.constant 0 : index
    %483 = vector.load %arg11[%c4, %c0_265] : memref<12x64xf32, #tpu.memory_space<vmem>>, vector<1x64xf32>
    %484 = vector.broadcast %482 : vector<2x1xf32> to vector<2x64xf32>
    %485 = vector.broadcast %483 : vector<1x64xf32> to vector<2x64xf32>
    %486 = arith.mulf %484, %485 : vector<2x64xf32>
    %487 = arith.addf %481, %486 : vector<2x64xf32>
    %488 = vector.extract_strided_slice %458 {offsets = [0, 5], sizes = [2, 1], strides = [1, 1]} : vector<2x12xf32> to vector<2x1xf32>
    %c5 = arith.constant 5 : index
    %c0_266 = arith.constant 0 : index
    %489 = vector.load %arg11[%c5, %c0_266] : memref<12x64xf32, #tpu.memory_space<vmem>>, vector<1x64xf32>
    %490 = vector.broadcast %488 : vector<2x1xf32> to vector<2x64xf32>
    %491 = vector.broadcast %489 : vector<1x64xf32> to vector<2x64xf32>
    %492 = arith.mulf %490, %491 : vector<2x64xf32>
    %493 = arith.addf %487, %492 : vector<2x64xf32>
    %494 = vector.extract_strided_slice %458 {offsets = [0, 6], sizes = [2, 1], strides = [1, 1]} : vector<2x12xf32> to vector<2x1xf32>
    %c6 = arith.constant 6 : index
    %c0_267 = arith.constant 0 : index
    %495 = vector.load %arg11[%c6, %c0_267] : memref<12x64xf32, #tpu.memory_space<vmem>>, vector<1x64xf32>
    %496 = vector.broadcast %494 : vector<2x1xf32> to vector<2x64xf32>
    %497 = vector.broadcast %495 : vector<1x64xf32> to vector<2x64xf32>
    %498 = arith.mulf %496, %497 : vector<2x64xf32>
    %499 = arith.addf %493, %498 : vector<2x64xf32>
    %500 = vector.extract_strided_slice %458 {offsets = [0, 7], sizes = [2, 1], strides = [1, 1]} : vector<2x12xf32> to vector<2x1xf32>
    %c7 = arith.constant 7 : index
    %c0_268 = arith.constant 0 : index
    %501 = vector.load %arg11[%c7, %c0_268] : memref<12x64xf32, #tpu.memory_space<vmem>>, vector<1x64xf32>
    %502 = vector.broadcast %500 : vector<2x1xf32> to vector<2x64xf32>
    %503 = vector.broadcast %501 : vector<1x64xf32> to vector<2x64xf32>
    %504 = arith.mulf %502, %503 : vector<2x64xf32>
    %505 = arith.addf %499, %504 : vector<2x64xf32>
    %506 = vector.extract_strided_slice %458 {offsets = [0, 8], sizes = [2, 1], strides = [1, 1]} : vector<2x12xf32> to vector<2x1xf32>
    %c8 = arith.constant 8 : index
    %c0_269 = arith.constant 0 : index
    %507 = vector.load %arg11[%c8, %c0_269] : memref<12x64xf32, #tpu.memory_space<vmem>>, vector<1x64xf32>
    %508 = vector.broadcast %506 : vector<2x1xf32> to vector<2x64xf32>
    %509 = vector.broadcast %507 : vector<1x64xf32> to vector<2x64xf32>
    %510 = arith.mulf %508, %509 : vector<2x64xf32>
    %511 = arith.addf %505, %510 : vector<2x64xf32>
    %512 = vector.extract_strided_slice %458 {offsets = [0, 9], sizes = [2, 1], strides = [1, 1]} : vector<2x12xf32> to vector<2x1xf32>
    %c9 = arith.constant 9 : index
    %c0_270 = arith.constant 0 : index
    %513 = vector.load %arg11[%c9, %c0_270] : memref<12x64xf32, #tpu.memory_space<vmem>>, vector<1x64xf32>
    %514 = vector.broadcast %512 : vector<2x1xf32> to vector<2x64xf32>
    %515 = vector.broadcast %513 : vector<1x64xf32> to vector<2x64xf32>
    %516 = arith.mulf %514, %515 : vector<2x64xf32>
    %517 = arith.addf %511, %516 : vector<2x64xf32>
    %518 = vector.extract_strided_slice %458 {offsets = [0, 10], sizes = [2, 1], strides = [1, 1]} : vector<2x12xf32> to vector<2x1xf32>
    %c10 = arith.constant 10 : index
    %c0_271 = arith.constant 0 : index
    %519 = vector.load %arg11[%c10, %c0_271] : memref<12x64xf32, #tpu.memory_space<vmem>>, vector<1x64xf32>
    %520 = vector.broadcast %518 : vector<2x1xf32> to vector<2x64xf32>
    %521 = vector.broadcast %519 : vector<1x64xf32> to vector<2x64xf32>
    %522 = arith.mulf %520, %521 : vector<2x64xf32>
    %523 = arith.addf %517, %522 : vector<2x64xf32>
    %524 = vector.extract_strided_slice %458 {offsets = [0, 11], sizes = [2, 1], strides = [1, 1]} : vector<2x12xf32> to vector<2x1xf32>
    %c11 = arith.constant 11 : index
    %c0_272 = arith.constant 0 : index
    %525 = vector.load %arg11[%c11, %c0_272] : memref<12x64xf32, #tpu.memory_space<vmem>>, vector<1x64xf32>
    %526 = vector.broadcast %524 : vector<2x1xf32> to vector<2x64xf32>
    %527 = vector.broadcast %525 : vector<1x64xf32> to vector<2x64xf32>
    %528 = arith.mulf %526, %527 : vector<2x64xf32>
    %529 = arith.addf %523, %528 : vector<2x64xf32>
    %c0_273 = arith.constant 0 : index
    %c0_274 = arith.constant 0 : index
    %530 = vector.load %arg12[%c0_273, %c0_274] : memref<1x64xf32, #tpu.memory_space<vmem>>, vector<1x64xf32>
    %531 = vector.broadcast %530 : vector<1x64xf32> to vector<2x64xf32>
    %532 = arith.mulf %529, %531 : vector<2x64xf32>
    %c0_275 = arith.constant 0 : index
    %c0_276 = arith.constant 0 : index
    %533 = vector.load %arg13[%c0_275, %c0_276] : memref<1x64xf32, #tpu.memory_space<vmem>>, vector<1x64xf32>
    %534 = vector.broadcast %533 : vector<1x64xf32> to vector<2x64xf32>
    %535 = arith.addf %532, %534 : vector<2x64xf32>
    %cst_277 = arith.constant 0.000000e+00 : f32
    %536 = vector.broadcast %cst_277 : f32 to vector<2x64xf32>
    %537 = arith.subf %536, %535 : vector<2x64xf32>
    %538 = math.exp %537 : vector<2x64xf32>
    %cst_278 = arith.constant 1.000000e+00 : f32
    %539 = vector.broadcast %cst_278 : f32 to vector<2x64xf32>
    %540 = arith.addf %539, %538 : vector<2x64xf32>
    %cst_279 = arith.constant 1.000000e+00 : f32
    %541 = vector.broadcast %cst_279 : f32 to vector<2x64xf32>
    %542 = arith.divf %541, %540 : vector<2x64xf32>
    %c1_280 = arith.constant 1 : index
    %c0_281 = arith.constant 0 : index
    %c0_282 = arith.constant 0 : index
    %c0_283 = arith.constant 0 : index
    %543 = vector.load %arg3[%c1_280, %c0_281, %c0_282, %c0_283] : memref<2x4x2x12xf32, #tpu.memory_space<vmem>>, vector<1x1x2x12xf32>
    %544 = vector.shape_cast %543 : vector<1x1x2x12xf32> to vector<2x12xf32>
    %545 = vector.extract_strided_slice %544 {offsets = [0, 0], sizes = [2, 1], strides = [1, 1]} : vector<2x12xf32> to vector<2x1xf32>
    %c0_284 = arith.constant 0 : index
    %c0_285 = arith.constant 0 : index
    %546 = vector.load %arg11[%c0_284, %c0_285] : memref<12x64xf32, #tpu.memory_space<vmem>>, vector<1x64xf32>
    %547 = vector.broadcast %545 : vector<2x1xf32> to vector<2x64xf32>
    %548 = vector.broadcast %546 : vector<1x64xf32> to vector<2x64xf32>
    %549 = arith.mulf %547, %548 : vector<2x64xf32>
    %550 = vector.extract_strided_slice %544 {offsets = [0, 1], sizes = [2, 1], strides = [1, 1]} : vector<2x12xf32> to vector<2x1xf32>
    %c1_286 = arith.constant 1 : index
    %c0_287 = arith.constant 0 : index
    %551 = vector.load %arg11[%c1_286, %c0_287] : memref<12x64xf32, #tpu.memory_space<vmem>>, vector<1x64xf32>
    %552 = vector.broadcast %550 : vector<2x1xf32> to vector<2x64xf32>
    %553 = vector.broadcast %551 : vector<1x64xf32> to vector<2x64xf32>
    %554 = arith.mulf %552, %553 : vector<2x64xf32>
    %555 = arith.addf %549, %554 : vector<2x64xf32>
    %556 = vector.extract_strided_slice %544 {offsets = [0, 2], sizes = [2, 1], strides = [1, 1]} : vector<2x12xf32> to vector<2x1xf32>
    %c2_288 = arith.constant 2 : index
    %c0_289 = arith.constant 0 : index
    %557 = vector.load %arg11[%c2_288, %c0_289] : memref<12x64xf32, #tpu.memory_space<vmem>>, vector<1x64xf32>
    %558 = vector.broadcast %556 : vector<2x1xf32> to vector<2x64xf32>
    %559 = vector.broadcast %557 : vector<1x64xf32> to vector<2x64xf32>
    %560 = arith.mulf %558, %559 : vector<2x64xf32>
    %561 = arith.addf %555, %560 : vector<2x64xf32>
    %562 = vector.extract_strided_slice %544 {offsets = [0, 3], sizes = [2, 1], strides = [1, 1]} : vector<2x12xf32> to vector<2x1xf32>
    %c3_290 = arith.constant 3 : index
    %c0_291 = arith.constant 0 : index
    %563 = vector.load %arg11[%c3_290, %c0_291] : memref<12x64xf32, #tpu.memory_space<vmem>>, vector<1x64xf32>
    %564 = vector.broadcast %562 : vector<2x1xf32> to vector<2x64xf32>
    %565 = vector.broadcast %563 : vector<1x64xf32> to vector<2x64xf32>
    %566 = arith.mulf %564, %565 : vector<2x64xf32>
    %567 = arith.addf %561, %566 : vector<2x64xf32>
    %568 = vector.extract_strided_slice %544 {offsets = [0, 4], sizes = [2, 1], strides = [1, 1]} : vector<2x12xf32> to vector<2x1xf32>
    %c4_292 = arith.constant 4 : index
    %c0_293 = arith.constant 0 : index
    %569 = vector.load %arg11[%c4_292, %c0_293] : memref<12x64xf32, #tpu.memory_space<vmem>>, vector<1x64xf32>
    %570 = vector.broadcast %568 : vector<2x1xf32> to vector<2x64xf32>
    %571 = vector.broadcast %569 : vector<1x64xf32> to vector<2x64xf32>
    %572 = arith.mulf %570, %571 : vector<2x64xf32>
    %573 = arith.addf %567, %572 : vector<2x64xf32>
    %574 = vector.extract_strided_slice %544 {offsets = [0, 5], sizes = [2, 1], strides = [1, 1]} : vector<2x12xf32> to vector<2x1xf32>
    %c5_294 = arith.constant 5 : index
    %c0_295 = arith.constant 0 : index
    %575 = vector.load %arg11[%c5_294, %c0_295] : memref<12x64xf32, #tpu.memory_space<vmem>>, vector<1x64xf32>
    %576 = vector.broadcast %574 : vector<2x1xf32> to vector<2x64xf32>
    %577 = vector.broadcast %575 : vector<1x64xf32> to vector<2x64xf32>
    %578 = arith.mulf %576, %577 : vector<2x64xf32>
    %579 = arith.addf %573, %578 : vector<2x64xf32>
    %580 = vector.extract_strided_slice %544 {offsets = [0, 6], sizes = [2, 1], strides = [1, 1]} : vector<2x12xf32> to vector<2x1xf32>
    %c6_296 = arith.constant 6 : index
    %c0_297 = arith.constant 0 : index
    %581 = vector.load %arg11[%c6_296, %c0_297] : memref<12x64xf32, #tpu.memory_space<vmem>>, vector<1x64xf32>
    %582 = vector.broadcast %580 : vector<2x1xf32> to vector<2x64xf32>
    %583 = vector.broadcast %581 : vector<1x64xf32> to vector<2x64xf32>
    %584 = arith.mulf %582, %583 : vector<2x64xf32>
    %585 = arith.addf %579, %584 : vector<2x64xf32>
    %586 = vector.extract_strided_slice %544 {offsets = [0, 7], sizes = [2, 1], strides = [1, 1]} : vector<2x12xf32> to vector<2x1xf32>
    %c7_298 = arith.constant 7 : index
    %c0_299 = arith.constant 0 : index
    %587 = vector.load %arg11[%c7_298, %c0_299] : memref<12x64xf32, #tpu.memory_space<vmem>>, vector<1x64xf32>
    %588 = vector.broadcast %586 : vector<2x1xf32> to vector<2x64xf32>
    %589 = vector.broadcast %587 : vector<1x64xf32> to vector<2x64xf32>
    %590 = arith.mulf %588, %589 : vector<2x64xf32>
    %591 = arith.addf %585, %590 : vector<2x64xf32>
    %592 = vector.extract_strided_slice %544 {offsets = [0, 8], sizes = [2, 1], strides = [1, 1]} : vector<2x12xf32> to vector<2x1xf32>
    %c8_300 = arith.constant 8 : index
    %c0_301 = arith.constant 0 : index
    %593 = vector.load %arg11[%c8_300, %c0_301] : memref<12x64xf32, #tpu.memory_space<vmem>>, vector<1x64xf32>
    %594 = vector.broadcast %592 : vector<2x1xf32> to vector<2x64xf32>
    %595 = vector.broadcast %593 : vector<1x64xf32> to vector<2x64xf32>
    %596 = arith.mulf %594, %595 : vector<2x64xf32>
    %597 = arith.addf %591, %596 : vector<2x64xf32>
    %598 = vector.extract_strided_slice %544 {offsets = [0, 9], sizes = [2, 1], strides = [1, 1]} : vector<2x12xf32> to vector<2x1xf32>
    %c9_302 = arith.constant 9 : index
    %c0_303 = arith.constant 0 : index
    %599 = vector.load %arg11[%c9_302, %c0_303] : memref<12x64xf32, #tpu.memory_space<vmem>>, vector<1x64xf32>
    %600 = vector.broadcast %598 : vector<2x1xf32> to vector<2x64xf32>
    %601 = vector.broadcast %599 : vector<1x64xf32> to vector<2x64xf32>
    %602 = arith.mulf %600, %601 : vector<2x64xf32>
    %603 = arith.addf %597, %602 : vector<2x64xf32>
    %604 = vector.extract_strided_slice %544 {offsets = [0, 10], sizes = [2, 1], strides = [1, 1]} : vector<2x12xf32> to vector<2x1xf32>
    %c10_304 = arith.constant 10 : index
    %c0_305 = arith.constant 0 : index
    %605 = vector.load %arg11[%c10_304, %c0_305] : memref<12x64xf32, #tpu.memory_space<vmem>>, vector<1x64xf32>
    %606 = vector.broadcast %604 : vector<2x1xf32> to vector<2x64xf32>
    %607 = vector.broadcast %605 : vector<1x64xf32> to vector<2x64xf32>
    %608 = arith.mulf %606, %607 : vector<2x64xf32>
    %609 = arith.addf %603, %608 : vector<2x64xf32>
    %610 = vector.extract_strided_slice %544 {offsets = [0, 11], sizes = [2, 1], strides = [1, 1]} : vector<2x12xf32> to vector<2x1xf32>
    %c11_306 = arith.constant 11 : index
    %c0_307 = arith.constant 0 : index
    %611 = vector.load %arg11[%c11_306, %c0_307] : memref<12x64xf32, #tpu.memory_space<vmem>>, vector<1x64xf32>
    %612 = vector.broadcast %610 : vector<2x1xf32> to vector<2x64xf32>
    %613 = vector.broadcast %611 : vector<1x64xf32> to vector<2x64xf32>
    %614 = arith.mulf %612, %613 : vector<2x64xf32>
    %615 = arith.addf %609, %614 : vector<2x64xf32>
    %c0_308 = arith.constant 0 : index
    %c0_309 = arith.constant 0 : index
    %616 = vector.load %arg12[%c0_308, %c0_309] : memref<1x64xf32, #tpu.memory_space<vmem>>, vector<1x64xf32>
    %617 = vector.broadcast %616 : vector<1x64xf32> to vector<2x64xf32>
    %618 = arith.mulf %615, %617 : vector<2x64xf32>
    %c0_310 = arith.constant 0 : index
    %c0_311 = arith.constant 0 : index
    %619 = vector.load %arg13[%c0_310, %c0_311] : memref<1x64xf32, #tpu.memory_space<vmem>>, vector<1x64xf32>
    %620 = vector.broadcast %619 : vector<1x64xf32> to vector<2x64xf32>
    %621 = arith.addf %618, %620 : vector<2x64xf32>
    %cst_312 = arith.constant 0.000000e+00 : f32
    %622 = vector.broadcast %cst_312 : f32 to vector<2x64xf32>
    %623 = arith.subf %622, %621 : vector<2x64xf32>
    %624 = math.exp %623 : vector<2x64xf32>
    %cst_313 = arith.constant 1.000000e+00 : f32
    %625 = vector.broadcast %cst_313 : f32 to vector<2x64xf32>
    %626 = arith.addf %625, %624 : vector<2x64xf32>
    %cst_314 = arith.constant 1.000000e+00 : f32
    %627 = vector.broadcast %cst_314 : f32 to vector<2x64xf32>
    %628 = arith.divf %627, %626 : vector<2x64xf32>
    %629 = arith.maximumf %542, %628 : vector<2x64xf32>
    %c0_315 = arith.constant 0 : index
    %c0_316 = arith.constant 0 : index
    %630 = vector.load %arg14[%c0_315, %c0_316] : memref<64x32xf32, #tpu.memory_space<vmem>>, vector<64x32xf32>
    %cst_317 = arith.constant dense<0.000000e+00> : vector<2x32xf32>
    %631 = tpu.matmul %629, %630, %cst_317 {dimension_numbers = #tpu.dot_dimension_numbers<[1], [0], [0], [1], [0, 0, 1, 1], [], []>} : vector<2x64xf32>, vector<64x32xf32>, vector<2x32xf32> -> vector<2x32xf32>
    %c0_318 = arith.constant 0 : index
    %c0_319 = arith.constant 0 : index
    %632 = vector.load %arg15[%c0_318, %c0_319] : memref<1x32xf32, #tpu.memory_space<vmem>>, vector<1x32xf32>
    %633 = vector.broadcast %632 : vector<1x32xf32> to vector<2x32xf32>
    %634 = arith.mulf %631, %633 : vector<2x32xf32>
    %c0_320 = arith.constant 0 : index
    %c0_321 = arith.constant 0 : index
    %635 = vector.load %arg16[%c0_320, %c0_321] : memref<1x32xf32, #tpu.memory_space<vmem>>, vector<1x32xf32>
    %636 = vector.broadcast %635 : vector<1x32xf32> to vector<2x32xf32>
    %637 = arith.addf %634, %636 : vector<2x32xf32>
    %cst_322 = arith.constant 0.000000e+00 : f32
    %638 = vector.broadcast %cst_322 : f32 to vector<2x32xf32>
    %639 = arith.subf %638, %637 : vector<2x32xf32>
    %640 = math.exp %639 : vector<2x32xf32>
    %cst_323 = arith.constant 1.000000e+00 : f32
    %641 = vector.broadcast %cst_323 : f32 to vector<2x32xf32>
    %642 = arith.addf %641, %640 : vector<2x32xf32>
    %cst_324 = arith.constant 1.000000e+00 : f32
    %643 = vector.broadcast %cst_324 : f32 to vector<2x32xf32>
    %644 = arith.divf %643, %642 : vector<2x32xf32>
    %c0_325 = arith.constant 0 : index
    %c1_326 = arith.constant 1 : index
    %c0_327 = arith.constant 0 : index
    %c0_328 = arith.constant 0 : index
    %645 = vector.load %arg3[%c0_325, %c1_326, %c0_327, %c0_328] : memref<2x4x2x12xf32, #tpu.memory_space<vmem>>, vector<1x1x2x12xf32>
    %646 = vector.shape_cast %645 : vector<1x1x2x12xf32> to vector<2x12xf32>
    %647 = vector.extract_strided_slice %646 {offsets = [0, 0], sizes = [2, 1], strides = [1, 1]} : vector<2x12xf32> to vector<2x1xf32>
    %c0_329 = arith.constant 0 : index
    %c0_330 = arith.constant 0 : index
    %648 = vector.load %arg11[%c0_329, %c0_330] : memref<12x64xf32, #tpu.memory_space<vmem>>, vector<1x64xf32>
    %649 = vector.broadcast %647 : vector<2x1xf32> to vector<2x64xf32>
    %650 = vector.broadcast %648 : vector<1x64xf32> to vector<2x64xf32>
    %651 = arith.mulf %649, %650 : vector<2x64xf32>
    %652 = vector.extract_strided_slice %646 {offsets = [0, 1], sizes = [2, 1], strides = [1, 1]} : vector<2x12xf32> to vector<2x1xf32>
    %c1_331 = arith.constant 1 : index
    %c0_332 = arith.constant 0 : index
    %653 = vector.load %arg11[%c1_331, %c0_332] : memref<12x64xf32, #tpu.memory_space<vmem>>, vector<1x64xf32>
    %654 = vector.broadcast %652 : vector<2x1xf32> to vector<2x64xf32>
    %655 = vector.broadcast %653 : vector<1x64xf32> to vector<2x64xf32>
    %656 = arith.mulf %654, %655 : vector<2x64xf32>
    %657 = arith.addf %651, %656 : vector<2x64xf32>
    %658 = vector.extract_strided_slice %646 {offsets = [0, 2], sizes = [2, 1], strides = [1, 1]} : vector<2x12xf32> to vector<2x1xf32>
    %c2_333 = arith.constant 2 : index
    %c0_334 = arith.constant 0 : index
    %659 = vector.load %arg11[%c2_333, %c0_334] : memref<12x64xf32, #tpu.memory_space<vmem>>, vector<1x64xf32>
    %660 = vector.broadcast %658 : vector<2x1xf32> to vector<2x64xf32>
    %661 = vector.broadcast %659 : vector<1x64xf32> to vector<2x64xf32>
    %662 = arith.mulf %660, %661 : vector<2x64xf32>
    %663 = arith.addf %657, %662 : vector<2x64xf32>
    %664 = vector.extract_strided_slice %646 {offsets = [0, 3], sizes = [2, 1], strides = [1, 1]} : vector<2x12xf32> to vector<2x1xf32>
    %c3_335 = arith.constant 3 : index
    %c0_336 = arith.constant 0 : index
    %665 = vector.load %arg11[%c3_335, %c0_336] : memref<12x64xf32, #tpu.memory_space<vmem>>, vector<1x64xf32>
    %666 = vector.broadcast %664 : vector<2x1xf32> to vector<2x64xf32>
    %667 = vector.broadcast %665 : vector<1x64xf32> to vector<2x64xf32>
    %668 = arith.mulf %666, %667 : vector<2x64xf32>
    %669 = arith.addf %663, %668 : vector<2x64xf32>
    %670 = vector.extract_strided_slice %646 {offsets = [0, 4], sizes = [2, 1], strides = [1, 1]} : vector<2x12xf32> to vector<2x1xf32>
    %c4_337 = arith.constant 4 : index
    %c0_338 = arith.constant 0 : index
    %671 = vector.load %arg11[%c4_337, %c0_338] : memref<12x64xf32, #tpu.memory_space<vmem>>, vector<1x64xf32>
    %672 = vector.broadcast %670 : vector<2x1xf32> to vector<2x64xf32>
    %673 = vector.broadcast %671 : vector<1x64xf32> to vector<2x64xf32>
    %674 = arith.mulf %672, %673 : vector<2x64xf32>
    %675 = arith.addf %669, %674 : vector<2x64xf32>
    %676 = vector.extract_strided_slice %646 {offsets = [0, 5], sizes = [2, 1], strides = [1, 1]} : vector<2x12xf32> to vector<2x1xf32>
    %c5_339 = arith.constant 5 : index
    %c0_340 = arith.constant 0 : index
    %677 = vector.load %arg11[%c5_339, %c0_340] : memref<12x64xf32, #tpu.memory_space<vmem>>, vector<1x64xf32>
    %678 = vector.broadcast %676 : vector<2x1xf32> to vector<2x64xf32>
    %679 = vector.broadcast %677 : vector<1x64xf32> to vector<2x64xf32>
    %680 = arith.mulf %678, %679 : vector<2x64xf32>
    %681 = arith.addf %675, %680 : vector<2x64xf32>
    %682 = vector.extract_strided_slice %646 {offsets = [0, 6], sizes = [2, 1], strides = [1, 1]} : vector<2x12xf32> to vector<2x1xf32>
    %c6_341 = arith.constant 6 : index
    %c0_342 = arith.constant 0 : index
    %683 = vector.load %arg11[%c6_341, %c0_342] : memref<12x64xf32, #tpu.memory_space<vmem>>, vector<1x64xf32>
    %684 = vector.broadcast %682 : vector<2x1xf32> to vector<2x64xf32>
    %685 = vector.broadcast %683 : vector<1x64xf32> to vector<2x64xf32>
    %686 = arith.mulf %684, %685 : vector<2x64xf32>
    %687 = arith.addf %681, %686 : vector<2x64xf32>
    %688 = vector.extract_strided_slice %646 {offsets = [0, 7], sizes = [2, 1], strides = [1, 1]} : vector<2x12xf32> to vector<2x1xf32>
    %c7_343 = arith.constant 7 : index
    %c0_344 = arith.constant 0 : index
    %689 = vector.load %arg11[%c7_343, %c0_344] : memref<12x64xf32, #tpu.memory_space<vmem>>, vector<1x64xf32>
    %690 = vector.broadcast %688 : vector<2x1xf32> to vector<2x64xf32>
    %691 = vector.broadcast %689 : vector<1x64xf32> to vector<2x64xf32>
    %692 = arith.mulf %690, %691 : vector<2x64xf32>
    %693 = arith.addf %687, %692 : vector<2x64xf32>
    %694 = vector.extract_strided_slice %646 {offsets = [0, 8], sizes = [2, 1], strides = [1, 1]} : vector<2x12xf32> to vector<2x1xf32>
    %c8_345 = arith.constant 8 : index
    %c0_346 = arith.constant 0 : index
    %695 = vector.load %arg11[%c8_345, %c0_346] : memref<12x64xf32, #tpu.memory_space<vmem>>, vector<1x64xf32>
    %696 = vector.broadcast %694 : vector<2x1xf32> to vector<2x64xf32>
    %697 = vector.broadcast %695 : vector<1x64xf32> to vector<2x64xf32>
    %698 = arith.mulf %696, %697 : vector<2x64xf32>
    %699 = arith.addf %693, %698 : vector<2x64xf32>
    %700 = vector.extract_strided_slice %646 {offsets = [0, 9], sizes = [2, 1], strides = [1, 1]} : vector<2x12xf32> to vector<2x1xf32>
    %c9_347 = arith.constant 9 : index
    %c0_348 = arith.constant 0 : index
    %701 = vector.load %arg11[%c9_347, %c0_348] : memref<12x64xf32, #tpu.memory_space<vmem>>, vector<1x64xf32>
    %702 = vector.broadcast %700 : vector<2x1xf32> to vector<2x64xf32>
    %703 = vector.broadcast %701 : vector<1x64xf32> to vector<2x64xf32>
    %704 = arith.mulf %702, %703 : vector<2x64xf32>
    %705 = arith.addf %699, %704 : vector<2x64xf32>
    %706 = vector.extract_strided_slice %646 {offsets = [0, 10], sizes = [2, 1], strides = [1, 1]} : vector<2x12xf32> to vector<2x1xf32>
    %c10_349 = arith.constant 10 : index
    %c0_350 = arith.constant 0 : index
    %707 = vector.load %arg11[%c10_349, %c0_350] : memref<12x64xf32, #tpu.memory_space<vmem>>, vector<1x64xf32>
    %708 = vector.broadcast %706 : vector<2x1xf32> to vector<2x64xf32>
    %709 = vector.broadcast %707 : vector<1x64xf32> to vector<2x64xf32>
    %710 = arith.mulf %708, %709 : vector<2x64xf32>
    %711 = arith.addf %705, %710 : vector<2x64xf32>
    %712 = vector.extract_strided_slice %646 {offsets = [0, 11], sizes = [2, 1], strides = [1, 1]} : vector<2x12xf32> to vector<2x1xf32>
    %c11_351 = arith.constant 11 : index
    %c0_352 = arith.constant 0 : index
    %713 = vector.load %arg11[%c11_351, %c0_352] : memref<12x64xf32, #tpu.memory_space<vmem>>, vector<1x64xf32>
    %714 = vector.broadcast %712 : vector<2x1xf32> to vector<2x64xf32>
    %715 = vector.broadcast %713 : vector<1x64xf32> to vector<2x64xf32>
    %716 = arith.mulf %714, %715 : vector<2x64xf32>
    %717 = arith.addf %711, %716 : vector<2x64xf32>
    %c0_353 = arith.constant 0 : index
    %c0_354 = arith.constant 0 : index
    %718 = vector.load %arg12[%c0_353, %c0_354] : memref<1x64xf32, #tpu.memory_space<vmem>>, vector<1x64xf32>
    %719 = vector.broadcast %718 : vector<1x64xf32> to vector<2x64xf32>
    %720 = arith.mulf %717, %719 : vector<2x64xf32>
    %c0_355 = arith.constant 0 : index
    %c0_356 = arith.constant 0 : index
    %721 = vector.load %arg13[%c0_355, %c0_356] : memref<1x64xf32, #tpu.memory_space<vmem>>, vector<1x64xf32>
    %722 = vector.broadcast %721 : vector<1x64xf32> to vector<2x64xf32>
    %723 = arith.addf %720, %722 : vector<2x64xf32>
    %cst_357 = arith.constant 0.000000e+00 : f32
    %724 = vector.broadcast %cst_357 : f32 to vector<2x64xf32>
    %725 = arith.subf %724, %723 : vector<2x64xf32>
    %726 = math.exp %725 : vector<2x64xf32>
    %cst_358 = arith.constant 1.000000e+00 : f32
    %727 = vector.broadcast %cst_358 : f32 to vector<2x64xf32>
    %728 = arith.addf %727, %726 : vector<2x64xf32>
    %cst_359 = arith.constant 1.000000e+00 : f32
    %729 = vector.broadcast %cst_359 : f32 to vector<2x64xf32>
    %730 = arith.divf %729, %728 : vector<2x64xf32>
    %c1_360 = arith.constant 1 : index
    %c1_361 = arith.constant 1 : index
    %c0_362 = arith.constant 0 : index
    %c0_363 = arith.constant 0 : index
    %731 = vector.load %arg3[%c1_360, %c1_361, %c0_362, %c0_363] : memref<2x4x2x12xf32, #tpu.memory_space<vmem>>, vector<1x1x2x12xf32>
    %732 = vector.shape_cast %731 : vector<1x1x2x12xf32> to vector<2x12xf32>
    %733 = vector.extract_strided_slice %732 {offsets = [0, 0], sizes = [2, 1], strides = [1, 1]} : vector<2x12xf32> to vector<2x1xf32>
    %c0_364 = arith.constant 0 : index
    %c0_365 = arith.constant 0 : index
    %734 = vector.load %arg11[%c0_364, %c0_365] : memref<12x64xf32, #tpu.memory_space<vmem>>, vector<1x64xf32>
    %735 = vector.broadcast %733 : vector<2x1xf32> to vector<2x64xf32>
    %736 = vector.broadcast %734 : vector<1x64xf32> to vector<2x64xf32>
    %737 = arith.mulf %735, %736 : vector<2x64xf32>
    %738 = vector.extract_strided_slice %732 {offsets = [0, 1], sizes = [2, 1], strides = [1, 1]} : vector<2x12xf32> to vector<2x1xf32>
    %c1_366 = arith.constant 1 : index
    %c0_367 = arith.constant 0 : index
    %739 = vector.load %arg11[%c1_366, %c0_367] : memref<12x64xf32, #tpu.memory_space<vmem>>, vector<1x64xf32>
    %740 = vector.broadcast %738 : vector<2x1xf32> to vector<2x64xf32>
    %741 = vector.broadcast %739 : vector<1x64xf32> to vector<2x64xf32>
    %742 = arith.mulf %740, %741 : vector<2x64xf32>
    %743 = arith.addf %737, %742 : vector<2x64xf32>
    %744 = vector.extract_strided_slice %732 {offsets = [0, 2], sizes = [2, 1], strides = [1, 1]} : vector<2x12xf32> to vector<2x1xf32>
    %c2_368 = arith.constant 2 : index
    %c0_369 = arith.constant 0 : index
    %745 = vector.load %arg11[%c2_368, %c0_369] : memref<12x64xf32, #tpu.memory_space<vmem>>, vector<1x64xf32>
    %746 = vector.broadcast %744 : vector<2x1xf32> to vector<2x64xf32>
    %747 = vector.broadcast %745 : vector<1x64xf32> to vector<2x64xf32>
    %748 = arith.mulf %746, %747 : vector<2x64xf32>
    %749 = arith.addf %743, %748 : vector<2x64xf32>
    %750 = vector.extract_strided_slice %732 {offsets = [0, 3], sizes = [2, 1], strides = [1, 1]} : vector<2x12xf32> to vector<2x1xf32>
    %c3_370 = arith.constant 3 : index
    %c0_371 = arith.constant 0 : index
    %751 = vector.load %arg11[%c3_370, %c0_371] : memref<12x64xf32, #tpu.memory_space<vmem>>, vector<1x64xf32>
    %752 = vector.broadcast %750 : vector<2x1xf32> to vector<2x64xf32>
    %753 = vector.broadcast %751 : vector<1x64xf32> to vector<2x64xf32>
    %754 = arith.mulf %752, %753 : vector<2x64xf32>
    %755 = arith.addf %749, %754 : vector<2x64xf32>
    %756 = vector.extract_strided_slice %732 {offsets = [0, 4], sizes = [2, 1], strides = [1, 1]} : vector<2x12xf32> to vector<2x1xf32>
    %c4_372 = arith.constant 4 : index
    %c0_373 = arith.constant 0 : index
    %757 = vector.load %arg11[%c4_372, %c0_373] : memref<12x64xf32, #tpu.memory_space<vmem>>, vector<1x64xf32>
    %758 = vector.broadcast %756 : vector<2x1xf32> to vector<2x64xf32>
    %759 = vector.broadcast %757 : vector<1x64xf32> to vector<2x64xf32>
    %760 = arith.mulf %758, %759 : vector<2x64xf32>
    %761 = arith.addf %755, %760 : vector<2x64xf32>
    %762 = vector.extract_strided_slice %732 {offsets = [0, 5], sizes = [2, 1], strides = [1, 1]} : vector<2x12xf32> to vector<2x1xf32>
    %c5_374 = arith.constant 5 : index
    %c0_375 = arith.constant 0 : index
    %763 = vector.load %arg11[%c5_374, %c0_375] : memref<12x64xf32, #tpu.memory_space<vmem>>, vector<1x64xf32>
    %764 = vector.broadcast %762 : vector<2x1xf32> to vector<2x64xf32>
    %765 = vector.broadcast %763 : vector<1x64xf32> to vector<2x64xf32>
    %766 = arith.mulf %764, %765 : vector<2x64xf32>
    %767 = arith.addf %761, %766 : vector<2x64xf32>
    %768 = vector.extract_strided_slice %732 {offsets = [0, 6], sizes = [2, 1], strides = [1, 1]} : vector<2x12xf32> to vector<2x1xf32>
    %c6_376 = arith.constant 6 : index
    %c0_377 = arith.constant 0 : index
    %769 = vector.load %arg11[%c6_376, %c0_377] : memref<12x64xf32, #tpu.memory_space<vmem>>, vector<1x64xf32>
    %770 = vector.broadcast %768 : vector<2x1xf32> to vector<2x64xf32>
    %771 = vector.broadcast %769 : vector<1x64xf32> to vector<2x64xf32>
    %772 = arith.mulf %770, %771 : vector<2x64xf32>
    %773 = arith.addf %767, %772 : vector<2x64xf32>
    %774 = vector.extract_strided_slice %732 {offsets = [0, 7], sizes = [2, 1], strides = [1, 1]} : vector<2x12xf32> to vector<2x1xf32>
    %c7_378 = arith.constant 7 : index
    %c0_379 = arith.constant 0 : index
    %775 = vector.load %arg11[%c7_378, %c0_379] : memref<12x64xf32, #tpu.memory_space<vmem>>, vector<1x64xf32>
    %776 = vector.broadcast %774 : vector<2x1xf32> to vector<2x64xf32>
    %777 = vector.broadcast %775 : vector<1x64xf32> to vector<2x64xf32>
    %778 = arith.mulf %776, %777 : vector<2x64xf32>
    %779 = arith.addf %773, %778 : vector<2x64xf32>
    %780 = vector.extract_strided_slice %732 {offsets = [0, 8], sizes = [2, 1], strides = [1, 1]} : vector<2x12xf32> to vector<2x1xf32>
    %c8_380 = arith.constant 8 : index
    %c0_381 = arith.constant 0 : index
    %781 = vector.load %arg11[%c8_380, %c0_381] : memref<12x64xf32, #tpu.memory_space<vmem>>, vector<1x64xf32>
    %782 = vector.broadcast %780 : vector<2x1xf32> to vector<2x64xf32>
    %783 = vector.broadcast %781 : vector<1x64xf32> to vector<2x64xf32>
    %784 = arith.mulf %782, %783 : vector<2x64xf32>
    %785 = arith.addf %779, %784 : vector<2x64xf32>
    %786 = vector.extract_strided_slice %732 {offsets = [0, 9], sizes = [2, 1], strides = [1, 1]} : vector<2x12xf32> to vector<2x1xf32>
    %c9_382 = arith.constant 9 : index
    %c0_383 = arith.constant 0 : index
    %787 = vector.load %arg11[%c9_382, %c0_383] : memref<12x64xf32, #tpu.memory_space<vmem>>, vector<1x64xf32>
    %788 = vector.broadcast %786 : vector<2x1xf32> to vector<2x64xf32>
    %789 = vector.broadcast %787 : vector<1x64xf32> to vector<2x64xf32>
    %790 = arith.mulf %788, %789 : vector<2x64xf32>
    %791 = arith.addf %785, %790 : vector<2x64xf32>
    %792 = vector.extract_strided_slice %732 {offsets = [0, 10], sizes = [2, 1], strides = [1, 1]} : vector<2x12xf32> to vector<2x1xf32>
    %c10_384 = arith.constant 10 : index
    %c0_385 = arith.constant 0 : index
    %793 = vector.load %arg11[%c10_384, %c0_385] : memref<12x64xf32, #tpu.memory_space<vmem>>, vector<1x64xf32>
    %794 = vector.broadcast %792 : vector<2x1xf32> to vector<2x64xf32>
    %795 = vector.broadcast %793 : vector<1x64xf32> to vector<2x64xf32>
    %796 = arith.mulf %794, %795 : vector<2x64xf32>
    %797 = arith.addf %791, %796 : vector<2x64xf32>
    %798 = vector.extract_strided_slice %732 {offsets = [0, 11], sizes = [2, 1], strides = [1, 1]} : vector<2x12xf32> to vector<2x1xf32>
    %c11_386 = arith.constant 11 : index
    %c0_387 = arith.constant 0 : index
    %799 = vector.load %arg11[%c11_386, %c0_387] : memref<12x64xf32, #tpu.memory_space<vmem>>, vector<1x64xf32>
    %800 = vector.broadcast %798 : vector<2x1xf32> to vector<2x64xf32>
    %801 = vector.broadcast %799 : vector<1x64xf32> to vector<2x64xf32>
    %802 = arith.mulf %800, %801 : vector<2x64xf32>
    %803 = arith.addf %797, %802 : vector<2x64xf32>
    %c0_388 = arith.constant 0 : index
    %c0_389 = arith.constant 0 : index
    %804 = vector.load %arg12[%c0_388, %c0_389] : memref<1x64xf32, #tpu.memory_space<vmem>>, vector<1x64xf32>
    %805 = vector.broadcast %804 : vector<1x64xf32> to vector<2x64xf32>
    %806 = arith.mulf %803, %805 : vector<2x64xf32>
    %c0_390 = arith.constant 0 : index
    %c0_391 = arith.constant 0 : index
    %807 = vector.load %arg13[%c0_390, %c0_391] : memref<1x64xf32, #tpu.memory_space<vmem>>, vector<1x64xf32>
    %808 = vector.broadcast %807 : vector<1x64xf32> to vector<2x64xf32>
    %809 = arith.addf %806, %808 : vector<2x64xf32>
    %cst_392 = arith.constant 0.000000e+00 : f32
    %810 = vector.broadcast %cst_392 : f32 to vector<2x64xf32>
    %811 = arith.subf %810, %809 : vector<2x64xf32>
    %812 = math.exp %811 : vector<2x64xf32>
    %cst_393 = arith.constant 1.000000e+00 : f32
    %813 = vector.broadcast %cst_393 : f32 to vector<2x64xf32>
    %814 = arith.addf %813, %812 : vector<2x64xf32>
    %cst_394 = arith.constant 1.000000e+00 : f32
    %815 = vector.broadcast %cst_394 : f32 to vector<2x64xf32>
    %816 = arith.divf %815, %814 : vector<2x64xf32>
    %817 = arith.maximumf %730, %816 : vector<2x64xf32>
    %c0_395 = arith.constant 0 : index
    %c0_396 = arith.constant 0 : index
    %818 = vector.load %arg14[%c0_395, %c0_396] : memref<64x32xf32, #tpu.memory_space<vmem>>, vector<64x32xf32>
    %cst_397 = arith.constant dense<0.000000e+00> : vector<2x32xf32>
    %819 = tpu.matmul %817, %818, %cst_397 {dimension_numbers = #tpu.dot_dimension_numbers<[1], [0], [0], [1], [0, 0, 1, 1], [], []>} : vector<2x64xf32>, vector<64x32xf32>, vector<2x32xf32> -> vector<2x32xf32>
    %c0_398 = arith.constant 0 : index
    %c0_399 = arith.constant 0 : index
    %820 = vector.load %arg15[%c0_398, %c0_399] : memref<1x32xf32, #tpu.memory_space<vmem>>, vector<1x32xf32>
    %821 = vector.broadcast %820 : vector<1x32xf32> to vector<2x32xf32>
    %822 = arith.mulf %819, %821 : vector<2x32xf32>
    %c0_400 = arith.constant 0 : index
    %c0_401 = arith.constant 0 : index
    %823 = vector.load %arg16[%c0_400, %c0_401] : memref<1x32xf32, #tpu.memory_space<vmem>>, vector<1x32xf32>
    %824 = vector.broadcast %823 : vector<1x32xf32> to vector<2x32xf32>
    %825 = arith.addf %822, %824 : vector<2x32xf32>
    %cst_402 = arith.constant 0.000000e+00 : f32
    %826 = vector.broadcast %cst_402 : f32 to vector<2x32xf32>
    %827 = arith.subf %826, %825 : vector<2x32xf32>
    %828 = math.exp %827 : vector<2x32xf32>
    %cst_403 = arith.constant 1.000000e+00 : f32
    %829 = vector.broadcast %cst_403 : f32 to vector<2x32xf32>
    %830 = arith.addf %829, %828 : vector<2x32xf32>
    %cst_404 = arith.constant 1.000000e+00 : f32
    %831 = vector.broadcast %cst_404 : f32 to vector<2x32xf32>
    %832 = arith.divf %831, %830 : vector<2x32xf32>
    %c0_405 = arith.constant 0 : index
    %c2_406 = arith.constant 2 : index
    %c0_407 = arith.constant 0 : index
    %c0_408 = arith.constant 0 : index
    %833 = vector.load %arg3[%c0_405, %c2_406, %c0_407, %c0_408] : memref<2x4x2x12xf32, #tpu.memory_space<vmem>>, vector<1x1x2x12xf32>
    %834 = vector.shape_cast %833 : vector<1x1x2x12xf32> to vector<2x12xf32>
    %835 = vector.extract_strided_slice %834 {offsets = [0, 0], sizes = [2, 1], strides = [1, 1]} : vector<2x12xf32> to vector<2x1xf32>
    %c0_409 = arith.constant 0 : index
    %c0_410 = arith.constant 0 : index
    %836 = vector.load %arg11[%c0_409, %c0_410] : memref<12x64xf32, #tpu.memory_space<vmem>>, vector<1x64xf32>
    %837 = vector.broadcast %835 : vector<2x1xf32> to vector<2x64xf32>
    %838 = vector.broadcast %836 : vector<1x64xf32> to vector<2x64xf32>
    %839 = arith.mulf %837, %838 : vector<2x64xf32>
    %840 = vector.extract_strided_slice %834 {offsets = [0, 1], sizes = [2, 1], strides = [1, 1]} : vector<2x12xf32> to vector<2x1xf32>
    %c1_411 = arith.constant 1 : index
    %c0_412 = arith.constant 0 : index
    %841 = vector.load %arg11[%c1_411, %c0_412] : memref<12x64xf32, #tpu.memory_space<vmem>>, vector<1x64xf32>
    %842 = vector.broadcast %840 : vector<2x1xf32> to vector<2x64xf32>
    %843 = vector.broadcast %841 : vector<1x64xf32> to vector<2x64xf32>
    %844 = arith.mulf %842, %843 : vector<2x64xf32>
    %845 = arith.addf %839, %844 : vector<2x64xf32>
    %846 = vector.extract_strided_slice %834 {offsets = [0, 2], sizes = [2, 1], strides = [1, 1]} : vector<2x12xf32> to vector<2x1xf32>
    %c2_413 = arith.constant 2 : index
    %c0_414 = arith.constant 0 : index
    %847 = vector.load %arg11[%c2_413, %c0_414] : memref<12x64xf32, #tpu.memory_space<vmem>>, vector<1x64xf32>
    %848 = vector.broadcast %846 : vector<2x1xf32> to vector<2x64xf32>
    %849 = vector.broadcast %847 : vector<1x64xf32> to vector<2x64xf32>
    %850 = arith.mulf %848, %849 : vector<2x64xf32>
    %851 = arith.addf %845, %850 : vector<2x64xf32>
    %852 = vector.extract_strided_slice %834 {offsets = [0, 3], sizes = [2, 1], strides = [1, 1]} : vector<2x12xf32> to vector<2x1xf32>
    %c3_415 = arith.constant 3 : index
    %c0_416 = arith.constant 0 : index
    %853 = vector.load %arg11[%c3_415, %c0_416] : memref<12x64xf32, #tpu.memory_space<vmem>>, vector<1x64xf32>
    %854 = vector.broadcast %852 : vector<2x1xf32> to vector<2x64xf32>
    %855 = vector.broadcast %853 : vector<1x64xf32> to vector<2x64xf32>
    %856 = arith.mulf %854, %855 : vector<2x64xf32>
    %857 = arith.addf %851, %856 : vector<2x64xf32>
    %858 = vector.extract_strided_slice %834 {offsets = [0, 4], sizes = [2, 1], strides = [1, 1]} : vector<2x12xf32> to vector<2x1xf32>
    %c4_417 = arith.constant 4 : index
    %c0_418 = arith.constant 0 : index
    %859 = vector.load %arg11[%c4_417, %c0_418] : memref<12x64xf32, #tpu.memory_space<vmem>>, vector<1x64xf32>
    %860 = vector.broadcast %858 : vector<2x1xf32> to vector<2x64xf32>
    %861 = vector.broadcast %859 : vector<1x64xf32> to vector<2x64xf32>
    %862 = arith.mulf %860, %861 : vector<2x64xf32>
    %863 = arith.addf %857, %862 : vector<2x64xf32>
    %864 = vector.extract_strided_slice %834 {offsets = [0, 5], sizes = [2, 1], strides = [1, 1]} : vector<2x12xf32> to vector<2x1xf32>
    %c5_419 = arith.constant 5 : index
    %c0_420 = arith.constant 0 : index
    %865 = vector.load %arg11[%c5_419, %c0_420] : memref<12x64xf32, #tpu.memory_space<vmem>>, vector<1x64xf32>
    %866 = vector.broadcast %864 : vector<2x1xf32> to vector<2x64xf32>
    %867 = vector.broadcast %865 : vector<1x64xf32> to vector<2x64xf32>
    %868 = arith.mulf %866, %867 : vector<2x64xf32>
    %869 = arith.addf %863, %868 : vector<2x64xf32>
    %870 = vector.extract_strided_slice %834 {offsets = [0, 6], sizes = [2, 1], strides = [1, 1]} : vector<2x12xf32> to vector<2x1xf32>
    %c6_421 = arith.constant 6 : index
    %c0_422 = arith.constant 0 : index
    %871 = vector.load %arg11[%c6_421, %c0_422] : memref<12x64xf32, #tpu.memory_space<vmem>>, vector<1x64xf32>
    %872 = vector.broadcast %870 : vector<2x1xf32> to vector<2x64xf32>
    %873 = vector.broadcast %871 : vector<1x64xf32> to vector<2x64xf32>
    %874 = arith.mulf %872, %873 : vector<2x64xf32>
    %875 = arith.addf %869, %874 : vector<2x64xf32>
    %876 = vector.extract_strided_slice %834 {offsets = [0, 7], sizes = [2, 1], strides = [1, 1]} : vector<2x12xf32> to vector<2x1xf32>
    %c7_423 = arith.constant 7 : index
    %c0_424 = arith.constant 0 : index
    %877 = vector.load %arg11[%c7_423, %c0_424] : memref<12x64xf32, #tpu.memory_space<vmem>>, vector<1x64xf32>
    %878 = vector.broadcast %876 : vector<2x1xf32> to vector<2x64xf32>
    %879 = vector.broadcast %877 : vector<1x64xf32> to vector<2x64xf32>
    %880 = arith.mulf %878, %879 : vector<2x64xf32>
    %881 = arith.addf %875, %880 : vector<2x64xf32>
    %882 = vector.extract_strided_slice %834 {offsets = [0, 8], sizes = [2, 1], strides = [1, 1]} : vector<2x12xf32> to vector<2x1xf32>
    %c8_425 = arith.constant 8 : index
    %c0_426 = arith.constant 0 : index
    %883 = vector.load %arg11[%c8_425, %c0_426] : memref<12x64xf32, #tpu.memory_space<vmem>>, vector<1x64xf32>
    %884 = vector.broadcast %882 : vector<2x1xf32> to vector<2x64xf32>
    %885 = vector.broadcast %883 : vector<1x64xf32> to vector<2x64xf32>
    %886 = arith.mulf %884, %885 : vector<2x64xf32>
    %887 = arith.addf %881, %886 : vector<2x64xf32>
    %888 = vector.extract_strided_slice %834 {offsets = [0, 9], sizes = [2, 1], strides = [1, 1]} : vector<2x12xf32> to vector<2x1xf32>
    %c9_427 = arith.constant 9 : index
    %c0_428 = arith.constant 0 : index
    %889 = vector.load %arg11[%c9_427, %c0_428] : memref<12x64xf32, #tpu.memory_space<vmem>>, vector<1x64xf32>
    %890 = vector.broadcast %888 : vector<2x1xf32> to vector<2x64xf32>
    %891 = vector.broadcast %889 : vector<1x64xf32> to vector<2x64xf32>
    %892 = arith.mulf %890, %891 : vector<2x64xf32>
    %893 = arith.addf %887, %892 : vector<2x64xf32>
    %894 = vector.extract_strided_slice %834 {offsets = [0, 10], sizes = [2, 1], strides = [1, 1]} : vector<2x12xf32> to vector<2x1xf32>
    %c10_429 = arith.constant 10 : index
    %c0_430 = arith.constant 0 : index
    %895 = vector.load %arg11[%c10_429, %c0_430] : memref<12x64xf32, #tpu.memory_space<vmem>>, vector<1x64xf32>
    %896 = vector.broadcast %894 : vector<2x1xf32> to vector<2x64xf32>
    %897 = vector.broadcast %895 : vector<1x64xf32> to vector<2x64xf32>
    %898 = arith.mulf %896, %897 : vector<2x64xf32>
    %899 = arith.addf %893, %898 : vector<2x64xf32>
    %900 = vector.extract_strided_slice %834 {offsets = [0, 11], sizes = [2, 1], strides = [1, 1]} : vector<2x12xf32> to vector<2x1xf32>
    %c11_431 = arith.constant 11 : index
    %c0_432 = arith.constant 0 : index
    %901 = vector.load %arg11[%c11_431, %c0_432] : memref<12x64xf32, #tpu.memory_space<vmem>>, vector<1x64xf32>
    %902 = vector.broadcast %900 : vector<2x1xf32> to vector<2x64xf32>
    %903 = vector.broadcast %901 : vector<1x64xf32> to vector<2x64xf32>
    %904 = arith.mulf %902, %903 : vector<2x64xf32>
    %905 = arith.addf %899, %904 : vector<2x64xf32>
    %c0_433 = arith.constant 0 : index
    %c0_434 = arith.constant 0 : index
    %906 = vector.load %arg12[%c0_433, %c0_434] : memref<1x64xf32, #tpu.memory_space<vmem>>, vector<1x64xf32>
    %907 = vector.broadcast %906 : vector<1x64xf32> to vector<2x64xf32>
    %908 = arith.mulf %905, %907 : vector<2x64xf32>
    %c0_435 = arith.constant 0 : index
    %c0_436 = arith.constant 0 : index
    %909 = vector.load %arg13[%c0_435, %c0_436] : memref<1x64xf32, #tpu.memory_space<vmem>>, vector<1x64xf32>
    %910 = vector.broadcast %909 : vector<1x64xf32> to vector<2x64xf32>
    %911 = arith.addf %908, %910 : vector<2x64xf32>
    %cst_437 = arith.constant 0.000000e+00 : f32
    %912 = vector.broadcast %cst_437 : f32 to vector<2x64xf32>
    %913 = arith.subf %912, %911 : vector<2x64xf32>
    %914 = math.exp %913 : vector<2x64xf32>
    %cst_438 = arith.constant 1.000000e+00 : f32
    %915 = vector.broadcast %cst_438 : f32 to vector<2x64xf32>
    %916 = arith.addf %915, %914 : vector<2x64xf32>
    %cst_439 = arith.constant 1.000000e+00 : f32
    %917 = vector.broadcast %cst_439 : f32 to vector<2x64xf32>
    %918 = arith.divf %917, %916 : vector<2x64xf32>
    %c1_440 = arith.constant 1 : index
    %c2_441 = arith.constant 2 : index
    %c0_442 = arith.constant 0 : index
    %c0_443 = arith.constant 0 : index
    %919 = vector.load %arg3[%c1_440, %c2_441, %c0_442, %c0_443] : memref<2x4x2x12xf32, #tpu.memory_space<vmem>>, vector<1x1x2x12xf32>
    %920 = vector.shape_cast %919 : vector<1x1x2x12xf32> to vector<2x12xf32>
    %921 = vector.extract_strided_slice %920 {offsets = [0, 0], sizes = [2, 1], strides = [1, 1]} : vector<2x12xf32> to vector<2x1xf32>
    %c0_444 = arith.constant 0 : index
    %c0_445 = arith.constant 0 : index
    %922 = vector.load %arg11[%c0_444, %c0_445] : memref<12x64xf32, #tpu.memory_space<vmem>>, vector<1x64xf32>
    %923 = vector.broadcast %921 : vector<2x1xf32> to vector<2x64xf32>
    %924 = vector.broadcast %922 : vector<1x64xf32> to vector<2x64xf32>
    %925 = arith.mulf %923, %924 : vector<2x64xf32>
    %926 = vector.extract_strided_slice %920 {offsets = [0, 1], sizes = [2, 1], strides = [1, 1]} : vector<2x12xf32> to vector<2x1xf32>
    %c1_446 = arith.constant 1 : index
    %c0_447 = arith.constant 0 : index
    %927 = vector.load %arg11[%c1_446, %c0_447] : memref<12x64xf32, #tpu.memory_space<vmem>>, vector<1x64xf32>
    %928 = vector.broadcast %926 : vector<2x1xf32> to vector<2x64xf32>
    %929 = vector.broadcast %927 : vector<1x64xf32> to vector<2x64xf32>
    %930 = arith.mulf %928, %929 : vector<2x64xf32>
    %931 = arith.addf %925, %930 : vector<2x64xf32>
    %932 = vector.extract_strided_slice %920 {offsets = [0, 2], sizes = [2, 1], strides = [1, 1]} : vector<2x12xf32> to vector<2x1xf32>
    %c2_448 = arith.constant 2 : index
    %c0_449 = arith.constant 0 : index
    %933 = vector.load %arg11[%c2_448, %c0_449] : memref<12x64xf32, #tpu.memory_space<vmem>>, vector<1x64xf32>
    %934 = vector.broadcast %932 : vector<2x1xf32> to vector<2x64xf32>
    %935 = vector.broadcast %933 : vector<1x64xf32> to vector<2x64xf32>
    %936 = arith.mulf %934, %935 : vector<2x64xf32>
    %937 = arith.addf %931, %936 : vector<2x64xf32>
    %938 = vector.extract_strided_slice %920 {offsets = [0, 3], sizes = [2, 1], strides = [1, 1]} : vector<2x12xf32> to vector<2x1xf32>
    %c3_450 = arith.constant 3 : index
    %c0_451 = arith.constant 0 : index
    %939 = vector.load %arg11[%c3_450, %c0_451] : memref<12x64xf32, #tpu.memory_space<vmem>>, vector<1x64xf32>
    %940 = vector.broadcast %938 : vector<2x1xf32> to vector<2x64xf32>
    %941 = vector.broadcast %939 : vector<1x64xf32> to vector<2x64xf32>
    %942 = arith.mulf %940, %941 : vector<2x64xf32>
    %943 = arith.addf %937, %942 : vector<2x64xf32>
    %944 = vector.extract_strided_slice %920 {offsets = [0, 4], sizes = [2, 1], strides = [1, 1]} : vector<2x12xf32> to vector<2x1xf32>
    %c4_452 = arith.constant 4 : index
    %c0_453 = arith.constant 0 : index
    %945 = vector.load %arg11[%c4_452, %c0_453] : memref<12x64xf32, #tpu.memory_space<vmem>>, vector<1x64xf32>
    %946 = vector.broadcast %944 : vector<2x1xf32> to vector<2x64xf32>
    %947 = vector.broadcast %945 : vector<1x64xf32> to vector<2x64xf32>
    %948 = arith.mulf %946, %947 : vector<2x64xf32>
    %949 = arith.addf %943, %948 : vector<2x64xf32>
    %950 = vector.extract_strided_slice %920 {offsets = [0, 5], sizes = [2, 1], strides = [1, 1]} : vector<2x12xf32> to vector<2x1xf32>
    %c5_454 = arith.constant 5 : index
    %c0_455 = arith.constant 0 : index
    %951 = vector.load %arg11[%c5_454, %c0_455] : memref<12x64xf32, #tpu.memory_space<vmem>>, vector<1x64xf32>
    %952 = vector.broadcast %950 : vector<2x1xf32> to vector<2x64xf32>
    %953 = vector.broadcast %951 : vector<1x64xf32> to vector<2x64xf32>
    %954 = arith.mulf %952, %953 : vector<2x64xf32>
    %955 = arith.addf %949, %954 : vector<2x64xf32>
    %956 = vector.extract_strided_slice %920 {offsets = [0, 6], sizes = [2, 1], strides = [1, 1]} : vector<2x12xf32> to vector<2x1xf32>
    %c6_456 = arith.constant 6 : index
    %c0_457 = arith.constant 0 : index
    %957 = vector.load %arg11[%c6_456, %c0_457] : memref<12x64xf32, #tpu.memory_space<vmem>>, vector<1x64xf32>
    %958 = vector.broadcast %956 : vector<2x1xf32> to vector<2x64xf32>
    %959 = vector.broadcast %957 : vector<1x64xf32> to vector<2x64xf32>
    %960 = arith.mulf %958, %959 : vector<2x64xf32>
    %961 = arith.addf %955, %960 : vector<2x64xf32>
    %962 = vector.extract_strided_slice %920 {offsets = [0, 7], sizes = [2, 1], strides = [1, 1]} : vector<2x12xf32> to vector<2x1xf32>
    %c7_458 = arith.constant 7 : index
    %c0_459 = arith.constant 0 : index
    %963 = vector.load %arg11[%c7_458, %c0_459] : memref<12x64xf32, #tpu.memory_space<vmem>>, vector<1x64xf32>
    %964 = vector.broadcast %962 : vector<2x1xf32> to vector<2x64xf32>
    %965 = vector.broadcast %963 : vector<1x64xf32> to vector<2x64xf32>
    %966 = arith.mulf %964, %965 : vector<2x64xf32>
    %967 = arith.addf %961, %966 : vector<2x64xf32>
    %968 = vector.extract_strided_slice %920 {offsets = [0, 8], sizes = [2, 1], strides = [1, 1]} : vector<2x12xf32> to vector<2x1xf32>
    %c8_460 = arith.constant 8 : index
    %c0_461 = arith.constant 0 : index
    %969 = vector.load %arg11[%c8_460, %c0_461] : memref<12x64xf32, #tpu.memory_space<vmem>>, vector<1x64xf32>
    %970 = vector.broadcast %968 : vector<2x1xf32> to vector<2x64xf32>
    %971 = vector.broadcast %969 : vector<1x64xf32> to vector<2x64xf32>
    %972 = arith.mulf %970, %971 : vector<2x64xf32>
    %973 = arith.addf %967, %972 : vector<2x64xf32>
    %974 = vector.extract_strided_slice %920 {offsets = [0, 9], sizes = [2, 1], strides = [1, 1]} : vector<2x12xf32> to vector<2x1xf32>
    %c9_462 = arith.constant 9 : index
    %c0_463 = arith.constant 0 : index
    %975 = vector.load %arg11[%c9_462, %c0_463] : memref<12x64xf32, #tpu.memory_space<vmem>>, vector<1x64xf32>
    %976 = vector.broadcast %974 : vector<2x1xf32> to vector<2x64xf32>
    %977 = vector.broadcast %975 : vector<1x64xf32> to vector<2x64xf32>
    %978 = arith.mulf %976, %977 : vector<2x64xf32>
    %979 = arith.addf %973, %978 : vector<2x64xf32>
    %980 = vector.extract_strided_slice %920 {offsets = [0, 10], sizes = [2, 1], strides = [1, 1]} : vector<2x12xf32> to vector<2x1xf32>
    %c10_464 = arith.constant 10 : index
    %c0_465 = arith.constant 0 : index
    %981 = vector.load %arg11[%c10_464, %c0_465] : memref<12x64xf32, #tpu.memory_space<vmem>>, vector<1x64xf32>
    %982 = vector.broadcast %980 : vector<2x1xf32> to vector<2x64xf32>
    %983 = vector.broadcast %981 : vector<1x64xf32> to vector<2x64xf32>
    %984 = arith.mulf %982, %983 : vector<2x64xf32>
    %985 = arith.addf %979, %984 : vector<2x64xf32>
    %986 = vector.extract_strided_slice %920 {offsets = [0, 11], sizes = [2, 1], strides = [1, 1]} : vector<2x12xf32> to vector<2x1xf32>
    %c11_466 = arith.constant 11 : index
    %c0_467 = arith.constant 0 : index
    %987 = vector.load %arg11[%c11_466, %c0_467] : memref<12x64xf32, #tpu.memory_space<vmem>>, vector<1x64xf32>
    %988 = vector.broadcast %986 : vector<2x1xf32> to vector<2x64xf32>
    %989 = vector.broadcast %987 : vector<1x64xf32> to vector<2x64xf32>
    %990 = arith.mulf %988, %989 : vector<2x64xf32>
    %991 = arith.addf %985, %990 : vector<2x64xf32>
    %c0_468 = arith.constant 0 : index
    %c0_469 = arith.constant 0 : index
    %992 = vector.load %arg12[%c0_468, %c0_469] : memref<1x64xf32, #tpu.memory_space<vmem>>, vector<1x64xf32>
    %993 = vector.broadcast %992 : vector<1x64xf32> to vector<2x64xf32>
    %994 = arith.mulf %991, %993 : vector<2x64xf32>
    %c0_470 = arith.constant 0 : index
    %c0_471 = arith.constant 0 : index
    %995 = vector.load %arg13[%c0_470, %c0_471] : memref<1x64xf32, #tpu.memory_space<vmem>>, vector<1x64xf32>
    %996 = vector.broadcast %995 : vector<1x64xf32> to vector<2x64xf32>
    %997 = arith.addf %994, %996 : vector<2x64xf32>
    %cst_472 = arith.constant 0.000000e+00 : f32
    %998 = vector.broadcast %cst_472 : f32 to vector<2x64xf32>
    %999 = arith.subf %998, %997 : vector<2x64xf32>
    %1000 = math.exp %999 : vector<2x64xf32>
    %cst_473 = arith.constant 1.000000e+00 : f32
    %1001 = vector.broadcast %cst_473 : f32 to vector<2x64xf32>
    %1002 = arith.addf %1001, %1000 : vector<2x64xf32>
    %cst_474 = arith.constant 1.000000e+00 : f32
    %1003 = vector.broadcast %cst_474 : f32 to vector<2x64xf32>
    %1004 = arith.divf %1003, %1002 : vector<2x64xf32>
    %1005 = arith.maximumf %918, %1004 : vector<2x64xf32>
    %c0_475 = arith.constant 0 : index
    %c0_476 = arith.constant 0 : index
    %1006 = vector.load %arg14[%c0_475, %c0_476] : memref<64x32xf32, #tpu.memory_space<vmem>>, vector<64x32xf32>
    %cst_477 = arith.constant dense<0.000000e+00> : vector<2x32xf32>
    %1007 = tpu.matmul %1005, %1006, %cst_477 {dimension_numbers = #tpu.dot_dimension_numbers<[1], [0], [0], [1], [0, 0, 1, 1], [], []>} : vector<2x64xf32>, vector<64x32xf32>, vector<2x32xf32> -> vector<2x32xf32>
    %c0_478 = arith.constant 0 : index
    %c0_479 = arith.constant 0 : index
    %1008 = vector.load %arg15[%c0_478, %c0_479] : memref<1x32xf32, #tpu.memory_space<vmem>>, vector<1x32xf32>
    %1009 = vector.broadcast %1008 : vector<1x32xf32> to vector<2x32xf32>
    %1010 = arith.mulf %1007, %1009 : vector<2x32xf32>
    %c0_480 = arith.constant 0 : index
    %c0_481 = arith.constant 0 : index
    %1011 = vector.load %arg16[%c0_480, %c0_481] : memref<1x32xf32, #tpu.memory_space<vmem>>, vector<1x32xf32>
    %1012 = vector.broadcast %1011 : vector<1x32xf32> to vector<2x32xf32>
    %1013 = arith.addf %1010, %1012 : vector<2x32xf32>
    %cst_482 = arith.constant 0.000000e+00 : f32
    %1014 = vector.broadcast %cst_482 : f32 to vector<2x32xf32>
    %1015 = arith.subf %1014, %1013 : vector<2x32xf32>
    %1016 = math.exp %1015 : vector<2x32xf32>
    %cst_483 = arith.constant 1.000000e+00 : f32
    %1017 = vector.broadcast %cst_483 : f32 to vector<2x32xf32>
    %1018 = arith.addf %1017, %1016 : vector<2x32xf32>
    %cst_484 = arith.constant 1.000000e+00 : f32
    %1019 = vector.broadcast %cst_484 : f32 to vector<2x32xf32>
    %1020 = arith.divf %1019, %1018 : vector<2x32xf32>
    %c0_485 = arith.constant 0 : index
    %c3_486 = arith.constant 3 : index
    %c0_487 = arith.constant 0 : index
    %c0_488 = arith.constant 0 : index
    %1021 = vector.load %arg3[%c0_485, %c3_486, %c0_487, %c0_488] : memref<2x4x2x12xf32, #tpu.memory_space<vmem>>, vector<1x1x2x12xf32>
    %1022 = vector.shape_cast %1021 : vector<1x1x2x12xf32> to vector<2x12xf32>
    %1023 = vector.extract_strided_slice %1022 {offsets = [0, 0], sizes = [2, 1], strides = [1, 1]} : vector<2x12xf32> to vector<2x1xf32>
    %c0_489 = arith.constant 0 : index
    %c0_490 = arith.constant 0 : index
    %1024 = vector.load %arg11[%c0_489, %c0_490] : memref<12x64xf32, #tpu.memory_space<vmem>>, vector<1x64xf32>
    %1025 = vector.broadcast %1023 : vector<2x1xf32> to vector<2x64xf32>
    %1026 = vector.broadcast %1024 : vector<1x64xf32> to vector<2x64xf32>
    %1027 = arith.mulf %1025, %1026 : vector<2x64xf32>
    %1028 = vector.extract_strided_slice %1022 {offsets = [0, 1], sizes = [2, 1], strides = [1, 1]} : vector<2x12xf32> to vector<2x1xf32>
    %c1_491 = arith.constant 1 : index
    %c0_492 = arith.constant 0 : index
    %1029 = vector.load %arg11[%c1_491, %c0_492] : memref<12x64xf32, #tpu.memory_space<vmem>>, vector<1x64xf32>
    %1030 = vector.broadcast %1028 : vector<2x1xf32> to vector<2x64xf32>
    %1031 = vector.broadcast %1029 : vector<1x64xf32> to vector<2x64xf32>
    %1032 = arith.mulf %1030, %1031 : vector<2x64xf32>
    %1033 = arith.addf %1027, %1032 : vector<2x64xf32>
    %1034 = vector.extract_strided_slice %1022 {offsets = [0, 2], sizes = [2, 1], strides = [1, 1]} : vector<2x12xf32> to vector<2x1xf32>
    %c2_493 = arith.constant 2 : index
    %c0_494 = arith.constant 0 : index
    %1035 = vector.load %arg11[%c2_493, %c0_494] : memref<12x64xf32, #tpu.memory_space<vmem>>, vector<1x64xf32>
    %1036 = vector.broadcast %1034 : vector<2x1xf32> to vector<2x64xf32>
    %1037 = vector.broadcast %1035 : vector<1x64xf32> to vector<2x64xf32>
    %1038 = arith.mulf %1036, %1037 : vector<2x64xf32>
    %1039 = arith.addf %1033, %1038 : vector<2x64xf32>
    %1040 = vector.extract_strided_slice %1022 {offsets = [0, 3], sizes = [2, 1], strides = [1, 1]} : vector<2x12xf32> to vector<2x1xf32>
    %c3_495 = arith.constant 3 : index
    %c0_496 = arith.constant 0 : index
    %1041 = vector.load %arg11[%c3_495, %c0_496] : memref<12x64xf32, #tpu.memory_space<vmem>>, vector<1x64xf32>
    %1042 = vector.broadcast %1040 : vector<2x1xf32> to vector<2x64xf32>
    %1043 = vector.broadcast %1041 : vector<1x64xf32> to vector<2x64xf32>
    %1044 = arith.mulf %1042, %1043 : vector<2x64xf32>
    %1045 = arith.addf %1039, %1044 : vector<2x64xf32>
    %1046 = vector.extract_strided_slice %1022 {offsets = [0, 4], sizes = [2, 1], strides = [1, 1]} : vector<2x12xf32> to vector<2x1xf32>
    %c4_497 = arith.constant 4 : index
    %c0_498 = arith.constant 0 : index
    %1047 = vector.load %arg11[%c4_497, %c0_498] : memref<12x64xf32, #tpu.memory_space<vmem>>, vector<1x64xf32>
    %1048 = vector.broadcast %1046 : vector<2x1xf32> to vector<2x64xf32>
    %1049 = vector.broadcast %1047 : vector<1x64xf32> to vector<2x64xf32>
    %1050 = arith.mulf %1048, %1049 : vector<2x64xf32>
    %1051 = arith.addf %1045, %1050 : vector<2x64xf32>
    %1052 = vector.extract_strided_slice %1022 {offsets = [0, 5], sizes = [2, 1], strides = [1, 1]} : vector<2x12xf32> to vector<2x1xf32>
    %c5_499 = arith.constant 5 : index
    %c0_500 = arith.constant 0 : index
    %1053 = vector.load %arg11[%c5_499, %c0_500] : memref<12x64xf32, #tpu.memory_space<vmem>>, vector<1x64xf32>
    %1054 = vector.broadcast %1052 : vector<2x1xf32> to vector<2x64xf32>
    %1055 = vector.broadcast %1053 : vector<1x64xf32> to vector<2x64xf32>
    %1056 = arith.mulf %1054, %1055 : vector<2x64xf32>
    %1057 = arith.addf %1051, %1056 : vector<2x64xf32>
    %1058 = vector.extract_strided_slice %1022 {offsets = [0, 6], sizes = [2, 1], strides = [1, 1]} : vector<2x12xf32> to vector<2x1xf32>
    %c6_501 = arith.constant 6 : index
    %c0_502 = arith.constant 0 : index
    %1059 = vector.load %arg11[%c6_501, %c0_502] : memref<12x64xf32, #tpu.memory_space<vmem>>, vector<1x64xf32>
    %1060 = vector.broadcast %1058 : vector<2x1xf32> to vector<2x64xf32>
    %1061 = vector.broadcast %1059 : vector<1x64xf32> to vector<2x64xf32>
    %1062 = arith.mulf %1060, %1061 : vector<2x64xf32>
    %1063 = arith.addf %1057, %1062 : vector<2x64xf32>
    %1064 = vector.extract_strided_slice %1022 {offsets = [0, 7], sizes = [2, 1], strides = [1, 1]} : vector<2x12xf32> to vector<2x1xf32>
    %c7_503 = arith.constant 7 : index
    %c0_504 = arith.constant 0 : index
    %1065 = vector.load %arg11[%c7_503, %c0_504] : memref<12x64xf32, #tpu.memory_space<vmem>>, vector<1x64xf32>
    %1066 = vector.broadcast %1064 : vector<2x1xf32> to vector<2x64xf32>
    %1067 = vector.broadcast %1065 : vector<1x64xf32> to vector<2x64xf32>
    %1068 = arith.mulf %1066, %1067 : vector<2x64xf32>
    %1069 = arith.addf %1063, %1068 : vector<2x64xf32>
    %1070 = vector.extract_strided_slice %1022 {offsets = [0, 8], sizes = [2, 1], strides = [1, 1]} : vector<2x12xf32> to vector<2x1xf32>
    %c8_505 = arith.constant 8 : index
    %c0_506 = arith.constant 0 : index
    %1071 = vector.load %arg11[%c8_505, %c0_506] : memref<12x64xf32, #tpu.memory_space<vmem>>, vector<1x64xf32>
    %1072 = vector.broadcast %1070 : vector<2x1xf32> to vector<2x64xf32>
    %1073 = vector.broadcast %1071 : vector<1x64xf32> to vector<2x64xf32>
    %1074 = arith.mulf %1072, %1073 : vector<2x64xf32>
    %1075 = arith.addf %1069, %1074 : vector<2x64xf32>
    %1076 = vector.extract_strided_slice %1022 {offsets = [0, 9], sizes = [2, 1], strides = [1, 1]} : vector<2x12xf32> to vector<2x1xf32>
    %c9_507 = arith.constant 9 : index
    %c0_508 = arith.constant 0 : index
    %1077 = vector.load %arg11[%c9_507, %c0_508] : memref<12x64xf32, #tpu.memory_space<vmem>>, vector<1x64xf32>
    %1078 = vector.broadcast %1076 : vector<2x1xf32> to vector<2x64xf32>
    %1079 = vector.broadcast %1077 : vector<1x64xf32> to vector<2x64xf32>
    %1080 = arith.mulf %1078, %1079 : vector<2x64xf32>
    %1081 = arith.addf %1075, %1080 : vector<2x64xf32>
    %1082 = vector.extract_strided_slice %1022 {offsets = [0, 10], sizes = [2, 1], strides = [1, 1]} : vector<2x12xf32> to vector<2x1xf32>
    %c10_509 = arith.constant 10 : index
    %c0_510 = arith.constant 0 : index
    %1083 = vector.load %arg11[%c10_509, %c0_510] : memref<12x64xf32, #tpu.memory_space<vmem>>, vector<1x64xf32>
    %1084 = vector.broadcast %1082 : vector<2x1xf32> to vector<2x64xf32>
    %1085 = vector.broadcast %1083 : vector<1x64xf32> to vector<2x64xf32>
    %1086 = arith.mulf %1084, %1085 : vector<2x64xf32>
    %1087 = arith.addf %1081, %1086 : vector<2x64xf32>
    %1088 = vector.extract_strided_slice %1022 {offsets = [0, 11], sizes = [2, 1], strides = [1, 1]} : vector<2x12xf32> to vector<2x1xf32>
    %c11_511 = arith.constant 11 : index
    %c0_512 = arith.constant 0 : index
    %1089 = vector.load %arg11[%c11_511, %c0_512] : memref<12x64xf32, #tpu.memory_space<vmem>>, vector<1x64xf32>
    %1090 = vector.broadcast %1088 : vector<2x1xf32> to vector<2x64xf32>
    %1091 = vector.broadcast %1089 : vector<1x64xf32> to vector<2x64xf32>
    %1092 = arith.mulf %1090, %1091 : vector<2x64xf32>
    %1093 = arith.addf %1087, %1092 : vector<2x64xf32>
    %c0_513 = arith.constant 0 : index
    %c0_514 = arith.constant 0 : index
    %1094 = vector.load %arg12[%c0_513, %c0_514] : memref<1x64xf32, #tpu.memory_space<vmem>>, vector<1x64xf32>
    %1095 = vector.broadcast %1094 : vector<1x64xf32> to vector<2x64xf32>
    %1096 = arith.mulf %1093, %1095 : vector<2x64xf32>
    %c0_515 = arith.constant 0 : index
    %c0_516 = arith.constant 0 : index
    %1097 = vector.load %arg13[%c0_515, %c0_516] : memref<1x64xf32, #tpu.memory_space<vmem>>, vector<1x64xf32>
    %1098 = vector.broadcast %1097 : vector<1x64xf32> to vector<2x64xf32>
    %1099 = arith.addf %1096, %1098 : vector<2x64xf32>
    %cst_517 = arith.constant 0.000000e+00 : f32
    %1100 = vector.broadcast %cst_517 : f32 to vector<2x64xf32>
    %1101 = arith.subf %1100, %1099 : vector<2x64xf32>
    %1102 = math.exp %1101 : vector<2x64xf32>
    %cst_518 = arith.constant 1.000000e+00 : f32
    %1103 = vector.broadcast %cst_518 : f32 to vector<2x64xf32>
    %1104 = arith.addf %1103, %1102 : vector<2x64xf32>
    %cst_519 = arith.constant 1.000000e+00 : f32
    %1105 = vector.broadcast %cst_519 : f32 to vector<2x64xf32>
    %1106 = arith.divf %1105, %1104 : vector<2x64xf32>
    %c1_520 = arith.constant 1 : index
    %c3_521 = arith.constant 3 : index
    %c0_522 = arith.constant 0 : index
    %c0_523 = arith.constant 0 : index
    %1107 = vector.load %arg3[%c1_520, %c3_521, %c0_522, %c0_523] : memref<2x4x2x12xf32, #tpu.memory_space<vmem>>, vector<1x1x2x12xf32>
    %1108 = vector.shape_cast %1107 : vector<1x1x2x12xf32> to vector<2x12xf32>
    %1109 = vector.extract_strided_slice %1108 {offsets = [0, 0], sizes = [2, 1], strides = [1, 1]} : vector<2x12xf32> to vector<2x1xf32>
    %c0_524 = arith.constant 0 : index
    %c0_525 = arith.constant 0 : index
    %1110 = vector.load %arg11[%c0_524, %c0_525] : memref<12x64xf32, #tpu.memory_space<vmem>>, vector<1x64xf32>
    %1111 = vector.broadcast %1109 : vector<2x1xf32> to vector<2x64xf32>
    %1112 = vector.broadcast %1110 : vector<1x64xf32> to vector<2x64xf32>
    %1113 = arith.mulf %1111, %1112 : vector<2x64xf32>
    %1114 = vector.extract_strided_slice %1108 {offsets = [0, 1], sizes = [2, 1], strides = [1, 1]} : vector<2x12xf32> to vector<2x1xf32>
    %c1_526 = arith.constant 1 : index
    %c0_527 = arith.constant 0 : index
    %1115 = vector.load %arg11[%c1_526, %c0_527] : memref<12x64xf32, #tpu.memory_space<vmem>>, vector<1x64xf32>
    %1116 = vector.broadcast %1114 : vector<2x1xf32> to vector<2x64xf32>
    %1117 = vector.broadcast %1115 : vector<1x64xf32> to vector<2x64xf32>
    %1118 = arith.mulf %1116, %1117 : vector<2x64xf32>
    %1119 = arith.addf %1113, %1118 : vector<2x64xf32>
    %1120 = vector.extract_strided_slice %1108 {offsets = [0, 2], sizes = [2, 1], strides = [1, 1]} : vector<2x12xf32> to vector<2x1xf32>
    %c2_528 = arith.constant 2 : index
    %c0_529 = arith.constant 0 : index
    %1121 = vector.load %arg11[%c2_528, %c0_529] : memref<12x64xf32, #tpu.memory_space<vmem>>, vector<1x64xf32>
    %1122 = vector.broadcast %1120 : vector<2x1xf32> to vector<2x64xf32>
    %1123 = vector.broadcast %1121 : vector<1x64xf32> to vector<2x64xf32>
    %1124 = arith.mulf %1122, %1123 : vector<2x64xf32>
    %1125 = arith.addf %1119, %1124 : vector<2x64xf32>
    %1126 = vector.extract_strided_slice %1108 {offsets = [0, 3], sizes = [2, 1], strides = [1, 1]} : vector<2x12xf32> to vector<2x1xf32>
    %c3_530 = arith.constant 3 : index
    %c0_531 = arith.constant 0 : index
    %1127 = vector.load %arg11[%c3_530, %c0_531] : memref<12x64xf32, #tpu.memory_space<vmem>>, vector<1x64xf32>
    %1128 = vector.broadcast %1126 : vector<2x1xf32> to vector<2x64xf32>
    %1129 = vector.broadcast %1127 : vector<1x64xf32> to vector<2x64xf32>
    %1130 = arith.mulf %1128, %1129 : vector<2x64xf32>
    %1131 = arith.addf %1125, %1130 : vector<2x64xf32>
    %1132 = vector.extract_strided_slice %1108 {offsets = [0, 4], sizes = [2, 1], strides = [1, 1]} : vector<2x12xf32> to vector<2x1xf32>
    %c4_532 = arith.constant 4 : index
    %c0_533 = arith.constant 0 : index
    %1133 = vector.load %arg11[%c4_532, %c0_533] : memref<12x64xf32, #tpu.memory_space<vmem>>, vector<1x64xf32>
    %1134 = vector.broadcast %1132 : vector<2x1xf32> to vector<2x64xf32>
    %1135 = vector.broadcast %1133 : vector<1x64xf32> to vector<2x64xf32>
    %1136 = arith.mulf %1134, %1135 : vector<2x64xf32>
    %1137 = arith.addf %1131, %1136 : vector<2x64xf32>
    %1138 = vector.extract_strided_slice %1108 {offsets = [0, 5], sizes = [2, 1], strides = [1, 1]} : vector<2x12xf32> to vector<2x1xf32>
    %c5_534 = arith.constant 5 : index
    %c0_535 = arith.constant 0 : index
    %1139 = vector.load %arg11[%c5_534, %c0_535] : memref<12x64xf32, #tpu.memory_space<vmem>>, vector<1x64xf32>
    %1140 = vector.broadcast %1138 : vector<2x1xf32> to vector<2x64xf32>
    %1141 = vector.broadcast %1139 : vector<1x64xf32> to vector<2x64xf32>
    %1142 = arith.mulf %1140, %1141 : vector<2x64xf32>
    %1143 = arith.addf %1137, %1142 : vector<2x64xf32>
    %1144 = vector.extract_strided_slice %1108 {offsets = [0, 6], sizes = [2, 1], strides = [1, 1]} : vector<2x12xf32> to vector<2x1xf32>
    %c6_536 = arith.constant 6 : index
    %c0_537 = arith.constant 0 : index
    %1145 = vector.load %arg11[%c6_536, %c0_537] : memref<12x64xf32, #tpu.memory_space<vmem>>, vector<1x64xf32>
    %1146 = vector.broadcast %1144 : vector<2x1xf32> to vector<2x64xf32>
    %1147 = vector.broadcast %1145 : vector<1x64xf32> to vector<2x64xf32>
    %1148 = arith.mulf %1146, %1147 : vector<2x64xf32>
    %1149 = arith.addf %1143, %1148 : vector<2x64xf32>
    %1150 = vector.extract_strided_slice %1108 {offsets = [0, 7], sizes = [2, 1], strides = [1, 1]} : vector<2x12xf32> to vector<2x1xf32>
    %c7_538 = arith.constant 7 : index
    %c0_539 = arith.constant 0 : index
    %1151 = vector.load %arg11[%c7_538, %c0_539] : memref<12x64xf32, #tpu.memory_space<vmem>>, vector<1x64xf32>
    %1152 = vector.broadcast %1150 : vector<2x1xf32> to vector<2x64xf32>
    %1153 = vector.broadcast %1151 : vector<1x64xf32> to vector<2x64xf32>
    %1154 = arith.mulf %1152, %1153 : vector<2x64xf32>
    %1155 = arith.addf %1149, %1154 : vector<2x64xf32>
    %1156 = vector.extract_strided_slice %1108 {offsets = [0, 8], sizes = [2, 1], strides = [1, 1]} : vector<2x12xf32> to vector<2x1xf32>
    %c8_540 = arith.constant 8 : index
    %c0_541 = arith.constant 0 : index
    %1157 = vector.load %arg11[%c8_540, %c0_541] : memref<12x64xf32, #tpu.memory_space<vmem>>, vector<1x64xf32>
    %1158 = vector.broadcast %1156 : vector<2x1xf32> to vector<2x64xf32>
    %1159 = vector.broadcast %1157 : vector<1x64xf32> to vector<2x64xf32>
    %1160 = arith.mulf %1158, %1159 : vector<2x64xf32>
    %1161 = arith.addf %1155, %1160 : vector<2x64xf32>
    %1162 = vector.extract_strided_slice %1108 {offsets = [0, 9], sizes = [2, 1], strides = [1, 1]} : vector<2x12xf32> to vector<2x1xf32>
    %c9_542 = arith.constant 9 : index
    %c0_543 = arith.constant 0 : index
    %1163 = vector.load %arg11[%c9_542, %c0_543] : memref<12x64xf32, #tpu.memory_space<vmem>>, vector<1x64xf32>
    %1164 = vector.broadcast %1162 : vector<2x1xf32> to vector<2x64xf32>
    %1165 = vector.broadcast %1163 : vector<1x64xf32> to vector<2x64xf32>
    %1166 = arith.mulf %1164, %1165 : vector<2x64xf32>
    %1167 = arith.addf %1161, %1166 : vector<2x64xf32>
    %1168 = vector.extract_strided_slice %1108 {offsets = [0, 10], sizes = [2, 1], strides = [1, 1]} : vector<2x12xf32> to vector<2x1xf32>
    %c10_544 = arith.constant 10 : index
    %c0_545 = arith.constant 0 : index
    %1169 = vector.load %arg11[%c10_544, %c0_545] : memref<12x64xf32, #tpu.memory_space<vmem>>, vector<1x64xf32>
    %1170 = vector.broadcast %1168 : vector<2x1xf32> to vector<2x64xf32>
    %1171 = vector.broadcast %1169 : vector<1x64xf32> to vector<2x64xf32>
    %1172 = arith.mulf %1170, %1171 : vector<2x64xf32>
    %1173 = arith.addf %1167, %1172 : vector<2x64xf32>
    %1174 = vector.extract_strided_slice %1108 {offsets = [0, 11], sizes = [2, 1], strides = [1, 1]} : vector<2x12xf32> to vector<2x1xf32>
    %c11_546 = arith.constant 11 : index
    %c0_547 = arith.constant 0 : index
    %1175 = vector.load %arg11[%c11_546, %c0_547] : memref<12x64xf32, #tpu.memory_space<vmem>>, vector<1x64xf32>
    %1176 = vector.broadcast %1174 : vector<2x1xf32> to vector<2x64xf32>
    %1177 = vector.broadcast %1175 : vector<1x64xf32> to vector<2x64xf32>
    %1178 = arith.mulf %1176, %1177 : vector<2x64xf32>
    %1179 = arith.addf %1173, %1178 : vector<2x64xf32>
    %c0_548 = arith.constant 0 : index
    %c0_549 = arith.constant 0 : index
    %1180 = vector.load %arg12[%c0_548, %c0_549] : memref<1x64xf32, #tpu.memory_space<vmem>>, vector<1x64xf32>
    %1181 = vector.broadcast %1180 : vector<1x64xf32> to vector<2x64xf32>
    %1182 = arith.mulf %1179, %1181 : vector<2x64xf32>
    %c0_550 = arith.constant 0 : index
    %c0_551 = arith.constant 0 : index
    %1183 = vector.load %arg13[%c0_550, %c0_551] : memref<1x64xf32, #tpu.memory_space<vmem>>, vector<1x64xf32>
    %1184 = vector.broadcast %1183 : vector<1x64xf32> to vector<2x64xf32>
    %1185 = arith.addf %1182, %1184 : vector<2x64xf32>
    %cst_552 = arith.constant 0.000000e+00 : f32
    %1186 = vector.broadcast %cst_552 : f32 to vector<2x64xf32>
    %1187 = arith.subf %1186, %1185 : vector<2x64xf32>
    %1188 = math.exp %1187 : vector<2x64xf32>
    %cst_553 = arith.constant 1.000000e+00 : f32
    %1189 = vector.broadcast %cst_553 : f32 to vector<2x64xf32>
    %1190 = arith.addf %1189, %1188 : vector<2x64xf32>
    %cst_554 = arith.constant 1.000000e+00 : f32
    %1191 = vector.broadcast %cst_554 : f32 to vector<2x64xf32>
    %1192 = arith.divf %1191, %1190 : vector<2x64xf32>
    %1193 = arith.maximumf %1106, %1192 : vector<2x64xf32>
    %c0_555 = arith.constant 0 : index
    %c0_556 = arith.constant 0 : index
    %1194 = vector.load %arg14[%c0_555, %c0_556] : memref<64x32xf32, #tpu.memory_space<vmem>>, vector<64x32xf32>
    %cst_557 = arith.constant dense<0.000000e+00> : vector<2x32xf32>
    %1195 = tpu.matmul %1193, %1194, %cst_557 {dimension_numbers = #tpu.dot_dimension_numbers<[1], [0], [0], [1], [0, 0, 1, 1], [], []>} : vector<2x64xf32>, vector<64x32xf32>, vector<2x32xf32> -> vector<2x32xf32>
    %c0_558 = arith.constant 0 : index
    %c0_559 = arith.constant 0 : index
    %1196 = vector.load %arg15[%c0_558, %c0_559] : memref<1x32xf32, #tpu.memory_space<vmem>>, vector<1x32xf32>
    %1197 = vector.broadcast %1196 : vector<1x32xf32> to vector<2x32xf32>
    %1198 = arith.mulf %1195, %1197 : vector<2x32xf32>
    %c0_560 = arith.constant 0 : index
    %c0_561 = arith.constant 0 : index
    %1199 = vector.load %arg16[%c0_560, %c0_561] : memref<1x32xf32, #tpu.memory_space<vmem>>, vector<1x32xf32>
    %1200 = vector.broadcast %1199 : vector<1x32xf32> to vector<2x32xf32>
    %1201 = arith.addf %1198, %1200 : vector<2x32xf32>
    %cst_562 = arith.constant 0.000000e+00 : f32
    %1202 = vector.broadcast %cst_562 : f32 to vector<2x32xf32>
    %1203 = arith.subf %1202, %1201 : vector<2x32xf32>
    %1204 = math.exp %1203 : vector<2x32xf32>
    %cst_563 = arith.constant 1.000000e+00 : f32
    %1205 = vector.broadcast %cst_563 : f32 to vector<2x32xf32>
    %1206 = arith.addf %1205, %1204 : vector<2x32xf32>
    %cst_564 = arith.constant 1.000000e+00 : f32
    %1207 = vector.broadcast %cst_564 : f32 to vector<2x32xf32>
    %1208 = arith.divf %1207, %1206 : vector<2x32xf32>
    %1209 = arith.maximumf %644, %832 : vector<2x32xf32>
    %1210 = arith.truncf %1209 : vector<2x32xf32> to vector<2x32xbf16>
    %c384 = arith.constant 384 : index
    %c0_565 = arith.constant 0 : index
    %1211 = vector.load %arg20[%c384, %c0_565] : memref<1600x128xbf16, #tpu.memory_space<vmem>>, vector<32x128xbf16>
    %cst_566 = arith.constant dense<0.000000e+00> : vector<2x128xf32>
    %1212 = tpu.matmul %1210, %1211, %cst_566 {dimension_numbers = #tpu.dot_dimension_numbers<[1], [0], [0], [1], [0, 0, 1, 1], [], []>} : vector<2x32xbf16>, vector<32x128xbf16>, vector<2x128xf32> -> vector<2x128xf32>
    %1213 = arith.addf %456, %1212 : vector<2x128xf32>
    %1214 = arith.maximumf %1020, %1208 : vector<2x32xf32>
    %1215 = arith.truncf %1214 : vector<2x32xf32> to vector<2x32xbf16>
    %c416 = arith.constant 416 : index
    %c0_567 = arith.constant 0 : index
    %1216 = vector.load %arg20[%c416, %c0_567] : memref<1600x128xbf16, #tpu.memory_space<vmem>>, vector<32x128xbf16>
    %cst_568 = arith.constant dense<0.000000e+00> : vector<2x128xf32>
    %1217 = tpu.matmul %1215, %1216, %cst_568 {dimension_numbers = #tpu.dot_dimension_numbers<[1], [0], [0], [1], [0, 0, 1, 1], [], []>} : vector<2x32xbf16>, vector<32x128xbf16>, vector<2x128xf32> -> vector<2x128xf32>
    %1218 = arith.addf %1213, %1217 : vector<2x128xf32>
    %c0_569 = arith.constant 0 : index
    %c0_570 = arith.constant 0 : index
    %1219 = memref.load %arg17[%c0_569, %c0_570] : memref<2x8xf32, #tpu.memory_space<smem>>
    %c1_571 = arith.constant 1 : index
    %c0_572 = arith.constant 0 : index
    %1220 = memref.load %arg17[%c1_571, %c0_572] : memref<2x8xf32, #tpu.memory_space<smem>>
    %c0_573 = arith.constant 0 : index
    %c0_574 = arith.constant 0 : index
    %1221 = memref.load %arg18[%c0_573, %c0_574] : memref<1x8xf32, #tpu.memory_space<smem>>
    %c0_575 = arith.constant 0 : index
    %c0_576 = arith.constant 0 : index
    %1222 = memref.load %arg19[%c0_575, %c0_576] : memref<1x8xf32, #tpu.memory_space<smem>>
    %c0_577 = arith.constant 0 : index
    %c0_578 = arith.constant 0 : index
    %c0_579 = arith.constant 0 : index
    %c0_580 = arith.constant 0 : index
    %1223 = vector.load %arg4[%c0_577, %c0_578, %c0_579, %c0_580] : memref<4x2x2x144xf32, #tpu.memory_space<vmem>>, vector<1x1x2x144xf32>
    %1224 = vector.shape_cast %1223 : vector<1x1x2x144xf32> to vector<2x144xf32>
    %1225 = vector.broadcast %1219 : f32 to vector<2x144xf32>
    %1226 = arith.mulf %1224, %1225 : vector<2x144xf32>
    %c0_581 = arith.constant 0 : index
    %c1_582 = arith.constant 1 : index
    %c0_583 = arith.constant 0 : index
    %c0_584 = arith.constant 0 : index
    %1227 = vector.load %arg4[%c0_581, %c1_582, %c0_583, %c0_584] : memref<4x2x2x144xf32, #tpu.memory_space<vmem>>, vector<1x1x2x144xf32>
    %1228 = vector.shape_cast %1227 : vector<1x1x2x144xf32> to vector<2x144xf32>
    %1229 = vector.broadcast %1220 : f32 to vector<2x144xf32>
    %1230 = arith.mulf %1228, %1229 : vector<2x144xf32>
    %1231 = arith.addf %1226, %1230 : vector<2x144xf32>
    %1232 = vector.broadcast %1221 : f32 to vector<2x144xf32>
    %1233 = arith.mulf %1231, %1232 : vector<2x144xf32>
    %1234 = vector.broadcast %1222 : f32 to vector<2x144xf32>
    %1235 = arith.addf %1233, %1234 : vector<2x144xf32>
    %cst_585 = arith.constant 0.000000e+00 : f32
    %1236 = vector.broadcast %cst_585 : f32 to vector<2x144xf32>
    %1237 = arith.maximumf %1235, %1236 : vector<2x144xf32>
    %c1_586 = arith.constant 1 : index
    %c0_587 = arith.constant 0 : index
    %c0_588 = arith.constant 0 : index
    %c0_589 = arith.constant 0 : index
    %1238 = vector.load %arg4[%c1_586, %c0_587, %c0_588, %c0_589] : memref<4x2x2x144xf32, #tpu.memory_space<vmem>>, vector<1x1x2x144xf32>
    %1239 = vector.shape_cast %1238 : vector<1x1x2x144xf32> to vector<2x144xf32>
    %1240 = vector.broadcast %1219 : f32 to vector<2x144xf32>
    %1241 = arith.mulf %1239, %1240 : vector<2x144xf32>
    %c1_590 = arith.constant 1 : index
    %c1_591 = arith.constant 1 : index
    %c0_592 = arith.constant 0 : index
    %c0_593 = arith.constant 0 : index
    %1242 = vector.load %arg4[%c1_590, %c1_591, %c0_592, %c0_593] : memref<4x2x2x144xf32, #tpu.memory_space<vmem>>, vector<1x1x2x144xf32>
    %1243 = vector.shape_cast %1242 : vector<1x1x2x144xf32> to vector<2x144xf32>
    %1244 = vector.broadcast %1220 : f32 to vector<2x144xf32>
    %1245 = arith.mulf %1243, %1244 : vector<2x144xf32>
    %1246 = arith.addf %1241, %1245 : vector<2x144xf32>
    %1247 = vector.broadcast %1221 : f32 to vector<2x144xf32>
    %1248 = arith.mulf %1246, %1247 : vector<2x144xf32>
    %1249 = vector.broadcast %1222 : f32 to vector<2x144xf32>
    %1250 = arith.addf %1248, %1249 : vector<2x144xf32>
    %cst_594 = arith.constant 0.000000e+00 : f32
    %1251 = vector.broadcast %cst_594 : f32 to vector<2x144xf32>
    %1252 = arith.maximumf %1250, %1251 : vector<2x144xf32>
    %1253 = arith.maximumf %1237, %1252 : vector<2x144xf32>
    %c2_595 = arith.constant 2 : index
    %c0_596 = arith.constant 0 : index
    %c0_597 = arith.constant 0 : index
    %c0_598 = arith.constant 0 : index
    %1254 = vector.load %arg4[%c2_595, %c0_596, %c0_597, %c0_598] : memref<4x2x2x144xf32, #tpu.memory_space<vmem>>, vector<1x1x2x144xf32>
    %1255 = vector.shape_cast %1254 : vector<1x1x2x144xf32> to vector<2x144xf32>
    %1256 = vector.broadcast %1219 : f32 to vector<2x144xf32>
    %1257 = arith.mulf %1255, %1256 : vector<2x144xf32>
    %c2_599 = arith.constant 2 : index
    %c1_600 = arith.constant 1 : index
    %c0_601 = arith.constant 0 : index
    %c0_602 = arith.constant 0 : index
    %1258 = vector.load %arg4[%c2_599, %c1_600, %c0_601, %c0_602] : memref<4x2x2x144xf32, #tpu.memory_space<vmem>>, vector<1x1x2x144xf32>
    %1259 = vector.shape_cast %1258 : vector<1x1x2x144xf32> to vector<2x144xf32>
    %1260 = vector.broadcast %1220 : f32 to vector<2x144xf32>
    %1261 = arith.mulf %1259, %1260 : vector<2x144xf32>
    %1262 = arith.addf %1257, %1261 : vector<2x144xf32>
    %1263 = vector.broadcast %1221 : f32 to vector<2x144xf32>
    %1264 = arith.mulf %1262, %1263 : vector<2x144xf32>
    %1265 = vector.broadcast %1222 : f32 to vector<2x144xf32>
    %1266 = arith.addf %1264, %1265 : vector<2x144xf32>
    %cst_603 = arith.constant 0.000000e+00 : f32
    %1267 = vector.broadcast %cst_603 : f32 to vector<2x144xf32>
    %1268 = arith.maximumf %1266, %1267 : vector<2x144xf32>
    %1269 = arith.maximumf %1253, %1268 : vector<2x144xf32>
    %c3_604 = arith.constant 3 : index
    %c0_605 = arith.constant 0 : index
    %c0_606 = arith.constant 0 : index
    %c0_607 = arith.constant 0 : index
    %1270 = vector.load %arg4[%c3_604, %c0_605, %c0_606, %c0_607] : memref<4x2x2x144xf32, #tpu.memory_space<vmem>>, vector<1x1x2x144xf32>
    %1271 = vector.shape_cast %1270 : vector<1x1x2x144xf32> to vector<2x144xf32>
    %1272 = vector.broadcast %1219 : f32 to vector<2x144xf32>
    %1273 = arith.mulf %1271, %1272 : vector<2x144xf32>
    %c3_608 = arith.constant 3 : index
    %c1_609 = arith.constant 1 : index
    %c0_610 = arith.constant 0 : index
    %c0_611 = arith.constant 0 : index
    %1274 = vector.load %arg4[%c3_608, %c1_609, %c0_610, %c0_611] : memref<4x2x2x144xf32, #tpu.memory_space<vmem>>, vector<1x1x2x144xf32>
    %1275 = vector.shape_cast %1274 : vector<1x1x2x144xf32> to vector<2x144xf32>
    %1276 = vector.broadcast %1220 : f32 to vector<2x144xf32>
    %1277 = arith.mulf %1275, %1276 : vector<2x144xf32>
    %1278 = arith.addf %1273, %1277 : vector<2x144xf32>
    %1279 = vector.broadcast %1221 : f32 to vector<2x144xf32>
    %1280 = arith.mulf %1278, %1279 : vector<2x144xf32>
    %1281 = vector.broadcast %1222 : f32 to vector<2x144xf32>
    %1282 = arith.addf %1280, %1281 : vector<2x144xf32>
    %cst_612 = arith.constant 0.000000e+00 : f32
    %1283 = vector.broadcast %cst_612 : f32 to vector<2x144xf32>
    %1284 = arith.maximumf %1282, %1283 : vector<2x144xf32>
    %1285 = arith.maximumf %1269, %1284 : vector<2x144xf32>
    %1286 = arith.truncf %1285 : vector<2x144xf32> to vector<2x144xbf16>
    %c448 = arith.constant 448 : index
    %c0_613 = arith.constant 0 : index
    %1287 = vector.load %arg20[%c448, %c0_613] : memref<1600x128xbf16, #tpu.memory_space<vmem>>, vector<144x128xbf16>
    %cst_614 = arith.constant dense<0.000000e+00> : vector<2x128xf32>
    %1288 = tpu.matmul %1286, %1287, %cst_614 {dimension_numbers = #tpu.dot_dimension_numbers<[1], [0], [0], [1], [0, 0, 1, 1], [], []>} : vector<2x144xbf16>, vector<144x128xbf16>, vector<2x128xf32> -> vector<2x128xf32>
    %1289 = arith.addf %1218, %1288 : vector<2x128xf32>
    %c0_615 = arith.constant 0 : index
    %c1_616 = arith.constant 1 : index
    %1290 = memref.load %arg17[%c0_615, %c1_616] : memref<2x8xf32, #tpu.memory_space<smem>>
    %c1_617 = arith.constant 1 : index
    %c1_618 = arith.constant 1 : index
    %1291 = memref.load %arg17[%c1_617, %c1_618] : memref<2x8xf32, #tpu.memory_space<smem>>
    %c0_619 = arith.constant 0 : index
    %c1_620 = arith.constant 1 : index
    %1292 = memref.load %arg18[%c0_619, %c1_620] : memref<1x8xf32, #tpu.memory_space<smem>>
    %c0_621 = arith.constant 0 : index
    %c1_622 = arith.constant 1 : index
    %1293 = memref.load %arg19[%c0_621, %c1_622] : memref<1x8xf32, #tpu.memory_space<smem>>
    %c0_623 = arith.constant 0 : index
    %c0_624 = arith.constant 0 : index
    %c0_625 = arith.constant 0 : index
    %c0_626 = arith.constant 0 : index
    %1294 = vector.load %arg4[%c0_623, %c0_624, %c0_625, %c0_626] : memref<4x2x2x144xf32, #tpu.memory_space<vmem>>, vector<1x1x2x144xf32>
    %1295 = vector.shape_cast %1294 : vector<1x1x2x144xf32> to vector<2x144xf32>
    %1296 = vector.broadcast %1290 : f32 to vector<2x144xf32>
    %1297 = arith.mulf %1295, %1296 : vector<2x144xf32>
    %c0_627 = arith.constant 0 : index
    %c1_628 = arith.constant 1 : index
    %c0_629 = arith.constant 0 : index
    %c0_630 = arith.constant 0 : index
    %1298 = vector.load %arg4[%c0_627, %c1_628, %c0_629, %c0_630] : memref<4x2x2x144xf32, #tpu.memory_space<vmem>>, vector<1x1x2x144xf32>
    %1299 = vector.shape_cast %1298 : vector<1x1x2x144xf32> to vector<2x144xf32>
    %1300 = vector.broadcast %1291 : f32 to vector<2x144xf32>
    %1301 = arith.mulf %1299, %1300 : vector<2x144xf32>
    %1302 = arith.addf %1297, %1301 : vector<2x144xf32>
    %1303 = vector.broadcast %1292 : f32 to vector<2x144xf32>
    %1304 = arith.mulf %1302, %1303 : vector<2x144xf32>
    %1305 = vector.broadcast %1293 : f32 to vector<2x144xf32>
    %1306 = arith.addf %1304, %1305 : vector<2x144xf32>
    %cst_631 = arith.constant 0.000000e+00 : f32
    %1307 = vector.broadcast %cst_631 : f32 to vector<2x144xf32>
    %1308 = arith.maximumf %1306, %1307 : vector<2x144xf32>
    %c1_632 = arith.constant 1 : index
    %c0_633 = arith.constant 0 : index
    %c0_634 = arith.constant 0 : index
    %c0_635 = arith.constant 0 : index
    %1309 = vector.load %arg4[%c1_632, %c0_633, %c0_634, %c0_635] : memref<4x2x2x144xf32, #tpu.memory_space<vmem>>, vector<1x1x2x144xf32>
    %1310 = vector.shape_cast %1309 : vector<1x1x2x144xf32> to vector<2x144xf32>
    %1311 = vector.broadcast %1290 : f32 to vector<2x144xf32>
    %1312 = arith.mulf %1310, %1311 : vector<2x144xf32>
    %c1_636 = arith.constant 1 : index
    %c1_637 = arith.constant 1 : index
    %c0_638 = arith.constant 0 : index
    %c0_639 = arith.constant 0 : index
    %1313 = vector.load %arg4[%c1_636, %c1_637, %c0_638, %c0_639] : memref<4x2x2x144xf32, #tpu.memory_space<vmem>>, vector<1x1x2x144xf32>
    %1314 = vector.shape_cast %1313 : vector<1x1x2x144xf32> to vector<2x144xf32>
    %1315 = vector.broadcast %1291 : f32 to vector<2x144xf32>
    %1316 = arith.mulf %1314, %1315 : vector<2x144xf32>
    %1317 = arith.addf %1312, %1316 : vector<2x144xf32>
    %1318 = vector.broadcast %1292 : f32 to vector<2x144xf32>
    %1319 = arith.mulf %1317, %1318 : vector<2x144xf32>
    %1320 = vector.broadcast %1293 : f32 to vector<2x144xf32>
    %1321 = arith.addf %1319, %1320 : vector<2x144xf32>
    %cst_640 = arith.constant 0.000000e+00 : f32
    %1322 = vector.broadcast %cst_640 : f32 to vector<2x144xf32>
    %1323 = arith.maximumf %1321, %1322 : vector<2x144xf32>
    %1324 = arith.maximumf %1308, %1323 : vector<2x144xf32>
    %c2_641 = arith.constant 2 : index
    %c0_642 = arith.constant 0 : index
    %c0_643 = arith.constant 0 : index
    %c0_644 = arith.constant 0 : index
    %1325 = vector.load %arg4[%c2_641, %c0_642, %c0_643, %c0_644] : memref<4x2x2x144xf32, #tpu.memory_space<vmem>>, vector<1x1x2x144xf32>
    %1326 = vector.shape_cast %1325 : vector<1x1x2x144xf32> to vector<2x144xf32>
    %1327 = vector.broadcast %1290 : f32 to vector<2x144xf32>
    %1328 = arith.mulf %1326, %1327 : vector<2x144xf32>
    %c2_645 = arith.constant 2 : index
    %c1_646 = arith.constant 1 : index
    %c0_647 = arith.constant 0 : index
    %c0_648 = arith.constant 0 : index
    %1329 = vector.load %arg4[%c2_645, %c1_646, %c0_647, %c0_648] : memref<4x2x2x144xf32, #tpu.memory_space<vmem>>, vector<1x1x2x144xf32>
    %1330 = vector.shape_cast %1329 : vector<1x1x2x144xf32> to vector<2x144xf32>
    %1331 = vector.broadcast %1291 : f32 to vector<2x144xf32>
    %1332 = arith.mulf %1330, %1331 : vector<2x144xf32>
    %1333 = arith.addf %1328, %1332 : vector<2x144xf32>
    %1334 = vector.broadcast %1292 : f32 to vector<2x144xf32>
    %1335 = arith.mulf %1333, %1334 : vector<2x144xf32>
    %1336 = vector.broadcast %1293 : f32 to vector<2x144xf32>
    %1337 = arith.addf %1335, %1336 : vector<2x144xf32>
    %cst_649 = arith.constant 0.000000e+00 : f32
    %1338 = vector.broadcast %cst_649 : f32 to vector<2x144xf32>
    %1339 = arith.maximumf %1337, %1338 : vector<2x144xf32>
    %1340 = arith.maximumf %1324, %1339 : vector<2x144xf32>
    %c3_650 = arith.constant 3 : index
    %c0_651 = arith.constant 0 : index
    %c0_652 = arith.constant 0 : index
    %c0_653 = arith.constant 0 : index
    %1341 = vector.load %arg4[%c3_650, %c0_651, %c0_652, %c0_653] : memref<4x2x2x144xf32, #tpu.memory_space<vmem>>, vector<1x1x2x144xf32>
    %1342 = vector.shape_cast %1341 : vector<1x1x2x144xf32> to vector<2x144xf32>
    %1343 = vector.broadcast %1290 : f32 to vector<2x144xf32>
    %1344 = arith.mulf %1342, %1343 : vector<2x144xf32>
    %c3_654 = arith.constant 3 : index
    %c1_655 = arith.constant 1 : index
    %c0_656 = arith.constant 0 : index
    %c0_657 = arith.constant 0 : index
    %1345 = vector.load %arg4[%c3_654, %c1_655, %c0_656, %c0_657] : memref<4x2x2x144xf32, #tpu.memory_space<vmem>>, vector<1x1x2x144xf32>
    %1346 = vector.shape_cast %1345 : vector<1x1x2x144xf32> to vector<2x144xf32>
    %1347 = vector.broadcast %1291 : f32 to vector<2x144xf32>
    %1348 = arith.mulf %1346, %1347 : vector<2x144xf32>
    %1349 = arith.addf %1344, %1348 : vector<2x144xf32>
    %1350 = vector.broadcast %1292 : f32 to vector<2x144xf32>
    %1351 = arith.mulf %1349, %1350 : vector<2x144xf32>
    %1352 = vector.broadcast %1293 : f32 to vector<2x144xf32>
    %1353 = arith.addf %1351, %1352 : vector<2x144xf32>
    %cst_658 = arith.constant 0.000000e+00 : f32
    %1354 = vector.broadcast %cst_658 : f32 to vector<2x144xf32>
    %1355 = arith.maximumf %1353, %1354 : vector<2x144xf32>
    %1356 = arith.maximumf %1340, %1355 : vector<2x144xf32>
    %1357 = arith.truncf %1356 : vector<2x144xf32> to vector<2x144xbf16>
    %c592 = arith.constant 592 : index
    %c0_659 = arith.constant 0 : index
    %1358 = vector.load %arg20[%c592, %c0_659] : memref<1600x128xbf16, #tpu.memory_space<vmem>>, vector<144x128xbf16>
    %cst_660 = arith.constant dense<0.000000e+00> : vector<2x128xf32>
    %1359 = tpu.matmul %1357, %1358, %cst_660 {dimension_numbers = #tpu.dot_dimension_numbers<[1], [0], [0], [1], [0, 0, 1, 1], [], []>} : vector<2x144xbf16>, vector<144x128xbf16>, vector<2x128xf32> -> vector<2x128xf32>
    %1360 = arith.addf %1289, %1359 : vector<2x128xf32>
    %c0_661 = arith.constant 0 : index
    %c2_662 = arith.constant 2 : index
    %1361 = memref.load %arg17[%c0_661, %c2_662] : memref<2x8xf32, #tpu.memory_space<smem>>
    %c1_663 = arith.constant 1 : index
    %c2_664 = arith.constant 2 : index
    %1362 = memref.load %arg17[%c1_663, %c2_664] : memref<2x8xf32, #tpu.memory_space<smem>>
    %c0_665 = arith.constant 0 : index
    %c2_666 = arith.constant 2 : index
    %1363 = memref.load %arg18[%c0_665, %c2_666] : memref<1x8xf32, #tpu.memory_space<smem>>
    %c0_667 = arith.constant 0 : index
    %c2_668 = arith.constant 2 : index
    %1364 = memref.load %arg19[%c0_667, %c2_668] : memref<1x8xf32, #tpu.memory_space<smem>>
    %c0_669 = arith.constant 0 : index
    %c0_670 = arith.constant 0 : index
    %c0_671 = arith.constant 0 : index
    %c0_672 = arith.constant 0 : index
    %1365 = vector.load %arg4[%c0_669, %c0_670, %c0_671, %c0_672] : memref<4x2x2x144xf32, #tpu.memory_space<vmem>>, vector<1x1x2x144xf32>
    %1366 = vector.shape_cast %1365 : vector<1x1x2x144xf32> to vector<2x144xf32>
    %1367 = vector.broadcast %1361 : f32 to vector<2x144xf32>
    %1368 = arith.mulf %1366, %1367 : vector<2x144xf32>
    %c0_673 = arith.constant 0 : index
    %c1_674 = arith.constant 1 : index
    %c0_675 = arith.constant 0 : index
    %c0_676 = arith.constant 0 : index
    %1369 = vector.load %arg4[%c0_673, %c1_674, %c0_675, %c0_676] : memref<4x2x2x144xf32, #tpu.memory_space<vmem>>, vector<1x1x2x144xf32>
    %1370 = vector.shape_cast %1369 : vector<1x1x2x144xf32> to vector<2x144xf32>
    %1371 = vector.broadcast %1362 : f32 to vector<2x144xf32>
    %1372 = arith.mulf %1370, %1371 : vector<2x144xf32>
    %1373 = arith.addf %1368, %1372 : vector<2x144xf32>
    %1374 = vector.broadcast %1363 : f32 to vector<2x144xf32>
    %1375 = arith.mulf %1373, %1374 : vector<2x144xf32>
    %1376 = vector.broadcast %1364 : f32 to vector<2x144xf32>
    %1377 = arith.addf %1375, %1376 : vector<2x144xf32>
    %cst_677 = arith.constant 0.000000e+00 : f32
    %1378 = vector.broadcast %cst_677 : f32 to vector<2x144xf32>
    %1379 = arith.maximumf %1377, %1378 : vector<2x144xf32>
    %c1_678 = arith.constant 1 : index
    %c0_679 = arith.constant 0 : index
    %c0_680 = arith.constant 0 : index
    %c0_681 = arith.constant 0 : index
    %1380 = vector.load %arg4[%c1_678, %c0_679, %c0_680, %c0_681] : memref<4x2x2x144xf32, #tpu.memory_space<vmem>>, vector<1x1x2x144xf32>
    %1381 = vector.shape_cast %1380 : vector<1x1x2x144xf32> to vector<2x144xf32>
    %1382 = vector.broadcast %1361 : f32 to vector<2x144xf32>
    %1383 = arith.mulf %1381, %1382 : vector<2x144xf32>
    %c1_682 = arith.constant 1 : index
    %c1_683 = arith.constant 1 : index
    %c0_684 = arith.constant 0 : index
    %c0_685 = arith.constant 0 : index
    %1384 = vector.load %arg4[%c1_682, %c1_683, %c0_684, %c0_685] : memref<4x2x2x144xf32, #tpu.memory_space<vmem>>, vector<1x1x2x144xf32>
    %1385 = vector.shape_cast %1384 : vector<1x1x2x144xf32> to vector<2x144xf32>
    %1386 = vector.broadcast %1362 : f32 to vector<2x144xf32>
    %1387 = arith.mulf %1385, %1386 : vector<2x144xf32>
    %1388 = arith.addf %1383, %1387 : vector<2x144xf32>
    %1389 = vector.broadcast %1363 : f32 to vector<2x144xf32>
    %1390 = arith.mulf %1388, %1389 : vector<2x144xf32>
    %1391 = vector.broadcast %1364 : f32 to vector<2x144xf32>
    %1392 = arith.addf %1390, %1391 : vector<2x144xf32>
    %cst_686 = arith.constant 0.000000e+00 : f32
    %1393 = vector.broadcast %cst_686 : f32 to vector<2x144xf32>
    %1394 = arith.maximumf %1392, %1393 : vector<2x144xf32>
    %1395 = arith.maximumf %1379, %1394 : vector<2x144xf32>
    %c2_687 = arith.constant 2 : index
    %c0_688 = arith.constant 0 : index
    %c0_689 = arith.constant 0 : index
    %c0_690 = arith.constant 0 : index
    %1396 = vector.load %arg4[%c2_687, %c0_688, %c0_689, %c0_690] : memref<4x2x2x144xf32, #tpu.memory_space<vmem>>, vector<1x1x2x144xf32>
    %1397 = vector.shape_cast %1396 : vector<1x1x2x144xf32> to vector<2x144xf32>
    %1398 = vector.broadcast %1361 : f32 to vector<2x144xf32>
    %1399 = arith.mulf %1397, %1398 : vector<2x144xf32>
    %c2_691 = arith.constant 2 : index
    %c1_692 = arith.constant 1 : index
    %c0_693 = arith.constant 0 : index
    %c0_694 = arith.constant 0 : index
    %1400 = vector.load %arg4[%c2_691, %c1_692, %c0_693, %c0_694] : memref<4x2x2x144xf32, #tpu.memory_space<vmem>>, vector<1x1x2x144xf32>
    %1401 = vector.shape_cast %1400 : vector<1x1x2x144xf32> to vector<2x144xf32>
    %1402 = vector.broadcast %1362 : f32 to vector<2x144xf32>
    %1403 = arith.mulf %1401, %1402 : vector<2x144xf32>
    %1404 = arith.addf %1399, %1403 : vector<2x144xf32>
    %1405 = vector.broadcast %1363 : f32 to vector<2x144xf32>
    %1406 = arith.mulf %1404, %1405 : vector<2x144xf32>
    %1407 = vector.broadcast %1364 : f32 to vector<2x144xf32>
    %1408 = arith.addf %1406, %1407 : vector<2x144xf32>
    %cst_695 = arith.constant 0.000000e+00 : f32
    %1409 = vector.broadcast %cst_695 : f32 to vector<2x144xf32>
    %1410 = arith.maximumf %1408, %1409 : vector<2x144xf32>
    %1411 = arith.maximumf %1395, %1410 : vector<2x144xf32>
    %c3_696 = arith.constant 3 : index
    %c0_697 = arith.constant 0 : index
    %c0_698 = arith.constant 0 : index
    %c0_699 = arith.constant 0 : index
    %1412 = vector.load %arg4[%c3_696, %c0_697, %c0_698, %c0_699] : memref<4x2x2x144xf32, #tpu.memory_space<vmem>>, vector<1x1x2x144xf32>
    %1413 = vector.shape_cast %1412 : vector<1x1x2x144xf32> to vector<2x144xf32>
    %1414 = vector.broadcast %1361 : f32 to vector<2x144xf32>
    %1415 = arith.mulf %1413, %1414 : vector<2x144xf32>
    %c3_700 = arith.constant 3 : index
    %c1_701 = arith.constant 1 : index
    %c0_702 = arith.constant 0 : index
    %c0_703 = arith.constant 0 : index
    %1416 = vector.load %arg4[%c3_700, %c1_701, %c0_702, %c0_703] : memref<4x2x2x144xf32, #tpu.memory_space<vmem>>, vector<1x1x2x144xf32>
    %1417 = vector.shape_cast %1416 : vector<1x1x2x144xf32> to vector<2x144xf32>
    %1418 = vector.broadcast %1362 : f32 to vector<2x144xf32>
    %1419 = arith.mulf %1417, %1418 : vector<2x144xf32>
    %1420 = arith.addf %1415, %1419 : vector<2x144xf32>
    %1421 = vector.broadcast %1363 : f32 to vector<2x144xf32>
    %1422 = arith.mulf %1420, %1421 : vector<2x144xf32>
    %1423 = vector.broadcast %1364 : f32 to vector<2x144xf32>
    %1424 = arith.addf %1422, %1423 : vector<2x144xf32>
    %cst_704 = arith.constant 0.000000e+00 : f32
    %1425 = vector.broadcast %cst_704 : f32 to vector<2x144xf32>
    %1426 = arith.maximumf %1424, %1425 : vector<2x144xf32>
    %1427 = arith.maximumf %1411, %1426 : vector<2x144xf32>
    %1428 = arith.truncf %1427 : vector<2x144xf32> to vector<2x144xbf16>
    %c736 = arith.constant 736 : index
    %c0_705 = arith.constant 0 : index
    %1429 = vector.load %arg20[%c736, %c0_705] : memref<1600x128xbf16, #tpu.memory_space<vmem>>, vector<144x128xbf16>
    %cst_706 = arith.constant dense<0.000000e+00> : vector<2x128xf32>
    %1430 = tpu.matmul %1428, %1429, %cst_706 {dimension_numbers = #tpu.dot_dimension_numbers<[1], [0], [0], [1], [0, 0, 1, 1], [], []>} : vector<2x144xbf16>, vector<144x128xbf16>, vector<2x128xf32> -> vector<2x128xf32>
    %1431 = arith.addf %1360, %1430 : vector<2x128xf32>
    %c0_707 = arith.constant 0 : index
    %c3_708 = arith.constant 3 : index
    %1432 = memref.load %arg17[%c0_707, %c3_708] : memref<2x8xf32, #tpu.memory_space<smem>>
    %c1_709 = arith.constant 1 : index
    %c3_710 = arith.constant 3 : index
    %1433 = memref.load %arg17[%c1_709, %c3_710] : memref<2x8xf32, #tpu.memory_space<smem>>
    %c0_711 = arith.constant 0 : index
    %c3_712 = arith.constant 3 : index
    %1434 = memref.load %arg18[%c0_711, %c3_712] : memref<1x8xf32, #tpu.memory_space<smem>>
    %c0_713 = arith.constant 0 : index
    %c3_714 = arith.constant 3 : index
    %1435 = memref.load %arg19[%c0_713, %c3_714] : memref<1x8xf32, #tpu.memory_space<smem>>
    %c0_715 = arith.constant 0 : index
    %c0_716 = arith.constant 0 : index
    %c0_717 = arith.constant 0 : index
    %c0_718 = arith.constant 0 : index
    %1436 = vector.load %arg4[%c0_715, %c0_716, %c0_717, %c0_718] : memref<4x2x2x144xf32, #tpu.memory_space<vmem>>, vector<1x1x2x144xf32>
    %1437 = vector.shape_cast %1436 : vector<1x1x2x144xf32> to vector<2x144xf32>
    %1438 = vector.broadcast %1432 : f32 to vector<2x144xf32>
    %1439 = arith.mulf %1437, %1438 : vector<2x144xf32>
    %c0_719 = arith.constant 0 : index
    %c1_720 = arith.constant 1 : index
    %c0_721 = arith.constant 0 : index
    %c0_722 = arith.constant 0 : index
    %1440 = vector.load %arg4[%c0_719, %c1_720, %c0_721, %c0_722] : memref<4x2x2x144xf32, #tpu.memory_space<vmem>>, vector<1x1x2x144xf32>
    %1441 = vector.shape_cast %1440 : vector<1x1x2x144xf32> to vector<2x144xf32>
    %1442 = vector.broadcast %1433 : f32 to vector<2x144xf32>
    %1443 = arith.mulf %1441, %1442 : vector<2x144xf32>
    %1444 = arith.addf %1439, %1443 : vector<2x144xf32>
    %1445 = vector.broadcast %1434 : f32 to vector<2x144xf32>
    %1446 = arith.mulf %1444, %1445 : vector<2x144xf32>
    %1447 = vector.broadcast %1435 : f32 to vector<2x144xf32>
    %1448 = arith.addf %1446, %1447 : vector<2x144xf32>
    %cst_723 = arith.constant 0.000000e+00 : f32
    %1449 = vector.broadcast %cst_723 : f32 to vector<2x144xf32>
    %1450 = arith.maximumf %1448, %1449 : vector<2x144xf32>
    %c1_724 = arith.constant 1 : index
    %c0_725 = arith.constant 0 : index
    %c0_726 = arith.constant 0 : index
    %c0_727 = arith.constant 0 : index
    %1451 = vector.load %arg4[%c1_724, %c0_725, %c0_726, %c0_727] : memref<4x2x2x144xf32, #tpu.memory_space<vmem>>, vector<1x1x2x144xf32>
    %1452 = vector.shape_cast %1451 : vector<1x1x2x144xf32> to vector<2x144xf32>
    %1453 = vector.broadcast %1432 : f32 to vector<2x144xf32>
    %1454 = arith.mulf %1452, %1453 : vector<2x144xf32>
    %c1_728 = arith.constant 1 : index
    %c1_729 = arith.constant 1 : index
    %c0_730 = arith.constant 0 : index
    %c0_731 = arith.constant 0 : index
    %1455 = vector.load %arg4[%c1_728, %c1_729, %c0_730, %c0_731] : memref<4x2x2x144xf32, #tpu.memory_space<vmem>>, vector<1x1x2x144xf32>
    %1456 = vector.shape_cast %1455 : vector<1x1x2x144xf32> to vector<2x144xf32>
    %1457 = vector.broadcast %1433 : f32 to vector<2x144xf32>
    %1458 = arith.mulf %1456, %1457 : vector<2x144xf32>
    %1459 = arith.addf %1454, %1458 : vector<2x144xf32>
    %1460 = vector.broadcast %1434 : f32 to vector<2x144xf32>
    %1461 = arith.mulf %1459, %1460 : vector<2x144xf32>
    %1462 = vector.broadcast %1435 : f32 to vector<2x144xf32>
    %1463 = arith.addf %1461, %1462 : vector<2x144xf32>
    %cst_732 = arith.constant 0.000000e+00 : f32
    %1464 = vector.broadcast %cst_732 : f32 to vector<2x144xf32>
    %1465 = arith.maximumf %1463, %1464 : vector<2x144xf32>
    %1466 = arith.maximumf %1450, %1465 : vector<2x144xf32>
    %c2_733 = arith.constant 2 : index
    %c0_734 = arith.constant 0 : index
    %c0_735 = arith.constant 0 : index
    %c0_736 = arith.constant 0 : index
    %1467 = vector.load %arg4[%c2_733, %c0_734, %c0_735, %c0_736] : memref<4x2x2x144xf32, #tpu.memory_space<vmem>>, vector<1x1x2x144xf32>
    %1468 = vector.shape_cast %1467 : vector<1x1x2x144xf32> to vector<2x144xf32>
    %1469 = vector.broadcast %1432 : f32 to vector<2x144xf32>
    %1470 = arith.mulf %1468, %1469 : vector<2x144xf32>
    %c2_737 = arith.constant 2 : index
    %c1_738 = arith.constant 1 : index
    %c0_739 = arith.constant 0 : index
    %c0_740 = arith.constant 0 : index
    %1471 = vector.load %arg4[%c2_737, %c1_738, %c0_739, %c0_740] : memref<4x2x2x144xf32, #tpu.memory_space<vmem>>, vector<1x1x2x144xf32>
    %1472 = vector.shape_cast %1471 : vector<1x1x2x144xf32> to vector<2x144xf32>
    %1473 = vector.broadcast %1433 : f32 to vector<2x144xf32>
    %1474 = arith.mulf %1472, %1473 : vector<2x144xf32>
    %1475 = arith.addf %1470, %1474 : vector<2x144xf32>
    %1476 = vector.broadcast %1434 : f32 to vector<2x144xf32>
    %1477 = arith.mulf %1475, %1476 : vector<2x144xf32>
    %1478 = vector.broadcast %1435 : f32 to vector<2x144xf32>
    %1479 = arith.addf %1477, %1478 : vector<2x144xf32>
    %cst_741 = arith.constant 0.000000e+00 : f32
    %1480 = vector.broadcast %cst_741 : f32 to vector<2x144xf32>
    %1481 = arith.maximumf %1479, %1480 : vector<2x144xf32>
    %1482 = arith.maximumf %1466, %1481 : vector<2x144xf32>
    %c3_742 = arith.constant 3 : index
    %c0_743 = arith.constant 0 : index
    %c0_744 = arith.constant 0 : index
    %c0_745 = arith.constant 0 : index
    %1483 = vector.load %arg4[%c3_742, %c0_743, %c0_744, %c0_745] : memref<4x2x2x144xf32, #tpu.memory_space<vmem>>, vector<1x1x2x144xf32>
    %1484 = vector.shape_cast %1483 : vector<1x1x2x144xf32> to vector<2x144xf32>
    %1485 = vector.broadcast %1432 : f32 to vector<2x144xf32>
    %1486 = arith.mulf %1484, %1485 : vector<2x144xf32>
    %c3_746 = arith.constant 3 : index
    %c1_747 = arith.constant 1 : index
    %c0_748 = arith.constant 0 : index
    %c0_749 = arith.constant 0 : index
    %1487 = vector.load %arg4[%c3_746, %c1_747, %c0_748, %c0_749] : memref<4x2x2x144xf32, #tpu.memory_space<vmem>>, vector<1x1x2x144xf32>
    %1488 = vector.shape_cast %1487 : vector<1x1x2x144xf32> to vector<2x144xf32>
    %1489 = vector.broadcast %1433 : f32 to vector<2x144xf32>
    %1490 = arith.mulf %1488, %1489 : vector<2x144xf32>
    %1491 = arith.addf %1486, %1490 : vector<2x144xf32>
    %1492 = vector.broadcast %1434 : f32 to vector<2x144xf32>
    %1493 = arith.mulf %1491, %1492 : vector<2x144xf32>
    %1494 = vector.broadcast %1435 : f32 to vector<2x144xf32>
    %1495 = arith.addf %1493, %1494 : vector<2x144xf32>
    %cst_750 = arith.constant 0.000000e+00 : f32
    %1496 = vector.broadcast %cst_750 : f32 to vector<2x144xf32>
    %1497 = arith.maximumf %1495, %1496 : vector<2x144xf32>
    %1498 = arith.maximumf %1482, %1497 : vector<2x144xf32>
    %1499 = arith.truncf %1498 : vector<2x144xf32> to vector<2x144xbf16>
    %c880 = arith.constant 880 : index
    %c0_751 = arith.constant 0 : index
    %1500 = vector.load %arg20[%c880, %c0_751] : memref<1600x128xbf16, #tpu.memory_space<vmem>>, vector<144x128xbf16>
    %cst_752 = arith.constant dense<0.000000e+00> : vector<2x128xf32>
    %1501 = tpu.matmul %1499, %1500, %cst_752 {dimension_numbers = #tpu.dot_dimension_numbers<[1], [0], [0], [1], [0, 0, 1, 1], [], []>} : vector<2x144xbf16>, vector<144x128xbf16>, vector<2x128xf32> -> vector<2x128xf32>
    %1502 = arith.addf %1431, %1501 : vector<2x128xf32>
    %c0_753 = arith.constant 0 : index
    %c4_754 = arith.constant 4 : index
    %1503 = memref.load %arg17[%c0_753, %c4_754] : memref<2x8xf32, #tpu.memory_space<smem>>
    %c1_755 = arith.constant 1 : index
    %c4_756 = arith.constant 4 : index
    %1504 = memref.load %arg17[%c1_755, %c4_756] : memref<2x8xf32, #tpu.memory_space<smem>>
    %c0_757 = arith.constant 0 : index
    %c4_758 = arith.constant 4 : index
    %1505 = memref.load %arg18[%c0_757, %c4_758] : memref<1x8xf32, #tpu.memory_space<smem>>
    %c0_759 = arith.constant 0 : index
    %c4_760 = arith.constant 4 : index
    %1506 = memref.load %arg19[%c0_759, %c4_760] : memref<1x8xf32, #tpu.memory_space<smem>>
    %c0_761 = arith.constant 0 : index
    %c0_762 = arith.constant 0 : index
    %c0_763 = arith.constant 0 : index
    %c0_764 = arith.constant 0 : index
    %1507 = vector.load %arg4[%c0_761, %c0_762, %c0_763, %c0_764] : memref<4x2x2x144xf32, #tpu.memory_space<vmem>>, vector<1x1x2x144xf32>
    %1508 = vector.shape_cast %1507 : vector<1x1x2x144xf32> to vector<2x144xf32>
    %1509 = vector.broadcast %1503 : f32 to vector<2x144xf32>
    %1510 = arith.mulf %1508, %1509 : vector<2x144xf32>
    %c0_765 = arith.constant 0 : index
    %c1_766 = arith.constant 1 : index
    %c0_767 = arith.constant 0 : index
    %c0_768 = arith.constant 0 : index
    %1511 = vector.load %arg4[%c0_765, %c1_766, %c0_767, %c0_768] : memref<4x2x2x144xf32, #tpu.memory_space<vmem>>, vector<1x1x2x144xf32>
    %1512 = vector.shape_cast %1511 : vector<1x1x2x144xf32> to vector<2x144xf32>
    %1513 = vector.broadcast %1504 : f32 to vector<2x144xf32>
    %1514 = arith.mulf %1512, %1513 : vector<2x144xf32>
    %1515 = arith.addf %1510, %1514 : vector<2x144xf32>
    %1516 = vector.broadcast %1505 : f32 to vector<2x144xf32>
    %1517 = arith.mulf %1515, %1516 : vector<2x144xf32>
    %1518 = vector.broadcast %1506 : f32 to vector<2x144xf32>
    %1519 = arith.addf %1517, %1518 : vector<2x144xf32>
    %cst_769 = arith.constant 0.000000e+00 : f32
    %1520 = vector.broadcast %cst_769 : f32 to vector<2x144xf32>
    %1521 = arith.maximumf %1519, %1520 : vector<2x144xf32>
    %c1_770 = arith.constant 1 : index
    %c0_771 = arith.constant 0 : index
    %c0_772 = arith.constant 0 : index
    %c0_773 = arith.constant 0 : index
    %1522 = vector.load %arg4[%c1_770, %c0_771, %c0_772, %c0_773] : memref<4x2x2x144xf32, #tpu.memory_space<vmem>>, vector<1x1x2x144xf32>
    %1523 = vector.shape_cast %1522 : vector<1x1x2x144xf32> to vector<2x144xf32>
    %1524 = vector.broadcast %1503 : f32 to vector<2x144xf32>
    %1525 = arith.mulf %1523, %1524 : vector<2x144xf32>
    %c1_774 = arith.constant 1 : index
    %c1_775 = arith.constant 1 : index
    %c0_776 = arith.constant 0 : index
    %c0_777 = arith.constant 0 : index
    %1526 = vector.load %arg4[%c1_774, %c1_775, %c0_776, %c0_777] : memref<4x2x2x144xf32, #tpu.memory_space<vmem>>, vector<1x1x2x144xf32>
    %1527 = vector.shape_cast %1526 : vector<1x1x2x144xf32> to vector<2x144xf32>
    %1528 = vector.broadcast %1504 : f32 to vector<2x144xf32>
    %1529 = arith.mulf %1527, %1528 : vector<2x144xf32>
    %1530 = arith.addf %1525, %1529 : vector<2x144xf32>
    %1531 = vector.broadcast %1505 : f32 to vector<2x144xf32>
    %1532 = arith.mulf %1530, %1531 : vector<2x144xf32>
    %1533 = vector.broadcast %1506 : f32 to vector<2x144xf32>
    %1534 = arith.addf %1532, %1533 : vector<2x144xf32>
    %cst_778 = arith.constant 0.000000e+00 : f32
    %1535 = vector.broadcast %cst_778 : f32 to vector<2x144xf32>
    %1536 = arith.maximumf %1534, %1535 : vector<2x144xf32>
    %1537 = arith.maximumf %1521, %1536 : vector<2x144xf32>
    %c2_779 = arith.constant 2 : index
    %c0_780 = arith.constant 0 : index
    %c0_781 = arith.constant 0 : index
    %c0_782 = arith.constant 0 : index
    %1538 = vector.load %arg4[%c2_779, %c0_780, %c0_781, %c0_782] : memref<4x2x2x144xf32, #tpu.memory_space<vmem>>, vector<1x1x2x144xf32>
    %1539 = vector.shape_cast %1538 : vector<1x1x2x144xf32> to vector<2x144xf32>
    %1540 = vector.broadcast %1503 : f32 to vector<2x144xf32>
    %1541 = arith.mulf %1539, %1540 : vector<2x144xf32>
    %c2_783 = arith.constant 2 : index
    %c1_784 = arith.constant 1 : index
    %c0_785 = arith.constant 0 : index
    %c0_786 = arith.constant 0 : index
    %1542 = vector.load %arg4[%c2_783, %c1_784, %c0_785, %c0_786] : memref<4x2x2x144xf32, #tpu.memory_space<vmem>>, vector<1x1x2x144xf32>
    %1543 = vector.shape_cast %1542 : vector<1x1x2x144xf32> to vector<2x144xf32>
    %1544 = vector.broadcast %1504 : f32 to vector<2x144xf32>
    %1545 = arith.mulf %1543, %1544 : vector<2x144xf32>
    %1546 = arith.addf %1541, %1545 : vector<2x144xf32>
    %1547 = vector.broadcast %1505 : f32 to vector<2x144xf32>
    %1548 = arith.mulf %1546, %1547 : vector<2x144xf32>
    %1549 = vector.broadcast %1506 : f32 to vector<2x144xf32>
    %1550 = arith.addf %1548, %1549 : vector<2x144xf32>
    %cst_787 = arith.constant 0.000000e+00 : f32
    %1551 = vector.broadcast %cst_787 : f32 to vector<2x144xf32>
    %1552 = arith.maximumf %1550, %1551 : vector<2x144xf32>
    %1553 = arith.maximumf %1537, %1552 : vector<2x144xf32>
    %c3_788 = arith.constant 3 : index
    %c0_789 = arith.constant 0 : index
    %c0_790 = arith.constant 0 : index
    %c0_791 = arith.constant 0 : index
    %1554 = vector.load %arg4[%c3_788, %c0_789, %c0_790, %c0_791] : memref<4x2x2x144xf32, #tpu.memory_space<vmem>>, vector<1x1x2x144xf32>
    %1555 = vector.shape_cast %1554 : vector<1x1x2x144xf32> to vector<2x144xf32>
    %1556 = vector.broadcast %1503 : f32 to vector<2x144xf32>
    %1557 = arith.mulf %1555, %1556 : vector<2x144xf32>
    %c3_792 = arith.constant 3 : index
    %c1_793 = arith.constant 1 : index
    %c0_794 = arith.constant 0 : index
    %c0_795 = arith.constant 0 : index
    %1558 = vector.load %arg4[%c3_792, %c1_793, %c0_794, %c0_795] : memref<4x2x2x144xf32, #tpu.memory_space<vmem>>, vector<1x1x2x144xf32>
    %1559 = vector.shape_cast %1558 : vector<1x1x2x144xf32> to vector<2x144xf32>
    %1560 = vector.broadcast %1504 : f32 to vector<2x144xf32>
    %1561 = arith.mulf %1559, %1560 : vector<2x144xf32>
    %1562 = arith.addf %1557, %1561 : vector<2x144xf32>
    %1563 = vector.broadcast %1505 : f32 to vector<2x144xf32>
    %1564 = arith.mulf %1562, %1563 : vector<2x144xf32>
    %1565 = vector.broadcast %1506 : f32 to vector<2x144xf32>
    %1566 = arith.addf %1564, %1565 : vector<2x144xf32>
    %cst_796 = arith.constant 0.000000e+00 : f32
    %1567 = vector.broadcast %cst_796 : f32 to vector<2x144xf32>
    %1568 = arith.maximumf %1566, %1567 : vector<2x144xf32>
    %1569 = arith.maximumf %1553, %1568 : vector<2x144xf32>
    %1570 = arith.truncf %1569 : vector<2x144xf32> to vector<2x144xbf16>
    %c1024 = arith.constant 1024 : index
    %c0_797 = arith.constant 0 : index
    %1571 = vector.load %arg20[%c1024, %c0_797] : memref<1600x128xbf16, #tpu.memory_space<vmem>>, vector<144x128xbf16>
    %cst_798 = arith.constant dense<0.000000e+00> : vector<2x128xf32>
    %1572 = tpu.matmul %1570, %1571, %cst_798 {dimension_numbers = #tpu.dot_dimension_numbers<[1], [0], [0], [1], [0, 0, 1, 1], [], []>} : vector<2x144xbf16>, vector<144x128xbf16>, vector<2x128xf32> -> vector<2x128xf32>
    %1573 = arith.addf %1502, %1572 : vector<2x128xf32>
    %c0_799 = arith.constant 0 : index
    %c5_800 = arith.constant 5 : index
    %1574 = memref.load %arg17[%c0_799, %c5_800] : memref<2x8xf32, #tpu.memory_space<smem>>
    %c1_801 = arith.constant 1 : index
    %c5_802 = arith.constant 5 : index
    %1575 = memref.load %arg17[%c1_801, %c5_802] : memref<2x8xf32, #tpu.memory_space<smem>>
    %c0_803 = arith.constant 0 : index
    %c5_804 = arith.constant 5 : index
    %1576 = memref.load %arg18[%c0_803, %c5_804] : memref<1x8xf32, #tpu.memory_space<smem>>
    %c0_805 = arith.constant 0 : index
    %c5_806 = arith.constant 5 : index
    %1577 = memref.load %arg19[%c0_805, %c5_806] : memref<1x8xf32, #tpu.memory_space<smem>>
    %c0_807 = arith.constant 0 : index
    %c0_808 = arith.constant 0 : index
    %c0_809 = arith.constant 0 : index
    %c0_810 = arith.constant 0 : index
    %1578 = vector.load %arg4[%c0_807, %c0_808, %c0_809, %c0_810] : memref<4x2x2x144xf32, #tpu.memory_space<vmem>>, vector<1x1x2x144xf32>
    %1579 = vector.shape_cast %1578 : vector<1x1x2x144xf32> to vector<2x144xf32>
    %1580 = vector.broadcast %1574 : f32 to vector<2x144xf32>
    %1581 = arith.mulf %1579, %1580 : vector<2x144xf32>
    %c0_811 = arith.constant 0 : index
    %c1_812 = arith.constant 1 : index
    %c0_813 = arith.constant 0 : index
    %c0_814 = arith.constant 0 : index
    %1582 = vector.load %arg4[%c0_811, %c1_812, %c0_813, %c0_814] : memref<4x2x2x144xf32, #tpu.memory_space<vmem>>, vector<1x1x2x144xf32>
    %1583 = vector.shape_cast %1582 : vector<1x1x2x144xf32> to vector<2x144xf32>
    %1584 = vector.broadcast %1575 : f32 to vector<2x144xf32>
    %1585 = arith.mulf %1583, %1584 : vector<2x144xf32>
    %1586 = arith.addf %1581, %1585 : vector<2x144xf32>
    %1587 = vector.broadcast %1576 : f32 to vector<2x144xf32>
    %1588 = arith.mulf %1586, %1587 : vector<2x144xf32>
    %1589 = vector.broadcast %1577 : f32 to vector<2x144xf32>
    %1590 = arith.addf %1588, %1589 : vector<2x144xf32>
    %cst_815 = arith.constant 0.000000e+00 : f32
    %1591 = vector.broadcast %cst_815 : f32 to vector<2x144xf32>
    %1592 = arith.maximumf %1590, %1591 : vector<2x144xf32>
    %c1_816 = arith.constant 1 : index
    %c0_817 = arith.constant 0 : index
    %c0_818 = arith.constant 0 : index
    %c0_819 = arith.constant 0 : index
    %1593 = vector.load %arg4[%c1_816, %c0_817, %c0_818, %c0_819] : memref<4x2x2x144xf32, #tpu.memory_space<vmem>>, vector<1x1x2x144xf32>
    %1594 = vector.shape_cast %1593 : vector<1x1x2x144xf32> to vector<2x144xf32>
    %1595 = vector.broadcast %1574 : f32 to vector<2x144xf32>
    %1596 = arith.mulf %1594, %1595 : vector<2x144xf32>
    %c1_820 = arith.constant 1 : index
    %c1_821 = arith.constant 1 : index
    %c0_822 = arith.constant 0 : index
    %c0_823 = arith.constant 0 : index
    %1597 = vector.load %arg4[%c1_820, %c1_821, %c0_822, %c0_823] : memref<4x2x2x144xf32, #tpu.memory_space<vmem>>, vector<1x1x2x144xf32>
    %1598 = vector.shape_cast %1597 : vector<1x1x2x144xf32> to vector<2x144xf32>
    %1599 = vector.broadcast %1575 : f32 to vector<2x144xf32>
    %1600 = arith.mulf %1598, %1599 : vector<2x144xf32>
    %1601 = arith.addf %1596, %1600 : vector<2x144xf32>
    %1602 = vector.broadcast %1576 : f32 to vector<2x144xf32>
    %1603 = arith.mulf %1601, %1602 : vector<2x144xf32>
    %1604 = vector.broadcast %1577 : f32 to vector<2x144xf32>
    %1605 = arith.addf %1603, %1604 : vector<2x144xf32>
    %cst_824 = arith.constant 0.000000e+00 : f32
    %1606 = vector.broadcast %cst_824 : f32 to vector<2x144xf32>
    %1607 = arith.maximumf %1605, %1606 : vector<2x144xf32>
    %1608 = arith.maximumf %1592, %1607 : vector<2x144xf32>
    %c2_825 = arith.constant 2 : index
    %c0_826 = arith.constant 0 : index
    %c0_827 = arith.constant 0 : index
    %c0_828 = arith.constant 0 : index
    %1609 = vector.load %arg4[%c2_825, %c0_826, %c0_827, %c0_828] : memref<4x2x2x144xf32, #tpu.memory_space<vmem>>, vector<1x1x2x144xf32>
    %1610 = vector.shape_cast %1609 : vector<1x1x2x144xf32> to vector<2x144xf32>
    %1611 = vector.broadcast %1574 : f32 to vector<2x144xf32>
    %1612 = arith.mulf %1610, %1611 : vector<2x144xf32>
    %c2_829 = arith.constant 2 : index
    %c1_830 = arith.constant 1 : index
    %c0_831 = arith.constant 0 : index
    %c0_832 = arith.constant 0 : index
    %1613 = vector.load %arg4[%c2_829, %c1_830, %c0_831, %c0_832] : memref<4x2x2x144xf32, #tpu.memory_space<vmem>>, vector<1x1x2x144xf32>
    %1614 = vector.shape_cast %1613 : vector<1x1x2x144xf32> to vector<2x144xf32>
    %1615 = vector.broadcast %1575 : f32 to vector<2x144xf32>
    %1616 = arith.mulf %1614, %1615 : vector<2x144xf32>
    %1617 = arith.addf %1612, %1616 : vector<2x144xf32>
    %1618 = vector.broadcast %1576 : f32 to vector<2x144xf32>
    %1619 = arith.mulf %1617, %1618 : vector<2x144xf32>
    %1620 = vector.broadcast %1577 : f32 to vector<2x144xf32>
    %1621 = arith.addf %1619, %1620 : vector<2x144xf32>
    %cst_833 = arith.constant 0.000000e+00 : f32
    %1622 = vector.broadcast %cst_833 : f32 to vector<2x144xf32>
    %1623 = arith.maximumf %1621, %1622 : vector<2x144xf32>
    %1624 = arith.maximumf %1608, %1623 : vector<2x144xf32>
    %c3_834 = arith.constant 3 : index
    %c0_835 = arith.constant 0 : index
    %c0_836 = arith.constant 0 : index
    %c0_837 = arith.constant 0 : index
    %1625 = vector.load %arg4[%c3_834, %c0_835, %c0_836, %c0_837] : memref<4x2x2x144xf32, #tpu.memory_space<vmem>>, vector<1x1x2x144xf32>
    %1626 = vector.shape_cast %1625 : vector<1x1x2x144xf32> to vector<2x144xf32>
    %1627 = vector.broadcast %1574 : f32 to vector<2x144xf32>
    %1628 = arith.mulf %1626, %1627 : vector<2x144xf32>
    %c3_838 = arith.constant 3 : index
    %c1_839 = arith.constant 1 : index
    %c0_840 = arith.constant 0 : index
    %c0_841 = arith.constant 0 : index
    %1629 = vector.load %arg4[%c3_838, %c1_839, %c0_840, %c0_841] : memref<4x2x2x144xf32, #tpu.memory_space<vmem>>, vector<1x1x2x144xf32>
    %1630 = vector.shape_cast %1629 : vector<1x1x2x144xf32> to vector<2x144xf32>
    %1631 = vector.broadcast %1575 : f32 to vector<2x144xf32>
    %1632 = arith.mulf %1630, %1631 : vector<2x144xf32>
    %1633 = arith.addf %1628, %1632 : vector<2x144xf32>
    %1634 = vector.broadcast %1576 : f32 to vector<2x144xf32>
    %1635 = arith.mulf %1633, %1634 : vector<2x144xf32>
    %1636 = vector.broadcast %1577 : f32 to vector<2x144xf32>
    %1637 = arith.addf %1635, %1636 : vector<2x144xf32>
    %cst_842 = arith.constant 0.000000e+00 : f32
    %1638 = vector.broadcast %cst_842 : f32 to vector<2x144xf32>
    %1639 = arith.maximumf %1637, %1638 : vector<2x144xf32>
    %1640 = arith.maximumf %1624, %1639 : vector<2x144xf32>
    %1641 = arith.truncf %1640 : vector<2x144xf32> to vector<2x144xbf16>
    %c1168 = arith.constant 1168 : index
    %c0_843 = arith.constant 0 : index
    %1642 = vector.load %arg20[%c1168, %c0_843] : memref<1600x128xbf16, #tpu.memory_space<vmem>>, vector<144x128xbf16>
    %cst_844 = arith.constant dense<0.000000e+00> : vector<2x128xf32>
    %1643 = tpu.matmul %1641, %1642, %cst_844 {dimension_numbers = #tpu.dot_dimension_numbers<[1], [0], [0], [1], [0, 0, 1, 1], [], []>} : vector<2x144xbf16>, vector<144x128xbf16>, vector<2x128xf32> -> vector<2x128xf32>
    %1644 = arith.addf %1573, %1643 : vector<2x128xf32>
    %c0_845 = arith.constant 0 : index
    %c6_846 = arith.constant 6 : index
    %1645 = memref.load %arg17[%c0_845, %c6_846] : memref<2x8xf32, #tpu.memory_space<smem>>
    %c1_847 = arith.constant 1 : index
    %c6_848 = arith.constant 6 : index
    %1646 = memref.load %arg17[%c1_847, %c6_848] : memref<2x8xf32, #tpu.memory_space<smem>>
    %c0_849 = arith.constant 0 : index
    %c6_850 = arith.constant 6 : index
    %1647 = memref.load %arg18[%c0_849, %c6_850] : memref<1x8xf32, #tpu.memory_space<smem>>
    %c0_851 = arith.constant 0 : index
    %c6_852 = arith.constant 6 : index
    %1648 = memref.load %arg19[%c0_851, %c6_852] : memref<1x8xf32, #tpu.memory_space<smem>>
    %c0_853 = arith.constant 0 : index
    %c0_854 = arith.constant 0 : index
    %c0_855 = arith.constant 0 : index
    %c0_856 = arith.constant 0 : index
    %1649 = vector.load %arg4[%c0_853, %c0_854, %c0_855, %c0_856] : memref<4x2x2x144xf32, #tpu.memory_space<vmem>>, vector<1x1x2x144xf32>
    %1650 = vector.shape_cast %1649 : vector<1x1x2x144xf32> to vector<2x144xf32>
    %1651 = vector.broadcast %1645 : f32 to vector<2x144xf32>
    %1652 = arith.mulf %1650, %1651 : vector<2x144xf32>
    %c0_857 = arith.constant 0 : index
    %c1_858 = arith.constant 1 : index
    %c0_859 = arith.constant 0 : index
    %c0_860 = arith.constant 0 : index
    %1653 = vector.load %arg4[%c0_857, %c1_858, %c0_859, %c0_860] : memref<4x2x2x144xf32, #tpu.memory_space<vmem>>, vector<1x1x2x144xf32>
    %1654 = vector.shape_cast %1653 : vector<1x1x2x144xf32> to vector<2x144xf32>
    %1655 = vector.broadcast %1646 : f32 to vector<2x144xf32>
    %1656 = arith.mulf %1654, %1655 : vector<2x144xf32>
    %1657 = arith.addf %1652, %1656 : vector<2x144xf32>
    %1658 = vector.broadcast %1647 : f32 to vector<2x144xf32>
    %1659 = arith.mulf %1657, %1658 : vector<2x144xf32>
    %1660 = vector.broadcast %1648 : f32 to vector<2x144xf32>
    %1661 = arith.addf %1659, %1660 : vector<2x144xf32>
    %cst_861 = arith.constant 0.000000e+00 : f32
    %1662 = vector.broadcast %cst_861 : f32 to vector<2x144xf32>
    %1663 = arith.maximumf %1661, %1662 : vector<2x144xf32>
    %c1_862 = arith.constant 1 : index
    %c0_863 = arith.constant 0 : index
    %c0_864 = arith.constant 0 : index
    %c0_865 = arith.constant 0 : index
    %1664 = vector.load %arg4[%c1_862, %c0_863, %c0_864, %c0_865] : memref<4x2x2x144xf32, #tpu.memory_space<vmem>>, vector<1x1x2x144xf32>
    %1665 = vector.shape_cast %1664 : vector<1x1x2x144xf32> to vector<2x144xf32>
    %1666 = vector.broadcast %1645 : f32 to vector<2x144xf32>
    %1667 = arith.mulf %1665, %1666 : vector<2x144xf32>
    %c1_866 = arith.constant 1 : index
    %c1_867 = arith.constant 1 : index
    %c0_868 = arith.constant 0 : index
    %c0_869 = arith.constant 0 : index
    %1668 = vector.load %arg4[%c1_866, %c1_867, %c0_868, %c0_869] : memref<4x2x2x144xf32, #tpu.memory_space<vmem>>, vector<1x1x2x144xf32>
    %1669 = vector.shape_cast %1668 : vector<1x1x2x144xf32> to vector<2x144xf32>
    %1670 = vector.broadcast %1646 : f32 to vector<2x144xf32>
    %1671 = arith.mulf %1669, %1670 : vector<2x144xf32>
    %1672 = arith.addf %1667, %1671 : vector<2x144xf32>
    %1673 = vector.broadcast %1647 : f32 to vector<2x144xf32>
    %1674 = arith.mulf %1672, %1673 : vector<2x144xf32>
    %1675 = vector.broadcast %1648 : f32 to vector<2x144xf32>
    %1676 = arith.addf %1674, %1675 : vector<2x144xf32>
    %cst_870 = arith.constant 0.000000e+00 : f32
    %1677 = vector.broadcast %cst_870 : f32 to vector<2x144xf32>
    %1678 = arith.maximumf %1676, %1677 : vector<2x144xf32>
    %1679 = arith.maximumf %1663, %1678 : vector<2x144xf32>
    %c2_871 = arith.constant 2 : index
    %c0_872 = arith.constant 0 : index
    %c0_873 = arith.constant 0 : index
    %c0_874 = arith.constant 0 : index
    %1680 = vector.load %arg4[%c2_871, %c0_872, %c0_873, %c0_874] : memref<4x2x2x144xf32, #tpu.memory_space<vmem>>, vector<1x1x2x144xf32>
    %1681 = vector.shape_cast %1680 : vector<1x1x2x144xf32> to vector<2x144xf32>
    %1682 = vector.broadcast %1645 : f32 to vector<2x144xf32>
    %1683 = arith.mulf %1681, %1682 : vector<2x144xf32>
    %c2_875 = arith.constant 2 : index
    %c1_876 = arith.constant 1 : index
    %c0_877 = arith.constant 0 : index
    %c0_878 = arith.constant 0 : index
    %1684 = vector.load %arg4[%c2_875, %c1_876, %c0_877, %c0_878] : memref<4x2x2x144xf32, #tpu.memory_space<vmem>>, vector<1x1x2x144xf32>
    %1685 = vector.shape_cast %1684 : vector<1x1x2x144xf32> to vector<2x144xf32>
    %1686 = vector.broadcast %1646 : f32 to vector<2x144xf32>
    %1687 = arith.mulf %1685, %1686 : vector<2x144xf32>
    %1688 = arith.addf %1683, %1687 : vector<2x144xf32>
    %1689 = vector.broadcast %1647 : f32 to vector<2x144xf32>
    %1690 = arith.mulf %1688, %1689 : vector<2x144xf32>
    %1691 = vector.broadcast %1648 : f32 to vector<2x144xf32>
    %1692 = arith.addf %1690, %1691 : vector<2x144xf32>
    %cst_879 = arith.constant 0.000000e+00 : f32
    %1693 = vector.broadcast %cst_879 : f32 to vector<2x144xf32>
    %1694 = arith.maximumf %1692, %1693 : vector<2x144xf32>
    %1695 = arith.maximumf %1679, %1694 : vector<2x144xf32>
    %c3_880 = arith.constant 3 : index
    %c0_881 = arith.constant 0 : index
    %c0_882 = arith.constant 0 : index
    %c0_883 = arith.constant 0 : index
    %1696 = vector.load %arg4[%c3_880, %c0_881, %c0_882, %c0_883] : memref<4x2x2x144xf32, #tpu.memory_space<vmem>>, vector<1x1x2x144xf32>
    %1697 = vector.shape_cast %1696 : vector<1x1x2x144xf32> to vector<2x144xf32>
    %1698 = vector.broadcast %1645 : f32 to vector<2x144xf32>
    %1699 = arith.mulf %1697, %1698 : vector<2x144xf32>
    %c3_884 = arith.constant 3 : index
    %c1_885 = arith.constant 1 : index
    %c0_886 = arith.constant 0 : index
    %c0_887 = arith.constant 0 : index
    %1700 = vector.load %arg4[%c3_884, %c1_885, %c0_886, %c0_887] : memref<4x2x2x144xf32, #tpu.memory_space<vmem>>, vector<1x1x2x144xf32>
    %1701 = vector.shape_cast %1700 : vector<1x1x2x144xf32> to vector<2x144xf32>
    %1702 = vector.broadcast %1646 : f32 to vector<2x144xf32>
    %1703 = arith.mulf %1701, %1702 : vector<2x144xf32>
    %1704 = arith.addf %1699, %1703 : vector<2x144xf32>
    %1705 = vector.broadcast %1647 : f32 to vector<2x144xf32>
    %1706 = arith.mulf %1704, %1705 : vector<2x144xf32>
    %1707 = vector.broadcast %1648 : f32 to vector<2x144xf32>
    %1708 = arith.addf %1706, %1707 : vector<2x144xf32>
    %cst_888 = arith.constant 0.000000e+00 : f32
    %1709 = vector.broadcast %cst_888 : f32 to vector<2x144xf32>
    %1710 = arith.maximumf %1708, %1709 : vector<2x144xf32>
    %1711 = arith.maximumf %1695, %1710 : vector<2x144xf32>
    %1712 = arith.truncf %1711 : vector<2x144xf32> to vector<2x144xbf16>
    %c1312 = arith.constant 1312 : index
    %c0_889 = arith.constant 0 : index
    %1713 = vector.load %arg20[%c1312, %c0_889] : memref<1600x128xbf16, #tpu.memory_space<vmem>>, vector<144x128xbf16>
    %cst_890 = arith.constant dense<0.000000e+00> : vector<2x128xf32>
    %1714 = tpu.matmul %1712, %1713, %cst_890 {dimension_numbers = #tpu.dot_dimension_numbers<[1], [0], [0], [1], [0, 0, 1, 1], [], []>} : vector<2x144xbf16>, vector<144x128xbf16>, vector<2x128xf32> -> vector<2x128xf32>
    %1715 = arith.addf %1644, %1714 : vector<2x128xf32>
    %c0_891 = arith.constant 0 : index
    %c7_892 = arith.constant 7 : index
    %1716 = memref.load %arg17[%c0_891, %c7_892] : memref<2x8xf32, #tpu.memory_space<smem>>
    %c1_893 = arith.constant 1 : index
    %c7_894 = arith.constant 7 : index
    %1717 = memref.load %arg17[%c1_893, %c7_894] : memref<2x8xf32, #tpu.memory_space<smem>>
    %c0_895 = arith.constant 0 : index
    %c7_896 = arith.constant 7 : index
    %1718 = memref.load %arg18[%c0_895, %c7_896] : memref<1x8xf32, #tpu.memory_space<smem>>
    %c0_897 = arith.constant 0 : index
    %c7_898 = arith.constant 7 : index
    %1719 = memref.load %arg19[%c0_897, %c7_898] : memref<1x8xf32, #tpu.memory_space<smem>>
    %c0_899 = arith.constant 0 : index
    %c0_900 = arith.constant 0 : index
    %c0_901 = arith.constant 0 : index
    %c0_902 = arith.constant 0 : index
    %1720 = vector.load %arg4[%c0_899, %c0_900, %c0_901, %c0_902] : memref<4x2x2x144xf32, #tpu.memory_space<vmem>>, vector<1x1x2x144xf32>
    %1721 = vector.shape_cast %1720 : vector<1x1x2x144xf32> to vector<2x144xf32>
    %1722 = vector.broadcast %1716 : f32 to vector<2x144xf32>
    %1723 = arith.mulf %1721, %1722 : vector<2x144xf32>
    %c0_903 = arith.constant 0 : index
    %c1_904 = arith.constant 1 : index
    %c0_905 = arith.constant 0 : index
    %c0_906 = arith.constant 0 : index
    %1724 = vector.load %arg4[%c0_903, %c1_904, %c0_905, %c0_906] : memref<4x2x2x144xf32, #tpu.memory_space<vmem>>, vector<1x1x2x144xf32>
    %1725 = vector.shape_cast %1724 : vector<1x1x2x144xf32> to vector<2x144xf32>
    %1726 = vector.broadcast %1717 : f32 to vector<2x144xf32>
    %1727 = arith.mulf %1725, %1726 : vector<2x144xf32>
    %1728 = arith.addf %1723, %1727 : vector<2x144xf32>
    %1729 = vector.broadcast %1718 : f32 to vector<2x144xf32>
    %1730 = arith.mulf %1728, %1729 : vector<2x144xf32>
    %1731 = vector.broadcast %1719 : f32 to vector<2x144xf32>
    %1732 = arith.addf %1730, %1731 : vector<2x144xf32>
    %cst_907 = arith.constant 0.000000e+00 : f32
    %1733 = vector.broadcast %cst_907 : f32 to vector<2x144xf32>
    %1734 = arith.maximumf %1732, %1733 : vector<2x144xf32>
    %c1_908 = arith.constant 1 : index
    %c0_909 = arith.constant 0 : index
    %c0_910 = arith.constant 0 : index
    %c0_911 = arith.constant 0 : index
    %1735 = vector.load %arg4[%c1_908, %c0_909, %c0_910, %c0_911] : memref<4x2x2x144xf32, #tpu.memory_space<vmem>>, vector<1x1x2x144xf32>
    %1736 = vector.shape_cast %1735 : vector<1x1x2x144xf32> to vector<2x144xf32>
    %1737 = vector.broadcast %1716 : f32 to vector<2x144xf32>
    %1738 = arith.mulf %1736, %1737 : vector<2x144xf32>
    %c1_912 = arith.constant 1 : index
    %c1_913 = arith.constant 1 : index
    %c0_914 = arith.constant 0 : index
    %c0_915 = arith.constant 0 : index
    %1739 = vector.load %arg4[%c1_912, %c1_913, %c0_914, %c0_915] : memref<4x2x2x144xf32, #tpu.memory_space<vmem>>, vector<1x1x2x144xf32>
    %1740 = vector.shape_cast %1739 : vector<1x1x2x144xf32> to vector<2x144xf32>
    %1741 = vector.broadcast %1717 : f32 to vector<2x144xf32>
    %1742 = arith.mulf %1740, %1741 : vector<2x144xf32>
    %1743 = arith.addf %1738, %1742 : vector<2x144xf32>
    %1744 = vector.broadcast %1718 : f32 to vector<2x144xf32>
    %1745 = arith.mulf %1743, %1744 : vector<2x144xf32>
    %1746 = vector.broadcast %1719 : f32 to vector<2x144xf32>
    %1747 = arith.addf %1745, %1746 : vector<2x144xf32>
    %cst_916 = arith.constant 0.000000e+00 : f32
    %1748 = vector.broadcast %cst_916 : f32 to vector<2x144xf32>
    %1749 = arith.maximumf %1747, %1748 : vector<2x144xf32>
    %1750 = arith.maximumf %1734, %1749 : vector<2x144xf32>
    %c2_917 = arith.constant 2 : index
    %c0_918 = arith.constant 0 : index
    %c0_919 = arith.constant 0 : index
    %c0_920 = arith.constant 0 : index
    %1751 = vector.load %arg4[%c2_917, %c0_918, %c0_919, %c0_920] : memref<4x2x2x144xf32, #tpu.memory_space<vmem>>, vector<1x1x2x144xf32>
    %1752 = vector.shape_cast %1751 : vector<1x1x2x144xf32> to vector<2x144xf32>
    %1753 = vector.broadcast %1716 : f32 to vector<2x144xf32>
    %1754 = arith.mulf %1752, %1753 : vector<2x144xf32>
    %c2_921 = arith.constant 2 : index
    %c1_922 = arith.constant 1 : index
    %c0_923 = arith.constant 0 : index
    %c0_924 = arith.constant 0 : index
    %1755 = vector.load %arg4[%c2_921, %c1_922, %c0_923, %c0_924] : memref<4x2x2x144xf32, #tpu.memory_space<vmem>>, vector<1x1x2x144xf32>
    %1756 = vector.shape_cast %1755 : vector<1x1x2x144xf32> to vector<2x144xf32>
    %1757 = vector.broadcast %1717 : f32 to vector<2x144xf32>
    %1758 = arith.mulf %1756, %1757 : vector<2x144xf32>
    %1759 = arith.addf %1754, %1758 : vector<2x144xf32>
    %1760 = vector.broadcast %1718 : f32 to vector<2x144xf32>
    %1761 = arith.mulf %1759, %1760 : vector<2x144xf32>
    %1762 = vector.broadcast %1719 : f32 to vector<2x144xf32>
    %1763 = arith.addf %1761, %1762 : vector<2x144xf32>
    %cst_925 = arith.constant 0.000000e+00 : f32
    %1764 = vector.broadcast %cst_925 : f32 to vector<2x144xf32>
    %1765 = arith.maximumf %1763, %1764 : vector<2x144xf32>
    %1766 = arith.maximumf %1750, %1765 : vector<2x144xf32>
    %c3_926 = arith.constant 3 : index
    %c0_927 = arith.constant 0 : index
    %c0_928 = arith.constant 0 : index
    %c0_929 = arith.constant 0 : index
    %1767 = vector.load %arg4[%c3_926, %c0_927, %c0_928, %c0_929] : memref<4x2x2x144xf32, #tpu.memory_space<vmem>>, vector<1x1x2x144xf32>
    %1768 = vector.shape_cast %1767 : vector<1x1x2x144xf32> to vector<2x144xf32>
    %1769 = vector.broadcast %1716 : f32 to vector<2x144xf32>
    %1770 = arith.mulf %1768, %1769 : vector<2x144xf32>
    %c3_930 = arith.constant 3 : index
    %c1_931 = arith.constant 1 : index
    %c0_932 = arith.constant 0 : index
    %c0_933 = arith.constant 0 : index
    %1771 = vector.load %arg4[%c3_930, %c1_931, %c0_932, %c0_933] : memref<4x2x2x144xf32, #tpu.memory_space<vmem>>, vector<1x1x2x144xf32>
    %1772 = vector.shape_cast %1771 : vector<1x1x2x144xf32> to vector<2x144xf32>
    %1773 = vector.broadcast %1717 : f32 to vector<2x144xf32>
    %1774 = arith.mulf %1772, %1773 : vector<2x144xf32>
    %1775 = arith.addf %1770, %1774 : vector<2x144xf32>
    %1776 = vector.broadcast %1718 : f32 to vector<2x144xf32>
    %1777 = arith.mulf %1775, %1776 : vector<2x144xf32>
    %1778 = vector.broadcast %1719 : f32 to vector<2x144xf32>
    %1779 = arith.addf %1777, %1778 : vector<2x144xf32>
    %cst_934 = arith.constant 0.000000e+00 : f32
    %1780 = vector.broadcast %cst_934 : f32 to vector<2x144xf32>
    %1781 = arith.maximumf %1779, %1780 : vector<2x144xf32>
    %1782 = arith.maximumf %1766, %1781 : vector<2x144xf32>
    %1783 = arith.truncf %1782 : vector<2x144xf32> to vector<2x144xbf16>
    %c1456 = arith.constant 1456 : index
    %c0_935 = arith.constant 0 : index
    %1784 = vector.load %arg20[%c1456, %c0_935] : memref<1600x128xbf16, #tpu.memory_space<vmem>>, vector<144x128xbf16>
    %cst_936 = arith.constant dense<0.000000e+00> : vector<2x128xf32>
    %1785 = tpu.matmul %1783, %1784, %cst_936 {dimension_numbers = #tpu.dot_dimension_numbers<[1], [0], [0], [1], [0, 0, 1, 1], [], []>} : vector<2x144xbf16>, vector<144x128xbf16>, vector<2x128xf32> -> vector<2x128xf32>
    %1786 = arith.addf %1715, %1785 : vector<2x128xf32>
    %c0_937 = arith.constant 0 : index
    %c0_938 = arith.constant 0 : index
    %1787 = vector.load %arg21[%c0_937, %c0_938] : memref<1x128xf32, #tpu.memory_space<vmem>>, vector<1x128xf32>
    %1788 = vector.broadcast %1787 : vector<1x128xf32> to vector<2x128xf32>
    %1789 = arith.mulf %1786, %1788 : vector<2x128xf32>
    %c0_939 = arith.constant 0 : index
    %c0_940 = arith.constant 0 : index
    %1790 = vector.load %arg22[%c0_939, %c0_940] : memref<1x128xf32, #tpu.memory_space<vmem>>, vector<1x128xf32>
    %1791 = vector.broadcast %1790 : vector<1x128xf32> to vector<2x128xf32>
    %1792 = arith.addf %1789, %1791 : vector<2x128xf32>
    %cst_941 = arith.constant 0.000000e+00 : f32
    %1793 = vector.broadcast %cst_941 : f32 to vector<2x128xf32>
    %1794 = arith.subf %1793, %1792 : vector<2x128xf32>
    %1795 = math.exp %1794 : vector<2x128xf32>
    %cst_942 = arith.constant 1.000000e+00 : f32
    %1796 = vector.broadcast %cst_942 : f32 to vector<2x128xf32>
    %1797 = arith.addf %1796, %1795 : vector<2x128xf32>
    %cst_943 = arith.constant 1.000000e+00 : f32
    %1798 = vector.broadcast %cst_943 : f32 to vector<2x128xf32>
    %1799 = arith.divf %1798, %1797 : vector<2x128xf32>
    %c0_944 = arith.constant 0 : index
    %c0_945 = arith.constant 0 : index
    %1800 = vector.load %arg23[%c0_944, %c0_945] : memref<128x16xf32, #tpu.memory_space<vmem>>, vector<128x16xf32>
    %cst_946 = arith.constant dense<0.000000e+00> : vector<2x16xf32>
    %1801 = tpu.matmul %1799, %1800, %cst_946 {dimension_numbers = #tpu.dot_dimension_numbers<[1], [0], [0], [1], [0, 0, 1, 1], [], []>} : vector<2x128xf32>, vector<128x16xf32>, vector<2x16xf32> -> vector<2x16xf32>
    %c0_947 = arith.constant 0 : index
    %c0_948 = arith.constant 0 : index
    %1802 = vector.load %arg24[%c0_947, %c0_948] : memref<1x16xf32, #tpu.memory_space<vmem>>, vector<1x16xf32>
    %1803 = vector.broadcast %1802 : vector<1x16xf32> to vector<2x16xf32>
    %1804 = arith.addf %1801, %1803 : vector<2x16xf32>
    %cst_949 = arith.constant dense<0xFF800000> : vector<2xf32>
    %1805 = vector.multi_reduction <maximumf>, %1804, %cst_949 [1] : vector<2x16xf32> to vector<2xf32>
    %1806 = vector.shape_cast %1805 : vector<2xf32> to vector<2x1xf32>
    %1807 = vector.broadcast %1806 : vector<2x1xf32> to vector<2x16xf32>
    %1808 = arith.subf %1804, %1807 : vector<2x16xf32>
    %1809 = math.exp %1808 : vector<2x16xf32>
    %cst_950 = arith.constant dense<0.000000e+00> : vector<2xf32>
    %1810 = vector.multi_reduction <add>, %1809, %cst_950 [1] : vector<2x16xf32> to vector<2xf32>
    %1811 = vector.shape_cast %1810 : vector<2xf32> to vector<2x1xf32>
    %1812 = vector.broadcast %1811 : vector<2x1xf32> to vector<2x16xf32>
    %1813 = arith.divf %1809, %1812 : vector<2x16xf32>
    %c0_951 = arith.constant 0 : index
    %c0_952 = arith.constant 0 : index
    %1814 = vector.load %arg25[%c0_951, %c0_952] : memref<16x2xf32, #tpu.memory_space<vmem>>, vector<16x2xf32>
    %cst_953 = arith.constant dense<0.000000e+00> : vector<2x2xf32>
    %1815 = tpu.matmul %1813, %1814, %cst_953 {dimension_numbers = #tpu.dot_dimension_numbers<[1], [0], [0], [1], [0, 0, 1, 1], [], []>} : vector<2x16xf32>, vector<16x2xf32>, vector<2x2xf32> -> vector<2x2xf32>
    %c0_954 = arith.constant 0 : index
    %c0_955 = arith.constant 0 : index
    %1816 = vector.load %arg26[%c0_954, %c0_955] : memref<2x2xf32, #tpu.memory_space<vmem>>, vector<2x2xf32>
    tpu.vector_store %arg26[%c0_954, %c0_955], %1815 {strides = array<i32>} : memref<2x2xf32, #tpu.memory_space<vmem>>, vector<2x2xf32>,
    return
  }
  func.func @transform_0(%arg0: i32) -> (i32, i32, i32, i32) {
    %c0_i32 = arith.constant 0 : i32
    %c0_i32_0 = arith.constant 0 : i32
    %c0_i32_1 = arith.constant 0 : i32
    %c0_i32_2 = arith.constant 0 : i32
    %c0_i32_3 = arith.constant 0 : i32
    return %c0_i32, %c0_i32_0, %c0_i32_1, %c0_i32_2 : i32, i32, i32, i32
  }
  func.func @transform_1(%arg0: i32) -> (i32, i32, i32, i32) {
    %c0_i32 = arith.constant 0 : i32
    %c0_i32_0 = arith.constant 0 : i32
    %c0_i32_1 = arith.constant 0 : i32
    %c0_i32_2 = arith.constant 0 : i32
    %c0_i32_3 = arith.constant 0 : i32
    return %c0_i32, %c0_i32_0, %c0_i32_1, %c0_i32_2 : i32, i32, i32, i32
  }
  func.func @transform_2(%arg0: i32) -> (i32, i32, i32, i32) {
    %c0_i32 = arith.constant 0 : i32
    %c0_i32_0 = arith.constant 0 : i32
    %c0_i32_1 = arith.constant 0 : i32
    %c0_i32_2 = arith.constant 0 : i32
    %c0_i32_3 = arith.constant 0 : i32
    return %c0_i32, %c0_i32_0, %c0_i32_1, %c0_i32_2 : i32, i32, i32, i32
  }
  func.func @transform_3(%arg0: i32) -> (i32, i32, i32, i32) {
    %c0_i32 = arith.constant 0 : i32
    %c0_i32_0 = arith.constant 0 : i32
    %c0_i32_1 = arith.constant 0 : i32
    %c0_i32_2 = arith.constant 0 : i32
    %c0_i32_3 = arith.constant 0 : i32
    return %c0_i32, %c0_i32_0, %c0_i32_1, %c0_i32_2 : i32, i32, i32, i32
  }
  func.func @transform_4(%arg0: i32) -> (i32, i32) {
    %c0_i32 = arith.constant 0 : i32
    %c0_i32_0 = arith.constant 0 : i32
    %c0_i32_1 = arith.constant 0 : i32
    return %c0_i32, %c0_i32_0 : i32, i32
  }
  func.func @transform_5(%arg0: i32) -> (i32, i32) {
    %c0_i32 = arith.constant 0 : i32
    %c0_i32_0 = arith.constant 0 : i32
    %c0_i32_1 = arith.constant 0 : i32
    return %c0_i32, %c0_i32_0 : i32, i32
  }
  func.func @transform_6(%arg0: i32) -> (i32, i32) {
    %c0_i32 = arith.constant 0 : i32
    %c0_i32_0 = arith.constant 0 : i32
    %c0_i32_1 = arith.constant 0 : i32
    return %c0_i32, %c0_i32_0 : i32, i32
  }
  func.func @transform_7(%arg0: i32) -> (i32, i32) {
    %c0_i32 = arith.constant 0 : i32
    %c0_i32_0 = arith.constant 0 : i32
    %c0_i32_1 = arith.constant 0 : i32
    return %c0_i32, %c0_i32_0 : i32, i32
  }
  func.func @transform_8(%arg0: i32) -> (i32, i32) {
    %c0_i32 = arith.constant 0 : i32
    %c0_i32_0 = arith.constant 0 : i32
    %c0_i32_1 = arith.constant 0 : i32
    return %c0_i32, %c0_i32_0 : i32, i32
  }
  func.func @transform_9(%arg0: i32) -> (i32, i32) {
    %c0_i32 = arith.constant 0 : i32
    %c0_i32_0 = arith.constant 0 : i32
    %c0_i32_1 = arith.constant 0 : i32
    return %c0_i32, %c0_i32_0 : i32, i32
  }
  func.func @transform_10(%arg0: i32) -> (i32, i32) {
    %c0_i32 = arith.constant 0 : i32
    %c0_i32_0 = arith.constant 0 : i32
    %c0_i32_1 = arith.constant 0 : i32
    return %c0_i32, %c0_i32_0 : i32, i32
  }
  func.func @transform_11(%arg0: i32) -> (i32, i32) {
    %c0_i32 = arith.constant 0 : i32
    %c0_i32_0 = arith.constant 0 : i32
    %c0_i32_1 = arith.constant 0 : i32
    return %c0_i32, %c0_i32_0 : i32, i32
  }
  func.func @transform_12(%arg0: i32) -> (i32, i32) {
    %c0_i32 = arith.constant 0 : i32
    %c0_i32_0 = arith.constant 0 : i32
    %c0_i32_1 = arith.constant 0 : i32
    return %c0_i32, %c0_i32_0 : i32, i32
  }
  func.func @transform_13(%arg0: i32) -> (i32, i32) {
    %c0_i32 = arith.constant 0 : i32
    %c0_i32_0 = arith.constant 0 : i32
    %c0_i32_1 = arith.constant 0 : i32
    return %c0_i32, %c0_i32_0 : i32, i32
  }
  func.func @transform_14(%arg0: i32) -> (i32, i32) {
    %c0_i32 = arith.constant 0 : i32
    %c0_i32_0 = arith.constant 0 : i32
    %c0_i32_1 = arith.constant 0 : i32
    return %c0_i32, %c0_i32_0 : i32, i32
  }
  func.func @transform_15(%arg0: i32) -> (i32, i32) {
    %c0_i32 = arith.constant 0 : i32
    %c0_i32_0 = arith.constant 0 : i32
    %c0_i32_1 = arith.constant 0 : i32
    return %c0_i32, %c0_i32_0 : i32, i32
  }
  func.func @transform_16(%arg0: i32) -> (i32, i32) {
    %c0_i32 = arith.constant 0 : i32
    %c0_i32_0 = arith.constant 0 : i32
    %c0_i32_1 = arith.constant 0 : i32
    return %c0_i32, %c0_i32_0 : i32, i32
  }
  func.func @transform_17(%arg0: i32) -> (i32, i32) {
    %c0_i32 = arith.constant 0 : i32
    %c0_i32_0 = arith.constant 0 : i32
    %c0_i32_1 = arith.constant 0 : i32
    return %c0_i32, %c0_i32_0 : i32, i32
  }
  func.func @transform_18(%arg0: i32) -> (i32, i32) {
    %c0_i32 = arith.constant 0 : i32
    %c0_i32_0 = arith.constant 0 : i32
    %c0_i32_1 = arith.constant 0 : i32
    return %c0_i32, %c0_i32_0 : i32, i32
  }
  func.func @transform_19(%arg0: i32) -> (i32, i32) {
    %c0_i32 = arith.constant 0 : i32
    %c0_i32_0 = arith.constant 0 : i32
    %c0_i32_1 = arith.constant 0 : i32
    return %c0_i32, %c0_i32_0 : i32, i32
  }
  func.func @transform_20(%arg0: i32) -> (i32, i32) {
    %c0_i32 = arith.constant 0 : i32
    %c0_i32_0 = arith.constant 0 : i32
    %c0_i32_1 = arith.constant 0 : i32
    return %c0_i32, %c0_i32_0 : i32, i32
  }
  func.func @transform_21(%arg0: i32) -> (i32, i32) {
    %c0_i32 = arith.constant 0 : i32
    %c0_i32_0 = arith.constant 0 : i32
    %c0_i32_1 = arith.constant 0 : i32
    return %c0_i32, %c0_i32_0 : i32, i32
  }
  func.func @transform_22(%arg0: i32) -> (i32, i32) {
    %c0_i32 = arith.constant 0 : i32
    %c0_i32_0 = arith.constant 0 : i32
    %c0_i32_1 = arith.constant 0 : i32
    return %c0_i32, %c0_i32_0 : i32, i32
  }
  func.func @transform_23(%arg0: i32) -> (i32, i32) {
    %c0_i32 = arith.constant 0 : i32
    %c0_i32_0 = arith.constant 0 : i32
    %c0_i32_1 = arith.constant 0 : i32
    return %c0_i32, %c0_i32_0 : i32, i32
  }
  func.func @transform_24(%arg0: i32) -> (i32, i32) {
    %c0_i32 = arith.constant 0 : i32
    %c0_i32_0 = arith.constant 0 : i32
    %c0_i32_1 = arith.constant 0 : i32
    return %c0_i32, %c0_i32_0 : i32, i32
  }
  func.func @transform_25(%arg0: i32) -> (i32, i32) {
    %c0_i32 = arith.constant 0 : i32
    %c0_i32_0 = arith.constant 0 : i32
    %c0_i32_1 = arith.constant 0 : i32
    return %c0_i32, %c0_i32_0 : i32, i32
  }
}

</mosaic_0001>

<llo_original>
// kernel: fixation_net_forward.1
$region0: #{fixation_net_forward.1}
  #allocation0 [shape = 'u32[]', space=smem, size = 0x4, offset = 0x4, fixed_abs, tag = 'smem constant byte address 0x4 - core index']
  #allocation1 [shape = 'u32[72,128]{1,0:T(1,128)}', space=vmem, size = 0x9000, scoped, tag = 'internal scratch']
  %s0 = inlined_call_operand.vmem [shape: f32[2,4,2,2], index: 0, kind: input, shape index: {}]
  %s1 = inlined_call_operand.vmem [shape: f32[2,4,2,2], index: 1, kind: input, shape index: {}]
  %s2 = inlined_call_operand.vmem [shape: f32[2,4,2,12], index: 2, kind: input, shape index: {}]
  %s3 = inlined_call_operand.vmem [shape: f32[4,2,2,144], index: 3, kind: input, shape index: {}]
  %s4 = inlined_call_operand.vmem [shape: f32[2,32], index: 4, kind: input, shape index: {}]
  %s5 = inlined_call_operand.vmem [shape: f32[1,32], index: 5, kind: input, shape index: {}]
  %s6 = inlined_call_operand.vmem [shape: f32[1,32], index: 6, kind: input, shape index: {}]
  %s7 = inlined_call_operand.vmem [shape: f32[2,64], index: 7, kind: input, shape index: {}]
  %s8 = inlined_call_operand.vmem [shape: f32[1,64], index: 8, kind: input, shape index: {}]
  %s9 = inlined_call_operand.vmem [shape: f32[1,64], index: 9, kind: input, shape index: {}]
  %s10 = inlined_call_operand.vmem [shape: f32[12,64], index: 10, kind: input, shape index: {}]
  %s11 = inlined_call_operand.vmem [shape: f32[1,64], index: 11, kind: input, shape index: {}]
  %s12 = inlined_call_operand.vmem [shape: f32[1,64], index: 12, kind: input, shape index: {}]
  %s13 = inlined_call_operand.vmem [shape: f32[64,32], index: 13, kind: input, shape index: {}]
  %s14 = inlined_call_operand.vmem [shape: f32[1,32], index: 14, kind: input, shape index: {}]
  %s15 = inlined_call_operand.vmem [shape: f32[1,32], index: 15, kind: input, shape index: {}]
  %s16 = inlined_call_operand.vmem [shape: f32[2,8], index: 16, kind: input, shape index: {}]
  %s17 = inlined_call_operand.vmem [shape: f32[1,8], index: 17, kind: input, shape index: {}]
  %s18 = inlined_call_operand.vmem [shape: f32[1,8], index: 18, kind: input, shape index: {}]
  %s19 = inlined_call_operand.vmem [shape: bf16[1600,128], index: 19, kind: input, shape index: {}]
  %s20 = inlined_call_operand.vmem [shape: f32[1,128], index: 20, kind: input, shape index: {}]
  %s21 = inlined_call_operand.vmem [shape: f32[1,128], index: 21, kind: input, shape index: {}]
  %s22 = inlined_call_operand.vmem [shape: f32[128,16], index: 22, kind: input, shape index: {}]
  %s23 = inlined_call_operand.vmem [shape: f32[1,16], index: 23, kind: input, shape index: {}]
  %s24 = inlined_call_operand.vmem [shape: f32[16,2], index: 24, kind: input, shape index: {}]
  %s25 = inlined_call_operand.hbm [shape: f32[2,2], index: 25, kind: output, shape index: {}]
  %s26 = sld [smem:[#allocation0]]
  $region122: #{fixation_net_forward.1} parent=0
    _
  %s28 = ssub.s32 1, %s26
  %s29 = scalar_select 0, %s28, %s26
  $region1: #{fixation_net_forward.1} parent=0
    #allocation2 [shape = 'u8[1024]{0}', space=smem, size = 0x400, scoped, tag = 'input window, operand 16, single buffered']
    #allocation3 [shape = 's32[1]{0}', space=sflag, size = 0x4, scoped, tag = 'scoped memory for fixation_net_forward.1']
    #allocation4 [shape = 's32[1]{0}', space=sflag, size = 0x4, scoped, tag = 'scoped memory for fixation_net_forward.1']
    #allocation5 [shape = 'u8[512]{0}', space=smem, size = 0x200, scoped, tag = 'input window, operand 17, single buffered']
    #allocation6 [shape = 's32[1]{0}', space=sflag, size = 0x4, scoped, tag = 'scoped memory for fixation_net_forward.1']
    #allocation7 [shape = 'u8[512]{0}', space=smem, size = 0x200, scoped, tag = 'input window, operand 18, single buffered']
    #allocation8 [shape = 'u8[1024]{0}', space=vmem, size = 0x400, scoped, tag = 'output window, operand 0, single buffered']
    %30 = vsyncpa [#allocation4], 0
    %31 = vsyncpa [#allocation6], 0
    %32 = vsyncpa [#allocation3], 0
    // Predicated region
    $region2: #{fixation_net_forward.1} parent=1 // pred_check
      _
    $region3: #{fixation_net_forward.1} parent=1 // pred_check_branch
      %34 = sbr.rel (0) target = $region5
    $region4: #{fixation_net_forward.1} parent=1 // pred_region
      _
    $region5: #{fixation_net_forward.1} parent=1 // pred_fallthru
      _
    // Predicated region
    $region6: #{fixation_net_forward.1} parent=1 // pred_check
      _
    $region7: #{fixation_net_forward.1} parent=1 // pred_check_branch
      %36 = sbr.rel (0) target = $region9
    $region8: #{fixation_net_forward.1} parent=1 // pred_region
      _
    $region9: #{fixation_net_forward.1} parent=1 // pred_fallthru
      _
    // Predicated region
    $region10: #{fixation_net_forward.1} parent=1 // pred_check
      _
    $region11: #{fixation_net_forward.1} parent=1 // pred_check_branch
      %38 = sbr.rel (0) target = $region13
    $region12: #{fixation_net_forward.1} parent=1 // pred_region
      _
    $region13: #{fixation_net_forward.1} parent=1 // pred_fallthru
      _
    // Predicated region
    $region14: #{fixation_net_forward.1} parent=1 // pred_check
      _
    $region15: #{fixation_net_forward.1} parent=1 // pred_check_branch
      %40 = sbr.rel (0) target = $region17
    $region16: #{fixation_net_forward.1} parent=1 // pred_region
      _
    $region17: #{fixation_net_forward.1} parent=1 // pred_fallthru
      _
    // Predicated region
    $region18: #{fixation_net_forward.1} parent=1 // pred_check
      _
    $region19: #{fixation_net_forward.1} parent=1 // pred_check_branch
      %42 = sbr.rel (0) target = $region21
    $region20: #{fixation_net_forward.1} parent=1 // pred_region
      _
    $region21: #{fixation_net_forward.1} parent=1 // pred_fallthru
      _
    // Predicated region
    $region22: #{fixation_net_forward.1} parent=1 // pred_check
      _
    $region23: #{fixation_net_forward.1} parent=1 // pred_check_branch
      %44 = sbr.rel (0) target = $region25
    $region24: #{fixation_net_forward.1} parent=1 // pred_region
      _
    $region25: #{fixation_net_forward.1} parent=1 // pred_fallthru
      _
    // Predicated region
    $region26: #{fixation_net_forward.1} parent=1 // pred_check
      _
    $region27: #{fixation_net_forward.1} parent=1 // pred_check_branch
      %46 = sbr.rel (0) target = $region29
    $region28: #{fixation_net_forward.1} parent=1 // pred_region
      _
    $region29: #{fixation_net_forward.1} parent=1 // pred_fallthru
      _
    // Predicated region
    $region30: #{fixation_net_forward.1} parent=1 // pred_check
      _
    $region31: #{fixation_net_forward.1} parent=1 // pred_check_branch
      %48 = sbr.rel (0) target = $region33
    $region32: #{fixation_net_forward.1} parent=1 // pred_region
      _
    $region33: #{fixation_net_forward.1} parent=1 // pred_fallthru
      _
    // Predicated region
    $region34: #{fixation_net_forward.1} parent=1 // pred_check
      _
    $region35: #{fixation_net_forward.1} parent=1 // pred_check_branch
      %50 = sbr.rel (0) target = $region37
    $region36: #{fixation_net_forward.1} parent=1 // pred_region
      _
    $region37: #{fixation_net_forward.1} parent=1 // pred_fallthru
      _
    // Predicated region
    $region38: #{fixation_net_forward.1} parent=1 // pred_check
      _
    $region39: #{fixation_net_forward.1} parent=1 // pred_check_branch
      %52 = sbr.rel (0) target = $region41
    $region40: #{fixation_net_forward.1} parent=1 // pred_region
      _
    $region41: #{fixation_net_forward.1} parent=1 // pred_fallthru
      _
    // Predicated region
    $region42: #{fixation_net_forward.1} parent=1 // pred_check
      _
    $region43: #{fixation_net_forward.1} parent=1 // pred_check_branch
      %54 = sbr.rel (0) target = $region45
    $region44: #{fixation_net_forward.1} parent=1 // pred_region
      _
    $region45: #{fixation_net_forward.1} parent=1 // pred_fallthru
      _
    // Predicated region
    $region46: #{fixation_net_forward.1} parent=1 // pred_check
      _
    $region47: #{fixation_net_forward.1} parent=1 // pred_check_branch
      %56 = sbr.rel (0) target = $region49
    $region48: #{fixation_net_forward.1} parent=1 // pred_region
      _
    $region49: #{fixation_net_forward.1} parent=1 // pred_fallthru
      _
    // Predicated region
    $region50: #{fixation_net_forward.1} parent=1 // pred_check
      _
    $region51: #{fixation_net_forward.1} parent=1 // pred_check_branch
      %58 = sbr.rel (0) target = $region53
    $region52: #{fixation_net_forward.1} parent=1 // pred_region
      _
    $region53: #{fixation_net_forward.1} parent=1 // pred_fallthru
      _
    // Predicated region
    $region54: #{fixation_net_forward.1} parent=1 // pred_check
      _
    $region55: #{fixation_net_forward.1} parent=1 // pred_check_branch
      %60 = sbr.rel (0) target = $region57
    $region56: #{fixation_net_forward.1} parent=1 // pred_region
      _
    $region57: #{fixation_net_forward.1} parent=1 // pred_fallthru
      _
    // Predicated region
    $region58: #{fixation_net_forward.1} parent=1 // pred_check
      _
    $region59: #{fixation_net_forward.1} parent=1 // pred_check_branch
      %62 = sbr.rel (0) target = $region61
    $region60: #{fixation_net_forward.1} parent=1 // pred_region
      _
    $region61: #{fixation_net_forward.1} parent=1 // pred_fallthru
      _
    // Predicated region
    $region62: #{fixation_net_forward.1} parent=1 // pred_check
      _
    $region63: #{fixation_net_forward.1} parent=1 // pred_check_branch
      %64 = sbr.rel (0) target = $region65
    $region64: #{fixation_net_forward.1} parent=1 // pred_region
      _
    $region65: #{fixation_net_forward.1} parent=1 // pred_fallthru
      _
    // Predicated region
    $region66: #{fixation_net_forward.1} parent=1 // pred_check
      _
    $region67: #{fixation_net_forward.1} parent=1 // pred_check_branch
      %66 = sbr.rel (0) target = $region69
    $region68: #{fixation_net_forward.1} parent=1 // pred_region
      %68 = vsyncadd [#allocation4], 0
      %s70 = sshll.u32 %s16, 4
      %s71 = int_to_ptr.vmem [resolvable:$true] %s70
      %73 = dma.vmem_to_smem %s71, 32, [#allocation2], [#allocation4]
    $region69: #{fixation_net_forward.1} parent=1 // pred_fallthru
      _
    // Predicated region
    $region70: #{fixation_net_forward.1} parent=1 // pred_check
      _
    $region71: #{fixation_net_forward.1} parent=1 // pred_check_branch
      %75 = sbr.rel (0) target = $region73
    $region72: #{fixation_net_forward.1} parent=1 // pred_region
      %77 = vsyncadd [#allocation6], 0
      %s79 = sshll.u32 %s17, 4
      %s80 = int_to_ptr.vmem [resolvable:$true] %s79
      %82 = dma.vmem_to_smem %s80, 16, [#allocation5], [#allocation6]
    $region73: #{fixation_net_forward.1} parent=1 // pred_fallthru
      _
    // Predicated region
    $region74: #{fixation_net_forward.1} parent=1 // pred_check
      _
    $region75: #{fixation_net_forward.1} parent=1 // pred_check_branch
      %84 = sbr.rel (0) target = $region77
    $region76: #{fixation_net_forward.1} parent=1 // pred_region
      %86 = vsyncadd [#allocation6], 0
      %s88 = sshll.u32 %s18, 4
      %s89 = int_to_ptr.vmem [resolvable:$true] %s88
      %91 = dma.vmem_to_smem %s89, 16, [#allocation7], [#allocation6]
    $region77: #{fixation_net_forward.1} parent=1 // pred_fallthru
      _
    // Predicated region
    $region78: #{fixation_net_forward.1} parent=1 // pred_check
      _
    $region79: #{fixation_net_forward.1} parent=1 // pred_check_branch
      %93 = sbr.rel (0) target = $region81
    $region80: #{fixation_net_forward.1} parent=1 // pred_region
      _
    $region81: #{fixation_net_forward.1} parent=1 // pred_fallthru
      _
    // Predicated region
    $region82: #{fixation_net_forward.1} parent=1 // pred_check
      _
    $region83: #{fixation_net_forward.1} parent=1 // pred_check_branch
      %95 = sbr.rel (0) target = $region85
    $region84: #{fixation_net_forward.1} parent=1 // pred_region
      _
    $region85: #{fixation_net_forward.1} parent=1 // pred_fallthru
      _
    // Predicated region
    $region86: #{fixation_net_forward.1} parent=1 // pred_check
      _
    $region87: #{fixation_net_forward.1} parent=1 // pred_check_branch
      %97 = sbr.rel (0) target = $region89
    $region88: #{fixation_net_forward.1} parent=1 // pred_region
      _
    $region89: #{fixation_net_forward.1} parent=1 // pred_fallthru
      _
    // Predicated region
    $region90: #{fixation_net_forward.1} parent=1 // pred_check
      _
    $region91: #{fixation_net_forward.1} parent=1 // pred_check_branch
      %99 = sbr.rel (0) target = $region93
    $region92: #{fixation_net_forward.1} parent=1 // pred_region
      _
    $region93: #{fixation_net_forward.1} parent=1 // pred_fallthru
      _
    // Predicated region
    $region94: #{fixation_net_forward.1} parent=1 // pred_check
      _
    $region95: #{fixation_net_forward.1} parent=1 // pred_check_branch
      %101 = sbr.rel (0) target = $region97
    $region96: #{fixation_net_forward.1} parent=1 // pred_region
      _
    $region97: #{fixation_net_forward.1} parent=1 // pred_fallthru
      _
    // Predicated region
    $region98: #{fixation_net_forward.1} parent=1 // pred_check
      _
    $region99: #{fixation_net_forward.1} parent=1 // pred_check_branch
      %103 = sbr.rel (0) target = $region101
    $region100: #{fixation_net_forward.1} parent=1 // pred_region
      _
    $region101: #{fixation_net_forward.1} parent=1 // pred_fallthru
      _
    // Predicated region
    $region102: #{fixation_net_forward.1} parent=1 // pred_check
      _
    $region103: #{fixation_net_forward.1} parent=1 // pred_check_branch
      %105 = sbr.rel (0) target = $region105
    $region104: #{fixation_net_forward.1} parent=1 // pred_region
      %107 = dma.done [#allocation4], 32
    $region105: #{fixation_net_forward.1} parent=1 // pred_fallthru
      _
    // Predicated region
    $region106: #{fixation_net_forward.1} parent=1 // pred_check
      _
    $region107: #{fixation_net_forward.1} parent=1 // pred_check_branch
      %109 = sbr.rel (0) target = $region109
    $region108: #{fixation_net_forward.1} parent=1 // pred_region
      %111 = dma.done [#allocation6], 16
    $region109: #{fixation_net_forward.1} parent=1 // pred_fallthru
      _
    // Predicated region
    $region110: #{fixation_net_forward.1} parent=1 // pred_check
      _
    $region111: #{fixation_net_forward.1} parent=1 // pred_check_branch
      %113 = sbr.rel (0) target = $region113
    $region112: #{fixation_net_forward.1} parent=1 // pred_region
      %115 = dma.done [#allocation6], 16
    $region113: #{fixation_net_forward.1} parent=1 // pred_fallthru
      _
    %116 = sfence
    %v118 = vld [vmem:[%s0] sm:$0x3]
    %v119 = vld [vmem:[%s4] sm:$0x1]
    %121 = vset.pattern.permute.xlu0 0
    %122 = vperm.xlu0 %121, %v118
    %v123 = vpop.permute.xlu0 %122
    %v125 = vperm.slane %v119, 0
    %v126 = vmul.f32 %v123, %v125
    %v127 = vld [vmem:[%s4 + $0x1] sm:$0x1]
    %128 = vset.pattern.permute.xlu0 1
    %129 = vperm.xlu0 %128, %v118
    %v130 = vpop.permute.xlu0 %129
    %v132 = vperm.slane %v127, 0
    %v133 = vmul.f32 %v130, %v132
    %v134 = vadd.f32 %v126, %v133
    %v135 = vld [vmem:[%s5] sm:$0x1]
    %v137 = vperm.slane %v135, 0
    %v139 = vmul.f32 %v134, %v137
    %v140 = vld [vmem:[%s6] sm:$0x1]
    %v142 = vperm.slane %v140, 0
    %v144 = vadd.f32 %v139, %v142
    %v145 = vsub.f32 0.0, %v144
    %v146 = vmul.f32 %v145, 1.442695
    %v147 = vpow.pop %v146
    %v148 = vadd.f32 %v147, 1.0
    %v149 = vrcp.pop %v148
    %v150 = vmul.f32 %v148, %v149
    %v151 = vsub.f32 1.0, %v150
    %v152 = vmul.f32 %v149, %v151
    %v153 = vadd.f32 %v149, %v152
    %vm154 = vweird.f32 %v148
    %vm155 = vweird.f32 %v149
    %vm156 = vmor %vm154, %vm155
    %v157 = vsel %vm156, %v149, %v153
    %v158 = vand.u32 2147483647, %v148
    %vm159 = vcmp.eq.f32.partialorder %v158, 8.507059e+37
    %v160 = vand.u32 %v148, 2147483648
    %v161 = vor.u32 1.1754944e-38, %v160
    %v162 = vsel %vm159, %v161, %v157
    %v163 = vmul.f32 1.0, %v162
    %s164 = scalar_lea.vmem %s0, 8
    %v165 = vld [vmem:[%s164] sm:$0x3]
    %167 = vset.pattern.permute.xlu0 0
    %168 = vperm.xlu0 %167, %v165
    %v169 = vpop.permute.xlu0 %168
    %v171 = vmul.f32 %v169, %v125
    %172 = vset.pattern.permute.xlu0 1
    %173 = vperm.xlu0 %172, %v165
    %v174 = vpop.permute.xlu0 %173
    %v176 = vmul.f32 %v174, %v132
    %v177 = vadd.f32 %v171, %v176
    %v178 = vmul.f32 %v177, %v137
    %v179 = vadd.f32 %v178, %v142
    %v180 = vsub.f32 0.0, %v179
    %v181 = vmul.f32 %v180, 1.442695
    %v182 = vpow.pop %v181
    %v183 = vadd.f32 %v182, 1.0
    %v184 = vrcp.pop %v183
    %v185 = vmul.f32 %v183, %v184
    %v186 = vsub.f32 1.0, %v185
    %v187 = vmul.f32 %v184, %v186
    %v188 = vadd.f32 %v184, %v187
    %vm189 = vweird.f32 %v183
    %vm190 = vweird.f32 %v184
    %vm191 = vmor %vm189, %vm190
    %v192 = vsel %vm191, %v184, %v188
    %v193 = vand.u32 2147483647, %v183
    %vm194 = vcmp.eq.f32.partialorder %v193, 8.507059e+37
    %v195 = vand.u32 %v183, 2147483648
    %v196 = vor.u32 1.1754944e-38, %v195
    %v197 = vsel %vm194, %v196, %v192
    %v198 = vmul.f32 1.0, %v197
    %v199 = vmax.f32 %v163, %v198
    %v200 = vpack.c.bf16 %v199, %v199
    %v201 = vld [vmem:[%s19] sm:$0xf]
    %v202 = vld [vmem:[%s19 + $0x4] sm:$0xf]
    %v203 = vld [vmem:[%s19 + $0x8] sm:$0xf]
    %v204 = vld [vmem:[%s19 + $0xc] sm:$0xf]
    %s205 = scalar_lea.vmem %s0, 2
    %v206 = vld [vmem:[%s205] sm:$0x3]
    %208 = vset.pattern.permute.xlu0 0
    %209 = vperm.xlu0 %208, %v206
    %v210 = vpop.permute.xlu0 %209
    %v212 = vmul.f32 %v210, %v125
    %213 = vset.pattern.permute.xlu0 1
    %214 = vperm.xlu0 %213, %v206
    %v215 = vpop.permute.xlu0 %214
    %v217 = vmul.f32 %v215, %v132
    %v218 = vadd.f32 %v212, %v217
    %v219 = vmul.f32 %v218, %v137
    %v220 = vadd.f32 %v219, %v142
    %v221 = vsub.f32 0.0, %v220
    %v222 = vmul.f32 %v221, 1.442695
    %v223 = vpow.pop %v222
    %v224 = vadd.f32 %v223, 1.0
    %v225 = vrcp.pop %v224
    %v226 = vmul.f32 %v224, %v225
    %v227 = vsub.f32 1.0, %v226
    %v228 = vmul.f32 %v225, %v227
    %v229 = vadd.f32 %v225, %v228
    %vm230 = vweird.f32 %v224
    %vm231 = vweird.f32 %v225
    %vm232 = vmor %vm230, %vm231
    %v233 = vsel %vm232, %v225, %v229
    %v234 = vand.u32 2147483647, %v224
    %vm235 = vcmp.eq.f32.partialorder %v234, 8.507059e+37
    %v236 = vand.u32 %v224, 2147483648
    %v237 = vor.u32 1.1754944e-38, %v236
    %v238 = vsel %vm235, %v237, %v233
    %v239 = vmul.f32 1.0, %v238
    %s240 = scalar_lea.vmem %s0, 10
    %v241 = vld [vmem:[%s240] sm:$0x3]
    %243 = vset.pattern.permute.xlu0 0
    %244 = vperm.xlu0 %243, %v241
    %v245 = vpop.permute.xlu0 %244
    %v247 = vmul.f32 %v245, %v125
    %248 = vset.pattern.permute.xlu0 1
    %249 = vperm.xlu0 %248, %v241
    %v250 = vpop.permute.xlu0 %249
    %v252 = vmul.f32 %v250, %v132
    %v253 = vadd.f32 %v247, %v252
    %v254 = vmul.f32 %v253, %v137
    %v255 = vadd.f32 %v254, %v142
    %v256 = vsub.f32 0.0, %v255
    %v257 = vmul.f32 %v256, 1.442695
    %v258 = vpow.pop %v257
    %v259 = vadd.f32 %v258, 1.0
    %v260 = vrcp.pop %v259
    %v261 = vmul.f32 %v259, %v260
    %v262 = vsub.f32 1.0, %v261
    %v263 = vmul.f32 %v260, %v262
    %v264 = vadd.f32 %v260, %v263
    %vm265 = vweird.f32 %v259
    %vm266 = vweird.f32 %v260
    %vm267 = vmor %vm265, %vm266
    %v268 = vsel %vm267, %v260, %v264
    %v269 = vand.u32 2147483647, %v259
    %vm270 = vcmp.eq.f32.partialorder %v269, 8.507059e+37
    %v271 = vand.u32 %v259, 2147483648
    %v272 = vor.u32 1.1754944e-38, %v271
    %v273 = vsel %vm270, %v272, %v268
    %v274 = vmul.f32 1.0, %v273
    %v275 = vmax.f32 %v239, %v274
    %v276 = vpack.c.bf16 %v275, %v275
    %v277 = vld [vmem:[%s19 + $0x10] sm:$0xf]
    %v278 = vld [vmem:[%s19 + $0x14] sm:$0xf]
    %v279 = vld [vmem:[%s19 + $0x18] sm:$0xf]
    %v280 = vld [vmem:[%s19 + $0x1c] sm:$0xf]
    %v285 = vunpack.c.l.b16 %v277
    %v286 = vunpack.c.l.b16 %v278
    %v287 = vunpack.c.l.b16 %v279
    %v288 = vunpack.c.l.b16 %v280
    %v289 = vpack.c.b16 %v286, %v285
    %v290 = vpack.c.b16 %v288, %v287
    %vm293 = vcmask 261120
    %v295 = vsel %vm293, %v276, 0
    %297 = vmatpush.bf16.msra.mxu0 0
    %298 = vmatpush.bf16.msra.mxu0 0
    %299 = vmatpush.bf16.msra.mxu0 0
    %300 = vmatpush.bf16.msra.mxu0 0
    %301 = vmatpush.bf16.msra.mxu0 0
    %302 = vmatpush.bf16.msra.mxu0 0
    %303 = vmatpush.bf16.msra.mxu0 %v290
    %304 = vmatpush.bf16.msra.mxu0 %v289
    %305 = vmatmul.bf16.gmra.mxu0 %v295
    %v306 = vpop.f32.mrf.mxu0
    %v307 = vadd.f32 0.0, %v306
    %v308 = vpop.f32.mrf.mxu0
    %309 = vdwg.mxu0
    %v314 = vunpack.c.l.b16 %v201
    %v315 = vunpack.c.l.b16 %v202
    %v316 = vunpack.c.l.b16 %v203
    %v317 = vunpack.c.l.b16 %v204
    %v318 = vpack.c.b16 %v315, %v314
    %v319 = vpack.c.b16 %v317, %v316
    %v323 = vsel %vm293, %v200, 0
    %325 = vmatpush.bf16.msra.mxu0 0
    %326 = vmatpush.bf16.msra.mxu0 0
    %327 = vmatpush.bf16.msra.mxu0 0
    %328 = vmatpush.bf16.msra.mxu0 0
    %329 = vmatpush.bf16.msra.mxu0 0
    %330 = vmatpush.bf16.msra.mxu0 0
    %331 = vmatpush.bf16.msra.mxu0 %v319
    %332 = vmatpush.bf16.msra.mxu0 %v318
    %333 = vmatmul.bf16.gmra.mxu0 %v323
    %v334 = vpop.f32.mrf.mxu0
    %v335 = vadd.f32 %v307, %v334
    %v336 = vpop.f32.mrf.mxu0
    %337 = vdwg.mxu0
    %s338 = scalar_lea.vmem %s0, 4
    %v339 = vld [vmem:[%s338] sm:$0x3]
    %341 = vset.pattern.permute.xlu0 0
    %342 = vperm.xlu0 %341, %v339
    %v343 = vpop.permute.xlu0 %342
    %v345 = vmul.f32 %v343, %v125
    %346 = vset.pattern.permute.xlu0 1
    %347 = vperm.xlu0 %346, %v339
    %v348 = vpop.permute.xlu0 %347
    %v350 = vmul.f32 %v348, %v132
    %v351 = vadd.f32 %v345, %v350
    %v352 = vmul.f32 %v351, %v137
    %v353 = vadd.f32 %v352, %v142
    %v354 = vsub.f32 0.0, %v353
    %v355 = vmul.f32 %v354, 1.442695
    %v356 = vpow.pop %v355
    %v357 = vadd.f32 %v356, 1.0
    %v358 = vrcp.pop %v357
    %v359 = vmul.f32 %v357, %v358
    %v360 = vsub.f32 1.0, %v359
    %v361 = vmul.f32 %v358, %v360
    %v362 = vadd.f32 %v358, %v361
    %vm363 = vweird.f32 %v357
    %vm364 = vweird.f32 %v358
    %vm365 = vmor %vm363, %vm364
    %v366 = vsel %vm365, %v358, %v362
    %v367 = vand.u32 2147483647, %v357
    %vm368 = vcmp.eq.f32.partialorder %v367, 8.507059e+37
    %v369 = vand.u32 %v357, 2147483648
    %v370 = vor.u32 1.1754944e-38, %v369
    %v371 = vsel %vm368, %v370, %v366
    %v372 = vmul.f32 1.0, %v371
    %s373 = scalar_lea.vmem %s0, 12
    %v374 = vld [vmem:[%s373] sm:$0x3]
    %376 = vset.pattern.permute.xlu0 0
    %377 = vperm.xlu0 %376, %v374
    %v378 = vpop.permute.xlu0 %377
    %v380 = vmul.f32 %v378, %v125
    %381 = vset.pattern.permute.xlu0 1
    %382 = vperm.xlu0 %381, %v374
    %v383 = vpop.permute.xlu0 %382
    %v385 = vmul.f32 %v383, %v132
    %v386 = vadd.f32 %v380, %v385
    %v387 = vmul.f32 %v386, %v137
    %v388 = vadd.f32 %v387, %v142
    %v389 = vsub.f32 0.0, %v388
    %v390 = vmul.f32 %v389, 1.442695
    %v391 = vpow.pop %v390
    %v392 = vadd.f32 %v391, 1.0
    %v393 = vrcp.pop %v392
    %v394 = vmul.f32 %v392, %v393
    %v395 = vsub.f32 1.0, %v394
    %v396 = vmul.f32 %v393, %v395
    %v397 = vadd.f32 %v393, %v396
    %vm398 = vweird.f32 %v392
    %vm399 = vweird.f32 %v393
    %vm400 = vmor %vm398, %vm399
    %v401 = vsel %vm400, %v393, %v397
    %v402 = vand.u32 2147483647, %v392
    %vm403 = vcmp.eq.f32.partialorder %v402, 8.507059e+37
    %v404 = vand.u32 %v392, 2147483648
    %v405 = vor.u32 1.1754944e-38, %v404
    %v406 = vsel %vm403, %v405, %v401
    %v407 = vmul.f32 1.0, %v406
    %v408 = vmax.f32 %v372, %v407
    %v409 = vpack.c.bf16 %v408, %v408
    %v410 = vld [vmem:[%s19 + $0x20] sm:$0xf]
    %v411 = vld [vmem:[%s19 + $0x24] sm:$0xf]
    %v412 = vld [vmem:[%s19 + $0x28] sm:$0xf]
    %v413 = vld [vmem:[%s19 + $0x2c] sm:$0xf]
    %v418 = vunpack.c.l.b16 %v410
    %v419 = vunpack.c.l.b16 %v411
    %v420 = vunpack.c.l.b16 %v412
    %v421 = vunpack.c.l.b16 %v413
    %v422 = vpack.c.b16 %v419, %v418
    %v423 = vpack.c.b16 %v421, %v420
    %v427 = vsel %vm293, %v409, 0
    %429 = vmatpush.bf16.msra.mxu0 0
    %430 = vmatpush.bf16.msra.mxu0 0
    %431 = vmatpush.bf16.msra.mxu0 0
    %432 = vmatpush.bf16.msra.mxu0 0
    %433 = vmatpush.bf16.msra.mxu0 0
    %434 = vmatpush.bf16.msra.mxu0 0
    %435 = vmatpush.bf16.msra.mxu0 %v423
    %436 = vmatpush.bf16.msra.mxu0 %v422
    %437 = vmatmul.bf16.gmra.mxu0 %v427
    %v438 = vpop.f32.mrf.mxu0
    %v439 = vadd.f32 0.0, %v438
    %v440 = vpop.f32.mrf.mxu0
    %441 = vdwg.mxu0
    %v442 = vadd.f32 %v335, %v439
    %s443 = scalar_lea.vmem %s0, 6
    %v444 = vld [vmem:[%s443] sm:$0x3]
    %446 = vset.pattern.permute.xlu0 0
    %447 = vperm.xlu0 %446, %v444
    %v448 = vpop.permute.xlu0 %447
    %v450 = vmul.f32 %v448, %v125
    %451 = vset.pattern.permute.xlu0 1
    %452 = vperm.xlu0 %451, %v444
    %v453 = vpop.permute.xlu0 %452
    %v455 = vmul.f32 %v453, %v132
    %v456 = vadd.f32 %v450, %v455
    %v457 = vmul.f32 %v456, %v137
    %v458 = vadd.f32 %v457, %v142
    %v459 = vsub.f32 0.0, %v458
    %v460 = vmul.f32 %v459, 1.442695
    %v461 = vpow.pop %v460
    %v462 = vadd.f32 %v461, 1.0
    %v463 = vrcp.pop %v462
    %v464 = vmul.f32 %v462, %v463
    %v465 = vsub.f32 1.0, %v464
    %v466 = vmul.f32 %v463, %v465
    %v467 = vadd.f32 %v463, %v466
    %vm468 = vweird.f32 %v462
    %vm469 = vweird.f32 %v463
    %vm470 = vmor %vm468, %vm469
    %v471 = vsel %vm470, %v463, %v467
    %v472 = vand.u32 2147483647, %v462
    %vm473 = vcmp.eq.f32.partialorder %v472, 8.507059e+37
    %v474 = vand.u32 %v462, 2147483648
    %v475 = vor.u32 1.1754944e-38, %v474
    %v476 = vsel %vm473, %v475, %v471
    %v477 = vmul.f32 1.0, %v476
    %s478 = scalar_lea.vmem %s0, 14
    %v479 = vld [vmem:[%s478] sm:$0x3]
    %481 = vset.pattern.permute.xlu0 0
    %482 = vperm.xlu0 %481, %v479
    %v483 = vpop.permute.xlu0 %482
    %v485 = vmul.f32 %v483, %v125
    %486 = vset.pattern.permute.xlu0 1
    %487 = vperm.xlu0 %486, %v479
    %v488 = vpop.permute.xlu0 %487
    %v490 = vmul.f32 %v488, %v132
    %v491 = vadd.f32 %v485, %v490
    %v492 = vmul.f32 %v491, %v137
    %v493 = vadd.f32 %v492, %v142
    %v494 = vsub.f32 0.0, %v493
    %v495 = vmul.f32 %v494, 1.442695
    %v496 = vpow.pop %v495
    %v497 = vadd.f32 %v496, 1.0
    %v498 = vrcp.pop %v497
    %v499 = vmul.f32 %v497, %v498
    %v500 = vsub.f32 1.0, %v499
    %v501 = vmul.f32 %v498, %v500
    %v502 = vadd.f32 %v498, %v501
    %vm503 = vweird.f32 %v497
    %vm504 = vweird.f32 %v498
    %vm505 = vmor %vm503, %vm504
    %v506 = vsel %vm505, %v498, %v502
    %v507 = vand.u32 2147483647, %v497
    %vm508 = vcmp.eq.f32.partialorder %v507, 8.507059e+37
    %v509 = vand.u32 %v497, 2147483648
    %v510 = vor.u32 1.1754944e-38, %v509
    %v511 = vsel %vm508, %v510, %v506
    %v512 = vmul.f32 1.0, %v511
    %v513 = vmax.f32 %v477, %v512
    %v514 = vpack.c.bf16 %v513, %v513
    %v515 = vld [vmem:[%s19 + $0x30] sm:$0xf]
    %v516 = vld [vmem:[%s19 + $0x34] sm:$0xf]
    %v517 = vld [vmem:[%s19 + $0x38] sm:$0xf]
    %v518 = vld [vmem:[%s19 + $0x3c] sm:$0xf]
    %v523 = vunpack.c.l.b16 %v515
    %v524 = vunpack.c.l.b16 %v516
    %v525 = vunpack.c.l.b16 %v517
    %v526 = vunpack.c.l.b16 %v518
    %v527 = vpack.c.b16 %v524, %v523
    %v528 = vpack.c.b16 %v526, %v525
    %v532 = vsel %vm293, %v514, 0
    %534 = vmatpush.bf16.msra.mxu0 0
    %535 = vmatpush.bf16.msra.mxu0 0
    %536 = vmatpush.bf16.msra.mxu0 0
    %537 = vmatpush.bf16.msra.mxu0 0
    %538 = vmatpush.bf16.msra.mxu0 0
    %539 = vmatpush.bf16.msra.mxu0 0
    %540 = vmatpush.bf16.msra.mxu0 %v528
    %541 = vmatpush.bf16.msra.mxu0 %v527
    %542 = vmatmul.bf16.gmra.mxu0 %v532
    %v543 = vpop.f32.mrf.mxu0
    %v544 = vadd.f32 0.0, %v543
    %v545 = vpop.f32.mrf.mxu0
    %546 = vdwg.mxu0
    %v547 = vadd.f32 %v442, %v544
    %v548 = vld [vmem:[%s1] sm:$0x3]
    %v549 = vld [vmem:[%s7] sm:$0x1]
    %551 = vset.pattern.permute.xlu0 0
    %552 = vperm.xlu0 %551, %v548
    %v553 = vpop.permute.xlu0 %552
    %v555 = vperm.slane %v549, 0
    %v556 = vmul.f32 %v553, %v555
    %v557 = vld [vmem:[%s7 + $0x1] sm:$0x1]
    %558 = vset.pattern.permute.xlu0 1
    %559 = vperm.xlu0 %558, %v548
    %v560 = vpop.permute.xlu0 %559
    %v562 = vperm.slane %v557, 0
    %v563 = vmul.f32 %v560, %v562
    %v564 = vadd.f32 %v556, %v563
    %v565 = vld [vmem:[%s8] sm:$0x1]
    %v567 = vperm.slane %v565, 0
    %v569 = vmul.f32 %v564, %v567
    %v570 = vld [vmem:[%s9] sm:$0x1]
    %v572 = vperm.slane %v570, 0
    %v574 = vadd.f32 %v569, %v572
    %v575 = vsub.f32 0.0, %v574
    %v576 = vmul.f32 %v575, 1.442695
    %v577 = vpow.pop %v576
    %v578 = vadd.f32 %v577, 1.0
    %v579 = vrcp.pop %v578
    %v580 = vmul.f32 %v578, %v579
    %v581 = vsub.f32 1.0, %v580
    %v582 = vmul.f32 %v579, %v581
    %v583 = vadd.f32 %v579, %v582
    %vm584 = vweird.f32 %v578
    %vm585 = vweird.f32 %v579
    %vm586 = vmor %vm584, %vm585
    %v587 = vsel %vm586, %v579, %v583
    %v588 = vand.u32 2147483647, %v578
    %vm589 = vcmp.eq.f32.partialorder %v588, 8.507059e+37
    %v590 = vand.u32 %v578, 2147483648
    %v591 = vor.u32 1.1754944e-38, %v590
    %v592 = vsel %vm589, %v591, %v587
    %v593 = vmul.f32 1.0, %v592
    %s594 = scalar_lea.vmem %s1, 8
    %v595 = vld [vmem:[%s594] sm:$0x3]
    %597 = vset.pattern.permute.xlu0 0
    %598 = vperm.xlu0 %597, %v595
    %v599 = vpop.permute.xlu0 %598
    %v601 = vmul.f32 %v599, %v555
    %602 = vset.pattern.permute.xlu0 1
    %603 = vperm.xlu0 %602, %v595
    %v604 = vpop.permute.xlu0 %603
    %v606 = vmul.f32 %v604, %v562
    %v607 = vadd.f32 %v601, %v606
    %v608 = vmul.f32 %v607, %v567
    %v609 = vadd.f32 %v608, %v572
    %v610 = vsub.f32 0.0, %v609
    %v611 = vmul.f32 %v610, 1.442695
    %v612 = vpow.pop %v611
    %v613 = vadd.f32 %v612, 1.0
    %v614 = vrcp.pop %v613
    %v615 = vmul.f32 %v613, %v614
    %v616 = vsub.f32 1.0, %v615
    %v617 = vmul.f32 %v614, %v616
    %v618 = vadd.f32 %v614, %v617
    %vm619 = vweird.f32 %v613
    %vm620 = vweird.f32 %v614
    %vm621 = vmor %vm619, %vm620
    %v622 = vsel %vm621, %v614, %v618
    %v623 = vand.u32 2147483647, %v613
    %vm624 = vcmp.eq.f32.partialorder %v623, 8.507059e+37
    %v625 = vand.u32 %v613, 2147483648
    %v626 = vor.u32 1.1754944e-38, %v625
    %v627 = vsel %vm624, %v626, %v622
    %v628 = vmul.f32 1.0, %v627
    %v629 = vmax.f32 %v593, %v628
    %v630 = vpack.c.bf16 %v629, %v629
    %v631 = vld [vmem:[%s19 + $0x40] sm:$0xf]
    %v632 = vld [vmem:[%s19 + $0x44] sm:$0xf]
    %v633 = vld [vmem:[%s19 + $0x48] sm:$0xf]
    %v634 = vld [vmem:[%s19 + $0x4c] sm:$0xf]
    %v635 = vld [vmem:[%s19 + $0x50] sm:$0xf]
    %v636 = vld [vmem:[%s19 + $0x54] sm:$0xf]
    %v637 = vld [vmem:[%s19 + $0x58] sm:$0xf]
    %v638 = vld [vmem:[%s19 + $0x5c] sm:$0xf]
    %v647 = vunpack.c.l.b16 %v631
    %v648 = vunpack.c.l.b16 %v632
    %v649 = vunpack.c.l.b16 %v633
    %v650 = vunpack.c.l.b16 %v634
    %v651 = vunpack.c.l.b16 %v635
    %v652 = vunpack.c.l.b16 %v636
    %v653 = vunpack.c.l.b16 %v637
    %v654 = vunpack.c.l.b16 %v638
    %v655 = vpack.c.b16 %v648, %v647
    %v656 = vpack.c.b16 %v650, %v649
    %v657 = vpack.c.b16 %v652, %v651
    %v658 = vpack.c.b16 %v654, %v653
    %vm663 = vcmask 523264
    %v665 = vsel %vm663, %v630, 0
    %667 = vmatpush.bf16.msra.mxu0 0
    %668 = vmatpush.bf16.msra.mxu0 0
    %669 = vmatpush.bf16.msra.mxu0 0
    %670 = vmatpush.bf16.msra.mxu0 0
    %671 = vmatpush.bf16.msra.mxu0 %v658
    %672 = vmatpush.bf16.msra.mxu0 %v657
    %673 = vmatpush.bf16.msra.mxu0 %v656
    %674 = vmatpush.bf16.msra.mxu0 %v655
    %675 = vmatmul.bf16.gmra.mxu0 %v665
    %v676 = vpop.f32.mrf.mxu0
    %v677 = vadd.f32 0.0, %v676
    %v678 = vpop.f32.mrf.mxu0
    %679 = vdwg.mxu0
    %v680 = vadd.f32 %v547, %v677
    %s681 = scalar_lea.vmem %s1, 2
    %v682 = vld [vmem:[%s681] sm:$0x3]
    %684 = vset.pattern.permute.xlu0 0
    %685 = vperm.xlu0 %684, %v682
    %v686 = vpop.permute.xlu0 %685
    %v688 = vmul.f32 %v686, %v555
    %689 = vset.pattern.permute.xlu0 1
    %690 = vperm.xlu0 %689, %v682
    %v691 = vpop.permute.xlu0 %690
    %v693 = vmul.f32 %v691, %v562
    %v694 = vadd.f32 %v688, %v693
    %v695 = vmul.f32 %v694, %v567
    %v696 = vadd.f32 %v695, %v572
    %v697 = vsub.f32 0.0, %v696
    %v698 = vmul.f32 %v697, 1.442695
    %v699 = vpow.pop %v698
    %v700 = vadd.f32 %v699, 1.0
    %v701 = vrcp.pop %v700
    %v702 = vmul.f32 %v700, %v701
    %v703 = vsub.f32 1.0, %v702
    %v704 = vmul.f32 %v701, %v703
    %v705 = vadd.f32 %v701, %v704
    %vm706 = vweird.f32 %v700
    %vm707 = vweird.f32 %v701
    %vm708 = vmor %vm706, %vm707
    %v709 = vsel %vm708, %v701, %v705
    %v710 = vand.u32 2147483647, %v700
    %vm711 = vcmp.eq.f32.partialorder %v710, 8.507059e+37
    %v712 = vand.u32 %v700, 2147483648
    %v713 = vor.u32 1.1754944e-38, %v712
    %v714 = vsel %vm711, %v713, %v709
    %v715 = vmul.f32 1.0, %v714
    %s716 = scalar_lea.vmem %s1, 10
    %v717 = vld [vmem:[%s716] sm:$0x3]
    %719 = vset.pattern.permute.xlu0 0
    %720 = vperm.xlu0 %719, %v717
    %v721 = vpop.permute.xlu0 %720
    %v723 = vmul.f32 %v721, %v555
    %724 = vset.pattern.permute.xlu0 1
    %725 = vperm.xlu0 %724, %v717
    %v726 = vpop.permute.xlu0 %725
    %v728 = vmul.f32 %v726, %v562
    %v729 = vadd.f32 %v723, %v728
    %v730 = vmul.f32 %v729, %v567
    %v731 = vadd.f32 %v730, %v572
    %v732 = vsub.f32 0.0, %v731
    %v733 = vmul.f32 %v732, 1.442695
    %v734 = vpow.pop %v733
    %v735 = vadd.f32 %v734, 1.0
    %v736 = vrcp.pop %v735
    %v737 = vmul.f32 %v735, %v736
    %v738 = vsub.f32 1.0, %v737
    %v739 = vmul.f32 %v736, %v738
    %v740 = vadd.f32 %v736, %v739
    %vm741 = vweird.f32 %v735
    %vm742 = vweird.f32 %v736
    %vm743 = vmor %vm741, %vm742
    %v744 = vsel %vm743, %v736, %v740
    %v745 = vand.u32 2147483647, %v735
    %vm746 = vcmp.eq.f32.partialorder %v745, 8.507059e+37
    %v747 = vand.u32 %v735, 2147483648
    %v748 = vor.u32 1.1754944e-38, %v747
    %v749 = vsel %vm746, %v748, %v744
    %v750 = vmul.f32 1.0, %v749
    %v751 = vmax.f32 %v715, %v750
    %v752 = vpack.c.bf16 %v751, %v751
    %v753 = vld [vmem:[%s19 + $0x60] sm:$0xf]
    %v754 = vld [vmem:[%s19 + $0x64] sm:$0xf]
    %v755 = vld [vmem:[%s19 + $0x68] sm:$0xf]
    %v756 = vld [vmem:[%s19 + $0x6c] sm:$0xf]
    %v757 = vld [vmem:[%s19 + $0x70] sm:$0xf]
    %v758 = vld [vmem:[%s19 + $0x74] sm:$0xf]
    %v759 = vld [vmem:[%s19 + $0x78] sm:$0xf]
    %v760 = vld [vmem:[%s19 + $0x7c] sm:$0xf]
    %v769 = vunpack.c.l.b16 %v753
    %v770 = vunpack.c.l.b16 %v754
    %v771 = vunpack.c.l.b16 %v755
    %v772 = vunpack.c.l.b16 %v756
    %v773 = vunpack.c.l.b16 %v757
    %v774 = vunpack.c.l.b16 %v758
    %v775 = vunpack.c.l.b16 %v759
    %v776 = vunpack.c.l.b16 %v760
    %v777 = vpack.c.b16 %v770, %v769
    %v778 = vpack.c.b16 %v772, %v771
    %v779 = vpack.c.b16 %v774, %v773
    %v780 = vpack.c.b16 %v776, %v775
    %v786 = vsel %vm663, %v752, 0
    %788 = vmatpush.bf16.msra.mxu0 0
    %789 = vmatpush.bf16.msra.mxu0 0
    %790 = vmatpush.bf16.msra.mxu0 0
    %791 = vmatpush.bf16.msra.mxu0 0
    %792 = vmatpush.bf16.msra.mxu0 %v780
    %793 = vmatpush.bf16.msra.mxu0 %v779
    %794 = vmatpush.bf16.msra.mxu0 %v778
    %795 = vmatpush.bf16.msra.mxu0 %v777
    %796 = vmatmul.bf16.gmra.mxu0 %v786
    %v797 = vpop.f32.mrf.mxu0
    %v798 = vadd.f32 0.0, %v797
    %v799 = vpop.f32.mrf.mxu0
    %800 = vdwg.mxu0
    %v801 = vadd.f32 %v680, %v798
    %s802 = scalar_lea.vmem %s1, 4
    %v803 = vld [vmem:[%s802] sm:$0x3]
    %805 = vset.pattern.permute.xlu0 0
    %806 = vperm.xlu0 %805, %v803
    %v807 = vpop.permute.xlu0 %806
    %v809 = vmul.f32 %v807, %v555
    %810 = vset.pattern.permute.xlu0 1
    %811 = vperm.xlu0 %810, %v803
    %v812 = vpop.permute.xlu0 %811
    %v814 = vmul.f32 %v812, %v562
    %v815 = vadd.f32 %v809, %v814
    %v816 = vmul.f32 %v815, %v567
    %v817 = vadd.f32 %v816, %v572
    %v818 = vsub.f32 0.0, %v817
    %v819 = vmul.f32 %v818, 1.442695
    %v820 = vpow.pop %v819
    %v821 = vadd.f32 %v820, 1.0
    %v822 = vrcp.pop %v821
    %v823 = vmul.f32 %v821, %v822
    %v824 = vsub.f32 1.0, %v823
    %v825 = vmul.f32 %v822, %v824
    %v826 = vadd.f32 %v822, %v825
    %vm827 = vweird.f32 %v821
    %vm828 = vweird.f32 %v822
    %vm829 = vmor %vm827, %vm828
    %v830 = vsel %vm829, %v822, %v826
    %v831 = vand.u32 2147483647, %v821
    %vm832 = vcmp.eq.f32.partialorder %v831, 8.507059e+37
    %v833 = vand.u32 %v821, 2147483648
    %v834 = vor.u32 1.1754944e-38, %v833
    %v835 = vsel %vm832, %v834, %v830
    %v836 = vmul.f32 1.0, %v835
    %s837 = scalar_lea.vmem %s1, 12
    %v838 = vld [vmem:[%s837] sm:$0x3]
    %840 = vset.pattern.permute.xlu0 0
    %841 = vperm.xlu0 %840, %v838
    %v842 = vpop.permute.xlu0 %841
    %v844 = vmul.f32 %v842, %v555
    %845 = vset.pattern.permute.xlu0 1
    %846 = vperm.xlu0 %845, %v838
    %v847 = vpop.permute.xlu0 %846
    %v849 = vmul.f32 %v847, %v562
    %v850 = vadd.f32 %v844, %v849
    %v851 = vmul.f32 %v850, %v567
    %v852 = vadd.f32 %v851, %v572
    %v853 = vsub.f32 0.0, %v852
    %v854 = vmul.f32 %v853, 1.442695
    %v855 = vpow.pop %v854
    %v856 = vadd.f32 %v855, 1.0
    %v857 = vrcp.pop %v856
    %v858 = vmul.f32 %v856, %v857
    %v859 = vsub.f32 1.0, %v858
    %v860 = vmul.f32 %v857, %v859
    %v861 = vadd.f32 %v857, %v860
    %vm862 = vweird.f32 %v856
    %vm863 = vweird.f32 %v857
    %vm864 = vmor %vm862, %vm863
    %v865 = vsel %vm864, %v857, %v861
    %v866 = vand.u32 2147483647, %v856
    %vm867 = vcmp.eq.f32.partialorder %v866, 8.507059e+37
    %v868 = vand.u32 %v856, 2147483648
    %v869 = vor.u32 1.1754944e-38, %v868
    %v870 = vsel %vm867, %v869, %v865
    %v871 = vmul.f32 1.0, %v870
    %v872 = vmax.f32 %v836, %v871
    %v873 = vpack.c.bf16 %v872, %v872
    %v874 = vld [vmem:[%s19 + $0x80] sm:$0xf]
    %v875 = vld [vmem:[%s19 + $0x84] sm:$0xf]
    %v876 = vld [vmem:[%s19 + $0x88] sm:$0xf]
    %v877 = vld [vmem:[%s19 + $0x8c] sm:$0xf]
    %v878 = vld [vmem:[%s19 + $0x90] sm:$0xf]
    %v879 = vld [vmem:[%s19 + $0x94] sm:$0xf]
    %v880 = vld [vmem:[%s19 + $0x98] sm:$0xf]
    %v881 = vld [vmem:[%s19 + $0x9c] sm:$0xf]
    %v890 = vunpack.c.l.b16 %v874
    %v891 = vunpack.c.l.b16 %v875
    %v892 = vunpack.c.l.b16 %v876
    %v893 = vunpack.c.l.b16 %v877
    %v894 = vunpack.c.l.b16 %v878
    %v895 = vunpack.c.l.b16 %v879
    %v896 = vunpack.c.l.b16 %v880
    %v897 = vunpack.c.l.b16 %v881
    %v898 = vpack.c.b16 %v891, %v890
    %v899 = vpack.c.b16 %v893, %v892
    %v900 = vpack.c.b16 %v895, %v894
    %v901 = vpack.c.b16 %v897, %v896
    %v907 = vsel %vm663, %v873, 0
    %909 = vmatpush.bf16.msra.mxu0 0
    %910 = vmatpush.bf16.msra.mxu0 0
    %911 = vmatpush.bf16.msra.mxu0 0
    %912 = vmatpush.bf16.msra.mxu0 0
    %913 = vmatpush.bf16.msra.mxu0 %v901
    %914 = vmatpush.bf16.msra.mxu0 %v900
    %915 = vmatpush.bf16.msra.mxu0 %v899
    %916 = vmatpush.bf16.msra.mxu0 %v898
    %917 = vmatmul.bf16.gmra.mxu0 %v907
    %v918 = vpop.f32.mrf.mxu0
    %v919 = vadd.f32 0.0, %v918
    %v920 = vpop.f32.mrf.mxu0
    %921 = vdwg.mxu0
    %v922 = vadd.f32 %v801, %v919
    %s923 = scalar_lea.vmem %s1, 6
    %v924 = vld [vmem:[%s923] sm:$0x3]
    %926 = vset.pattern.permute.xlu0 0
    %927 = vperm.xlu0 %926, %v924
    %v928 = vpop.permute.xlu0 %927
    %v930 = vmul.f32 %v928, %v555
    %931 = vset.pattern.permute.xlu0 1
    %932 = vperm.xlu0 %931, %v924
    %v933 = vpop.permute.xlu0 %932
    %v935 = vmul.f32 %v933, %v562
    %v936 = vadd.f32 %v930, %v935
    %v937 = vmul.f32 %v936, %v567
    %v938 = vadd.f32 %v937, %v572
    %v939 = vsub.f32 0.0, %v938
    %v940 = vmul.f32 %v939, 1.442695
    %v941 = vpow.pop %v940
    %v942 = vadd.f32 %v941, 1.0
    %v943 = vrcp.pop %v942
    %v944 = vmul.f32 %v942, %v943
    %v945 = vsub.f32 1.0, %v944
    %v946 = vmul.f32 %v943, %v945
    %v947 = vadd.f32 %v943, %v946
    %vm948 = vweird.f32 %v942
    %vm949 = vweird.f32 %v943
    %vm950 = vmor %vm948, %vm949
    %v951 = vsel %vm950, %v943, %v947
    %v952 = vand.u32 2147483647, %v942
    %vm953 = vcmp.eq.f32.partialorder %v952, 8.507059e+37
    %v954 = vand.u32 %v942, 2147483648
    %v955 = vor.u32 1.1754944e-38, %v954
    %v956 = vsel %vm953, %v955, %v951
    %v957 = vmul.f32 1.0, %v956
    %s958 = scalar_lea.vmem %s1, 14
    %v959 = vld [vmem:[%s958] sm:$0x3]
    %961 = vset.pattern.permute.xlu0 0
    %962 = vperm.xlu0 %961, %v959
    %v963 = vpop.permute.xlu0 %962
    %v965 = vmul.f32 %v963, %v555
    %966 = vset.pattern.permute.xlu0 1
    %967 = vperm.xlu0 %966, %v959
    %v968 = vpop.permute.xlu0 %967
    %v970 = vmul.f32 %v968, %v562
    %v971 = vadd.f32 %v965, %v970
    %v972 = vmul.f32 %v971, %v567
    %v973 = vadd.f32 %v972, %v572
    %v974 = vsub.f32 0.0, %v973
    %v975 = vmul.f32 %v974, 1.442695
    %v976 = vpow.pop %v975
    %v977 = vadd.f32 %v976, 1.0
    %v978 = vrcp.pop %v977
    %v979 = vmul.f32 %v977, %v978
    %v980 = vsub.f32 1.0, %v979
    %v981 = vmul.f32 %v978, %v980
    %v982 = vadd.f32 %v978, %v981
    %vm983 = vweird.f32 %v977
    %vm984 = vweird.f32 %v978
    %vm985 = vmor %vm983, %vm984
    %v986 = vsel %vm985, %v978, %v982
    %v987 = vand.u32 2147483647, %v977
    %vm988 = vcmp.eq.f32.partialorder %v987, 8.507059e+37
    %v989 = vand.u32 %v977, 2147483648
    %v990 = vor.u32 1.1754944e-38, %v989
    %v991 = vsel %vm988, %v990, %v986
    %v992 = vmul.f32 1.0, %v991
    %v993 = vmax.f32 %v957, %v992
    %v994 = vpack.c.bf16 %v993, %v993
    %v995 = vld [vmem:[%s19 + $0xa0] sm:$0xf]
    %v996 = vld [vmem:[%s19 + $0xa4] sm:$0xf]
    %v997 = vld [vmem:[%s19 + $0xa8] sm:$0xf]
    %v998 = vld [vmem:[%s19 + $0xac] sm:$0xf]
    %v999 = vld [vmem:[%s19 + $0xb0] sm:$0xf]
    %v1000 = vld [vmem:[%s19 + $0xb4] sm:$0xf]
    %v1001 = vld [vmem:[%s19 + $0xb8] sm:$0xf]
    %v1002 = vld [vmem:[%s19 + $0xbc] sm:$0xf]
    %v1011 = vunpack.c.l.b16 %v995
    %v1012 = vunpack.c.l.b16 %v996
    %v1013 = vunpack.c.l.b16 %v997
    %v1014 = vunpack.c.l.b16 %v998
    %v1015 = vunpack.c.l.b16 %v999
    %v1016 = vunpack.c.l.b16 %v1000
    %v1017 = vunpack.c.l.b16 %v1001
    %v1018 = vunpack.c.l.b16 %v1002
    %v1019 = vpack.c.b16 %v1012, %v1011
    %v1020 = vpack.c.b16 %v1014, %v1013
    %v1021 = vpack.c.b16 %v1016, %v1015
    %v1022 = vpack.c.b16 %v1018, %v1017
    %v1028 = vsel %vm663, %v994, 0
    %1030 = vmatpush.bf16.msra.mxu0 0
    %1031 = vmatpush.bf16.msra.mxu0 0
    %1032 = vmatpush.bf16.msra.mxu0 0
    %1033 = vmatpush.bf16.msra.mxu0 0
    %1034 = vmatpush.bf16.msra.mxu0 %v1022
    %1035 = vmatpush.bf16.msra.mxu0 %v1021
    %1036 = vmatpush.bf16.msra.mxu0 %v1020
    %1037 = vmatpush.bf16.msra.mxu0 %v1019
    %1038 = vmatmul.bf16.gmra.mxu0 %v1028
    %v1039 = vpop.f32.mrf.mxu0
    %v1040 = vadd.f32 0.0, %v1039
    %v1041 = vpop.f32.mrf.mxu0
    %1042 = vdwg.mxu0
    %v1043 = vadd.f32 %v922, %v1040
    %v1044 = vld [vmem:[%s2] sm:$0x3]
    %v1045 = vld [vmem:[%s10] sm:$0x1]
    %1047 = vset.pattern.permute.xlu0 0
    %1048 = vperm.xlu0 %1047, %v1044
    %v1049 = vpop.permute.xlu0 %1048
    %v1051 = vperm.slane %v1045, 0
    %v1052 = vmul.f32 %v1049, %v1051
    %v1053 = vld [vmem:[%s10 + $0x1] sm:$0x1]
    %1054 = vset.pattern.permute.xlu0 1
    %1055 = vperm.xlu0 %1054, %v1044
    %v1056 = vpop.permute.xlu0 %1055
    %v1058 = vperm.slane %v1053, 0
    %v1059 = vmul.f32 %v1056, %v1058
    %v1060 = vadd.f32 %v1052, %v1059
    %v1061 = vld [vmem:[%s10 + $0x2] sm:$0x1]
    %1062 = vset.pattern.permute.xlu0 2
    %1063 = vperm.xlu0 %1062, %v1044
    %v1064 = vpop.permute.xlu0 %1063
    %v1066 = vperm.slane %v1061, 0
    %v1067 = vmul.f32 %v1064, %v1066
    %v1068 = vadd.f32 %v1060, %v1067
    %v1069 = vld [vmem:[%s10 + $0x3] sm:$0x1]
    %1070 = vset.pattern.permute.xlu0 3
    %1071 = vperm.xlu0 %1070, %v1044
    %v1072 = vpop.permute.xlu0 %1071
    %v1074 = vperm.slane %v1069, 0
    %v1075 = vmul.f32 %v1072, %v1074
    %v1076 = vadd.f32 %v1068, %v1075
    %v1077 = vld [vmem:[%s10 + $0x4] sm:$0x1]
    %1078 = vset.pattern.permute.xlu0 4
    %1079 = vperm.xlu0 %1078, %v1044
    %v1080 = vpop.permute.xlu0 %1079
    %v1082 = vperm.slane %v1077, 0
    %v1083 = vmul.f32 %v1080, %v1082
    %v1084 = vadd.f32 %v1076, %v1083
    %v1085 = vld [vmem:[%s10 + $0x5] sm:$0x1]
    %1086 = vset.pattern.permute.xlu0 5
    %1087 = vperm.xlu0 %1086, %v1044
    %v1088 = vpop.permute.xlu0 %1087
    %v1090 = vperm.slane %v1085, 0
    %v1091 = vmul.f32 %v1088, %v1090
    %v1092 = vadd.f32 %v1084, %v1091
    %v1093 = vld [vmem:[%s10 + $0x6] sm:$0x1]
    %1094 = vset.pattern.permute.xlu0 6
    %1095 = vperm.xlu0 %1094, %v1044
    %v1096 = vpop.permute.xlu0 %1095
    %v1098 = vperm.slane %v1093, 0
    %v1099 = vmul.f32 %v1096, %v1098
    %v1100 = vadd.f32 %v1092, %v1099
    %v1101 = vld [vmem:[%s10 + $0x7] sm:$0x1]
    %1102 = vset.pattern.permute.xlu0 7
    %1103 = vperm.xlu0 %1102, %v1044
    %v1104 = vpop.permute.xlu0 %1103
    %v1106 = vperm.slane %v1101, 0
    %v1107 = vmul.f32 %v1104, %v1106
    %v1108 = vadd.f32 %v1100, %v1107
    %v1109 = vld [vmem:[%s10 + $0x8] sm:$0x1]
    %1110 = vset.pattern.permute.xlu0 8
    %1111 = vperm.xlu0 %1110, %v1044
    %v1112 = vpop.permute.xlu0 %1111
    %v1114 = vperm.slane %v1109, 0
    %v1115 = vmul.f32 %v1112, %v1114
    %v1116 = vadd.f32 %v1108, %v1115
    %v1117 = vld [vmem:[%s10 + $0x9] sm:$0x1]
    %1118 = vset.pattern.permute.xlu0 9
    %1119 = vperm.xlu0 %1118, %v1044
    %v1120 = vpop.permute.xlu0 %1119
    %v1122 = vperm.slane %v1117, 0
    %v1123 = vmul.f32 %v1120, %v1122
    %v1124 = vadd.f32 %v1116, %v1123
    %v1125 = vld [vmem:[%s10 + $0xa] sm:$0x1]
    %1126 = vset.pattern.permute.xlu0 10
    %1127 = vperm.xlu0 %1126, %v1044
    %v1128 = vpop.permute.xlu0 %1127
    %v1130 = vperm.slane %v1125, 0
    %v1131 = vmul.f32 %v1128, %v1130
    %v1132 = vadd.f32 %v1124, %v1131
    %v1133 = vld [vmem:[%s10 + $0xb] sm:$0x1]
    %1134 = vset.pattern.permute.xlu0 11
    %1135 = vperm.xlu0 %1134, %v1044
    %v1136 = vpop.permute.xlu0 %1135
    %v1138 = vperm.slane %v1133, 0
    %v1139 = vmul.f32 %v1136, %v1138
    %v1140 = vadd.f32 %v1132, %v1139
    %v1141 = vld [vmem:[%s11] sm:$0x1]
    %v1143 = vperm.slane %v1141, 0
    %v1145 = vmul.f32 %v1140, %v1143
    %v1146 = vld [vmem:[%s12] sm:$0x1]
    %v1148 = vperm.slane %v1146, 0
    %v1150 = vadd.f32 %v1145, %v1148
    %v1151 = vsub.f32 0.0, %v1150
    %v1152 = vmul.f32 %v1151, 1.442695
    %v1153 = vpow.pop %v1152
    %v1154 = vadd.f32 %v1153, 1.0
    %v1155 = vrcp.pop %v1154
    %v1156 = vmul.f32 %v1154, %v1155
    %v1157 = vsub.f32 1.0, %v1156
    %v1158 = vmul.f32 %v1155, %v1157
    %v1159 = vadd.f32 %v1155, %v1158
    %vm1160 = vweird.f32 %v1154
    %vm1161 = vweird.f32 %v1155
    %vm1162 = vmor %vm1160, %vm1161
    %v1163 = vsel %vm1162, %v1155, %v1159
    %v1164 = vand.u32 2147483647, %v1154
    %vm1165 = vcmp.eq.f32.partialorder %v1164, 8.507059e+37
    %v1166 = vand.u32 %v1154, 2147483648
    %v1167 = vor.u32 1.1754944e-38, %v1166
    %v1168 = vsel %vm1165, %v1167, %v1163
    %v1169 = vmul.f32 1.0, %v1168
    %s1170 = scalar_lea.vmem %s2, 8
    %v1171 = vld [vmem:[%s1170] sm:$0x3]
    %1173 = vset.pattern.permute.xlu0 0
    %1174 = vperm.xlu0 %1173, %v1171
    %v1175 = vpop.permute.xlu0 %1174
    %v1177 = vmul.f32 %v1175, %v1051
    %1178 = vset.pattern.permute.xlu0 1
    %1179 = vperm.xlu0 %1178, %v1171
    %v1180 = vpop.permute.xlu0 %1179
    %v1182 = vmul.f32 %v1180, %v1058
    %v1183 = vadd.f32 %v1177, %v1182
    %1184 = vset.pattern.permute.xlu0 2
    %1185 = vperm.xlu0 %1184, %v1171
    %v1186 = vpop.permute.xlu0 %1185
    %v1188 = vmul.f32 %v1186, %v1066
    %v1189 = vadd.f32 %v1183, %v1188
    %1190 = vset.pattern.permute.xlu0 3
    %1191 = vperm.xlu0 %1190, %v1171
    %v1192 = vpop.permute.xlu0 %1191
    %v1194 = vmul.f32 %v1192, %v1074
    %v1195 = vadd.f32 %v1189, %v1194
    %1196 = vset.pattern.permute.xlu0 4
    %1197 = vperm.xlu0 %1196, %v1171
    %v1198 = vpop.permute.xlu0 %1197
    %v1200 = vmul.f32 %v1198, %v1082
    %v1201 = vadd.f32 %v1195, %v1200
    %1202 = vset.pattern.permute.xlu0 5
    %1203 = vperm.xlu0 %1202, %v1171
    %v1204 = vpop.permute.xlu0 %1203
    %v1206 = vmul.f32 %v1204, %v1090
    %v1207 = vadd.f32 %v1201, %v1206
    %1208 = vset.pattern.permute.xlu0 6
    %1209 = vperm.xlu0 %1208, %v1171
    %v1210 = vpop.permute.xlu0 %1209
    %v1212 = vmul.f32 %v1210, %v1098
    %v1213 = vadd.f32 %v1207, %v1212
    %1214 = vset.pattern.permute.xlu0 7
    %1215 = vperm.xlu0 %1214, %v1171
    %v1216 = vpop.permute.xlu0 %1215
    %v1218 = vmul.f32 %v1216, %v1106
    %v1219 = vadd.f32 %v1213, %v1218
    %1220 = vset.pattern.permute.xlu0 8
    %1221 = vperm.xlu0 %1220, %v1171
    %v1222 = vpop.permute.xlu0 %1221
    %v1224 = vmul.f32 %v1222, %v1114
    %v1225 = vadd.f32 %v1219, %v1224
    %1226 = vset.pattern.permute.xlu0 9
    %1227 = vperm.xlu0 %1226, %v1171
    %v1228 = vpop.permute.xlu0 %1227
    %v1230 = vmul.f32 %v1228, %v1122
    %v1231 = vadd.f32 %v1225, %v1230
    %1232 = vset.pattern.permute.xlu0 10
    %1233 = vperm.xlu0 %1232, %v1171
    %v1234 = vpop.permute.xlu0 %1233
    %v1236 = vmul.f32 %v1234, %v1130
    %v1237 = vadd.f32 %v1231, %v1236
    %1238 = vset.pattern.permute.xlu0 11
    %1239 = vperm.xlu0 %1238, %v1171
    %v1240 = vpop.permute.xlu0 %1239
    %v1242 = vmul.f32 %v1240, %v1138
    %v1243 = vadd.f32 %v1237, %v1242
    %v1244 = vmul.f32 %v1243, %v1143
    %v1245 = vadd.f32 %v1244, %v1148
    %v1246 = vsub.f32 0.0, %v1245
    %v1247 = vmul.f32 %v1246, 1.442695
    %v1248 = vpow.pop %v1247
    %v1249 = vadd.f32 %v1248, 1.0
    %v1250 = vrcp.pop %v1249
    %v1251 = vmul.f32 %v1249, %v1250
    %v1252 = vsub.f32 1.0, %v1251
    %v1253 = vmul.f32 %v1250, %v1252
    %v1254 = vadd.f32 %v1250, %v1253
    %vm1255 = vweird.f32 %v1249
    %vm1256 = vweird.f32 %v1250
    %vm1257 = vmor %vm1255, %vm1256
    %v1258 = vsel %vm1257, %v1250, %v1254
    %v1259 = vand.u32 2147483647, %v1249
    %vm1260 = vcmp.eq.f32.partialorder %v1259, 8.507059e+37
    %v1261 = vand.u32 %v1249, 2147483648
    %v1262 = vor.u32 1.1754944e-38, %v1261
    %v1263 = vsel %vm1260, %v1262, %v1258
    %v1264 = vmul.f32 1.0, %v1263
    %v1265 = vmax.f32 %v1169, %v1264
    %v1266 = vld [vmem:[%s13] sm:$0xff]
    %v1267 = vld [vmem:[%s13 + $0x8] sm:$0xff]
    %v1268 = vld [vmem:[%s13 + $0x10] sm:$0xff]
    %v1269 = vld [vmem:[%s13 + $0x18] sm:$0xff]
    %v1270 = vld [vmem:[%s13 + $0x20] sm:$0xff]
    %v1271 = vld [vmem:[%s13 + $0x28] sm:$0xff]
    %v1272 = vld [vmem:[%s13 + $0x30] sm:$0xff]
    %v1273 = vld [vmem:[%s13 + $0x38] sm:$0xff]
    %v1275 = vsel %vm663, %v1265, 0
    %1277 = vmatpush.msra.mxu0 0.0
    %1278 = vmatpush.msra.mxu0 0.0
    %1279 = vmatpush.msra.mxu0 0.0
    %1280 = vmatpush.msra.mxu0 0.0
    %1281 = vmatpush.msra.mxu0 0.0
    %1282 = vmatpush.msra.mxu0 0.0
    %1283 = vmatpush.msra.mxu0 0.0
    %1284 = vmatpush.msra.mxu0 0.0
    %1285 = vmatpush.msra.mxu0 %v1273
    %1286 = vmatpush.msra.mxu0 %v1272
    %1287 = vmatpush.msra.mxu0 %v1271
    %1288 = vmatpush.msra.mxu0 %v1270
    %1289 = vmatpush.msra.mxu0 %v1269
    %1290 = vmatpush.msra.mxu0 %v1268
    %1291 = vmatpush.msra.mxu0 %v1267
    %1292 = vmatpush.msra.mxu0 %v1266
    %1293 = vmatmul.f32.gmra.mxu0 %v1275
    %v1294 = vpop.f32.mrf.mxu0
    %v1295 = vadd.f32 0.0, %v1294
    %1296 = vdwg.mxu0
    %v1297 = vld [vmem:[%s14] sm:$0x1]
    %v1299 = vperm.slane %v1297, 0
    %v1301 = vmul.f32 %v1295, %v1299
    %v1302 = vld [vmem:[%s15] sm:$0x1]
    %v1304 = vperm.slane %v1302, 0
    %v1306 = vadd.f32 %v1301, %v1304
    %v1307 = vsub.f32 0.0, %v1306
    %v1308 = vmul.f32 %v1307, 1.442695
    %v1309 = vpow.pop %v1308
    %v1310 = vadd.f32 %v1309, 1.0
    %v1311 = vrcp.pop %v1310
    %v1312 = vmul.f32 %v1310, %v1311
    %v1313 = vsub.f32 1.0, %v1312
    %v1314 = vmul.f32 %v1311, %v1313
    %v1315 = vadd.f32 %v1311, %v1314
    %vm1316 = vweird.f32 %v1310
    %vm1317 = vweird.f32 %v1311
    %vm1318 = vmor %vm1316, %vm1317
    %v1319 = vsel %vm1318, %v1311, %v1315
    %v1320 = vand.u32 2147483647, %v1310
    %vm1321 = vcmp.eq.f32.partialorder %v1320, 8.507059e+37
    %v1322 = vand.u32 %v1310, 2147483648
    %v1323 = vor.u32 1.1754944e-38, %v1322
    %v1324 = vsel %vm1321, %v1323, %v1319
    %v1325 = vmul.f32 1.0, %v1324
    %s1326 = scalar_lea.vmem %s2, 2
    %v1327 = vld [vmem:[%s1326] sm:$0x3]
    %1329 = vset.pattern.permute.xlu0 0
    %1330 = vperm.xlu0 %1329, %v1327
    %v1331 = vpop.permute.xlu0 %1330
    %v1333 = vmul.f32 %v1331, %v1051
    %1334 = vset.pattern.permute.xlu0 1
    %1335 = vperm.xlu0 %1334, %v1327
    %v1336 = vpop.permute.xlu0 %1335
    %v1338 = vmul.f32 %v1336, %v1058
    %v1339 = vadd.f32 %v1333, %v1338
    %1340 = vset.pattern.permute.xlu0 2
    %1341 = vperm.xlu0 %1340, %v1327
    %v1342 = vpop.permute.xlu0 %1341
    %v1344 = vmul.f32 %v1342, %v1066
    %v1345 = vadd.f32 %v1339, %v1344
    %1346 = vset.pattern.permute.xlu0 3
    %1347 = vperm.xlu0 %1346, %v1327
    %v1348 = vpop.permute.xlu0 %1347
    %v1350 = vmul.f32 %v1348, %v1074
    %v1351 = vadd.f32 %v1345, %v1350
    %1352 = vset.pattern.permute.xlu0 4
    %1353 = vperm.xlu0 %1352, %v1327
    %v1354 = vpop.permute.xlu0 %1353
    %v1356 = vmul.f32 %v1354, %v1082
    %v1357 = vadd.f32 %v1351, %v1356
    %1358 = vset.pattern.permute.xlu0 5
    %1359 = vperm.xlu0 %1358, %v1327
    %v1360 = vpop.permute.xlu0 %1359
    %v1362 = vmul.f32 %v1360, %v1090
    %v1363 = vadd.f32 %v1357, %v1362
    %1364 = vset.pattern.permute.xlu0 6
    %1365 = vperm.xlu0 %1364, %v1327
    %v1366 = vpop.permute.xlu0 %1365
    %v1368 = vmul.f32 %v1366, %v1098
    %v1369 = vadd.f32 %v1363, %v1368
    %1370 = vset.pattern.permute.xlu0 7
    %1371 = vperm.xlu0 %1370, %v1327
    %v1372 = vpop.permute.xlu0 %1371
    %v1374 = vmul.f32 %v1372, %v1106
    %v1375 = vadd.f32 %v1369, %v1374
    %1376 = vset.pattern.permute.xlu0 8
    %1377 = vperm.xlu0 %1376, %v1327
    %v1378 = vpop.permute.xlu0 %1377
    %v1380 = vmul.f32 %v1378, %v1114
    %v1381 = vadd.f32 %v1375, %v1380
    %1382 = vset.pattern.permute.xlu0 9
    %1383 = vperm.xlu0 %1382, %v1327
    %v1384 = vpop.permute.xlu0 %1383
    %v1386 = vmul.f32 %v1384, %v1122
    %v1387 = vadd.f32 %v1381, %v1386
    %1388 = vset.pattern.permute.xlu0 10
    %1389 = vperm.xlu0 %1388, %v1327
    %v1390 = vpop.permute.xlu0 %1389
    %v1392 = vmul.f32 %v1390, %v1130
    %v1393 = vadd.f32 %v1387, %v1392
    %1394 = vset.pattern.permute.xlu0 11
    %1395 = vperm.xlu0 %1394, %v1327
    %v1396 = vpop.permute.xlu0 %1395
    %v1398 = vmul.f32 %v1396, %v1138
    %v1399 = vadd.f32 %v1393, %v1398
    %v1400 = vmul.f32 %v1399, %v1143
    %v1401 = vadd.f32 %v1400, %v1148
    %v1402 = vsub.f32 0.0, %v1401
    %v1403 = vmul.f32 %v1402, 1.442695
    %v1404 = vpow.pop %v1403
    %v1405 = vadd.f32 %v1404, 1.0
    %v1406 = vrcp.pop %v1405
    %v1407 = vmul.f32 %v1405, %v1406
    %v1408 = vsub.f32 1.0, %v1407
    %v1409 = vmul.f32 %v1406, %v1408
    %v1410 = vadd.f32 %v1406, %v1409
    %vm1411 = vweird.f32 %v1405
    %vm1412 = vweird.f32 %v1406
    %vm1413 = vmor %vm1411, %vm1412
    %v1414 = vsel %vm1413, %v1406, %v1410
    %v1415 = vand.u32 2147483647, %v1405
    %vm1416 = vcmp.eq.f32.partialorder %v1415, 8.507059e+37
    %v1417 = vand.u32 %v1405, 2147483648
    %v1418 = vor.u32 1.1754944e-38, %v1417
    %v1419 = vsel %vm1416, %v1418, %v1414
    %v1420 = vmul.f32 1.0, %v1419
    %s1421 = scalar_lea.vmem %s2, 10
    %v1422 = vld [vmem:[%s1421] sm:$0x3]
    %1424 = vset.pattern.permute.xlu0 0
    %1425 = vperm.xlu0 %1424, %v1422
    %v1426 = vpop.permute.xlu0 %1425
    %v1428 = vmul.f32 %v1426, %v1051
    %1429 = vset.pattern.permute.xlu0 1
    %1430 = vperm.xlu0 %1429, %v1422
    %v1431 = vpop.permute.xlu0 %1430
    %v1433 = vmul.f32 %v1431, %v1058
    %v1434 = vadd.f32 %v1428, %v1433
    %1435 = vset.pattern.permute.xlu0 2
    %1436 = vperm.xlu0 %1435, %v1422
    %v1437 = vpop.permute.xlu0 %1436
    %v1439 = vmul.f32 %v1437, %v1066
    %v1440 = vadd.f32 %v1434, %v1439
    %1441 = vset.pattern.permute.xlu0 3
    %1442 = vperm.xlu0 %1441, %v1422
    %v1443 = vpop.permute.xlu0 %1442
    %v1445 = vmul.f32 %v1443, %v1074
    %v1446 = vadd.f32 %v1440, %v1445
    %1447 = vset.pattern.permute.xlu0 4
    %1448 = vperm.xlu0 %1447, %v1422
    %v1449 = vpop.permute.xlu0 %1448
    %v1451 = vmul.f32 %v1449, %v1082
    %v1452 = vadd.f32 %v1446, %v1451
    %1453 = vset.pattern.permute.xlu0 5
    %1454 = vperm.xlu0 %1453, %v1422
    %v1455 = vpop.permute.xlu0 %1454
    %v1457 = vmul.f32 %v1455, %v1090
    %v1458 = vadd.f32 %v1452, %v1457
    %1459 = vset.pattern.permute.xlu0 6
    %1460 = vperm.xlu0 %1459, %v1422
    %v1461 = vpop.permute.xlu0 %1460
    %v1463 = vmul.f32 %v1461, %v1098
    %v1464 = vadd.f32 %v1458, %v1463
    %1465 = vset.pattern.permute.xlu0 7
    %1466 = vperm.xlu0 %1465, %v1422
    %v1467 = vpop.permute.xlu0 %1466
    %v1469 = vmul.f32 %v1467, %v1106
    %v1470 = vadd.f32 %v1464, %v1469
    %1471 = vset.pattern.permute.xlu0 8
    %1472 = vperm.xlu0 %1471, %v1422
    %v1473 = vpop.permute.xlu0 %1472
    %v1475 = vmul.f32 %v1473, %v1114
    %v1476 = vadd.f32 %v1470, %v1475
    %1477 = vset.pattern.permute.xlu0 9
    %1478 = vperm.xlu0 %1477, %v1422
    %v1479 = vpop.permute.xlu0 %1478
    %v1481 = vmul.f32 %v1479, %v1122
    %v1482 = vadd.f32 %v1476, %v1481
    %1483 = vset.pattern.permute.xlu0 10
    %1484 = vperm.xlu0 %1483, %v1422
    %v1485 = vpop.permute.xlu0 %1484
    %v1487 = vmul.f32 %v1485, %v1130
    %v1488 = vadd.f32 %v1482, %v1487
    %1489 = vset.pattern.permute.xlu0 11
    %1490 = vperm.xlu0 %1489, %v1422
    %v1491 = vpop.permute.xlu0 %1490
    %v1493 = vmul.f32 %v1491, %v1138
    %v1494 = vadd.f32 %v1488, %v1493
    %v1495 = vmul.f32 %v1494, %v1143
    %v1496 = vadd.f32 %v1495, %v1148
    %v1497 = vsub.f32 0.0, %v1496
    %v1498 = vmul.f32 %v1497, 1.442695
    %v1499 = vpow.pop %v1498
    %v1500 = vadd.f32 %v1499, 1.0
    %v1501 = vrcp.pop %v1500
    %v1502 = vmul.f32 %v1500, %v1501
    %v1503 = vsub.f32 1.0, %v1502
    %v1504 = vmul.f32 %v1501, %v1503
    %v1505 = vadd.f32 %v1501, %v1504
    %vm1506 = vweird.f32 %v1500
    %vm1507 = vweird.f32 %v1501
    %vm1508 = vmor %vm1506, %vm1507
    %v1509 = vsel %vm1508, %v1501, %v1505
    %v1510 = vand.u32 2147483647, %v1500
    %vm1511 = vcmp.eq.f32.partialorder %v1510, 8.507059e+37
    %v1512 = vand.u32 %v1500, 2147483648
    %v1513 = vor.u32 1.1754944e-38, %v1512
    %v1514 = vsel %vm1511, %v1513, %v1509
    %v1515 = vmul.f32 1.0, %v1514
    %v1516 = vmax.f32 %v1420, %v1515
    %v1518 = vsel %vm663, %v1516, 0
    %1520 = vmatpush.msra.mxu0 0.0
    %1521 = vmatpush.msra.mxu0 0.0
    %1522 = vmatpush.msra.mxu0 0.0
    %1523 = vmatpush.msra.mxu0 0.0
    %1524 = vmatpush.msra.mxu0 0.0
    %1525 = vmatpush.msra.mxu0 0.0
    %1526 = vmatpush.msra.mxu0 0.0
    %1527 = vmatpush.msra.mxu0 0.0
    %1528 = vmatpush.msra.mxu0 %v1273
    %1529 = vmatpush.msra.mxu0 %v1272
    %1530 = vmatpush.msra.mxu0 %v1271
    %1531 = vmatpush.msra.mxu0 %v1270
    %1532 = vmatpush.msra.mxu0 %v1269
    %1533 = vmatpush.msra.mxu0 %v1268
    %1534 = vmatpush.msra.mxu0 %v1267
    %1535 = vmatpush.msra.mxu0 %v1266
    %1536 = vmatmul.f32.gmra.mxu0 %v1518
    %v1537 = vpop.f32.mrf.mxu0
    %v1538 = vadd.f32 0.0, %v1537
    %1539 = vdwg.mxu0
    %v1540 = vmul.f32 %v1538, %v1299
    %v1541 = vadd.f32 %v1540, %v1304
    %v1542 = vsub.f32 0.0, %v1541
    %v1543 = vmul.f32 %v1542, 1.442695
    %v1544 = vpow.pop %v1543
    %v1545 = vadd.f32 %v1544, 1.0
    %v1546 = vrcp.pop %v1545
    %v1547 = vmul.f32 %v1545, %v1546
    %v1548 = vsub.f32 1.0, %v1547
    %v1549 = vmul.f32 %v1546, %v1548
    %v1550 = vadd.f32 %v1546, %v1549
    %vm1551 = vweird.f32 %v1545
    %vm1552 = vweird.f32 %v1546
    %vm1553 = vmor %vm1551, %vm1552
    %v1554 = vsel %vm1553, %v1546, %v1550
    %v1555 = vand.u32 2147483647, %v1545
    %vm1556 = vcmp.eq.f32.partialorder %v1555, 8.507059e+37
    %v1557 = vand.u32 %v1545, 2147483648
    %v1558 = vor.u32 1.1754944e-38, %v1557
    %v1559 = vsel %vm1556, %v1558, %v1554
    %v1560 = vmul.f32 1.0, %v1559
    %s1561 = scalar_lea.vmem %s2, 4
    %v1562 = vld [vmem:[%s1561] sm:$0x3]
    %1564 = vset.pattern.permute.xlu0 0
    %1565 = vperm.xlu0 %1564, %v1562
    %v1566 = vpop.permute.xlu0 %1565
    %v1568 = vmul.f32 %v1566, %v1051
    %1569 = vset.pattern.permute.xlu0 1
    %1570 = vperm.xlu0 %1569, %v1562
    %v1571 = vpop.permute.xlu0 %1570
    %v1573 = vmul.f32 %v1571, %v1058
    %v1574 = vadd.f32 %v1568, %v1573
    %1575 = vset.pattern.permute.xlu0 2
    %1576 = vperm.xlu0 %1575, %v1562
    %v1577 = vpop.permute.xlu0 %1576
    %v1579 = vmul.f32 %v1577, %v1066
    %v1580 = vadd.f32 %v1574, %v1579
    %1581 = vset.pattern.permute.xlu0 3
    %1582 = vperm.xlu0 %1581, %v1562
    %v1583 = vpop.permute.xlu0 %1582
    %v1585 = vmul.f32 %v1583, %v1074
    %v1586 = vadd.f32 %v1580, %v1585
    %1587 = vset.pattern.permute.xlu0 4
    %1588 = vperm.xlu0 %1587, %v1562
    %v1589 = vpop.permute.xlu0 %1588
    %v1591 = vmul.f32 %v1589, %v1082
    %v1592 = vadd.f32 %v1586, %v1591
    %1593 = vset.pattern.permute.xlu0 5
    %1594 = vperm.xlu0 %1593, %v1562
    %v1595 = vpop.permute.xlu0 %1594
    %v1597 = vmul.f32 %v1595, %v1090
    %v1598 = vadd.f32 %v1592, %v1597
    %1599 = vset.pattern.permute.xlu0 6
    %1600 = vperm.xlu0 %1599, %v1562
    %v1601 = vpop.permute.xlu0 %1600
    %v1603 = vmul.f32 %v1601, %v1098
    %v1604 = vadd.f32 %v1598, %v1603
    %1605 = vset.pattern.permute.xlu0 7
    %1606 = vperm.xlu0 %1605, %v1562
    %v1607 = vpop.permute.xlu0 %1606
    %v1609 = vmul.f32 %v1607, %v1106
    %v1610 = vadd.f32 %v1604, %v1609
    %1611 = vset.pattern.permute.xlu0 8
    %1612 = vperm.xlu0 %1611, %v1562
    %v1613 = vpop.permute.xlu0 %1612
    %v1615 = vmul.f32 %v1613, %v1114
    %v1616 = vadd.f32 %v1610, %v1615
    %1617 = vset.pattern.permute.xlu0 9
    %1618 = vperm.xlu0 %1617, %v1562
    %v1619 = vpop.permute.xlu0 %1618
    %v1621 = vmul.f32 %v1619, %v1122
    %v1622 = vadd.f32 %v1616, %v1621
    %1623 = vset.pattern.permute.xlu0 10
    %1624 = vperm.xlu0 %1623, %v1562
    %v1625 = vpop.permute.xlu0 %1624
    %v1627 = vmul.f32 %v1625, %v1130
    %v1628 = vadd.f32 %v1622, %v1627
    %1629 = vset.pattern.permute.xlu0 11
    %1630 = vperm.xlu0 %1629, %v1562
    %v1631 = vpop.permute.xlu0 %1630
    %v1633 = vmul.f32 %v1631, %v1138
    %v1634 = vadd.f32 %v1628, %v1633
    %v1635 = vmul.f32 %v1634, %v1143
    %v1636 = vadd.f32 %v1635, %v1148
    %v1637 = vsub.f32 0.0, %v1636
    %v1638 = vmul.f32 %v1637, 1.442695
    %v1639 = vpow.pop %v1638
    %v1640 = vadd.f32 %v1639, 1.0
    %v1641 = vrcp.pop %v1640
    %v1642 = vmul.f32 %v1640, %v1641
    %v1643 = vsub.f32 1.0, %v1642
    %v1644 = vmul.f32 %v1641, %v1643
    %v1645 = vadd.f32 %v1641, %v1644
    %vm1646 = vweird.f32 %v1640
    %vm1647 = vweird.f32 %v1641
    %vm1648 = vmor %vm1646, %vm1647
    %v1649 = vsel %vm1648, %v1641, %v1645
    %v1650 = vand.u32 2147483647, %v1640
    %vm1651 = vcmp.eq.f32.partialorder %v1650, 8.507059e+37
    %v1652 = vand.u32 %v1640, 2147483648
    %v1653 = vor.u32 1.1754944e-38, %v1652
    %v1654 = vsel %vm1651, %v1653, %v1649
    %v1655 = vmul.f32 1.0, %v1654
    %s1656 = scalar_lea.vmem %s2, 12
    %v1657 = vld [vmem:[%s1656] sm:$0x3]
    %1659 = vset.pattern.permute.xlu0 0
    %1660 = vperm.xlu0 %1659, %v1657
    %v1661 = vpop.permute.xlu0 %1660
    %v1663 = vmul.f32 %v1661, %v1051
    %1664 = vset.pattern.permute.xlu0 1
    %1665 = vperm.xlu0 %1664, %v1657
    %v1666 = vpop.permute.xlu0 %1665
    %v1668 = vmul.f32 %v1666, %v1058
    %v1669 = vadd.f32 %v1663, %v1668
    %1670 = vset.pattern.permute.xlu0 2
    %1671 = vperm.xlu0 %1670, %v1657
    %v1672 = vpop.permute.xlu0 %1671
    %v1674 = vmul.f32 %v1672, %v1066
    %v1675 = vadd.f32 %v1669, %v1674
    %1676 = vset.pattern.permute.xlu0 3
    %1677 = vperm.xlu0 %1676, %v1657
    %v1678 = vpop.permute.xlu0 %1677
    %v1680 = vmul.f32 %v1678, %v1074
    %v1681 = vadd.f32 %v1675, %v1680
    %1682 = vset.pattern.permute.xlu0 4
    %1683 = vperm.xlu0 %1682, %v1657
    %v1684 = vpop.permute.xlu0 %1683
    %v1686 = vmul.f32 %v1684, %v1082
    %v1687 = vadd.f32 %v1681, %v1686
    %1688 = vset.pattern.permute.xlu0 5
    %1689 = vperm.xlu0 %1688, %v1657
    %v1690 = vpop.permute.xlu0 %1689
    %v1692 = vmul.f32 %v1690, %v1090
    %v1693 = vadd.f32 %v1687, %v1692
    %1694 = vset.pattern.permute.xlu0 6
    %1695 = vperm.xlu0 %1694, %v1657
    %v1696 = vpop.permute.xlu0 %1695
    %v1698 = vmul.f32 %v1696, %v1098
    %v1699 = vadd.f32 %v1693, %v1698
    %1700 = vset.pattern.permute.xlu0 7
    %1701 = vperm.xlu0 %1700, %v1657
    %v1702 = vpop.permute.xlu0 %1701
    %v1704 = vmul.f32 %v1702, %v1106
    %v1705 = vadd.f32 %v1699, %v1704
    %1706 = vset.pattern.permute.xlu0 8
    %1707 = vperm.xlu0 %1706, %v1657
    %v1708 = vpop.permute.xlu0 %1707
    %v1710 = vmul.f32 %v1708, %v1114
    %v1711 = vadd.f32 %v1705, %v1710
    %1712 = vset.pattern.permute.xlu0 9
    %1713 = vperm.xlu0 %1712, %v1657
    %v1714 = vpop.permute.xlu0 %1713
    %v1716 = vmul.f32 %v1714, %v1122
    %v1717 = vadd.f32 %v1711, %v1716
    %1718 = vset.pattern.permute.xlu0 10
    %1719 = vperm.xlu0 %1718, %v1657
    %v1720 = vpop.permute.xlu0 %1719
    %v1722 = vmul.f32 %v1720, %v1130
    %v1723 = vadd.f32 %v1717, %v1722
    %1724 = vset.pattern.permute.xlu0 11
    %1725 = vperm.xlu0 %1724, %v1657
    %v1726 = vpop.permute.xlu0 %1725
    %v1728 = vmul.f32 %v1726, %v1138
    %v1729 = vadd.f32 %v1723, %v1728
    %v1730 = vmul.f32 %v1729, %v1143
    %v1731 = vadd.f32 %v1730, %v1148
    %v1732 = vsub.f32 0.0, %v1731
    %v1733 = vmul.f32 %v1732, 1.442695
    %v1734 = vpow.pop %v1733
    %v1735 = vadd.f32 %v1734, 1.0
    %v1736 = vrcp.pop %v1735
    %v1737 = vmul.f32 %v1735, %v1736
    %v1738 = vsub.f32 1.0, %v1737
    %v1739 = vmul.f32 %v1736, %v1738
    %v1740 = vadd.f32 %v1736, %v1739
    %vm1741 = vweird.f32 %v1735
    %vm1742 = vweird.f32 %v1736
    %vm1743 = vmor %vm1741, %vm1742
    %v1744 = vsel %vm1743, %v1736, %v1740
    %v1745 = vand.u32 2147483647, %v1735
    %vm1746 = vcmp.eq.f32.partialorder %v1745, 8.507059e+37
    %v1747 = vand.u32 %v1735, 2147483648
    %v1748 = vor.u32 1.1754944e-38, %v1747
    %v1749 = vsel %vm1746, %v1748, %v1744
    %v1750 = vmul.f32 1.0, %v1749
    %v1751 = vmax.f32 %v1655, %v1750
    %v1753 = vsel %vm663, %v1751, 0
    %1755 = vmatpush.msra.mxu0 0.0
    %1756 = vmatpush.msra.mxu0 0.0
    %1757 = vmatpush.msra.mxu0 0.0
    %1758 = vmatpush.msra.mxu0 0.0
    %1759 = vmatpush.msra.mxu0 0.0
    %1760 = vmatpush.msra.mxu0 0.0
    %1761 = vmatpush.msra.mxu0 0.0
    %1762 = vmatpush.msra.mxu0 0.0
    %1763 = vmatpush.msra.mxu0 %v1273
    %1764 = vmatpush.msra.mxu0 %v1272
    %1765 = vmatpush.msra.mxu0 %v1271
    %1766 = vmatpush.msra.mxu0 %v1270
    %1767 = vmatpush.msra.mxu0 %v1269
    %1768 = vmatpush.msra.mxu0 %v1268
    %1769 = vmatpush.msra.mxu0 %v1267
    %1770 = vmatpush.msra.mxu0 %v1266
    %1771 = vmatmul.f32.gmra.mxu0 %v1753
    %v1772 = vpop.f32.mrf.mxu0
    %v1773 = vadd.f32 0.0, %v1772
    %1774 = vdwg.mxu0
    %v1775 = vmul.f32 %v1773, %v1299
    %v1776 = vadd.f32 %v1775, %v1304
    %v1777 = vsub.f32 0.0, %v1776
    %v1778 = vmul.f32 %v1777, 1.442695
    %v1779 = vpow.pop %v1778
    %v1780 = vadd.f32 %v1779, 1.0
    %v1781 = vrcp.pop %v1780
    %v1782 = vmul.f32 %v1780, %v1781
    %v1783 = vsub.f32 1.0, %v1782
    %v1784 = vmul.f32 %v1781, %v1783
    %v1785 = vadd.f32 %v1781, %v1784
    %vm1786 = vweird.f32 %v1780
    %vm1787 = vweird.f32 %v1781
    %vm1788 = vmor %vm1786, %vm1787
    %v1789 = vsel %vm1788, %v1781, %v1785
    %v1790 = vand.u32 2147483647, %v1780
    %vm1791 = vcmp.eq.f32.partialorder %v1790, 8.507059e+37
    %v1792 = vand.u32 %v1780, 2147483648
    %v1793 = vor.u32 1.1754944e-38, %v1792
    %v1794 = vsel %vm1791, %v1793, %v1789
    %v1795 = vmul.f32 1.0, %v1794
    %s1796 = scalar_lea.vmem %s2, 6
    %v1797 = vld [vmem:[%s1796] sm:$0x3]
    %1799 = vset.pattern.permute.xlu0 0
    %1800 = vperm.xlu0 %1799, %v1797
    %v1801 = vpop.permute.xlu0 %1800
    %v1803 = vmul.f32 %v1801, %v1051
    %1804 = vset.pattern.permute.xlu0 1
    %1805 = vperm.xlu0 %1804, %v1797
    %v1806 = vpop.permute.xlu0 %1805
    %v1808 = vmul.f32 %v1806, %v1058
    %v1809 = vadd.f32 %v1803, %v1808
    %1810 = vset.pattern.permute.xlu0 2
    %1811 = vperm.xlu0 %1810, %v1797
    %v1812 = vpop.permute.xlu0 %1811
    %v1814 = vmul.f32 %v1812, %v1066
    %v1815 = vadd.f32 %v1809, %v1814
    %1816 = vset.pattern.permute.xlu0 3
    %1817 = vperm.xlu0 %1816, %v1797
    %v1818 = vpop.permute.xlu0 %1817
    %v1820 = vmul.f32 %v1818, %v1074
    %v1821 = vadd.f32 %v1815, %v1820
    %1822 = vset.pattern.permute.xlu0 4
    %1823 = vperm.xlu0 %1822, %v1797
    %v1824 = vpop.permute.xlu0 %1823
    %v1826 = vmul.f32 %v1824, %v1082
    %v1827 = vadd.f32 %v1821, %v1826
    %1828 = vset.pattern.permute.xlu0 5
    %1829 = vperm.xlu0 %1828, %v1797
    %v1830 = vpop.permute.xlu0 %1829
    %v1832 = vmul.f32 %v1830, %v1090
    %v1833 = vadd.f32 %v1827, %v1832
    %1834 = vset.pattern.permute.xlu0 6
    %1835 = vperm.xlu0 %1834, %v1797
    %v1836 = vpop.permute.xlu0 %1835
    %v1838 = vmul.f32 %v1836, %v1098
    %v1839 = vadd.f32 %v1833, %v1838
    %1840 = vset.pattern.permute.xlu0 7
    %1841 = vperm.xlu0 %1840, %v1797
    %v1842 = vpop.permute.xlu0 %1841
    %v1844 = vmul.f32 %v1842, %v1106
    %v1845 = vadd.f32 %v1839, %v1844
    %1846 = vset.pattern.permute.xlu0 8
    %1847 = vperm.xlu0 %1846, %v1797
    %v1848 = vpop.permute.xlu0 %1847
    %v1850 = vmul.f32 %v1848, %v1114
    %v1851 = vadd.f32 %v1845, %v1850
    %1852 = vset.pattern.permute.xlu0 9
    %1853 = vperm.xlu0 %1852, %v1797
    %v1854 = vpop.permute.xlu0 %1853
    %v1856 = vmul.f32 %v1854, %v1122
    %v1857 = vadd.f32 %v1851, %v1856
    %1858 = vset.pattern.permute.xlu0 10
    %1859 = vperm.xlu0 %1858, %v1797
    %v1860 = vpop.permute.xlu0 %1859
    %v1862 = vmul.f32 %v1860, %v1130
    %v1863 = vadd.f32 %v1857, %v1862
    %1864 = vset.pattern.permute.xlu0 11
    %1865 = vperm.xlu0 %1864, %v1797
    %v1866 = vpop.permute.xlu0 %1865
    %v1868 = vmul.f32 %v1866, %v1138
    %v1869 = vadd.f32 %v1863, %v1868
    %v1870 = vmul.f32 %v1869, %v1143
    %v1871 = vadd.f32 %v1870, %v1148
    %v1872 = vsub.f32 0.0, %v1871
    %v1873 = vmul.f32 %v1872, 1.442695
    %v1874 = vpow.pop %v1873
    %v1875 = vadd.f32 %v1874, 1.0
    %v1876 = vrcp.pop %v1875
    %v1877 = vmul.f32 %v1875, %v1876
    %v1878 = vsub.f32 1.0, %v1877
    %v1879 = vmul.f32 %v1876, %v1878
    %v1880 = vadd.f32 %v1876, %v1879
    %vm1881 = vweird.f32 %v1875
    %vm1882 = vweird.f32 %v1876
    %vm1883 = vmor %vm1881, %vm1882
    %v1884 = vsel %vm1883, %v1876, %v1880
    %v1885 = vand.u32 2147483647, %v1875
    %vm1886 = vcmp.eq.f32.partialorder %v1885, 8.507059e+37
    %v1887 = vand.u32 %v1875, 2147483648
    %v1888 = vor.u32 1.1754944e-38, %v1887
    %v1889 = vsel %vm1886, %v1888, %v1884
    %v1890 = vmul.f32 1.0, %v1889
    %s1891 = scalar_lea.vmem %s2, 14
    %v1892 = vld [vmem:[%s1891] sm:$0x3]
    %1894 = vset.pattern.permute.xlu0 0
    %1895 = vperm.xlu0 %1894, %v1892
    %v1896 = vpop.permute.xlu0 %1895
    %v1898 = vmul.f32 %v1896, %v1051
    %1899 = vset.pattern.permute.xlu0 1
    %1900 = vperm.xlu0 %1899, %v1892
    %v1901 = vpop.permute.xlu0 %1900
    %v1903 = vmul.f32 %v1901, %v1058
    %v1904 = vadd.f32 %v1898, %v1903
    %1905 = vset.pattern.permute.xlu0 2
    %1906 = vperm.xlu0 %1905, %v1892
    %v1907 = vpop.permute.xlu0 %1906
    %v1909 = vmul.f32 %v1907, %v1066
    %v1910 = vadd.f32 %v1904, %v1909
    %1911 = vset.pattern.permute.xlu0 3
    %1912 = vperm.xlu0 %1911, %v1892
    %v1913 = vpop.permute.xlu0 %1912
    %v1915 = vmul.f32 %v1913, %v1074
    %v1916 = vadd.f32 %v1910, %v1915
    %1917 = vset.pattern.permute.xlu0 4
    %1918 = vperm.xlu0 %1917, %v1892
    %v1919 = vpop.permute.xlu0 %1918
    %v1921 = vmul.f32 %v1919, %v1082
    %v1922 = vadd.f32 %v1916, %v1921
    %1923 = vset.pattern.permute.xlu0 5
    %1924 = vperm.xlu0 %1923, %v1892
    %v1925 = vpop.permute.xlu0 %1924
    %v1927 = vmul.f32 %v1925, %v1090
    %v1928 = vadd.f32 %v1922, %v1927
    %1929 = vset.pattern.permute.xlu0 6
    %1930 = vperm.xlu0 %1929, %v1892
    %v1931 = vpop.permute.xlu0 %1930
    %v1933 = vmul.f32 %v1931, %v1098
    %v1934 = vadd.f32 %v1928, %v1933
    %1935 = vset.pattern.permute.xlu0 7
    %1936 = vperm.xlu0 %1935, %v1892
    %v1937 = vpop.permute.xlu0 %1936
    %v1939 = vmul.f32 %v1937, %v1106
    %v1940 = vadd.f32 %v1934, %v1939
    %1941 = vset.pattern.permute.xlu0 8
    %1942 = vperm.xlu0 %1941, %v1892
    %v1943 = vpop.permute.xlu0 %1942
    %v1945 = vmul.f32 %v1943, %v1114
    %v1946 = vadd.f32 %v1940, %v1945
    %1947 = vset.pattern.permute.xlu0 9
    %1948 = vperm.xlu0 %1947, %v1892
    %v1949 = vpop.permute.xlu0 %1948
    %v1951 = vmul.f32 %v1949, %v1122
    %v1952 = vadd.f32 %v1946, %v1951
    %1953 = vset.pattern.permute.xlu0 10
    %1954 = vperm.xlu0 %1953, %v1892
    %v1955 = vpop.permute.xlu0 %1954
    %v1957 = vmul.f32 %v1955, %v1130
    %v1958 = vadd.f32 %v1952, %v1957
    %1959 = vset.pattern.permute.xlu0 11
    %1960 = vperm.xlu0 %1959, %v1892
    %v1961 = vpop.permute.xlu0 %1960
    %v1963 = vmul.f32 %v1961, %v1138
    %v1964 = vadd.f32 %v1958, %v1963
    %v1965 = vmul.f32 %v1964, %v1143
    %v1966 = vadd.f32 %v1965, %v1148
    %v1967 = vsub.f32 0.0, %v1966
    %v1968 = vmul.f32 %v1967, 1.442695
    %v1969 = vpow.pop %v1968
    %v1970 = vadd.f32 %v1969, 1.0
    %v1971 = vrcp.pop %v1970
    %v1972 = vmul.f32 %v1970, %v1971
    %v1973 = vsub.f32 1.0, %v1972
    %v1974 = vmul.f32 %v1971, %v1973
    %v1975 = vadd.f32 %v1971, %v1974
    %vm1976 = vweird.f32 %v1970
    %vm1977 = vweird.f32 %v1971
    %vm1978 = vmor %vm1976, %vm1977
    %v1979 = vsel %vm1978, %v1971, %v1975
    %v1980 = vand.u32 2147483647, %v1970
    %vm1981 = vcmp.eq.f32.partialorder %v1980, 8.507059e+37
    %v1982 = vand.u32 %v1970, 2147483648
    %v1983 = vor.u32 1.1754944e-38, %v1982
    %v1984 = vsel %vm1981, %v1983, %v1979
    %v1985 = vmul.f32 1.0, %v1984
    %v1986 = vmax.f32 %v1890, %v1985
    %v1988 = vsel %vm663, %v1986, 0
    %1990 = vmatpush.msra.mxu0 0.0
    %1991 = vmatpush.msra.mxu0 0.0
    %1992 = vmatpush.msra.mxu0 0.0
    %1993 = vmatpush.msra.mxu0 0.0
    %1994 = vmatpush.msra.mxu0 0.0
    %1995 = vmatpush.msra.mxu0 0.0
    %1996 = vmatpush.msra.mxu0 0.0
    %1997 = vmatpush.msra.mxu0 0.0
    %1998 = vmatpush.msra.mxu0 %v1273
    %1999 = vmatpush.msra.mxu0 %v1272
    %2000 = vmatpush.msra.mxu0 %v1271
    %2001 = vmatpush.msra.mxu0 %v1270
    %2002 = vmatpush.msra.mxu0 %v1269
    %2003 = vmatpush.msra.mxu0 %v1268
    %2004 = vmatpush.msra.mxu0 %v1267
    %2005 = vmatpush.msra.mxu0 %v1266
    %2006 = vmatmul.f32.gmra.mxu0 %v1988
    %v2007 = vpop.f32.mrf.mxu0
    %v2008 = vadd.f32 0.0, %v2007
    %2009 = vdwg.mxu0
    %v2010 = vmul.f32 %v2008, %v1299
    %v2011 = vadd.f32 %v2010, %v1304
    %v2012 = vsub.f32 0.0, %v2011
    %v2013 = vmul.f32 %v2012, 1.442695
    %v2014 = vpow.pop %v2013
    %v2015 = vadd.f32 %v2014, 1.0
    %v2016 = vrcp.pop %v2015
    %v2017 = vmul.f32 %v2015, %v2016
    %v2018 = vsub.f32 1.0, %v2017
    %v2019 = vmul.f32 %v2016, %v2018
    %v2020 = vadd.f32 %v2016, %v2019
    %vm2021 = vweird.f32 %v2015
    %vm2022 = vweird.f32 %v2016
    %vm2023 = vmor %vm2021, %vm2022
    %v2024 = vsel %vm2023, %v2016, %v2020
    %v2025 = vand.u32 2147483647, %v2015
    %vm2026 = vcmp.eq.f32.partialorder %v2025, 8.507059e+37
    %v2027 = vand.u32 %v2015, 2147483648
    %v2028 = vor.u32 1.1754944e-38, %v2027
    %v2029 = vsel %vm2026, %v2028, %v2024
    %v2030 = vmul.f32 1.0, %v2029
    %v2031 = vmax.f32 %v1325, %v1560
    %v2032 = vpack.c.bf16 %v2031, %v2031
    %v2033 = vld [vmem:[%s19 + $0xc0] sm:$0xf]
    %v2034 = vld [vmem:[%s19 + $0xc4] sm:$0xf]
    %v2035 = vld [vmem:[%s19 + $0xc8] sm:$0xf]
    %v2036 = vld [vmem:[%s19 + $0xcc] sm:$0xf]
    %v2041 = vunpack.c.l.b16 %v2033
    %v2042 = vunpack.c.l.b16 %v2034
    %v2043 = vunpack.c.l.b16 %v2035
    %v2044 = vunpack.c.l.b16 %v2036
    %v2045 = vpack.c.b16 %v2042, %v2041
    %v2046 = vpack.c.b16 %v2044, %v2043
    %v2050 = vsel %vm293, %v2032, 0
    %2052 = vmatpush.bf16.msra.mxu0 0
    %2053 = vmatpush.bf16.msra.mxu0 0
    %2054 = vmatpush.bf16.msra.mxu0 0
    %2055 = vmatpush.bf16.msra.mxu0 0
    %2056 = vmatpush.bf16.msra.mxu0 0
    %2057 = vmatpush.bf16.msra.mxu0 0
    %2058 = vmatpush.bf16.msra.mxu0 %v2046
    %2059 = vmatpush.bf16.msra.mxu0 %v2045
    %2060 = vmatmul.bf16.gmra.mxu0 %v2050
    %v2061 = vpop.f32.mrf.mxu0
    %v2062 = vadd.f32 0.0, %v2061
    %v2063 = vpop.f32.mrf.mxu0
    %2064 = vdwg.mxu0
    %v2065 = vadd.f32 %v1043, %v2062
    %v2066 = vmax.f32 %v1795, %v2030
    %v2067 = vpack.c.bf16 %v2066, %v2066
    %v2068 = vld [vmem:[%s19 + $0xd0] sm:$0xf]
    %v2069 = vld [vmem:[%s19 + $0xd4] sm:$0xf]
    %v2070 = vld [vmem:[%s19 + $0xd8] sm:$0xf]
    %v2071 = vld [vmem:[%s19 + $0xdc] sm:$0xf]
    %v2076 = vunpack.c.l.b16 %v2068
    %v2077 = vunpack.c.l.b16 %v2069
    %v2078 = vunpack.c.l.b16 %v2070
    %v2079 = vunpack.c.l.b16 %v2071
    %v2080 = vpack.c.b16 %v2077, %v2076
    %v2081 = vpack.c.b16 %v2079, %v2078
    %v2085 = vsel %vm293, %v2067, 0
    %2087 = vmatpush.bf16.msra.mxu0 0
    %2088 = vmatpush.bf16.msra.mxu0 0
    %2089 = vmatpush.bf16.msra.mxu0 0
    %2090 = vmatpush.bf16.msra.mxu0 0
    %2091 = vmatpush.bf16.msra.mxu0 0
    %2092 = vmatpush.bf16.msra.mxu0 0
    %2093 = vmatpush.bf16.msra.mxu0 %v2081
    %2094 = vmatpush.bf16.msra.mxu0 %v2080
    %2095 = vmatmul.bf16.gmra.mxu0 %v2085
    %v2096 = vpop.f32.mrf.mxu0
    %v2097 = vadd.f32 0.0, %v2096
    %v2098 = vpop.f32.mrf.mxu0
    %2099 = vdwg.mxu0
    %v2100 = vadd.f32 %v2065, %v2097
    %s2101 = sld [smem:[#allocation2]]
    %s2102 = sld [smem:[#allocation2 + $0x80]]
    %s2103 = sld [smem:[#allocation5]]
    %s2104 = sld [smem:[#allocation7]]
    %v2105 = vld [vmem:[%s3] sm:$0xf]
    %v2106 = vstv %s2101
    %v2107 = vmul.f32 %v2105, %v2106
    %s2108 = scalar_lea.vmem %s3, 4
    %v2109 = vld [vmem:[%s2108] sm:$0xf]
    %v2110 = vstv %s2102
    %v2111 = vmul.f32 %v2109, %v2110
    %v2112 = vadd.f32 %v2107, %v2111
    %v2113 = vstv %s2103
    %v2114 = vmul.f32 %v2112, %v2113
    %v2115 = vstv %s2104
    %v2116 = vadd.f32 %v2114, %v2115
    %v2117 = vmax.f32 %v2116, 0.0
    %s2118 = scalar_lea.vmem %s3, 8
    %v2119 = vld [vmem:[%s2118] sm:$0xf]
    %v2120 = vmul.f32 %v2119, %v2106
    %s2121 = scalar_lea.vmem %s3, 12
    %v2122 = vld [vmem:[%s2121] sm:$0xf]
    %v2123 = vmul.f32 %v2122, %v2110
    %v2124 = vadd.f32 %v2120, %v2123
    %v2125 = vmul.f32 %v2124, %v2113
    %v2126 = vadd.f32 %v2125, %v2115
    %v2127 = vmax.f32 %v2126, 0.0
    %v2128 = vmax.f32 %v2117, %v2127
    %s2129 = scalar_lea.vmem %s3, 16
    %v2130 = vld [vmem:[%s2129] sm:$0xf]
    %v2131 = vmul.f32 %v2130, %v2106
    %s2132 = scalar_lea.vmem %s3, 20
    %v2133 = vld [vmem:[%s2132] sm:$0xf]
    %v2134 = vmul.f32 %v2133, %v2110
    %v2135 = vadd.f32 %v2131, %v2134
    %v2136 = vmul.f32 %v2135, %v2113
    %v2137 = vadd.f32 %v2136, %v2115
    %v2138 = vmax.f32 %v2137, 0.0
    %v2139 = vmax.f32 %v2128, %v2138
    %s2140 = scalar_lea.vmem %s3, 24
    %v2141 = vld [vmem:[%s2140] sm:$0xf]
    %v2142 = vmul.f32 %v2141, %v2106
    %s2143 = scalar_lea.vmem %s3, 28
    %v2144 = vld [vmem:[%s2143] sm:$0xf]
    %v2145 = vmul.f32 %v2144, %v2110
    %v2146 = vadd.f32 %v2142, %v2145
    %v2147 = vmul.f32 %v2146, %v2113
    %v2148 = vadd.f32 %v2147, %v2115
    %v2149 = vmax.f32 %v2148, 0.0
    %v2150 = vmax.f32 %v2139, %v2149
    %2152 = vst [vmem:[#allocation1] ss:$4 sm:$0xff] %v2150
    %v2153 = vld.sshfl [vmem:[#allocation1] sm:$0xff pattern:$0x73625140]
    %v2154 = vld.sshfl [vmem:[#allocation1 + $0x8] sm:$0xff pattern:$0x73625140]
    %v2157 = vpack.c.bf16 %v2153, %v2153
    %v2158 = vpack.c.bf16 %v2154, %v2154
    %v2159 = vld [vmem:[%s19 + $0xe0] sm:$0xf]
    %v2160 = vld [vmem:[%s19 + $0xe4] sm:$0xf]
    %v2161 = vld [vmem:[%s19 + $0xe8] sm:$0xf]
    %v2162 = vld [vmem:[%s19 + $0xec] sm:$0xf]
    %v2163 = vld [vmem:[%s19 + $0xf0] sm:$0xf]
    %v2164 = vld [vmem:[%s19 + $0xf4] sm:$0xf]
    %v2165 = vld [vmem:[%s19 + $0xf8] sm:$0xf]
    %v2166 = vld [vmem:[%s19 + $0xfc] sm:$0xf]
    %v2167 = vld [vmem:[%s19 + $0x100] sm:$0xf]
    %v2168 = vld [vmem:[%s19 + $0x104] sm:$0xf]
    %v2169 = vld [vmem:[%s19 + $0x108] sm:$0xf]
    %v2170 = vld [vmem:[%s19 + $0x10c] sm:$0xf]
    %v2171 = vld [vmem:[%s19 + $0x110] sm:$0xf]
    %v2172 = vld [vmem:[%s19 + $0x114] sm:$0xf]
    %v2173 = vld [vmem:[%s19 + $0x118] sm:$0xf]
    %v2174 = vld [vmem:[%s19 + $0x11c] sm:$0xf]
    %v2175 = vld [vmem:[%s19 + $0x120] sm:$0xf]
    %v2176 = vld [vmem:[%s19 + $0x124] sm:$0xf]
    %v2195 = vunpack.c.l.b16 %v2159
    %v2196 = vunpack.c.l.b16 %v2160
    %v2197 = vunpack.c.l.b16 %v2161
    %v2198 = vunpack.c.l.b16 %v2162
    %v2199 = vunpack.c.l.b16 %v2163
    %v2200 = vunpack.c.l.b16 %v2164
    %v2201 = vunpack.c.l.b16 %v2165
    %v2202 = vunpack.c.l.b16 %v2166
    %v2203 = vunpack.c.l.b16 %v2167
    %v2204 = vunpack.c.l.b16 %v2168
    %v2205 = vunpack.c.l.b16 %v2169
    %v2206 = vunpack.c.l.b16 %v2170
    %v2207 = vunpack.c.l.b16 %v2171
    %v2208 = vunpack.c.l.b16 %v2172
    %v2209 = vunpack.c.l.b16 %v2173
    %v2210 = vunpack.c.l.b16 %v2174
    %v2211 = vunpack.c.l.b16 %v2175
    %v2212 = vunpack.c.l.b16 %v2176
    %v2213 = vpack.c.b16 %v2196, %v2195
    %v2214 = vpack.c.b16 %v2198, %v2197
    %v2215 = vpack.c.b16 %v2200, %v2199
    %v2216 = vpack.c.b16 %v2202, %v2201
    %v2217 = vpack.c.b16 %v2204, %v2203
    %v2218 = vpack.c.b16 %v2206, %v2205
    %v2219 = vpack.c.b16 %v2208, %v2207
    %v2220 = vpack.c.b16 %v2210, %v2209
    %v2221 = vpack.c.b16 %v2212, %v2211
    %vm2231 = vcmask 130048
    %v2233 = vsel %vm2231, %v2158, 0
    %2235 = vmatpush.bf16.msra.mxu0 %v2220
    %2236 = vmatpush.bf16.msra.mxu0 %v2219
    %2237 = vmatpush.bf16.msra.mxu0 %v2218
    %2238 = vmatpush.bf16.msra.mxu0 %v2217
    %2239 = vmatpush.bf16.msra.mxu0 %v2216
    %2240 = vmatpush.bf16.msra.mxu0 %v2215
    %2241 = vmatpush.bf16.msra.mxu0 %v2214
    %2242 = vmatpush.bf16.msra.mxu0 %v2213
    %2243 = vmatmul.bf16.gmra.mxu0 %v2157
    %v2244 = vpop.f32.mrf.mxu0
    %v2245 = vadd.f32 0.0, %v2244
    %v2246 = vpop.f32.mrf.mxu0
    %2247 = vdwg.mxu0
    %2248 = vmatpush.bf16.msra.mxu0 0
    %2249 = vmatpush.bf16.msra.mxu0 0
    %2250 = vmatpush.bf16.msra.mxu0 0
    %2251 = vmatpush.bf16.msra.mxu0 0
    %2252 = vmatpush.bf16.msra.mxu0 0
    %2253 = vmatpush.bf16.msra.mxu0 0
    %2254 = vmatpush.bf16.msra.mxu0 0
    %2255 = vmatpush.bf16.msra.mxu0 %v2221
    %2256 = vmatmul.bf16.gmra.mxu0 %v2233
    %v2257 = vpop.f32.mrf.mxu0
    %v2258 = vadd.f32 %v2245, %v2257
    %v2259 = vpop.f32.mrf.mxu0
    %2260 = vdwg.mxu0
    %v2261 = vadd.f32 %v2100, %v2258
    %s2262 = sld [smem:[#allocation2 + $0x1]]
    %s2263 = sld [smem:[#allocation2 + $0x81]]
    %s2264 = sld [smem:[#allocation5 + $0x1]]
    %s2265 = sld [smem:[#allocation7 + $0x1]]
    %v2266 = vstv %s2262
    %v2267 = vmul.f32 %v2105, %v2266
    %v2268 = vstv %s2263
    %v2269 = vmul.f32 %v2109, %v2268
    %v2270 = vadd.f32 %v2267, %v2269
    %v2271 = vstv %s2264
    %v2272 = vmul.f32 %v2270, %v2271
    %v2273 = vstv %s2265
    %v2274 = vadd.f32 %v2272, %v2273
    %v2275 = vmax.f32 %v2274, 0.0
    %v2276 = vmul.f32 %v2119, %v2266
    %v2277 = vmul.f32 %v2122, %v2268
    %v2278 = vadd.f32 %v2276, %v2277
    %v2279 = vmul.f32 %v2278, %v2271
    %v2280 = vadd.f32 %v2279, %v2273
    %v2281 = vmax.f32 %v2280, 0.0
    %v2282 = vmax.f32 %v2275, %v2281
    %v2283 = vmul.f32 %v2130, %v2266
    %v2284 = vmul.f32 %v2133, %v2268
    %v2285 = vadd.f32 %v2283, %v2284
    %v2286 = vmul.f32 %v2285, %v2271
    %v2287 = vadd.f32 %v2286, %v2273
    %v2288 = vmax.f32 %v2287, 0.0
    %v2289 = vmax.f32 %v2282, %v2288
    %v2290 = vmul.f32 %v2141, %v2266
    %v2291 = vmul.f32 %v2144, %v2268
    %v2292 = vadd.f32 %v2290, %v2291
    %v2293 = vmul.f32 %v2292, %v2271
    %v2294 = vadd.f32 %v2293, %v2273
    %v2295 = vmax.f32 %v2294, 0.0
    %v2296 = vmax.f32 %v2289, %v2295
    %2298 = vst [vmem:[#allocation1] ss:$4 sm:$0xff] %v2296
    %v2299 = vld.sshfl [vmem:[#allocation1] sm:$0xff pattern:$0x73625140]
    %v2300 = vld.sshfl [vmem:[#allocation1 + $0x8] sm:$0xff pattern:$0x73625140]
    %v2303 = vpack.c.bf16 %v2299, %v2299
    %v2304 = vpack.c.bf16 %v2300, %v2300
    %v2305 = vld [vmem:[%s19 + $0x128] sm:$0xf]
    %v2306 = vld [vmem:[%s19 + $0x12c] sm:$0xf]
    %v2307 = vld [vmem:[%s19 + $0x130] sm:$0xf]
    %v2308 = vld [vmem:[%s19 + $0x134] sm:$0xf]
    %v2309 = vld [vmem:[%s19 + $0x138] sm:$0xf]
    %v2310 = vld [vmem:[%s19 + $0x13c] sm:$0xf]
    %v2311 = vld [vmem:[%s19 + $0x140] sm:$0xf]
    %v2312 = vld [vmem:[%s19 + $0x144] sm:$0xf]
    %v2313 = vld [vmem:[%s19 + $0x148] sm:$0xf]
    %v2314 = vld [vmem:[%s19 + $0x14c] sm:$0xf]
    %v2315 = vld [vmem:[%s19 + $0x150] sm:$0xf]
    %v2316 = vld [vmem:[%s19 + $0x154] sm:$0xf]
    %v2317 = vld [vmem:[%s19 + $0x158] sm:$0xf]
    %v2318 = vld [vmem:[%s19 + $0x15c] sm:$0xf]
    %v2319 = vld [vmem:[%s19 + $0x160] sm:$0xf]
    %v2320 = vld [vmem:[%s19 + $0x164] sm:$0xf]
    %v2321 = vld [vmem:[%s19 + $0x168] sm:$0xf]
    %v2322 = vld [vmem:[%s19 + $0x16c] sm:$0xf]
    %v2341 = vunpack.c.l.b16 %v2305
    %v2342 = vunpack.c.l.b16 %v2306
    %v2343 = vunpack.c.l.b16 %v2307
    %v2344 = vunpack.c.l.b16 %v2308
    %v2345 = vunpack.c.l.b16 %v2309
    %v2346 = vunpack.c.l.b16 %v2310
    %v2347 = vunpack.c.l.b16 %v2311
    %v2348 = vunpack.c.l.b16 %v2312
    %v2349 = vunpack.c.l.b16 %v2313
    %v2350 = vunpack.c.l.b16 %v2314
    %v2351 = vunpack.c.l.b16 %v2315
    %v2352 = vunpack.c.l.b16 %v2316
    %v2353 = vunpack.c.l.b16 %v2317
    %v2354 = vunpack.c.l.b16 %v2318
    %v2355 = vunpack.c.l.b16 %v2319
    %v2356 = vunpack.c.l.b16 %v2320
    %v2357 = vunpack.c.l.b16 %v2321
    %v2358 = vunpack.c.l.b16 %v2322
    %v2359 = vpack.c.b16 %v2342, %v2341
    %v2360 = vpack.c.b16 %v2344, %v2343
    %v2361 = vpack.c.b16 %v2346, %v2345
    %v2362 = vpack.c.b16 %v2348, %v2347
    %v2363 = vpack.c.b16 %v2350, %v2349
    %v2364 = vpack.c.b16 %v2352, %v2351
    %v2365 = vpack.c.b16 %v2354, %v2353
    %v2366 = vpack.c.b16 %v2356, %v2355
    %v2367 = vpack.c.b16 %v2358, %v2357
    %v2378 = vsel %vm2231, %v2304, 0
    %2380 = vmatpush.bf16.msra.mxu0 %v2366
    %2381 = vmatpush.bf16.msra.mxu0 %v2365
    %2382 = vmatpush.bf16.msra.mxu0 %v2364
    %2383 = vmatpush.bf16.msra.mxu0 %v2363
    %2384 = vmatpush.bf16.msra.mxu0 %v2362
    %2385 = vmatpush.bf16.msra.mxu0 %v2361
    %2386 = vmatpush.bf16.msra.mxu0 %v2360
    %2387 = vmatpush.bf16.msra.mxu0 %v2359
    %2388 = vmatmul.bf16.gmra.mxu0 %v2303
    %v2389 = vpop.f32.mrf.mxu0
    %v2390 = vadd.f32 0.0, %v2389
    %v2391 = vpop.f32.mrf.mxu0
    %2392 = vdwg.mxu0
    %2393 = vmatpush.bf16.msra.mxu0 0
    %2394 = vmatpush.bf16.msra.mxu0 0
    %2395 = vmatpush.bf16.msra.mxu0 0
    %2396 = vmatpush.bf16.msra.mxu0 0
    %2397 = vmatpush.bf16.msra.mxu0 0
    %2398 = vmatpush.bf16.msra.mxu0 0
    %2399 = vmatpush.bf16.msra.mxu0 0
    %2400 = vmatpush.bf16.msra.mxu0 %v2367
    %2401 = vmatmul.bf16.gmra.mxu0 %v2378
    %v2402 = vpop.f32.mrf.mxu0
    %v2403 = vadd.f32 %v2390, %v2402
    %v2404 = vpop.f32.mrf.mxu0
    %2405 = vdwg.mxu0
    %v2406 = vadd.f32 %v2261, %v2403
    %s2407 = sld [smem:[#allocation2 + $0x2]]
    %s2408 = sld [smem:[#allocation2 + $0x82]]
    %s2409 = sld [smem:[#allocation5 + $0x2]]
    %s2410 = sld [smem:[#allocation7 + $0x2]]
    %v2411 = vstv %s2407
    %v2412 = vmul.f32 %v2105, %v2411
    %v2413 = vstv %s2408
    %v2414 = vmul.f32 %v2109, %v2413
    %v2415 = vadd.f32 %v2412, %v2414
    %v2416 = vstv %s2409
    %v2417 = vmul.f32 %v2415, %v2416
    %v2418 = vstv %s2410
    %v2419 = vadd.f32 %v2417, %v2418
    %v2420 = vmax.f32 %v2419, 0.0
    %v2421 = vmul.f32 %v2119, %v2411
    %v2422 = vmul.f32 %v2122, %v2413
    %v2423 = vadd.f32 %v2421, %v2422
    %v2424 = vmul.f32 %v2423, %v2416
    %v2425 = vadd.f32 %v2424, %v2418
    %v2426 = vmax.f32 %v2425, 0.0
    %v2427 = vmax.f32 %v2420, %v2426
    %v2428 = vmul.f32 %v2130, %v2411
    %v2429 = vmul.f32 %v2133, %v2413
    %v2430 = vadd.f32 %v2428, %v2429
    %v2431 = vmul.f32 %v2430, %v2416
    %v2432 = vadd.f32 %v2431, %v2418
    %v2433 = vmax.f32 %v2432, 0.0
    %v2434 = vmax.f32 %v2427, %v2433
    %v2435 = vmul.f32 %v2141, %v2411
    %v2436 = vmul.f32 %v2144, %v2413
    %v2437 = vadd.f32 %v2435, %v2436
    %v2438 = vmul.f32 %v2437, %v2416
    %v2439 = vadd.f32 %v2438, %v2418
    %v2440 = vmax.f32 %v2439, 0.0
    %v2441 = vmax.f32 %v2434, %v2440
    %2443 = vst [vmem:[#allocation1] ss:$4 sm:$0xff] %v2441
    %v2444 = vld.sshfl [vmem:[#allocation1] sm:$0xff pattern:$0x73625140]
    %v2445 = vld.sshfl [vmem:[#allocation1 + $0x8] sm:$0xff pattern:$0x73625140]
    %v2448 = vpack.c.bf16 %v2444, %v2444
    %v2449 = vpack.c.bf16 %v2445, %v2445
    %v2450 = vld [vmem:[%s19 + $0x170] sm:$0xf]
    %v2451 = vld [vmem:[%s19 + $0x174] sm:$0xf]
    %v2452 = vld [vmem:[%s19 + $0x178] sm:$0xf]
    %v2453 = vld [vmem:[%s19 + $0x17c] sm:$0xf]
    %v2454 = vld [vmem:[%s19 + $0x180] sm:$0xf]
    %v2455 = vld [vmem:[%s19 + $0x184] sm:$0xf]
    %v2456 = vld [vmem:[%s19 + $0x188] sm:$0xf]
    %v2457 = vld [vmem:[%s19 + $0x18c] sm:$0xf]
    %v2458 = vld [vmem:[%s19 + $0x190] sm:$0xf]
    %v2459 = vld [vmem:[%s19 + $0x194] sm:$0xf]
    %v2460 = vld [vmem:[%s19 + $0x198] sm:$0xf]
    %v2461 = vld [vmem:[%s19 + $0x19c] sm:$0xf]
    %v2462 = vld [vmem:[%s19 + $0x1a0] sm:$0xf]
    %v2463 = vld [vmem:[%s19 + $0x1a4] sm:$0xf]
    %v2464 = vld [vmem:[%s19 + $0x1a8] sm:$0xf]
    %v2465 = vld [vmem:[%s19 + $0x1ac] sm:$0xf]
    %v2466 = vld [vmem:[%s19 + $0x1b0] sm:$0xf]
    %v2467 = vld [vmem:[%s19 + $0x1b4] sm:$0xf]
    %v2486 = vunpack.c.l.b16 %v2450
    %v2487 = vunpack.c.l.b16 %v2451
    %v2488 = vunpack.c.l.b16 %v2452
    %v2489 = vunpack.c.l.b16 %v2453
    %v2490 = vunpack.c.l.b16 %v2454
    %v2491 = vunpack.c.l.b16 %v2455
    %v2492 = vunpack.c.l.b16 %v2456
    %v2493 = vunpack.c.l.b16 %v2457
    %v2494 = vunpack.c.l.b16 %v2458
    %v2495 = vunpack.c.l.b16 %v2459
    %v2496 = vunpack.c.l.b16 %v2460
    %v2497 = vunpack.c.l.b16 %v2461
    %v2498 = vunpack.c.l.b16 %v2462
    %v2499 = vunpack.c.l.b16 %v2463
    %v2500 = vunpack.c.l.b16 %v2464
    %v2501 = vunpack.c.l.b16 %v2465
    %v2502 = vunpack.c.l.b16 %v2466
    %v2503 = vunpack.c.l.b16 %v2467
    %v2504 = vpack.c.b16 %v2487, %v2486
    %v2505 = vpack.c.b16 %v2489, %v2488
    %v2506 = vpack.c.b16 %v2491, %v2490
    %v2507 = vpack.c.b16 %v2493, %v2492
    %v2508 = vpack.c.b16 %v2495, %v2494
    %v2509 = vpack.c.b16 %v2497, %v2496
    %v2510 = vpack.c.b16 %v2499, %v2498
    %v2511 = vpack.c.b16 %v2501, %v2500
    %v2512 = vpack.c.b16 %v2503, %v2502
    %v2523 = vsel %vm2231, %v2449, 0
    %2525 = vmatpush.bf16.msra.mxu0 %v2511
    %2526 = vmatpush.bf16.msra.mxu0 %v2510
    %2527 = vmatpush.bf16.msra.mxu0 %v2509
    %2528 = vmatpush.bf16.msra.mxu0 %v2508
    %2529 = vmatpush.bf16.msra.mxu0 %v2507
    %2530 = vmatpush.bf16.msra.mxu0 %v2506
    %2531 = vmatpush.bf16.msra.mxu0 %v2505
    %2532 = vmatpush.bf16.msra.mxu0 %v2504
    %2533 = vmatmul.bf16.gmra.mxu0 %v2448
    %v2534 = vpop.f32.mrf.mxu0
    %v2535 = vadd.f32 0.0, %v2534
    %v2536 = vpop.f32.mrf.mxu0
    %2537 = vdwg.mxu0
    %2538 = vmatpush.bf16.msra.mxu0 0
    %2539 = vmatpush.bf16.msra.mxu0 0
    %2540 = vmatpush.bf16.msra.mxu0 0
    %2541 = vmatpush.bf16.msra.mxu0 0
    %2542 = vmatpush.bf16.msra.mxu0 0
    %2543 = vmatpush.bf16.msra.mxu0 0
    %2544 = vmatpush.bf16.msra.mxu0 0
    %2545 = vmatpush.bf16.msra.mxu0 %v2512
    %2546 = vmatmul.bf16.gmra.mxu0 %v2523
    %v2547 = vpop.f32.mrf.mxu0
    %v2548 = vadd.f32 %v2535, %v2547
    %v2549 = vpop.f32.mrf.mxu0
    %2550 = vdwg.mxu0
    %v2551 = vadd.f32 %v2406, %v2548
    %s2552 = sld [smem:[#allocation2 + $0x3]]
    %s2553 = sld [smem:[#allocation2 + $0x83]]
    %s2554 = sld [smem:[#allocation5 + $0x3]]
    %s2555 = sld [smem:[#allocation7 + $0x3]]
    %v2556 = vstv %s2552
    %v2557 = vmul.f32 %v2105, %v2556
    %v2558 = vstv %s2553
    %v2559 = vmul.f32 %v2109, %v2558
    %v2560 = vadd.f32 %v2557, %v2559
    %v2561 = vstv %s2554
    %v2562 = vmul.f32 %v2560, %v2561
    %v2563 = vstv %s2555
    %v2564 = vadd.f32 %v2562, %v2563
    %v2565 = vmax.f32 %v2564, 0.0
    %v2566 = vmul.f32 %v2119, %v2556
    %v2567 = vmul.f32 %v2122, %v2558
    %v2568 = vadd.f32 %v2566, %v2567
    %v2569 = vmul.f32 %v2568, %v2561
    %v2570 = vadd.f32 %v2569, %v2563
    %v2571 = vmax.f32 %v2570, 0.0
    %v2572 = vmax.f32 %v2565, %v2571
    %v2573 = vmul.f32 %v2130, %v2556
    %v2574 = vmul.f32 %v2133, %v2558
    %v2575 = vadd.f32 %v2573, %v2574
    %v2576 = vmul.f32 %v2575, %v2561
    %v2577 = vadd.f32 %v2576, %v2563
    %v2578 = vmax.f32 %v2577, 0.0
    %v2579 = vmax.f32 %v2572, %v2578
    %v2580 = vmul.f32 %v2141, %v2556
    %v2581 = vmul.f32 %v2144, %v2558
    %v2582 = vadd.f32 %v2580, %v2581
    %v2583 = vmul.f32 %v2582, %v2561
    %v2584 = vadd.f32 %v2583, %v2563
    %v2585 = vmax.f32 %v2584, 0.0
    %v2586 = vmax.f32 %v2579, %v2585
    %2588 = vst [vmem:[#allocation1] ss:$4 sm:$0xff] %v2586
    %v2589 = vld.sshfl [vmem:[#allocation1] sm:$0xff pattern:$0x73625140]
    %v2590 = vld.sshfl [vmem:[#allocation1 + $0x8] sm:$0xff pattern:$0x73625140]
    %v2593 = vpack.c.bf16 %v2589, %v2589
    %v2594 = vpack.c.bf16 %v2590, %v2590
    %v2595 = vld [vmem:[%s19 + $0x1b8] sm:$0xf]
    %v2596 = vld [vmem:[%s19 + $0x1bc] sm:$0xf]
    %v2597 = vld [vmem:[%s19 + $0x1c0] sm:$0xf]
    %v2598 = vld [vmem:[%s19 + $0x1c4] sm:$0xf]
    %v2599 = vld [vmem:[%s19 + $0x1c8] sm:$0xf]
    %v2600 = vld [vmem:[%s19 + $0x1cc] sm:$0xf]
    %v2601 = vld [vmem:[%s19 + $0x1d0] sm:$0xf]
    %v2602 = vld [vmem:[%s19 + $0x1d4] sm:$0xf]
    %v2603 = vld [vmem:[%s19 + $0x1d8] sm:$0xf]
    %v2604 = vld [vmem:[%s19 + $0x1dc] sm:$0xf]
    %v2605 = vld [vmem:[%s19 + $0x1e0] sm:$0xf]
    %v2606 = vld [vmem:[%s19 + $0x1e4] sm:$0xf]
    %v2607 = vld [vmem:[%s19 + $0x1e8] sm:$0xf]
    %v2608 = vld [vmem:[%s19 + $0x1ec] sm:$0xf]
    %v2609 = vld [vmem:[%s19 + $0x1f0] sm:$0xf]
    %v2610 = vld [vmem:[%s19 + $0x1f4] sm:$0xf]
    %v2611 = vld [vmem:[%s19 + $0x1f8] sm:$0xf]
    %v2612 = vld [vmem:[%s19 + $0x1fc] sm:$0xf]
    %v2631 = vunpack.c.l.b16 %v2595
    %v2632 = vunpack.c.l.b16 %v2596
    %v2633 = vunpack.c.l.b16 %v2597
    %v2634 = vunpack.c.l.b16 %v2598
    %v2635 = vunpack.c.l.b16 %v2599
    %v2636 = vunpack.c.l.b16 %v2600
    %v2637 = vunpack.c.l.b16 %v2601
    %v2638 = vunpack.c.l.b16 %v2602
    %v2639 = vunpack.c.l.b16 %v2603
    %v2640 = vunpack.c.l.b16 %v2604
    %v2641 = vunpack.c.l.b16 %v2605
    %v2642 = vunpack.c.l.b16 %v2606
    %v2643 = vunpack.c.l.b16 %v2607
    %v2644 = vunpack.c.l.b16 %v2608
    %v2645 = vunpack.c.l.b16 %v2609
    %v2646 = vunpack.c.l.b16 %v2610
    %v2647 = vunpack.c.l.b16 %v2611
    %v2648 = vunpack.c.l.b16 %v2612
    %v2649 = vpack.c.b16 %v2632, %v2631
    %v2650 = vpack.c.b16 %v2634, %v2633
    %v2651 = vpack.c.b16 %v2636, %v2635
    %v2652 = vpack.c.b16 %v2638, %v2637
    %v2653 = vpack.c.b16 %v2640, %v2639
    %v2654 = vpack.c.b16 %v2642, %v2641
    %v2655 = vpack.c.b16 %v2644, %v2643
    %v2656 = vpack.c.b16 %v2646, %v2645
    %v2657 = vpack.c.b16 %v2648, %v2647
    %v2668 = vsel %vm2231, %v2594, 0
    %2670 = vmatpush.bf16.msra.mxu0 %v2656
    %2671 = vmatpush.bf16.msra.mxu0 %v2655
    %2672 = vmatpush.bf16.msra.mxu0 %v2654
    %2673 = vmatpush.bf16.msra.mxu0 %v2653
    %2674 = vmatpush.bf16.msra.mxu0 %v2652
    %2675 = vmatpush.bf16.msra.mxu0 %v2651
    %2676 = vmatpush.bf16.msra.mxu0 %v2650
    %2677 = vmatpush.bf16.msra.mxu0 %v2649
    %2678 = vmatmul.bf16.gmra.mxu0 %v2593
    %v2679 = vpop.f32.mrf.mxu0
    %v2680 = vadd.f32 0.0, %v2679
    %v2681 = vpop.f32.mrf.mxu0
    %2682 = vdwg.mxu0
    %2683 = vmatpush.bf16.msra.mxu0 0
    %2684 = vmatpush.bf16.msra.mxu0 0
    %2685 = vmatpush.bf16.msra.mxu0 0
    %2686 = vmatpush.bf16.msra.mxu0 0
    %2687 = vmatpush.bf16.msra.mxu0 0
    %2688 = vmatpush.bf16.msra.mxu0 0
    %2689 = vmatpush.bf16.msra.mxu0 0
    %2690 = vmatpush.bf16.msra.mxu0 %v2657
    %2691 = vmatmul.bf16.gmra.mxu0 %v2668
    %v2692 = vpop.f32.mrf.mxu0
    %v2693 = vadd.f32 %v2680, %v2692
    %v2694 = vpop.f32.mrf.mxu0
    %2695 = vdwg.mxu0
    %v2696 = vadd.f32 %v2551, %v2693
    %s2697 = sld [smem:[#allocation2 + $0x4]]
    %s2698 = sld [smem:[#allocation2 + $0x84]]
    %s2699 = sld [smem:[#allocation5 + $0x4]]
    %s2700 = sld [smem:[#allocation7 + $0x4]]
    %v2701 = vstv %s2697
    %v2702 = vmul.f32 %v2105, %v2701
    %v2703 = vstv %s2698
    %v2704 = vmul.f32 %v2109, %v2703
    %v2705 = vadd.f32 %v2702, %v2704
    %v2706 = vstv %s2699
    %v2707 = vmul.f32 %v2705, %v2706
    %v2708 = vstv %s2700
    %v2709 = vadd.f32 %v2707, %v2708
    %v2710 = vmax.f32 %v2709, 0.0
    %v2711 = vmul.f32 %v2119, %v2701
    %v2712 = vmul.f32 %v2122, %v2703
    %v2713 = vadd.f32 %v2711, %v2712
    %v2714 = vmul.f32 %v2713, %v2706
    %v2715 = vadd.f32 %v2714, %v2708
    %v2716 = vmax.f32 %v2715, 0.0
    %v2717 = vmax.f32 %v2710, %v2716
    %v2718 = vmul.f32 %v2130, %v2701
    %v2719 = vmul.f32 %v2133, %v2703
    %v2720 = vadd.f32 %v2718, %v2719
    %v2721 = vmul.f32 %v2720, %v2706
    %v2722 = vadd.f32 %v2721, %v2708
    %v2723 = vmax.f32 %v2722, 0.0
    %v2724 = vmax.f32 %v2717, %v2723
    %v2725 = vmul.f32 %v2141, %v2701
    %v2726 = vmul.f32 %v2144, %v2703
    %v2727 = vadd.f32 %v2725, %v2726
    %v2728 = vmul.f32 %v2727, %v2706
    %v2729 = vadd.f32 %v2728, %v2708
    %v2730 = vmax.f32 %v2729, 0.0
    %v2731 = vmax.f32 %v2724, %v2730
    %2733 = vst [vmem:[#allocation1] ss:$4 sm:$0xff] %v2731
    %v2734 = vld.sshfl [vmem:[#allocation1] sm:$0xff pattern:$0x73625140]
    %v2735 = vld.sshfl [vmem:[#allocation1 + $0x8] sm:$0xff pattern:$0x73625140]
    %v2738 = vpack.c.bf16 %v2734, %v2734
    %v2739 = vpack.c.bf16 %v2735, %v2735
    %v2740 = vld [vmem:[%s19 + $0x200] sm:$0xf]
    %v2741 = vld [vmem:[%s19 + $0x204] sm:$0xf]
    %v2742 = vld [vmem:[%s19 + $0x208] sm:$0xf]
    %v2743 = vld [vmem:[%s19 + $0x20c] sm:$0xf]
    %v2744 = vld [vmem:[%s19 + $0x210] sm:$0xf]
    %v2745 = vld [vmem:[%s19 + $0x214] sm:$0xf]
    %v2746 = vld [vmem:[%s19 + $0x218] sm:$0xf]
    %v2747 = vld [vmem:[%s19 + $0x21c] sm:$0xf]
    %v2748 = vld [vmem:[%s19 + $0x220] sm:$0xf]
    %v2749 = vld [vmem:[%s19 + $0x224] sm:$0xf]
    %v2750 = vld [vmem:[%s19 + $0x228] sm:$0xf]
    %v2751 = vld [vmem:[%s19 + $0x22c] sm:$0xf]
    %v2752 = vld [vmem:[%s19 + $0x230] sm:$0xf]
    %v2753 = vld [vmem:[%s19 + $0x234] sm:$0xf]
    %v2754 = vld [vmem:[%s19 + $0x238] sm:$0xf]
    %v2755 = vld [vmem:[%s19 + $0x23c] sm:$0xf]
    %v2756 = vld [vmem:[%s19 + $0x240] sm:$0xf]
    %v2757 = vld [vmem:[%s19 + $0x244] sm:$0xf]
    %v2776 = vunpack.c.l.b16 %v2740
    %v2777 = vunpack.c.l.b16 %v2741
    %v2778 = vunpack.c.l.b16 %v2742
    %v2779 = vunpack.c.l.b16 %v2743
    %v2780 = vunpack.c.l.b16 %v2744
    %v2781 = vunpack.c.l.b16 %v2745
    %v2782 = vunpack.c.l.b16 %v2746
    %v2783 = vunpack.c.l.b16 %v2747
    %v2784 = vunpack.c.l.b16 %v2748
    %v2785 = vunpack.c.l.b16 %v2749
    %v2786 = vunpack.c.l.b16 %v2750
    %v2787 = vunpack.c.l.b16 %v2751
    %v2788 = vunpack.c.l.b16 %v2752
    %v2789 = vunpack.c.l.b16 %v2753
    %v2790 = vunpack.c.l.b16 %v2754
    %v2791 = vunpack.c.l.b16 %v2755
    %v2792 = vunpack.c.l.b16 %v2756
    %v2793 = vunpack.c.l.b16 %v2757
    %v2794 = vpack.c.b16 %v2777, %v2776
    %v2795 = vpack.c.b16 %v2779, %v2778
    %v2796 = vpack.c.b16 %v2781, %v2780
    %v2797 = vpack.c.b16 %v2783, %v2782
    %v2798 = vpack.c.b16 %v2785, %v2784
    %v2799 = vpack.c.b16 %v2787, %v2786
    %v2800 = vpack.c.b16 %v2789, %v2788
    %v2801 = vpack.c.b16 %v2791, %v2790
    %v2802 = vpack.c.b16 %v2793, %v2792
    %v2813 = vsel %vm2231, %v2739, 0
    %2815 = vmatpush.bf16.msra.mxu0 %v2801
    %2816 = vmatpush.bf16.msra.mxu0 %v2800
    %2817 = vmatpush.bf16.msra.mxu0 %v2799
    %2818 = vmatpush.bf16.msra.mxu0 %v2798
    %2819 = vmatpush.bf16.msra.mxu0 %v2797
    %2820 = vmatpush.bf16.msra.mxu0 %v2796
    %2821 = vmatpush.bf16.msra.mxu0 %v2795
    %2822 = vmatpush.bf16.msra.mxu0 %v2794
    %2823 = vmatmul.bf16.gmra.mxu0 %v2738
    %v2824 = vpop.f32.mrf.mxu0
    %v2825 = vadd.f32 0.0, %v2824
    %v2826 = vpop.f32.mrf.mxu0
    %2827 = vdwg.mxu0
    %2828 = vmatpush.bf16.msra.mxu0 0
    %2829 = vmatpush.bf16.msra.mxu0 0
    %2830 = vmatpush.bf16.msra.mxu0 0
    %2831 = vmatpush.bf16.msra.mxu0 0
    %2832 = vmatpush.bf16.msra.mxu0 0
    %2833 = vmatpush.bf16.msra.mxu0 0
    %2834 = vmatpush.bf16.msra.mxu0 0
    %2835 = vmatpush.bf16.msra.mxu0 %v2802
    %2836 = vmatmul.bf16.gmra.mxu0 %v2813
    %v2837 = vpop.f32.mrf.mxu0
    %v2838 = vadd.f32 %v2825, %v2837
    %v2839 = vpop.f32.mrf.mxu0
    %2840 = vdwg.mxu0
    %v2841 = vadd.f32 %v2696, %v2838
    %s2842 = sld [smem:[#allocation2 + $0x5]]
    %s2843 = sld [smem:[#allocation2 + $0x85]]
    %s2844 = sld [smem:[#allocation5 + $0x5]]
    %s2845 = sld [smem:[#allocation7 + $0x5]]
    %v2846 = vstv %s2842
    %v2847 = vmul.f32 %v2105, %v2846
    %v2848 = vstv %s2843
    %v2849 = vmul.f32 %v2109, %v2848
    %v2850 = vadd.f32 %v2847, %v2849
    %v2851 = vstv %s2844
    %v2852 = vmul.f32 %v2850, %v2851
    %v2853 = vstv %s2845
    %v2854 = vadd.f32 %v2852, %v2853
    %v2855 = vmax.f32 %v2854, 0.0
    %v2856 = vmul.f32 %v2119, %v2846
    %v2857 = vmul.f32 %v2122, %v2848
    %v2858 = vadd.f32 %v2856, %v2857
    %v2859 = vmul.f32 %v2858, %v2851
    %v2860 = vadd.f32 %v2859, %v2853
    %v2861 = vmax.f32 %v2860, 0.0
    %v2862 = vmax.f32 %v2855, %v2861
    %v2863 = vmul.f32 %v2130, %v2846
    %v2864 = vmul.f32 %v2133, %v2848
    %v2865 = vadd.f32 %v2863, %v2864
    %v2866 = vmul.f32 %v2865, %v2851
    %v2867 = vadd.f32 %v2866, %v2853
    %v2868 = vmax.f32 %v2867, 0.0
    %v2869 = vmax.f32 %v2862, %v2868
    %v2870 = vmul.f32 %v2141, %v2846
    %v2871 = vmul.f32 %v2144, %v2848
    %v2872 = vadd.f32 %v2870, %v2871
    %v2873 = vmul.f32 %v2872, %v2851
    %v2874 = vadd.f32 %v2873, %v2853
    %v2875 = vmax.f32 %v2874, 0.0
    %v2876 = vmax.f32 %v2869, %v2875
    %2878 = vst [vmem:[#allocation1] ss:$4 sm:$0xff] %v2876
    %v2879 = vld.sshfl [vmem:[#allocation1] sm:$0xff pattern:$0x73625140]
    %v2880 = vld.sshfl [vmem:[#allocation1 + $0x8] sm:$0xff pattern:$0x73625140]
    %v2883 = vpack.c.bf16 %v2879, %v2879
    %v2884 = vpack.c.bf16 %v2880, %v2880
    %v2885 = vld [vmem:[%s19 + $0x248] sm:$0xf]
    %v2886 = vld [vmem:[%s19 + $0x24c] sm:$0xf]
    %v2887 = vld [vmem:[%s19 + $0x250] sm:$0xf]
    %v2888 = vld [vmem:[%s19 + $0x254] sm:$0xf]
    %v2889 = vld [vmem:[%s19 + $0x258] sm:$0xf]
    %v2890 = vld [vmem:[%s19 + $0x25c] sm:$0xf]
    %v2891 = vld [vmem:[%s19 + $0x260] sm:$0xf]
    %v2892 = vld [vmem:[%s19 + $0x264] sm:$0xf]
    %v2893 = vld [vmem:[%s19 + $0x268] sm:$0xf]
    %v2894 = vld [vmem:[%s19 + $0x26c] sm:$0xf]
    %v2895 = vld [vmem:[%s19 + $0x270] sm:$0xf]
    %v2896 = vld [vmem:[%s19 + $0x274] sm:$0xf]
    %v2897 = vld [vmem:[%s19 + $0x278] sm:$0xf]
    %v2898 = vld [vmem:[%s19 + $0x27c] sm:$0xf]
    %v2899 = vld [vmem:[%s19 + $0x280] sm:$0xf]
    %v2900 = vld [vmem:[%s19 + $0x284] sm:$0xf]
    %v2901 = vld [vmem:[%s19 + $0x288] sm:$0xf]
    %v2902 = vld [vmem:[%s19 + $0x28c] sm:$0xf]
    %v2921 = vunpack.c.l.b16 %v2885
    %v2922 = vunpack.c.l.b16 %v2886
    %v2923 = vunpack.c.l.b16 %v2887
    %v2924 = vunpack.c.l.b16 %v2888
    %v2925 = vunpack.c.l.b16 %v2889
    %v2926 = vunpack.c.l.b16 %v2890
    %v2927 = vunpack.c.l.b16 %v2891
    %v2928 = vunpack.c.l.b16 %v2892
    %v2929 = vunpack.c.l.b16 %v2893
    %v2930 = vunpack.c.l.b16 %v2894
    %v2931 = vunpack.c.l.b16 %v2895
    %v2932 = vunpack.c.l.b16 %v2896
    %v2933 = vunpack.c.l.b16 %v2897
    %v2934 = vunpack.c.l.b16 %v2898
    %v2935 = vunpack.c.l.b16 %v2899
    %v2936 = vunpack.c.l.b16 %v2900
    %v2937 = vunpack.c.l.b16 %v2901
    %v2938 = vunpack.c.l.b16 %v2902
    %v2939 = vpack.c.b16 %v2922, %v2921
    %v2940 = vpack.c.b16 %v2924, %v2923
    %v2941 = vpack.c.b16 %v2926, %v2925
    %v2942 = vpack.c.b16 %v2928, %v2927
    %v2943 = vpack.c.b16 %v2930, %v2929
    %v2944 = vpack.c.b16 %v2932, %v2931
    %v2945 = vpack.c.b16 %v2934, %v2933
    %v2946 = vpack.c.b16 %v2936, %v2935
    %v2947 = vpack.c.b16 %v2938, %v2937
    %v2958 = vsel %vm2231, %v2884, 0
    %2960 = vmatpush.bf16.msra.mxu0 %v2946
    %2961 = vmatpush.bf16.msra.mxu0 %v2945
    %2962 = vmatpush.bf16.msra.mxu0 %v2944
    %2963 = vmatpush.bf16.msra.mxu0 %v2943
    %2964 = vmatpush.bf16.msra.mxu0 %v2942
    %2965 = vmatpush.bf16.msra.mxu0 %v2941
    %2966 = vmatpush.bf16.msra.mxu0 %v2940
    %2967 = vmatpush.bf16.msra.mxu0 %v2939
    %2968 = vmatmul.bf16.gmra.mxu0 %v2883
    %v2969 = vpop.f32.mrf.mxu0
    %v2970 = vadd.f32 0.0, %v2969
    %v2971 = vpop.f32.mrf.mxu0
    %2972 = vdwg.mxu0
    %2973 = vmatpush.bf16.msra.mxu0 0
    %2974 = vmatpush.bf16.msra.mxu0 0
    %2975 = vmatpush.bf16.msra.mxu0 0
    %2976 = vmatpush.bf16.msra.mxu0 0
    %2977 = vmatpush.bf16.msra.mxu0 0
    %2978 = vmatpush.bf16.msra.mxu0 0
    %2979 = vmatpush.bf16.msra.mxu0 0
    %2980 = vmatpush.bf16.msra.mxu0 %v2947
    %2981 = vmatmul.bf16.gmra.mxu0 %v2958
    %v2982 = vpop.f32.mrf.mxu0
    %v2983 = vadd.f32 %v2970, %v2982
    %v2984 = vpop.f32.mrf.mxu0
    %2985 = vdwg.mxu0
    %v2986 = vadd.f32 %v2841, %v2983
    %s2987 = sld [smem:[#allocation2 + $0x6]]
    %s2988 = sld [smem:[#allocation2 + $0x86]]
    %s2989 = sld [smem:[#allocation5 + $0x6]]
    %s2990 = sld [smem:[#allocation7 + $0x6]]
    %v2991 = vstv %s2987
    %v2992 = vmul.f32 %v2105, %v2991
    %v2993 = vstv %s2988
    %v2994 = vmul.f32 %v2109, %v2993
    %v2995 = vadd.f32 %v2992, %v2994
    %v2996 = vstv %s2989
    %v2997 = vmul.f32 %v2995, %v2996
    %v2998 = vstv %s2990
    %v2999 = vadd.f32 %v2997, %v2998
    %v3000 = vmax.f32 %v2999, 0.0
    %v3001 = vmul.f32 %v2119, %v2991
    %v3002 = vmul.f32 %v2122, %v2993
    %v3003 = vadd.f32 %v3001, %v3002
    %v3004 = vmul.f32 %v3003, %v2996
    %v3005 = vadd.f32 %v3004, %v2998
    %v3006 = vmax.f32 %v3005, 0.0
    %v3007 = vmax.f32 %v3000, %v3006
    %v3008 = vmul.f32 %v2130, %v2991
    %v3009 = vmul.f32 %v2133, %v2993
    %v3010 = vadd.f32 %v3008, %v3009
    %v3011 = vmul.f32 %v3010, %v2996
    %v3012 = vadd.f32 %v3011, %v2998
    %v3013 = vmax.f32 %v3012, 0.0
    %v3014 = vmax.f32 %v3007, %v3013
    %v3015 = vmul.f32 %v2141, %v2991
    %v3016 = vmul.f32 %v2144, %v2993
    %v3017 = vadd.f32 %v3015, %v3016
    %v3018 = vmul.f32 %v3017, %v2996
    %v3019 = vadd.f32 %v3018, %v2998
    %v3020 = vmax.f32 %v3019, 0.0
    %v3021 = vmax.f32 %v3014, %v3020
    %3023 = vst [vmem:[#allocation1] ss:$4 sm:$0xff] %v3021
    %v3024 = vld.sshfl [vmem:[#allocation1] sm:$0xff pattern:$0x73625140]
    %v3025 = vld.sshfl [vmem:[#allocation1 + $0x8] sm:$0xff pattern:$0x73625140]
    %v3028 = vpack.c.bf16 %v3024, %v3024
    %v3029 = vpack.c.bf16 %v3025, %v3025
    %v3030 = vld [vmem:[%s19 + $0x290] sm:$0xf]
    %v3031 = vld [vmem:[%s19 + $0x294] sm:$0xf]
    %v3032 = vld [vmem:[%s19 + $0x298] sm:$0xf]
    %v3033 = vld [vmem:[%s19 + $0x29c] sm:$0xf]
    %v3034 = vld [vmem:[%s19 + $0x2a0] sm:$0xf]
    %v3035 = vld [vmem:[%s19 + $0x2a4] sm:$0xf]
    %v3036 = vld [vmem:[%s19 + $0x2a8] sm:$0xf]
    %v3037 = vld [vmem:[%s19 + $0x2ac] sm:$0xf]
    %v3038 = vld [vmem:[%s19 + $0x2b0] sm:$0xf]
    %v3039 = vld [vmem:[%s19 + $0x2b4] sm:$0xf]
    %v3040 = vld [vmem:[%s19 + $0x2b8] sm:$0xf]
    %v3041 = vld [vmem:[%s19 + $0x2bc] sm:$0xf]
    %v3042 = vld [vmem:[%s19 + $0x2c0] sm:$0xf]
    %v3043 = vld [vmem:[%s19 + $0x2c4] sm:$0xf]
    %v3044 = vld [vmem:[%s19 + $0x2c8] sm:$0xf]
    %v3045 = vld [vmem:[%s19 + $0x2cc] sm:$0xf]
    %v3046 = vld [vmem:[%s19 + $0x2d0] sm:$0xf]
    %v3047 = vld [vmem:[%s19 + $0x2d4] sm:$0xf]
    %v3066 = vunpack.c.l.b16 %v3030
    %v3067 = vunpack.c.l.b16 %v3031
    %v3068 = vunpack.c.l.b16 %v3032
    %v3069 = vunpack.c.l.b16 %v3033
    %v3070 = vunpack.c.l.b16 %v3034
    %v3071 = vunpack.c.l.b16 %v3035
    %v3072 = vunpack.c.l.b16 %v3036
    %v3073 = vunpack.c.l.b16 %v3037
    %v3074 = vunpack.c.l.b16 %v3038
    %v3075 = vunpack.c.l.b16 %v3039
    %v3076 = vunpack.c.l.b16 %v3040
    %v3077 = vunpack.c.l.b16 %v3041
    %v3078 = vunpack.c.l.b16 %v3042
    %v3079 = vunpack.c.l.b16 %v3043
    %v3080 = vunpack.c.l.b16 %v3044
    %v3081 = vunpack.c.l.b16 %v3045
    %v3082 = vunpack.c.l.b16 %v3046
    %v3083 = vunpack.c.l.b16 %v3047
    %v3084 = vpack.c.b16 %v3067, %v3066
    %v3085 = vpack.c.b16 %v3069, %v3068
    %v3086 = vpack.c.b16 %v3071, %v3070
    %v3087 = vpack.c.b16 %v3073, %v3072
    %v3088 = vpack.c.b16 %v3075, %v3074
    %v3089 = vpack.c.b16 %v3077, %v3076
    %v3090 = vpack.c.b16 %v3079, %v3078
    %v3091 = vpack.c.b16 %v3081, %v3080
    %v3092 = vpack.c.b16 %v3083, %v3082
    %v3103 = vsel %vm2231, %v3029, 0
    %3105 = vmatpush.bf16.msra.mxu0 %v3091
    %3106 = vmatpush.bf16.msra.mxu0 %v3090
    %3107 = vmatpush.bf16.msra.mxu0 %v3089
    %3108 = vmatpush.bf16.msra.mxu0 %v3088
    %3109 = vmatpush.bf16.msra.mxu0 %v3087
    %3110 = vmatpush.bf16.msra.mxu0 %v3086
    %3111 = vmatpush.bf16.msra.mxu0 %v3085
    %3112 = vmatpush.bf16.msra.mxu0 %v3084
    %3113 = vmatmul.bf16.gmra.mxu0 %v3028
    %v3114 = vpop.f32.mrf.mxu0
    %v3115 = vadd.f32 0.0, %v3114
    %v3116 = vpop.f32.mrf.mxu0
    %3117 = vdwg.mxu0
    %3118 = vmatpush.bf16.msra.mxu0 0
    %3119 = vmatpush.bf16.msra.mxu0 0
    %3120 = vmatpush.bf16.msra.mxu0 0
    %3121 = vmatpush.bf16.msra.mxu0 0
    %3122 = vmatpush.bf16.msra.mxu0 0
    %3123 = vmatpush.bf16.msra.mxu0 0
    %3124 = vmatpush.bf16.msra.mxu0 0
    %3125 = vmatpush.bf16.msra.mxu0 %v3092
    %3126 = vmatmul.bf16.gmra.mxu0 %v3103
    %v3127 = vpop.f32.mrf.mxu0
    %v3128 = vadd.f32 %v3115, %v3127
    %v3129 = vpop.f32.mrf.mxu0
    %3130 = vdwg.mxu0
    %v3131 = vadd.f32 %v2986, %v3128
    %s3132 = sld [smem:[#allocation2 + $0x7]]
    %s3133 = sld [smem:[#allocation2 + $0x87]]
    %s3134 = sld [smem:[#allocation5 + $0x7]]
    %s3135 = sld [smem:[#allocation7 + $0x7]]
    %v3136 = vstv %s3132
    %v3137 = vmul.f32 %v2105, %v3136
    %v3138 = vstv %s3133
    %v3139 = vmul.f32 %v2109, %v3138
    %v3140 = vadd.f32 %v3137, %v3139
    %v3141 = vstv %s3134
    %v3142 = vmul.f32 %v3140, %v3141
    %v3143 = vstv %s3135
    %v3144 = vadd.f32 %v3142, %v3143
    %v3145 = vmax.f32 %v3144, 0.0
    %v3146 = vmul.f32 %v2119, %v3136
    %v3147 = vmul.f32 %v2122, %v3138
    %v3148 = vadd.f32 %v3146, %v3147
    %v3149 = vmul.f32 %v3148, %v3141
    %v3150 = vadd.f32 %v3149, %v3143
    %v3151 = vmax.f32 %v3150, 0.0
    %v3152 = vmax.f32 %v3145, %v3151
    %v3153 = vmul.f32 %v2130, %v3136
    %v3154 = vmul.f32 %v2133, %v3138
    %v3155 = vadd.f32 %v3153, %v3154
    %v3156 = vmul.f32 %v3155, %v3141
    %v3157 = vadd.f32 %v3156, %v3143
    %v3158 = vmax.f32 %v3157, 0.0
    %v3159 = vmax.f32 %v3152, %v3158
    %v3160 = vmul.f32 %v2141, %v3136
    %v3161 = vmul.f32 %v2144, %v3138
    %v3162 = vadd.f32 %v3160, %v3161
    %v3163 = vmul.f32 %v3162, %v3141
    %v3164 = vadd.f32 %v3163, %v3143
    %v3165 = vmax.f32 %v3164, 0.0
    %v3166 = vmax.f32 %v3159, %v3165
    %3168 = vst [vmem:[#allocation1] ss:$4 sm:$0xff] %v3166
    %v3169 = vld.sshfl [vmem:[#allocation1] sm:$0xff pattern:$0x73625140]
    %v3170 = vld.sshfl [vmem:[#allocation1 + $0x8] sm:$0xff pattern:$0x73625140]
    %v3173 = vpack.c.bf16 %v3169, %v3169
    %v3174 = vpack.c.bf16 %v3170, %v3170
    %v3175 = vld [vmem:[%s19 + $0x2d8] sm:$0xf]
    %v3176 = vld [vmem:[%s19 + $0x2dc] sm:$0xf]
    %v3177 = vld [vmem:[%s19 + $0x2e0] sm:$0xf]
    %v3178 = vld [vmem:[%s19 + $0x2e4] sm:$0xf]
    %v3179 = vld [vmem:[%s19 + $0x2e8] sm:$0xf]
    %v3180 = vld [vmem:[%s19 + $0x2ec] sm:$0xf]
    %v3181 = vld [vmem:[%s19 + $0x2f0] sm:$0xf]
    %v3182 = vld [vmem:[%s19 + $0x2f4] sm:$0xf]
    %v3183 = vld [vmem:[%s19 + $0x2f8] sm:$0xf]
    %v3184 = vld [vmem:[%s19 + $0x2fc] sm:$0xf]
    %v3185 = vld [vmem:[%s19 + $0x300] sm:$0xf]
    %v3186 = vld [vmem:[%s19 + $0x304] sm:$0xf]
    %v3187 = vld [vmem:[%s19 + $0x308] sm:$0xf]
    %v3188 = vld [vmem:[%s19 + $0x30c] sm:$0xf]
    %v3189 = vld [vmem:[%s19 + $0x310] sm:$0xf]
    %v3190 = vld [vmem:[%s19 + $0x314] sm:$0xf]
    %v3191 = vld [vmem:[%s19 + $0x318] sm:$0xf]
    %v3192 = vld [vmem:[%s19 + $0x31c] sm:$0xf]
    %v3211 = vunpack.c.l.b16 %v3175
    %v3212 = vunpack.c.l.b16 %v3176
    %v3213 = vunpack.c.l.b16 %v3177
    %v3214 = vunpack.c.l.b16 %v3178
    %v3215 = vunpack.c.l.b16 %v3179
    %v3216 = vunpack.c.l.b16 %v3180
    %v3217 = vunpack.c.l.b16 %v3181
    %v3218 = vunpack.c.l.b16 %v3182
    %v3219 = vunpack.c.l.b16 %v3183
    %v3220 = vunpack.c.l.b16 %v3184
    %v3221 = vunpack.c.l.b16 %v3185
    %v3222 = vunpack.c.l.b16 %v3186
    %v3223 = vunpack.c.l.b16 %v3187
    %v3224 = vunpack.c.l.b16 %v3188
    %v3225 = vunpack.c.l.b16 %v3189
    %v3226 = vunpack.c.l.b16 %v3190
    %v3227 = vunpack.c.l.b16 %v3191
    %v3228 = vunpack.c.l.b16 %v3192
    %v3229 = vpack.c.b16 %v3212, %v3211
    %v3230 = vpack.c.b16 %v3214, %v3213
    %v3231 = vpack.c.b16 %v3216, %v3215
    %v3232 = vpack.c.b16 %v3218, %v3217
    %v3233 = vpack.c.b16 %v3220, %v3219
    %v3234 = vpack.c.b16 %v3222, %v3221
    %v3235 = vpack.c.b16 %v3224, %v3223
    %v3236 = vpack.c.b16 %v3226, %v3225
    %v3237 = vpack.c.b16 %v3228, %v3227
    %v3248 = vsel %vm2231, %v3174, 0
    %3250 = vmatpush.bf16.msra.mxu0 %v3236
    %3251 = vmatpush.bf16.msra.mxu0 %v3235
    %3252 = vmatpush.bf16.msra.mxu0 %v3234
    %3253 = vmatpush.bf16.msra.mxu0 %v3233
    %3254 = vmatpush.bf16.msra.mxu0 %v3232
    %3255 = vmatpush.bf16.msra.mxu0 %v3231
    %3256 = vmatpush.bf16.msra.mxu0 %v3230
    %3257 = vmatpush.bf16.msra.mxu0 %v3229
    %3258 = vmatmul.bf16.gmra.mxu0 %v3173
    %v3259 = vpop.f32.mrf.mxu0
    %v3260 = vadd.f32 0.0, %v3259
    %v3261 = vpop.f32.mrf.mxu0
    %3262 = vdwg.mxu0
    %3263 = vmatpush.bf16.msra.mxu0 0
    %3264 = vmatpush.bf16.msra.mxu0 0
    %3265 = vmatpush.bf16.msra.mxu0 0
    %3266 = vmatpush.bf16.msra.mxu0 0
    %3267 = vmatpush.bf16.msra.mxu0 0
    %3268 = vmatpush.bf16.msra.mxu0 0
    %3269 = vmatpush.bf16.msra.mxu0 0
    %3270 = vmatpush.bf16.msra.mxu0 %v3237
    %3271 = vmatmul.bf16.gmra.mxu0 %v3248
    %v3272 = vpop.f32.mrf.mxu0
    %v3273 = vadd.f32 %v3260, %v3272
    %v3274 = vpop.f32.mrf.mxu0
    %3275 = vdwg.mxu0
    %v3276 = vadd.f32 %v3131, %v3273
    %v3277 = vld [vmem:[%s20] sm:$0x1]
    %v3279 = vperm.slane %v3277, 0
    %v3281 = vmul.f32 %v3276, %v3279
    %v3282 = vld [vmem:[%s21] sm:$0x1]
    %v3284 = vperm.slane %v3282, 0
    %v3286 = vadd.f32 %v3281, %v3284
    %v3287 = vsub.f32 0.0, %v3286
    %v3288 = vmul.f32 %v3287, 1.442695
    %v3289 = vpow.pop %v3288
    %v3290 = vadd.f32 %v3289, 1.0
    %v3291 = vrcp.pop %v3290
    %v3292 = vmul.f32 %v3290, %v3291
    %v3293 = vsub.f32 1.0, %v3292
    %v3294 = vmul.f32 %v3291, %v3293
    %v3295 = vadd.f32 %v3291, %v3294
    %vm3296 = vweird.f32 %v3290
    %vm3297 = vweird.f32 %v3291
    %vm3298 = vmor %vm3296, %vm3297
    %v3299 = vsel %vm3298, %v3291, %v3295
    %v3300 = vand.u32 2147483647, %v3290
    %vm3301 = vcmp.eq.f32.partialorder %v3300, 8.507059e+37
    %v3302 = vand.u32 %v3290, 2147483648
    %v3303 = vor.u32 1.1754944e-38, %v3302
    %v3304 = vsel %vm3301, %v3303, %v3299
    %v3305 = vmul.f32 1.0, %v3304
    %v3306 = vld [vmem:[%s22] sm:$0xff]
    %v3307 = vld [vmem:[%s22 + $0x8] sm:$0xff]
    %v3308 = vld [vmem:[%s22 + $0x10] sm:$0xff]
    %v3309 = vld [vmem:[%s22 + $0x18] sm:$0xff]
    %v3310 = vld [vmem:[%s22 + $0x20] sm:$0xff]
    %v3311 = vld [vmem:[%s22 + $0x28] sm:$0xff]
    %v3312 = vld [vmem:[%s22 + $0x30] sm:$0xff]
    %v3313 = vld [vmem:[%s22 + $0x38] sm:$0xff]
    %v3314 = vld [vmem:[%s22 + $0x40] sm:$0xff]
    %v3315 = vld [vmem:[%s22 + $0x48] sm:$0xff]
    %v3316 = vld [vmem:[%s22 + $0x50] sm:$0xff]
    %v3317 = vld [vmem:[%s22 + $0x58] sm:$0xff]
    %v3318 = vld [vmem:[%s22 + $0x60] sm:$0xff]
    %v3319 = vld [vmem:[%s22 + $0x68] sm:$0xff]
    %v3320 = vld [vmem:[%s22 + $0x70] sm:$0xff]
    %v3321 = vld [vmem:[%s22 + $0x78] sm:$0xff]
    %v3322 = vld [vmem:[%s23] sm:$0x1]
    %v3324 = vperm.slane %v3322, 0
    %3326 = vmatpush.msra.mxu0 %v3321
    %3327 = vmatpush.msra.mxu0 %v3320
    %3328 = vmatpush.msra.mxu0 %v3319
    %3329 = vmatpush.msra.mxu0 %v3318
    %3330 = vmatpush.msra.mxu0 %v3317
    %3331 = vmatpush.msra.mxu0 %v3316
    %3332 = vmatpush.msra.mxu0 %v3315
    %3333 = vmatpush.msra.mxu0 %v3314
    %3334 = vmatpush.msra.mxu0 %v3313
    %3335 = vmatpush.msra.mxu0 %v3312
    %3336 = vmatpush.msra.mxu0 %v3311
    %3337 = vmatpush.msra.mxu0 %v3310
    %3338 = vmatpush.msra.mxu0 %v3309
    %3339 = vmatpush.msra.mxu0 %v3308
    %3340 = vmatpush.msra.mxu0 %v3307
    %3341 = vmatpush.msra.mxu0 %v3306
    %3342 = vmatmul.f32.gmra.mxu0 %v3305
    %v3343 = vpop.f32.mrf.mxu0
    %v3344 = vadd.f32 %v3324, %v3343
    %3345 = vdwg.mxu0
    %vm3346 = vcmask 123904
    %v3347 = vsel %vm3346, %v3344, -inf
    %3348 = vmax.xlane.f32.xlu0 %v3347
    %v3349 = vpop.xlane.xlu0 %3348
    %v3350 = vsub.f32 %v3344, %v3349
    %v3351 = vmul.f32 %v3350, 1.442695
    %v3352 = vpow.pop %v3351
    %v3353 = vsel %vm3346, %v3352, 0.0
    %3354 = vadd.xlane.f32.xlu0 %v3353
    %v3355 = vpop.xlane.xlu0 %3354
    %v3356 = vrcp.pop %v3355
    %v3357 = vmul.f32 %v3355, %v3356
    %v3358 = vsub.f32 1.0, %v3357
    %v3359 = vmul.f32 %v3356, %v3358
    %v3360 = vadd.f32 %v3356, %v3359
    %vm3361 = vweird.f32 %v3355
    %vm3362 = vweird.f32 %v3356
    %vm3363 = vmor %vm3361, %vm3362
    %v3364 = vsel %vm3363, %v3356, %v3360
    %v3365 = vand.u32 2147483647, %v3355
    %vm3366 = vcmp.eq.f32.partialorder %v3365, 8.507059e+37
    %v3367 = vand.u32 %v3355, 2147483648
    %v3368 = vor.u32 1.1754944e-38, %v3367
    %v3369 = vsel %vm3366, %v3368, %v3364
    %v3370 = vmul.f32 %v3352, %v3369
    %v3371 = vld [vmem:[%s24] sm:$0xff]
    %v3372 = vld [vmem:[%s24 + $0x8] sm:$0xff]
    %v3374 = vsel %vm2231, %v3370, 0
    %3376 = vmatpush.msra.mxu0 0.0
    %3377 = vmatpush.msra.mxu0 0.0
    %3378 = vmatpush.msra.mxu0 0.0
    %3379 = vmatpush.msra.mxu0 0.0
    %3380 = vmatpush.msra.mxu0 0.0
    %3381 = vmatpush.msra.mxu0 0.0
    %3382 = vmatpush.msra.mxu0 0.0
    %3383 = vmatpush.msra.mxu0 0.0
    %3384 = vmatpush.msra.mxu0 0.0
    %3385 = vmatpush.msra.mxu0 0.0
    %3386 = vmatpush.msra.mxu0 0.0
    %3387 = vmatpush.msra.mxu0 0.0
    %3388 = vmatpush.msra.mxu0 0.0
    %3389 = vmatpush.msra.mxu0 0.0
    %3390 = vmatpush.msra.mxu0 %v3372
    %3391 = vmatpush.msra.mxu0 %v3371
    %3392 = vmatmul.f32.gmra.mxu0 %v3374
    %v3393 = vpop.f32.mrf.mxu0
    %v3394 = vadd.f32 0.0, %v3393
    %3395 = vdwg.mxu0
    %vm3396 = vcmask 9216
    %3397 = vst.msk [vmem:[#allocation8] sm:$0x3] %vm3396, %v3394
    // Predicated region
    $region114: #{fixation_net_forward.1} parent=1 // pred_check
      _
    $region115: #{fixation_net_forward.1} parent=1 // pred_check_branch
      %3399 = sbr.rel (0) target = $region117
    $region116: #{fixation_net_forward.1} parent=1 // pred_region
      %3401 = vsyncadd [#allocation3], 0
      %s3403 = sshll.u32 [#allocation8], 4
      %s3404 = int_to_ptr.vmem [resolvable:$true] %s3403
      %s3405 = sshll.u32 %s25, 4
      %s3406 = int_to_ptr.hbm [resolvable:$true] %s3405
      %3408 = dma.vmem_to_hbm [thread:$0]  %s3404, 32, %s3406, [#allocation3]
    $region117: #{fixation_net_forward.1} parent=1 // pred_fallthru
      _
    // Predicated region
    $region118: #{fixation_net_forward.1} parent=1 // pred_check
      _
    $region119: #{fixation_net_forward.1} parent=1 // pred_check_branch
      %3410 = sbr.rel (0) target = $region121
    $region120: #{fixation_net_forward.1} parent=1 // pred_region
      %3412 = dma.done [#allocation3], 32
    $region121: #{fixation_net_forward.1} parent=1 // pred_fallthru
      _
    %3413 = vsyncpa [#allocation3], 1
    %3414 = vsyncpa [#allocation4], 1
    %3415 = vsyncpa [#allocation6], 1

</llo_original>
